<compile_context>
chip_gen: v7x
topology: tpu7x:2x2x1
jax: 0.10.0
libtpu: 0.0.40
codegen_flags: <defaults>
</compile_context>

<pallas_src>
import functools

import jax
import jax.numpy as jnp
from jax.experimental import pallas as pl
from jax.experimental.pallas import tpu as pltpu

_BN_EPS = 1e-5


def _resblock_kernel(x_ref, w1_ref, g1_ref, be1_ref, w2_ref, g2_ref, be2_ref,
                     out_ref, pad_ref, *, N, C, H, W):
    """Fused ResBlock forward, fully VMEM-resident.

    x_ref  : (N, C, H, W)      f32  VMEM   input (NCHW, no wrapper transpose)
    w*_ref : (9*C*C,)          f32  SMEM   conv taps flattened as (kh, kw, ci, co)
    g*_ref : (C,)              f32  SMEM   BatchNorm gamma
    be*_ref: (C,)              f32  SMEM   BatchNorm beta
    out_ref: (N, C, H, W)      f32  VMEM   output
    pad_ref: (N, C, H+2, W+2)  f32  VMEM   scratch, reused by both conv layers
    """
    inv_m = 1.0 / (N * H * W)

    def reflect_pad(chan_slabs):
        # Build the 1-pixel reflect-padded activation in VMEM scratch.
        for ci in range(C):
            a = chan_slabs[ci]                                   # (N, 1, H, W)
            pad_ref[:, ci:ci + 1, 1:H + 1, 1:W + 1] = a
            pad_ref[:, ci:ci + 1, 0:1, 1:W + 1] = a[:, :, 1:2, :]
            pad_ref[:, ci:ci + 1, H + 1:H + 2, 1:W + 1] = a[:, :, H - 2:H - 1, :]
        # Columns (including corners) mirrored from the row-padded content.
        pad_ref[:, :, :, 0:1] = pad_ref[:, :, :, 2:3]
        pad_ref[:, :, :, W + 1:W + 2] = pad_ref[:, :, :, W - 1:W]

    def conv_bn_act(chan_slabs, w_ref, g_ref, b_ref, slope):
        """3x3/stride-1 conv (reflect pad) + train-mode BN + optional LeakyReLU.

        Conv is 9*C shifted VMEM reads + 9*C*C broadcast FMAs on the VPU —
        the contraction is far too small (K=9C, N=C) to be worth the MXU.
        """
        reflect_pad(chan_slabs)
        acc = [jnp.zeros((N, 1, H, W), jnp.float32) for _ in range(C)]
        for ci in range(C):
            for dy in range(3):
                for dx in range(3):
                    sl = pad_ref[:, ci:ci + 1, dy:dy + H, dx:dx + W]
                    base = ((dy * 3 + dx) * C + ci) * C
                    for co in range(C):
                        acc[co] = acc[co] + w_ref[base + co] * sl
        outs = []
        for co in range(C):
            c = acc[co]                                          # (N, 1, H, W)
            # Two-pass batch statistics (biased variance, training mode).
            s = jnp.sum(jnp.sum(jnp.sum(c, axis=3, keepdims=True),
                                axis=2, keepdims=True), axis=0, keepdims=True)
            mean = s * inv_m                                     # (1, 1, 1, 1)
            d = c - mean
            v = jnp.sum(jnp.sum(jnp.sum(d * d, axis=3, keepdims=True),
                                axis=2, keepdims=True), axis=0, keepdims=True)
            scale = g_ref[co] * jax.lax.rsqrt(v * inv_m + _BN_EPS)
            y = d * scale + b_ref[co]
            if slope is not None:
                y = jnp.where(y >= 0, y, slope * y)
            outs.append(y)
        return outs

    x_slabs = [x_ref[:, ci:ci + 1, :, :] for ci in range(C)]
    h = conv_bn_act(x_slabs, w1_ref, g1_ref, be1_ref, 0.2)
    y = conv_bn_act(h, w2_ref, g2_ref, be2_ref, None)
    for co in range(C):
        out_ref[:, co:co + 1, :, :] = y[co] + x_slabs[co]        # residual add


def resblock_forward(x_nchw, w1, b1, g1, be1, w2, b2, g2, be2):
    """ResBlock.forward: Conv2dBlock(lrelu)(x) -> Conv2dBlock(none) -> + x."""
    N, C, H, W = x_nchw.shape
    assert H >= 2 and W >= 2
    # Conv bias is exactly cancelled by train-mode BN mean subtraction.
    del b1, b2

    # Working-set budget: the whole batch must fit VMEM for the fused kernel.
    act_bytes = N * C * (H + 2) * (W + 2) * 4
    budget = 56 * 1024 * 1024            # keep headroom under v7x's 64 MiB VMEM
    assert 24 * act_bytes <= budget, (
        "batch too large for fused VMEM-resident ResBlock")
    vmem_limit = int(min(budget, max(16 * 1024 * 1024, 24 * act_bytes)))

    # Taps flattened as (kh, kw, cin, cout) -> scalar SMEM reads in-kernel.
    w1f = w1.reshape(9 * C * C).astype(jnp.float32)
    w2f = w2.reshape(9 * C * C).astype(jnp.float32)

    smem = pl.BlockSpec(memory_space=pltpu.MemorySpace.SMEM)
    out = pl.pallas_call(
        functools.partial(_resblock_kernel, N=N, C=C, H=H, W=W),
        grid=(1,),
        in_specs=[
            pl.BlockSpec((N, C, H, W), lambda i: (0, 0, 0, 0)),
            smem, smem, smem,            # w1, gamma1, beta1
            smem, smem, smem,            # w2, gamma2, beta2
        ],
        out_specs=pl.BlockSpec((N, C, H, W), lambda i: (0, 0, 0, 0)),
        out_shape=jax.ShapeDtypeStruct((N, C, H, W), jnp.float32),
        scratch_shapes=[pltpu.VMEM((N, C, H + 2, W + 2), jnp.float32)],
        compiler_params=pltpu.CompilerParams(
            dimension_semantics=("arbitrary",),
            vmem_limit_bytes=vmem_limit),
    )(x_nchw.astype(jnp.float32),
      w1f, g1.astype(jnp.float32), be1.astype(jnp.float32),
      w2f, g2.astype(jnp.float32), be2.astype(jnp.float32))
    return out


def _resblock_ref(x_nchw, w1, g1, be1, w2, g2, be2):
    """Pure-JAX f32 reference (same math: reflect pad, train-mode BN)."""
    def block(x, w, gamma, beta, act):
        xpad = jnp.pad(x, ((0, 0), (1, 1), (1, 1), (0, 0)), mode="reflect")
        c = jax.lax.conv_general_dilated(
            xpad, w, (1, 1), "VALID",
            dimension_numbers=("NHWC", "HWIO", "NHWC"))
        mean = jnp.mean(c, axis=(0, 1, 2))
        var = jnp.mean((c - mean) ** 2, axis=(0, 1, 2))
        y = (c - mean) * jax.lax.rsqrt(var + _BN_EPS) * gamma + beta
        if act:
            y = jnp.where(y >= 0, y, 0.2 * y)
        return y
    x = jnp.transpose(x_nchw, (0, 2, 3, 1)).astype(jnp.float32)
    h = block(x, w1, g1, be1, True)
    y = block(h, w2, g2, be2, False) + x
    return jnp.transpose(y, (0, 3, 1, 2))


if __name__ == "__main__":
    # Small shapes consistent with ResBlock(dim=4): x is NCHW (2, 4, 16, 16).
    N, C, H, W = 2, 4, 16, 16
    key = jax.random.PRNGKey(0)
    k = jax.random.split(key, 9)

    x = jax.random.normal(k[0], (N, C, H, W), jnp.float32)
    # Deterministic synthetic parameters (HWIO conv weights, BN affine).
    w1 = 0.1 * jax.random.normal(k[1], (3, 3, C, C), jnp.float32)
    b1 = 0.1 * jax.random.normal(k[2], (C,), jnp.float32)
    w2 = 0.1 * jax.random.normal(k[3], (3, 3, C, C), jnp.float32)
    b2 = 0.1 * jax.random.normal(k[4], (C,), jnp.float32)
    g1 = 1.0 + 0.1 * jax.random.normal(k[5], (C,), jnp.float32)
    be1 = 0.1 * jax.random.normal(k[6], (C,), jnp.float32)
    g2 = 1.0 + 0.1 * jax.random.normal(k[7], (C,), jnp.float32)
    be2 = 0.1 * jax.random.normal(k[8], (C,), jnp.float32)

    # TODO(synk): BatchNorm running-stat updates (running_mean/var, momentum)
    # are training bookkeeping, not part of the pure forward output, and are
    # intentionally not modeled.

    out = jax.jit(resblock_forward)(x, w1, b1, g1, be1, w2, b2, g2, be2)
    jax.block_until_ready(out)
    assert out.shape == (N, C, H, W) and out.dtype == jnp.float32

    ref = _resblock_ref(x, w1, g1, be1, w2, g2, be2)
    err = float(jnp.max(jnp.abs(out - ref)))
    assert err < 1e-2, f"max abs error vs reference: {err}"
    print("KERNEL_OK")
</pallas_src>

<mosaic_0001>
module attributes {stable_mosaic.version = 11 : i64} {
  func.func @_resblock_kernel(%arg0: i32, %arg1: memref<2x4x16x16xf32, #tpu.memory_space<vmem>>, %arg2: memref<144xf32, #tpu.memory_space<smem>>, %arg3: memref<4xf32, #tpu.memory_space<smem>>, %arg4: memref<4xf32, #tpu.memory_space<smem>>, %arg5: memref<144xf32, #tpu.memory_space<smem>>, %arg6: memref<4xf32, #tpu.memory_space<smem>>, %arg7: memref<4xf32, #tpu.memory_space<smem>>, %arg8: memref<2x4x16x16xf32, #tpu.memory_space<vmem>>, %arg9: memref<2x4x18x18xf32, #tpu.memory_space<vmem>>) attributes {dimension_semantics = [#tpu.dimension_semantics<arbitrary>], iteration_bounds = array<i64: 1>, scalar_prefetch = 0 : i64, scratch_operands = 1 : i64, tpu.core_type = #tpu.core_type<tc>, window_params = [{pipeline_mode = #tpu.pipeline_mode<synchronous>, transform_indices = @transform_0, window_bounds = array<i64: 2, 4, 16, 16>}, {transform_indices = @transform_1, window_bounds = array<i64: 144>}, {transform_indices = @transform_2, window_bounds = array<i64: 4>}, {transform_indices = @transform_3, window_bounds = array<i64: 4>}, {transform_indices = @transform_4, window_bounds = array<i64: 144>}, {transform_indices = @transform_5, window_bounds = array<i64: 4>}, {transform_indices = @transform_6, window_bounds = array<i64: 4>}, {pipeline_mode = #tpu.pipeline_mode<synchronous>, transform_indices = @transform_7, window_bounds = array<i64: 2, 4, 16, 16>}]} {
    %c0 = arith.constant 0 : index
    %c0_0 = arith.constant 0 : index
    %c0_1 = arith.constant 0 : index
    %c0_2 = arith.constant 0 : index
    %0 = vector.load %arg1[%c0, %c0_0, %c0_1, %c0_2] : memref<2x4x16x16xf32, #tpu.memory_space<vmem>>, vector<2x1x16x16xf32>
    %c0_3 = arith.constant 0 : index
    %c1 = arith.constant 1 : index
    %c0_4 = arith.constant 0 : index
    %c0_5 = arith.constant 0 : index
    %1 = vector.load %arg1[%c0_3, %c1, %c0_4, %c0_5] : memref<2x4x16x16xf32, #tpu.memory_space<vmem>>, vector<2x1x16x16xf32>
    %c0_6 = arith.constant 0 : index
    %c2 = arith.constant 2 : index
    %c0_7 = arith.constant 0 : index
    %c0_8 = arith.constant 0 : index
    %2 = vector.load %arg1[%c0_6, %c2, %c0_7, %c0_8] : memref<2x4x16x16xf32, #tpu.memory_space<vmem>>, vector<2x1x16x16xf32>
    %c0_9 = arith.constant 0 : index
    %c3 = arith.constant 3 : index
    %c0_10 = arith.constant 0 : index
    %c0_11 = arith.constant 0 : index
    %3 = vector.load %arg1[%c0_9, %c3, %c0_10, %c0_11] : memref<2x4x16x16xf32, #tpu.memory_space<vmem>>, vector<2x1x16x16xf32>
    %c0_12 = arith.constant 0 : index
    %c0_13 = arith.constant 0 : index
    %c1_14 = arith.constant 1 : index
    %c1_15 = arith.constant 1 : index
    %4 = vector.load %arg9[%c0_12, %c0_13, %c1_14, %c1_15] : memref<2x4x18x18xf32, #tpu.memory_space<vmem>>, vector<2x1x16x16xf32>
    tpu.vector_store %arg9[%c0_12, %c0_13, %c1_14, %c1_15], %0 {strides = array<i32>} : memref<2x4x18x18xf32, #tpu.memory_space<vmem>>, vector<2x1x16x16xf32>,
    %5 = vector.extract_strided_slice %0 {offsets = [0, 0, 1, 0], sizes = [2, 1, 1, 16], strides = [1, 1, 1, 1]} : vector<2x1x16x16xf32> to vector<2x1x1x16xf32>
    %c0_16 = arith.constant 0 : index
    %c0_17 = arith.constant 0 : index
    %c0_18 = arith.constant 0 : index
    %c1_19 = arith.constant 1 : index
    %6 = vector.load %arg9[%c0_16, %c0_17, %c0_18, %c1_19] : memref<2x4x18x18xf32, #tpu.memory_space<vmem>>, vector<2x1x1x16xf32>
    tpu.vector_store %arg9[%c0_16, %c0_17, %c0_18, %c1_19], %5 {strides = array<i32>} : memref<2x4x18x18xf32, #tpu.memory_space<vmem>>, vector<2x1x1x16xf32>,
    %7 = vector.extract_strided_slice %0 {offsets = [0, 0, 14, 0], sizes = [2, 1, 1, 16], strides = [1, 1, 1, 1]} : vector<2x1x16x16xf32> to vector<2x1x1x16xf32>
    %c0_20 = arith.constant 0 : index
    %c0_21 = arith.constant 0 : index
    %c17 = arith.constant 17 : index
    %c1_22 = arith.constant 1 : index
    %8 = vector.load %arg9[%c0_20, %c0_21, %c17, %c1_22] : memref<2x4x18x18xf32, #tpu.memory_space<vmem>>, vector<2x1x1x16xf32>
    tpu.vector_store %arg9[%c0_20, %c0_21, %c17, %c1_22], %7 {strides = array<i32>} : memref<2x4x18x18xf32, #tpu.memory_space<vmem>>, vector<2x1x1x16xf32>,
    %c0_23 = arith.constant 0 : index
    %c1_24 = arith.constant 1 : index
    %c1_25 = arith.constant 1 : index
    %c1_26 = arith.constant 1 : index
    %9 = vector.load %arg9[%c0_23, %c1_24, %c1_25, %c1_26] : memref<2x4x18x18xf32, #tpu.memory_space<vmem>>, vector<2x1x16x16xf32>
    tpu.vector_store %arg9[%c0_23, %c1_24, %c1_25, %c1_26], %1 {strides = array<i32>} : memref<2x4x18x18xf32, #tpu.memory_space<vmem>>, vector<2x1x16x16xf32>,
    %10 = vector.extract_strided_slice %1 {offsets = [0, 0, 1, 0], sizes = [2, 1, 1, 16], strides = [1, 1, 1, 1]} : vector<2x1x16x16xf32> to vector<2x1x1x16xf32>
    %c0_27 = arith.constant 0 : index
    %c1_28 = arith.constant 1 : index
    %c0_29 = arith.constant 0 : index
    %c1_30 = arith.constant 1 : index
    %11 = vector.load %arg9[%c0_27, %c1_28, %c0_29, %c1_30] : memref<2x4x18x18xf32, #tpu.memory_space<vmem>>, vector<2x1x1x16xf32>
    tpu.vector_store %arg9[%c0_27, %c1_28, %c0_29, %c1_30], %10 {strides = array<i32>} : memref<2x4x18x18xf32, #tpu.memory_space<vmem>>, vector<2x1x1x16xf32>,
    %12 = vector.extract_strided_slice %1 {offsets = [0, 0, 14, 0], sizes = [2, 1, 1, 16], strides = [1, 1, 1, 1]} : vector<2x1x16x16xf32> to vector<2x1x1x16xf32>
    %c0_31 = arith.constant 0 : index
    %c1_32 = arith.constant 1 : index
    %c17_33 = arith.constant 17 : index
    %c1_34 = arith.constant 1 : index
    %13 = vector.load %arg9[%c0_31, %c1_32, %c17_33, %c1_34] : memref<2x4x18x18xf32, #tpu.memory_space<vmem>>, vector<2x1x1x16xf32>
    tpu.vector_store %arg9[%c0_31, %c1_32, %c17_33, %c1_34], %12 {strides = array<i32>} : memref<2x4x18x18xf32, #tpu.memory_space<vmem>>, vector<2x1x1x16xf32>,
    %c0_35 = arith.constant 0 : index
    %c2_36 = arith.constant 2 : index
    %c1_37 = arith.constant 1 : index
    %c1_38 = arith.constant 1 : index
    %14 = vector.load %arg9[%c0_35, %c2_36, %c1_37, %c1_38] : memref<2x4x18x18xf32, #tpu.memory_space<vmem>>, vector<2x1x16x16xf32>
    tpu.vector_store %arg9[%c0_35, %c2_36, %c1_37, %c1_38], %2 {strides = array<i32>} : memref<2x4x18x18xf32, #tpu.memory_space<vmem>>, vector<2x1x16x16xf32>,
    %15 = vector.extract_strided_slice %2 {offsets = [0, 0, 1, 0], sizes = [2, 1, 1, 16], strides = [1, 1, 1, 1]} : vector<2x1x16x16xf32> to vector<2x1x1x16xf32>
    %c0_39 = arith.constant 0 : index
    %c2_40 = arith.constant 2 : index
    %c0_41 = arith.constant 0 : index
    %c1_42 = arith.constant 1 : index
    %16 = vector.load %arg9[%c0_39, %c2_40, %c0_41, %c1_42] : memref<2x4x18x18xf32, #tpu.memory_space<vmem>>, vector<2x1x1x16xf32>
    tpu.vector_store %arg9[%c0_39, %c2_40, %c0_41, %c1_42], %15 {strides = array<i32>} : memref<2x4x18x18xf32, #tpu.memory_space<vmem>>, vector<2x1x1x16xf32>,
    %17 = vector.extract_strided_slice %2 {offsets = [0, 0, 14, 0], sizes = [2, 1, 1, 16], strides = [1, 1, 1, 1]} : vector<2x1x16x16xf32> to vector<2x1x1x16xf32>
    %c0_43 = arith.constant 0 : index
    %c2_44 = arith.constant 2 : index
    %c17_45 = arith.constant 17 : index
    %c1_46 = arith.constant 1 : index
    %18 = vector.load %arg9[%c0_43, %c2_44, %c17_45, %c1_46] : memref<2x4x18x18xf32, #tpu.memory_space<vmem>>, vector<2x1x1x16xf32>
    tpu.vector_store %arg9[%c0_43, %c2_44, %c17_45, %c1_46], %17 {strides = array<i32>} : memref<2x4x18x18xf32, #tpu.memory_space<vmem>>, vector<2x1x1x16xf32>,
    %c0_47 = arith.constant 0 : index
    %c3_48 = arith.constant 3 : index
    %c1_49 = arith.constant 1 : index
    %c1_50 = arith.constant 1 : index
    %19 = vector.load %arg9[%c0_47, %c3_48, %c1_49, %c1_50] : memref<2x4x18x18xf32, #tpu.memory_space<vmem>>, vector<2x1x16x16xf32>
    tpu.vector_store %arg9[%c0_47, %c3_48, %c1_49, %c1_50], %3 {strides = array<i32>} : memref<2x4x18x18xf32, #tpu.memory_space<vmem>>, vector<2x1x16x16xf32>,
    %20 = vector.extract_strided_slice %3 {offsets = [0, 0, 1, 0], sizes = [2, 1, 1, 16], strides = [1, 1, 1, 1]} : vector<2x1x16x16xf32> to vector<2x1x1x16xf32>
    %c0_51 = arith.constant 0 : index
    %c3_52 = arith.constant 3 : index
    %c0_53 = arith.constant 0 : index
    %c1_54 = arith.constant 1 : index
    %21 = vector.load %arg9[%c0_51, %c3_52, %c0_53, %c1_54] : memref<2x4x18x18xf32, #tpu.memory_space<vmem>>, vector<2x1x1x16xf32>
    tpu.vector_store %arg9[%c0_51, %c3_52, %c0_53, %c1_54], %20 {strides = array<i32>} : memref<2x4x18x18xf32, #tpu.memory_space<vmem>>, vector<2x1x1x16xf32>,
    %22 = vector.extract_strided_slice %3 {offsets = [0, 0, 14, 0], sizes = [2, 1, 1, 16], strides = [1, 1, 1, 1]} : vector<2x1x16x16xf32> to vector<2x1x1x16xf32>
    %c0_55 = arith.constant 0 : index
    %c3_56 = arith.constant 3 : index
    %c17_57 = arith.constant 17 : index
    %c1_58 = arith.constant 1 : index
    %23 = vector.load %arg9[%c0_55, %c3_56, %c17_57, %c1_58] : memref<2x4x18x18xf32, #tpu.memory_space<vmem>>, vector<2x1x1x16xf32>
    tpu.vector_store %arg9[%c0_55, %c3_56, %c17_57, %c1_58], %22 {strides = array<i32>} : memref<2x4x18x18xf32, #tpu.memory_space<vmem>>, vector<2x1x1x16xf32>,
    %c0_59 = arith.constant 0 : index
    %c0_60 = arith.constant 0 : index
    %c0_61 = arith.constant 0 : index
    %c2_62 = arith.constant 2 : index
    %24 = vector.load %arg9[%c0_59, %c0_60, %c0_61, %c2_62] : memref<2x4x18x18xf32, #tpu.memory_space<vmem>>, vector<2x4x18x1xf32>
    %c0_63 = arith.constant 0 : index
    %c0_64 = arith.constant 0 : index
    %c0_65 = arith.constant 0 : index
    %c0_66 = arith.constant 0 : index
    %25 = vector.load %arg9[%c0_63, %c0_64, %c0_65, %c0_66] : memref<2x4x18x18xf32, #tpu.memory_space<vmem>>, vector<2x4x18x1xf32>
    tpu.vector_store %arg9[%c0_63, %c0_64, %c0_65, %c0_66], %24 {strides = array<i32>} : memref<2x4x18x18xf32, #tpu.memory_space<vmem>>, vector<2x4x18x1xf32>,
    %c0_67 = arith.constant 0 : index
    %c0_68 = arith.constant 0 : index
    %c0_69 = arith.constant 0 : index
    %c15 = arith.constant 15 : index
    %26 = vector.load %arg9[%c0_67, %c0_68, %c0_69, %c15] : memref<2x4x18x18xf32, #tpu.memory_space<vmem>>, vector<2x4x18x1xf32>
    %c0_70 = arith.constant 0 : index
    %c0_71 = arith.constant 0 : index
    %c0_72 = arith.constant 0 : index
    %c17_73 = arith.constant 17 : index
    %27 = vector.load %arg9[%c0_70, %c0_71, %c0_72, %c17_73] : memref<2x4x18x18xf32, #tpu.memory_space<vmem>>, vector<2x4x18x1xf32>
    tpu.vector_store %arg9[%c0_70, %c0_71, %c0_72, %c17_73], %26 {strides = array<i32>} : memref<2x4x18x18xf32, #tpu.memory_space<vmem>>, vector<2x4x18x1xf32>,
    %cst = arith.constant 0.000000e+00 : f32
    %28 = vector.broadcast %cst : f32 to vector<2x1x16x16xf32>
    %cst_74 = arith.constant 0.000000e+00 : f32
    %29 = vector.broadcast %cst_74 : f32 to vector<2x1x16x16xf32>
    %cst_75 = arith.constant 0.000000e+00 : f32
    %30 = vector.broadcast %cst_75 : f32 to vector<2x1x16x16xf32>
    %cst_76 = arith.constant 0.000000e+00 : f32
    %31 = vector.broadcast %cst_76 : f32 to vector<2x1x16x16xf32>
    %c0_77 = arith.constant 0 : index
    %c0_78 = arith.constant 0 : index
    %c0_79 = arith.constant 0 : index
    %c0_80 = arith.constant 0 : index
    %32 = vector.load %arg9[%c0_77, %c0_78, %c0_79, %c0_80] : memref<2x4x18x18xf32, #tpu.memory_space<vmem>>, vector<2x1x16x16xf32>
    %c0_81 = arith.constant 0 : index
    %33 = memref.load %arg2[%c0_81] : memref<144xf32, #tpu.memory_space<smem>>
    %34 = vector.broadcast %33 : f32 to vector<2x1x16x16xf32>
    %35 = arith.mulf %34, %32 : vector<2x1x16x16xf32>
    %36 = arith.addf %28, %35 : vector<2x1x16x16xf32>
    %c1_82 = arith.constant 1 : index
    %37 = memref.load %arg2[%c1_82] : memref<144xf32, #tpu.memory_space<smem>>
    %38 = vector.broadcast %37 : f32 to vector<2x1x16x16xf32>
    %39 = arith.mulf %38, %32 : vector<2x1x16x16xf32>
    %40 = arith.addf %29, %39 : vector<2x1x16x16xf32>
    %c2_83 = arith.constant 2 : index
    %41 = memref.load %arg2[%c2_83] : memref<144xf32, #tpu.memory_space<smem>>
    %42 = vector.broadcast %41 : f32 to vector<2x1x16x16xf32>
    %43 = arith.mulf %42, %32 : vector<2x1x16x16xf32>
    %44 = arith.addf %30, %43 : vector<2x1x16x16xf32>
    %c3_84 = arith.constant 3 : index
    %45 = memref.load %arg2[%c3_84] : memref<144xf32, #tpu.memory_space<smem>>
    %46 = vector.broadcast %45 : f32 to vector<2x1x16x16xf32>
    %47 = arith.mulf %46, %32 : vector<2x1x16x16xf32>
    %48 = arith.addf %31, %47 : vector<2x1x16x16xf32>
    %c0_85 = arith.constant 0 : index
    %c0_86 = arith.constant 0 : index
    %c0_87 = arith.constant 0 : index
    %c1_88 = arith.constant 1 : index
    %49 = vector.load %arg9[%c0_85, %c0_86, %c0_87, %c1_88] : memref<2x4x18x18xf32, #tpu.memory_space<vmem>>, vector<2x1x16x16xf32>
    %c16 = arith.constant 16 : index
    %50 = memref.load %arg2[%c16] : memref<144xf32, #tpu.memory_space<smem>>
    %51 = vector.broadcast %50 : f32 to vector<2x1x16x16xf32>
    %52 = arith.mulf %51, %49 : vector<2x1x16x16xf32>
    %53 = arith.addf %36, %52 : vector<2x1x16x16xf32>
    %c17_89 = arith.constant 17 : index
    %54 = memref.load %arg2[%c17_89] : memref<144xf32, #tpu.memory_space<smem>>
    %55 = vector.broadcast %54 : f32 to vector<2x1x16x16xf32>
    %56 = arith.mulf %55, %49 : vector<2x1x16x16xf32>
    %57 = arith.addf %40, %56 : vector<2x1x16x16xf32>
    %c18 = arith.constant 18 : index
    %58 = memref.load %arg2[%c18] : memref<144xf32, #tpu.memory_space<smem>>
    %59 = vector.broadcast %58 : f32 to vector<2x1x16x16xf32>
    %60 = arith.mulf %59, %49 : vector<2x1x16x16xf32>
    %61 = arith.addf %44, %60 : vector<2x1x16x16xf32>
    %c19 = arith.constant 19 : index
    %62 = memref.load %arg2[%c19] : memref<144xf32, #tpu.memory_space<smem>>
    %63 = vector.broadcast %62 : f32 to vector<2x1x16x16xf32>
    %64 = arith.mulf %63, %49 : vector<2x1x16x16xf32>
    %65 = arith.addf %48, %64 : vector<2x1x16x16xf32>
    %c0_90 = arith.constant 0 : index
    %c0_91 = arith.constant 0 : index
    %c0_92 = arith.constant 0 : index
    %c2_93 = arith.constant 2 : index
    %66 = vector.load %arg9[%c0_90, %c0_91, %c0_92, %c2_93] : memref<2x4x18x18xf32, #tpu.memory_space<vmem>>, vector<2x1x16x16xf32>
    %c32 = arith.constant 32 : index
    %67 = memref.load %arg2[%c32] : memref<144xf32, #tpu.memory_space<smem>>
    %68 = vector.broadcast %67 : f32 to vector<2x1x16x16xf32>
    %69 = arith.mulf %68, %66 : vector<2x1x16x16xf32>
    %70 = arith.addf %53, %69 : vector<2x1x16x16xf32>
    %c33 = arith.constant 33 : index
    %71 = memref.load %arg2[%c33] : memref<144xf32, #tpu.memory_space<smem>>
    %72 = vector.broadcast %71 : f32 to vector<2x1x16x16xf32>
    %73 = arith.mulf %72, %66 : vector<2x1x16x16xf32>
    %74 = arith.addf %57, %73 : vector<2x1x16x16xf32>
    %c34 = arith.constant 34 : index
    %75 = memref.load %arg2[%c34] : memref<144xf32, #tpu.memory_space<smem>>
    %76 = vector.broadcast %75 : f32 to vector<2x1x16x16xf32>
    %77 = arith.mulf %76, %66 : vector<2x1x16x16xf32>
    %78 = arith.addf %61, %77 : vector<2x1x16x16xf32>
    %c35 = arith.constant 35 : index
    %79 = memref.load %arg2[%c35] : memref<144xf32, #tpu.memory_space<smem>>
    %80 = vector.broadcast %79 : f32 to vector<2x1x16x16xf32>
    %81 = arith.mulf %80, %66 : vector<2x1x16x16xf32>
    %82 = arith.addf %65, %81 : vector<2x1x16x16xf32>
    %c0_94 = arith.constant 0 : index
    %c0_95 = arith.constant 0 : index
    %c1_96 = arith.constant 1 : index
    %c0_97 = arith.constant 0 : index
    %83 = vector.load %arg9[%c0_94, %c0_95, %c1_96, %c0_97] : memref<2x4x18x18xf32, #tpu.memory_space<vmem>>, vector<2x1x16x16xf32>
    %c48 = arith.constant 48 : index
    %84 = memref.load %arg2[%c48] : memref<144xf32, #tpu.memory_space<smem>>
    %85 = vector.broadcast %84 : f32 to vector<2x1x16x16xf32>
    %86 = arith.mulf %85, %83 : vector<2x1x16x16xf32>
    %87 = arith.addf %70, %86 : vector<2x1x16x16xf32>
    %c49 = arith.constant 49 : index
    %88 = memref.load %arg2[%c49] : memref<144xf32, #tpu.memory_space<smem>>
    %89 = vector.broadcast %88 : f32 to vector<2x1x16x16xf32>
    %90 = arith.mulf %89, %83 : vector<2x1x16x16xf32>
    %91 = arith.addf %74, %90 : vector<2x1x16x16xf32>
    %c50 = arith.constant 50 : index
    %92 = memref.load %arg2[%c50] : memref<144xf32, #tpu.memory_space<smem>>
    %93 = vector.broadcast %92 : f32 to vector<2x1x16x16xf32>
    %94 = arith.mulf %93, %83 : vector<2x1x16x16xf32>
    %95 = arith.addf %78, %94 : vector<2x1x16x16xf32>
    %c51 = arith.constant 51 : index
    %96 = memref.load %arg2[%c51] : memref<144xf32, #tpu.memory_space<smem>>
    %97 = vector.broadcast %96 : f32 to vector<2x1x16x16xf32>
    %98 = arith.mulf %97, %83 : vector<2x1x16x16xf32>
    %99 = arith.addf %82, %98 : vector<2x1x16x16xf32>
    %c0_98 = arith.constant 0 : index
    %c0_99 = arith.constant 0 : index
    %c1_100 = arith.constant 1 : index
    %c1_101 = arith.constant 1 : index
    %100 = vector.load %arg9[%c0_98, %c0_99, %c1_100, %c1_101] : memref<2x4x18x18xf32, #tpu.memory_space<vmem>>, vector<2x1x16x16xf32>
    %c64 = arith.constant 64 : index
    %101 = memref.load %arg2[%c64] : memref<144xf32, #tpu.memory_space<smem>>
    %102 = vector.broadcast %101 : f32 to vector<2x1x16x16xf32>
    %103 = arith.mulf %102, %100 : vector<2x1x16x16xf32>
    %104 = arith.addf %87, %103 : vector<2x1x16x16xf32>
    %c65 = arith.constant 65 : index
    %105 = memref.load %arg2[%c65] : memref<144xf32, #tpu.memory_space<smem>>
    %106 = vector.broadcast %105 : f32 to vector<2x1x16x16xf32>
    %107 = arith.mulf %106, %100 : vector<2x1x16x16xf32>
    %108 = arith.addf %91, %107 : vector<2x1x16x16xf32>
    %c66 = arith.constant 66 : index
    %109 = memref.load %arg2[%c66] : memref<144xf32, #tpu.memory_space<smem>>
    %110 = vector.broadcast %109 : f32 to vector<2x1x16x16xf32>
    %111 = arith.mulf %110, %100 : vector<2x1x16x16xf32>
    %112 = arith.addf %95, %111 : vector<2x1x16x16xf32>
    %c67 = arith.constant 67 : index
    %113 = memref.load %arg2[%c67] : memref<144xf32, #tpu.memory_space<smem>>
    %114 = vector.broadcast %113 : f32 to vector<2x1x16x16xf32>
    %115 = arith.mulf %114, %100 : vector<2x1x16x16xf32>
    %116 = arith.addf %99, %115 : vector<2x1x16x16xf32>
    %c0_102 = arith.constant 0 : index
    %c0_103 = arith.constant 0 : index
    %c1_104 = arith.constant 1 : index
    %c2_105 = arith.constant 2 : index
    %117 = vector.load %arg9[%c0_102, %c0_103, %c1_104, %c2_105] : memref<2x4x18x18xf32, #tpu.memory_space<vmem>>, vector<2x1x16x16xf32>
    %c80 = arith.constant 80 : index
    %118 = memref.load %arg2[%c80] : memref<144xf32, #tpu.memory_space<smem>>
    %119 = vector.broadcast %118 : f32 to vector<2x1x16x16xf32>
    %120 = arith.mulf %119, %117 : vector<2x1x16x16xf32>
    %121 = arith.addf %104, %120 : vector<2x1x16x16xf32>
    %c81 = arith.constant 81 : index
    %122 = memref.load %arg2[%c81] : memref<144xf32, #tpu.memory_space<smem>>
    %123 = vector.broadcast %122 : f32 to vector<2x1x16x16xf32>
    %124 = arith.mulf %123, %117 : vector<2x1x16x16xf32>
    %125 = arith.addf %108, %124 : vector<2x1x16x16xf32>
    %c82 = arith.constant 82 : index
    %126 = memref.load %arg2[%c82] : memref<144xf32, #tpu.memory_space<smem>>
    %127 = vector.broadcast %126 : f32 to vector<2x1x16x16xf32>
    %128 = arith.mulf %127, %117 : vector<2x1x16x16xf32>
    %129 = arith.addf %112, %128 : vector<2x1x16x16xf32>
    %c83 = arith.constant 83 : index
    %130 = memref.load %arg2[%c83] : memref<144xf32, #tpu.memory_space<smem>>
    %131 = vector.broadcast %130 : f32 to vector<2x1x16x16xf32>
    %132 = arith.mulf %131, %117 : vector<2x1x16x16xf32>
    %133 = arith.addf %116, %132 : vector<2x1x16x16xf32>
    %c0_106 = arith.constant 0 : index
    %c0_107 = arith.constant 0 : index
    %c2_108 = arith.constant 2 : index
    %c0_109 = arith.constant 0 : index
    %134 = vector.load %arg9[%c0_106, %c0_107, %c2_108, %c0_109] : memref<2x4x18x18xf32, #tpu.memory_space<vmem>>, vector<2x1x16x16xf32>
    %c96 = arith.constant 96 : index
    %135 = memref.load %arg2[%c96] : memref<144xf32, #tpu.memory_space<smem>>
    %136 = vector.broadcast %135 : f32 to vector<2x1x16x16xf32>
    %137 = arith.mulf %136, %134 : vector<2x1x16x16xf32>
    %138 = arith.addf %121, %137 : vector<2x1x16x16xf32>
    %c97 = arith.constant 97 : index
    %139 = memref.load %arg2[%c97] : memref<144xf32, #tpu.memory_space<smem>>
    %140 = vector.broadcast %139 : f32 to vector<2x1x16x16xf32>
    %141 = arith.mulf %140, %134 : vector<2x1x16x16xf32>
    %142 = arith.addf %125, %141 : vector<2x1x16x16xf32>
    %c98 = arith.constant 98 : index
    %143 = memref.load %arg2[%c98] : memref<144xf32, #tpu.memory_space<smem>>
    %144 = vector.broadcast %143 : f32 to vector<2x1x16x16xf32>
    %145 = arith.mulf %144, %134 : vector<2x1x16x16xf32>
    %146 = arith.addf %129, %145 : vector<2x1x16x16xf32>
    %c99 = arith.constant 99 : index
    %147 = memref.load %arg2[%c99] : memref<144xf32, #tpu.memory_space<smem>>
    %148 = vector.broadcast %147 : f32 to vector<2x1x16x16xf32>
    %149 = arith.mulf %148, %134 : vector<2x1x16x16xf32>
    %150 = arith.addf %133, %149 : vector<2x1x16x16xf32>
    %c0_110 = arith.constant 0 : index
    %c0_111 = arith.constant 0 : index
    %c2_112 = arith.constant 2 : index
    %c1_113 = arith.constant 1 : index
    %151 = vector.load %arg9[%c0_110, %c0_111, %c2_112, %c1_113] : memref<2x4x18x18xf32, #tpu.memory_space<vmem>>, vector<2x1x16x16xf32>
    %c112 = arith.constant 112 : index
    %152 = memref.load %arg2[%c112] : memref<144xf32, #tpu.memory_space<smem>>
    %153 = vector.broadcast %152 : f32 to vector<2x1x16x16xf32>
    %154 = arith.mulf %153, %151 : vector<2x1x16x16xf32>
    %155 = arith.addf %138, %154 : vector<2x1x16x16xf32>
    %c113 = arith.constant 113 : index
    %156 = memref.load %arg2[%c113] : memref<144xf32, #tpu.memory_space<smem>>
    %157 = vector.broadcast %156 : f32 to vector<2x1x16x16xf32>
    %158 = arith.mulf %157, %151 : vector<2x1x16x16xf32>
    %159 = arith.addf %142, %158 : vector<2x1x16x16xf32>
    %c114 = arith.constant 114 : index
    %160 = memref.load %arg2[%c114] : memref<144xf32, #tpu.memory_space<smem>>
    %161 = vector.broadcast %160 : f32 to vector<2x1x16x16xf32>
    %162 = arith.mulf %161, %151 : vector<2x1x16x16xf32>
    %163 = arith.addf %146, %162 : vector<2x1x16x16xf32>
    %c115 = arith.constant 115 : index
    %164 = memref.load %arg2[%c115] : memref<144xf32, #tpu.memory_space<smem>>
    %165 = vector.broadcast %164 : f32 to vector<2x1x16x16xf32>
    %166 = arith.mulf %165, %151 : vector<2x1x16x16xf32>
    %167 = arith.addf %150, %166 : vector<2x1x16x16xf32>
    %c0_114 = arith.constant 0 : index
    %c0_115 = arith.constant 0 : index
    %c2_116 = arith.constant 2 : index
    %c2_117 = arith.constant 2 : index
    %168 = vector.load %arg9[%c0_114, %c0_115, %c2_116, %c2_117] : memref<2x4x18x18xf32, #tpu.memory_space<vmem>>, vector<2x1x16x16xf32>
    %c128 = arith.constant 128 : index
    %169 = memref.load %arg2[%c128] : memref<144xf32, #tpu.memory_space<smem>>
    %170 = vector.broadcast %169 : f32 to vector<2x1x16x16xf32>
    %171 = arith.mulf %170, %168 : vector<2x1x16x16xf32>
    %172 = arith.addf %155, %171 : vector<2x1x16x16xf32>
    %c129 = arith.constant 129 : index
    %173 = memref.load %arg2[%c129] : memref<144xf32, #tpu.memory_space<smem>>
    %174 = vector.broadcast %173 : f32 to vector<2x1x16x16xf32>
    %175 = arith.mulf %174, %168 : vector<2x1x16x16xf32>
    %176 = arith.addf %159, %175 : vector<2x1x16x16xf32>
    %c130 = arith.constant 130 : index
    %177 = memref.load %arg2[%c130] : memref<144xf32, #tpu.memory_space<smem>>
    %178 = vector.broadcast %177 : f32 to vector<2x1x16x16xf32>
    %179 = arith.mulf %178, %168 : vector<2x1x16x16xf32>
    %180 = arith.addf %163, %179 : vector<2x1x16x16xf32>
    %c131 = arith.constant 131 : index
    %181 = memref.load %arg2[%c131] : memref<144xf32, #tpu.memory_space<smem>>
    %182 = vector.broadcast %181 : f32 to vector<2x1x16x16xf32>
    %183 = arith.mulf %182, %168 : vector<2x1x16x16xf32>
    %184 = arith.addf %167, %183 : vector<2x1x16x16xf32>
    %c0_118 = arith.constant 0 : index
    %c1_119 = arith.constant 1 : index
    %c0_120 = arith.constant 0 : index
    %c0_121 = arith.constant 0 : index
    %185 = vector.load %arg9[%c0_118, %c1_119, %c0_120, %c0_121] : memref<2x4x18x18xf32, #tpu.memory_space<vmem>>, vector<2x1x16x16xf32>
    %c4 = arith.constant 4 : index
    %186 = memref.load %arg2[%c4] : memref<144xf32, #tpu.memory_space<smem>>
    %187 = vector.broadcast %186 : f32 to vector<2x1x16x16xf32>
    %188 = arith.mulf %187, %185 : vector<2x1x16x16xf32>
    %189 = arith.addf %172, %188 : vector<2x1x16x16xf32>
    %c5 = arith.constant 5 : index
    %190 = memref.load %arg2[%c5] : memref<144xf32, #tpu.memory_space<smem>>
    %191 = vector.broadcast %190 : f32 to vector<2x1x16x16xf32>
    %192 = arith.mulf %191, %185 : vector<2x1x16x16xf32>
    %193 = arith.addf %176, %192 : vector<2x1x16x16xf32>
    %c6 = arith.constant 6 : index
    %194 = memref.load %arg2[%c6] : memref<144xf32, #tpu.memory_space<smem>>
    %195 = vector.broadcast %194 : f32 to vector<2x1x16x16xf32>
    %196 = arith.mulf %195, %185 : vector<2x1x16x16xf32>
    %197 = arith.addf %180, %196 : vector<2x1x16x16xf32>
    %c7 = arith.constant 7 : index
    %198 = memref.load %arg2[%c7] : memref<144xf32, #tpu.memory_space<smem>>
    %199 = vector.broadcast %198 : f32 to vector<2x1x16x16xf32>
    %200 = arith.mulf %199, %185 : vector<2x1x16x16xf32>
    %201 = arith.addf %184, %200 : vector<2x1x16x16xf32>
    %c0_122 = arith.constant 0 : index
    %c1_123 = arith.constant 1 : index
    %c0_124 = arith.constant 0 : index
    %c1_125 = arith.constant 1 : index
    %202 = vector.load %arg9[%c0_122, %c1_123, %c0_124, %c1_125] : memref<2x4x18x18xf32, #tpu.memory_space<vmem>>, vector<2x1x16x16xf32>
    %c20 = arith.constant 20 : index
    %203 = memref.load %arg2[%c20] : memref<144xf32, #tpu.memory_space<smem>>
    %204 = vector.broadcast %203 : f32 to vector<2x1x16x16xf32>
    %205 = arith.mulf %204, %202 : vector<2x1x16x16xf32>
    %206 = arith.addf %189, %205 : vector<2x1x16x16xf32>
    %c21 = arith.constant 21 : index
    %207 = memref.load %arg2[%c21] : memref<144xf32, #tpu.memory_space<smem>>
    %208 = vector.broadcast %207 : f32 to vector<2x1x16x16xf32>
    %209 = arith.mulf %208, %202 : vector<2x1x16x16xf32>
    %210 = arith.addf %193, %209 : vector<2x1x16x16xf32>
    %c22 = arith.constant 22 : index
    %211 = memref.load %arg2[%c22] : memref<144xf32, #tpu.memory_space<smem>>
    %212 = vector.broadcast %211 : f32 to vector<2x1x16x16xf32>
    %213 = arith.mulf %212, %202 : vector<2x1x16x16xf32>
    %214 = arith.addf %197, %213 : vector<2x1x16x16xf32>
    %c23 = arith.constant 23 : index
    %215 = memref.load %arg2[%c23] : memref<144xf32, #tpu.memory_space<smem>>
    %216 = vector.broadcast %215 : f32 to vector<2x1x16x16xf32>
    %217 = arith.mulf %216, %202 : vector<2x1x16x16xf32>
    %218 = arith.addf %201, %217 : vector<2x1x16x16xf32>
    %c0_126 = arith.constant 0 : index
    %c1_127 = arith.constant 1 : index
    %c0_128 = arith.constant 0 : index
    %c2_129 = arith.constant 2 : index
    %219 = vector.load %arg9[%c0_126, %c1_127, %c0_128, %c2_129] : memref<2x4x18x18xf32, #tpu.memory_space<vmem>>, vector<2x1x16x16xf32>
    %c36 = arith.constant 36 : index
    %220 = memref.load %arg2[%c36] : memref<144xf32, #tpu.memory_space<smem>>
    %221 = vector.broadcast %220 : f32 to vector<2x1x16x16xf32>
    %222 = arith.mulf %221, %219 : vector<2x1x16x16xf32>
    %223 = arith.addf %206, %222 : vector<2x1x16x16xf32>
    %c37 = arith.constant 37 : index
    %224 = memref.load %arg2[%c37] : memref<144xf32, #tpu.memory_space<smem>>
    %225 = vector.broadcast %224 : f32 to vector<2x1x16x16xf32>
    %226 = arith.mulf %225, %219 : vector<2x1x16x16xf32>
    %227 = arith.addf %210, %226 : vector<2x1x16x16xf32>
    %c38 = arith.constant 38 : index
    %228 = memref.load %arg2[%c38] : memref<144xf32, #tpu.memory_space<smem>>
    %229 = vector.broadcast %228 : f32 to vector<2x1x16x16xf32>
    %230 = arith.mulf %229, %219 : vector<2x1x16x16xf32>
    %231 = arith.addf %214, %230 : vector<2x1x16x16xf32>
    %c39 = arith.constant 39 : index
    %232 = memref.load %arg2[%c39] : memref<144xf32, #tpu.memory_space<smem>>
    %233 = vector.broadcast %232 : f32 to vector<2x1x16x16xf32>
    %234 = arith.mulf %233, %219 : vector<2x1x16x16xf32>
    %235 = arith.addf %218, %234 : vector<2x1x16x16xf32>
    %c0_130 = arith.constant 0 : index
    %c1_131 = arith.constant 1 : index
    %c1_132 = arith.constant 1 : index
    %c0_133 = arith.constant 0 : index
    %236 = vector.load %arg9[%c0_130, %c1_131, %c1_132, %c0_133] : memref<2x4x18x18xf32, #tpu.memory_space<vmem>>, vector<2x1x16x16xf32>
    %c52 = arith.constant 52 : index
    %237 = memref.load %arg2[%c52] : memref<144xf32, #tpu.memory_space<smem>>
    %238 = vector.broadcast %237 : f32 to vector<2x1x16x16xf32>
    %239 = arith.mulf %238, %236 : vector<2x1x16x16xf32>
    %240 = arith.addf %223, %239 : vector<2x1x16x16xf32>
    %c53 = arith.constant 53 : index
    %241 = memref.load %arg2[%c53] : memref<144xf32, #tpu.memory_space<smem>>
    %242 = vector.broadcast %241 : f32 to vector<2x1x16x16xf32>
    %243 = arith.mulf %242, %236 : vector<2x1x16x16xf32>
    %244 = arith.addf %227, %243 : vector<2x1x16x16xf32>
    %c54 = arith.constant 54 : index
    %245 = memref.load %arg2[%c54] : memref<144xf32, #tpu.memory_space<smem>>
    %246 = vector.broadcast %245 : f32 to vector<2x1x16x16xf32>
    %247 = arith.mulf %246, %236 : vector<2x1x16x16xf32>
    %248 = arith.addf %231, %247 : vector<2x1x16x16xf32>
    %c55 = arith.constant 55 : index
    %249 = memref.load %arg2[%c55] : memref<144xf32, #tpu.memory_space<smem>>
    %250 = vector.broadcast %249 : f32 to vector<2x1x16x16xf32>
    %251 = arith.mulf %250, %236 : vector<2x1x16x16xf32>
    %252 = arith.addf %235, %251 : vector<2x1x16x16xf32>
    %c0_134 = arith.constant 0 : index
    %c1_135 = arith.constant 1 : index
    %c1_136 = arith.constant 1 : index
    %c1_137 = arith.constant 1 : index
    %253 = vector.load %arg9[%c0_134, %c1_135, %c1_136, %c1_137] : memref<2x4x18x18xf32, #tpu.memory_space<vmem>>, vector<2x1x16x16xf32>
    %c68 = arith.constant 68 : index
    %254 = memref.load %arg2[%c68] : memref<144xf32, #tpu.memory_space<smem>>
    %255 = vector.broadcast %254 : f32 to vector<2x1x16x16xf32>
    %256 = arith.mulf %255, %253 : vector<2x1x16x16xf32>
    %257 = arith.addf %240, %256 : vector<2x1x16x16xf32>
    %c69 = arith.constant 69 : index
    %258 = memref.load %arg2[%c69] : memref<144xf32, #tpu.memory_space<smem>>
    %259 = vector.broadcast %258 : f32 to vector<2x1x16x16xf32>
    %260 = arith.mulf %259, %253 : vector<2x1x16x16xf32>
    %261 = arith.addf %244, %260 : vector<2x1x16x16xf32>
    %c70 = arith.constant 70 : index
    %262 = memref.load %arg2[%c70] : memref<144xf32, #tpu.memory_space<smem>>
    %263 = vector.broadcast %262 : f32 to vector<2x1x16x16xf32>
    %264 = arith.mulf %263, %253 : vector<2x1x16x16xf32>
    %265 = arith.addf %248, %264 : vector<2x1x16x16xf32>
    %c71 = arith.constant 71 : index
    %266 = memref.load %arg2[%c71] : memref<144xf32, #tpu.memory_space<smem>>
    %267 = vector.broadcast %266 : f32 to vector<2x1x16x16xf32>
    %268 = arith.mulf %267, %253 : vector<2x1x16x16xf32>
    %269 = arith.addf %252, %268 : vector<2x1x16x16xf32>
    %c0_138 = arith.constant 0 : index
    %c1_139 = arith.constant 1 : index
    %c1_140 = arith.constant 1 : index
    %c2_141 = arith.constant 2 : index
    %270 = vector.load %arg9[%c0_138, %c1_139, %c1_140, %c2_141] : memref<2x4x18x18xf32, #tpu.memory_space<vmem>>, vector<2x1x16x16xf32>
    %c84 = arith.constant 84 : index
    %271 = memref.load %arg2[%c84] : memref<144xf32, #tpu.memory_space<smem>>
    %272 = vector.broadcast %271 : f32 to vector<2x1x16x16xf32>
    %273 = arith.mulf %272, %270 : vector<2x1x16x16xf32>
    %274 = arith.addf %257, %273 : vector<2x1x16x16xf32>
    %c85 = arith.constant 85 : index
    %275 = memref.load %arg2[%c85] : memref<144xf32, #tpu.memory_space<smem>>
    %276 = vector.broadcast %275 : f32 to vector<2x1x16x16xf32>
    %277 = arith.mulf %276, %270 : vector<2x1x16x16xf32>
    %278 = arith.addf %261, %277 : vector<2x1x16x16xf32>
    %c86 = arith.constant 86 : index
    %279 = memref.load %arg2[%c86] : memref<144xf32, #tpu.memory_space<smem>>
    %280 = vector.broadcast %279 : f32 to vector<2x1x16x16xf32>
    %281 = arith.mulf %280, %270 : vector<2x1x16x16xf32>
    %282 = arith.addf %265, %281 : vector<2x1x16x16xf32>
    %c87 = arith.constant 87 : index
    %283 = memref.load %arg2[%c87] : memref<144xf32, #tpu.memory_space<smem>>
    %284 = vector.broadcast %283 : f32 to vector<2x1x16x16xf32>
    %285 = arith.mulf %284, %270 : vector<2x1x16x16xf32>
    %286 = arith.addf %269, %285 : vector<2x1x16x16xf32>
    %c0_142 = arith.constant 0 : index
    %c1_143 = arith.constant 1 : index
    %c2_144 = arith.constant 2 : index
    %c0_145 = arith.constant 0 : index
    %287 = vector.load %arg9[%c0_142, %c1_143, %c2_144, %c0_145] : memref<2x4x18x18xf32, #tpu.memory_space<vmem>>, vector<2x1x16x16xf32>
    %c100 = arith.constant 100 : index
    %288 = memref.load %arg2[%c100] : memref<144xf32, #tpu.memory_space<smem>>
    %289 = vector.broadcast %288 : f32 to vector<2x1x16x16xf32>
    %290 = arith.mulf %289, %287 : vector<2x1x16x16xf32>
    %291 = arith.addf %274, %290 : vector<2x1x16x16xf32>
    %c101 = arith.constant 101 : index
    %292 = memref.load %arg2[%c101] : memref<144xf32, #tpu.memory_space<smem>>
    %293 = vector.broadcast %292 : f32 to vector<2x1x16x16xf32>
    %294 = arith.mulf %293, %287 : vector<2x1x16x16xf32>
    %295 = arith.addf %278, %294 : vector<2x1x16x16xf32>
    %c102 = arith.constant 102 : index
    %296 = memref.load %arg2[%c102] : memref<144xf32, #tpu.memory_space<smem>>
    %297 = vector.broadcast %296 : f32 to vector<2x1x16x16xf32>
    %298 = arith.mulf %297, %287 : vector<2x1x16x16xf32>
    %299 = arith.addf %282, %298 : vector<2x1x16x16xf32>
    %c103 = arith.constant 103 : index
    %300 = memref.load %arg2[%c103] : memref<144xf32, #tpu.memory_space<smem>>
    %301 = vector.broadcast %300 : f32 to vector<2x1x16x16xf32>
    %302 = arith.mulf %301, %287 : vector<2x1x16x16xf32>
    %303 = arith.addf %286, %302 : vector<2x1x16x16xf32>
    %c0_146 = arith.constant 0 : index
    %c1_147 = arith.constant 1 : index
    %c2_148 = arith.constant 2 : index
    %c1_149 = arith.constant 1 : index
    %304 = vector.load %arg9[%c0_146, %c1_147, %c2_148, %c1_149] : memref<2x4x18x18xf32, #tpu.memory_space<vmem>>, vector<2x1x16x16xf32>
    %c116 = arith.constant 116 : index
    %305 = memref.load %arg2[%c116] : memref<144xf32, #tpu.memory_space<smem>>
    %306 = vector.broadcast %305 : f32 to vector<2x1x16x16xf32>
    %307 = arith.mulf %306, %304 : vector<2x1x16x16xf32>
    %308 = arith.addf %291, %307 : vector<2x1x16x16xf32>
    %c117 = arith.constant 117 : index
    %309 = memref.load %arg2[%c117] : memref<144xf32, #tpu.memory_space<smem>>
    %310 = vector.broadcast %309 : f32 to vector<2x1x16x16xf32>
    %311 = arith.mulf %310, %304 : vector<2x1x16x16xf32>
    %312 = arith.addf %295, %311 : vector<2x1x16x16xf32>
    %c118 = arith.constant 118 : index
    %313 = memref.load %arg2[%c118] : memref<144xf32, #tpu.memory_space<smem>>
    %314 = vector.broadcast %313 : f32 to vector<2x1x16x16xf32>
    %315 = arith.mulf %314, %304 : vector<2x1x16x16xf32>
    %316 = arith.addf %299, %315 : vector<2x1x16x16xf32>
    %c119 = arith.constant 119 : index
    %317 = memref.load %arg2[%c119] : memref<144xf32, #tpu.memory_space<smem>>
    %318 = vector.broadcast %317 : f32 to vector<2x1x16x16xf32>
    %319 = arith.mulf %318, %304 : vector<2x1x16x16xf32>
    %320 = arith.addf %303, %319 : vector<2x1x16x16xf32>
    %c0_150 = arith.constant 0 : index
    %c1_151 = arith.constant 1 : index
    %c2_152 = arith.constant 2 : index
    %c2_153 = arith.constant 2 : index
    %321 = vector.load %arg9[%c0_150, %c1_151, %c2_152, %c2_153] : memref<2x4x18x18xf32, #tpu.memory_space<vmem>>, vector<2x1x16x16xf32>
    %c132 = arith.constant 132 : index
    %322 = memref.load %arg2[%c132] : memref<144xf32, #tpu.memory_space<smem>>
    %323 = vector.broadcast %322 : f32 to vector<2x1x16x16xf32>
    %324 = arith.mulf %323, %321 : vector<2x1x16x16xf32>
    %325 = arith.addf %308, %324 : vector<2x1x16x16xf32>
    %c133 = arith.constant 133 : index
    %326 = memref.load %arg2[%c133] : memref<144xf32, #tpu.memory_space<smem>>
    %327 = vector.broadcast %326 : f32 to vector<2x1x16x16xf32>
    %328 = arith.mulf %327, %321 : vector<2x1x16x16xf32>
    %329 = arith.addf %312, %328 : vector<2x1x16x16xf32>
    %c134 = arith.constant 134 : index
    %330 = memref.load %arg2[%c134] : memref<144xf32, #tpu.memory_space<smem>>
    %331 = vector.broadcast %330 : f32 to vector<2x1x16x16xf32>
    %332 = arith.mulf %331, %321 : vector<2x1x16x16xf32>
    %333 = arith.addf %316, %332 : vector<2x1x16x16xf32>
    %c135 = arith.constant 135 : index
    %334 = memref.load %arg2[%c135] : memref<144xf32, #tpu.memory_space<smem>>
    %335 = vector.broadcast %334 : f32 to vector<2x1x16x16xf32>
    %336 = arith.mulf %335, %321 : vector<2x1x16x16xf32>
    %337 = arith.addf %320, %336 : vector<2x1x16x16xf32>
    %c0_154 = arith.constant 0 : index
    %c2_155 = arith.constant 2 : index
    %c0_156 = arith.constant 0 : index
    %c0_157 = arith.constant 0 : index
    %338 = vector.load %arg9[%c0_154, %c2_155, %c0_156, %c0_157] : memref<2x4x18x18xf32, #tpu.memory_space<vmem>>, vector<2x1x16x16xf32>
    %c8 = arith.constant 8 : index
    %339 = memref.load %arg2[%c8] : memref<144xf32, #tpu.memory_space<smem>>
    %340 = vector.broadcast %339 : f32 to vector<2x1x16x16xf32>
    %341 = arith.mulf %340, %338 : vector<2x1x16x16xf32>
    %342 = arith.addf %325, %341 : vector<2x1x16x16xf32>
    %c9 = arith.constant 9 : index
    %343 = memref.load %arg2[%c9] : memref<144xf32, #tpu.memory_space<smem>>
    %344 = vector.broadcast %343 : f32 to vector<2x1x16x16xf32>
    %345 = arith.mulf %344, %338 : vector<2x1x16x16xf32>
    %346 = arith.addf %329, %345 : vector<2x1x16x16xf32>
    %c10 = arith.constant 10 : index
    %347 = memref.load %arg2[%c10] : memref<144xf32, #tpu.memory_space<smem>>
    %348 = vector.broadcast %347 : f32 to vector<2x1x16x16xf32>
    %349 = arith.mulf %348, %338 : vector<2x1x16x16xf32>
    %350 = arith.addf %333, %349 : vector<2x1x16x16xf32>
    %c11 = arith.constant 11 : index
    %351 = memref.load %arg2[%c11] : memref<144xf32, #tpu.memory_space<smem>>
    %352 = vector.broadcast %351 : f32 to vector<2x1x16x16xf32>
    %353 = arith.mulf %352, %338 : vector<2x1x16x16xf32>
    %354 = arith.addf %337, %353 : vector<2x1x16x16xf32>
    %c0_158 = arith.constant 0 : index
    %c2_159 = arith.constant 2 : index
    %c0_160 = arith.constant 0 : index
    %c1_161 = arith.constant 1 : index
    %355 = vector.load %arg9[%c0_158, %c2_159, %c0_160, %c1_161] : memref<2x4x18x18xf32, #tpu.memory_space<vmem>>, vector<2x1x16x16xf32>
    %c24 = arith.constant 24 : index
    %356 = memref.load %arg2[%c24] : memref<144xf32, #tpu.memory_space<smem>>
    %357 = vector.broadcast %356 : f32 to vector<2x1x16x16xf32>
    %358 = arith.mulf %357, %355 : vector<2x1x16x16xf32>
    %359 = arith.addf %342, %358 : vector<2x1x16x16xf32>
    %c25 = arith.constant 25 : index
    %360 = memref.load %arg2[%c25] : memref<144xf32, #tpu.memory_space<smem>>
    %361 = vector.broadcast %360 : f32 to vector<2x1x16x16xf32>
    %362 = arith.mulf %361, %355 : vector<2x1x16x16xf32>
    %363 = arith.addf %346, %362 : vector<2x1x16x16xf32>
    %c26 = arith.constant 26 : index
    %364 = memref.load %arg2[%c26] : memref<144xf32, #tpu.memory_space<smem>>
    %365 = vector.broadcast %364 : f32 to vector<2x1x16x16xf32>
    %366 = arith.mulf %365, %355 : vector<2x1x16x16xf32>
    %367 = arith.addf %350, %366 : vector<2x1x16x16xf32>
    %c27 = arith.constant 27 : index
    %368 = memref.load %arg2[%c27] : memref<144xf32, #tpu.memory_space<smem>>
    %369 = vector.broadcast %368 : f32 to vector<2x1x16x16xf32>
    %370 = arith.mulf %369, %355 : vector<2x1x16x16xf32>
    %371 = arith.addf %354, %370 : vector<2x1x16x16xf32>
    %c0_162 = arith.constant 0 : index
    %c2_163 = arith.constant 2 : index
    %c0_164 = arith.constant 0 : index
    %c2_165 = arith.constant 2 : index
    %372 = vector.load %arg9[%c0_162, %c2_163, %c0_164, %c2_165] : memref<2x4x18x18xf32, #tpu.memory_space<vmem>>, vector<2x1x16x16xf32>
    %c40 = arith.constant 40 : index
    %373 = memref.load %arg2[%c40] : memref<144xf32, #tpu.memory_space<smem>>
    %374 = vector.broadcast %373 : f32 to vector<2x1x16x16xf32>
    %375 = arith.mulf %374, %372 : vector<2x1x16x16xf32>
    %376 = arith.addf %359, %375 : vector<2x1x16x16xf32>
    %c41 = arith.constant 41 : index
    %377 = memref.load %arg2[%c41] : memref<144xf32, #tpu.memory_space<smem>>
    %378 = vector.broadcast %377 : f32 to vector<2x1x16x16xf32>
    %379 = arith.mulf %378, %372 : vector<2x1x16x16xf32>
    %380 = arith.addf %363, %379 : vector<2x1x16x16xf32>
    %c42 = arith.constant 42 : index
    %381 = memref.load %arg2[%c42] : memref<144xf32, #tpu.memory_space<smem>>
    %382 = vector.broadcast %381 : f32 to vector<2x1x16x16xf32>
    %383 = arith.mulf %382, %372 : vector<2x1x16x16xf32>
    %384 = arith.addf %367, %383 : vector<2x1x16x16xf32>
    %c43 = arith.constant 43 : index
    %385 = memref.load %arg2[%c43] : memref<144xf32, #tpu.memory_space<smem>>
    %386 = vector.broadcast %385 : f32 to vector<2x1x16x16xf32>
    %387 = arith.mulf %386, %372 : vector<2x1x16x16xf32>
    %388 = arith.addf %371, %387 : vector<2x1x16x16xf32>
    %c0_166 = arith.constant 0 : index
    %c2_167 = arith.constant 2 : index
    %c1_168 = arith.constant 1 : index
    %c0_169 = arith.constant 0 : index
    %389 = vector.load %arg9[%c0_166, %c2_167, %c1_168, %c0_169] : memref<2x4x18x18xf32, #tpu.memory_space<vmem>>, vector<2x1x16x16xf32>
    %c56 = arith.constant 56 : index
    %390 = memref.load %arg2[%c56] : memref<144xf32, #tpu.memory_space<smem>>
    %391 = vector.broadcast %390 : f32 to vector<2x1x16x16xf32>
    %392 = arith.mulf %391, %389 : vector<2x1x16x16xf32>
    %393 = arith.addf %376, %392 : vector<2x1x16x16xf32>
    %c57 = arith.constant 57 : index
    %394 = memref.load %arg2[%c57] : memref<144xf32, #tpu.memory_space<smem>>
    %395 = vector.broadcast %394 : f32 to vector<2x1x16x16xf32>
    %396 = arith.mulf %395, %389 : vector<2x1x16x16xf32>
    %397 = arith.addf %380, %396 : vector<2x1x16x16xf32>
    %c58 = arith.constant 58 : index
    %398 = memref.load %arg2[%c58] : memref<144xf32, #tpu.memory_space<smem>>
    %399 = vector.broadcast %398 : f32 to vector<2x1x16x16xf32>
    %400 = arith.mulf %399, %389 : vector<2x1x16x16xf32>
    %401 = arith.addf %384, %400 : vector<2x1x16x16xf32>
    %c59 = arith.constant 59 : index
    %402 = memref.load %arg2[%c59] : memref<144xf32, #tpu.memory_space<smem>>
    %403 = vector.broadcast %402 : f32 to vector<2x1x16x16xf32>
    %404 = arith.mulf %403, %389 : vector<2x1x16x16xf32>
    %405 = arith.addf %388, %404 : vector<2x1x16x16xf32>
    %c0_170 = arith.constant 0 : index
    %c2_171 = arith.constant 2 : index
    %c1_172 = arith.constant 1 : index
    %c1_173 = arith.constant 1 : index
    %406 = vector.load %arg9[%c0_170, %c2_171, %c1_172, %c1_173] : memref<2x4x18x18xf32, #tpu.memory_space<vmem>>, vector<2x1x16x16xf32>
    %c72 = arith.constant 72 : index
    %407 = memref.load %arg2[%c72] : memref<144xf32, #tpu.memory_space<smem>>
    %408 = vector.broadcast %407 : f32 to vector<2x1x16x16xf32>
    %409 = arith.mulf %408, %406 : vector<2x1x16x16xf32>
    %410 = arith.addf %393, %409 : vector<2x1x16x16xf32>
    %c73 = arith.constant 73 : index
    %411 = memref.load %arg2[%c73] : memref<144xf32, #tpu.memory_space<smem>>
    %412 = vector.broadcast %411 : f32 to vector<2x1x16x16xf32>
    %413 = arith.mulf %412, %406 : vector<2x1x16x16xf32>
    %414 = arith.addf %397, %413 : vector<2x1x16x16xf32>
    %c74 = arith.constant 74 : index
    %415 = memref.load %arg2[%c74] : memref<144xf32, #tpu.memory_space<smem>>
    %416 = vector.broadcast %415 : f32 to vector<2x1x16x16xf32>
    %417 = arith.mulf %416, %406 : vector<2x1x16x16xf32>
    %418 = arith.addf %401, %417 : vector<2x1x16x16xf32>
    %c75 = arith.constant 75 : index
    %419 = memref.load %arg2[%c75] : memref<144xf32, #tpu.memory_space<smem>>
    %420 = vector.broadcast %419 : f32 to vector<2x1x16x16xf32>
    %421 = arith.mulf %420, %406 : vector<2x1x16x16xf32>
    %422 = arith.addf %405, %421 : vector<2x1x16x16xf32>
    %c0_174 = arith.constant 0 : index
    %c2_175 = arith.constant 2 : index
    %c1_176 = arith.constant 1 : index
    %c2_177 = arith.constant 2 : index
    %423 = vector.load %arg9[%c0_174, %c2_175, %c1_176, %c2_177] : memref<2x4x18x18xf32, #tpu.memory_space<vmem>>, vector<2x1x16x16xf32>
    %c88 = arith.constant 88 : index
    %424 = memref.load %arg2[%c88] : memref<144xf32, #tpu.memory_space<smem>>
    %425 = vector.broadcast %424 : f32 to vector<2x1x16x16xf32>
    %426 = arith.mulf %425, %423 : vector<2x1x16x16xf32>
    %427 = arith.addf %410, %426 : vector<2x1x16x16xf32>
    %c89 = arith.constant 89 : index
    %428 = memref.load %arg2[%c89] : memref<144xf32, #tpu.memory_space<smem>>
    %429 = vector.broadcast %428 : f32 to vector<2x1x16x16xf32>
    %430 = arith.mulf %429, %423 : vector<2x1x16x16xf32>
    %431 = arith.addf %414, %430 : vector<2x1x16x16xf32>
    %c90 = arith.constant 90 : index
    %432 = memref.load %arg2[%c90] : memref<144xf32, #tpu.memory_space<smem>>
    %433 = vector.broadcast %432 : f32 to vector<2x1x16x16xf32>
    %434 = arith.mulf %433, %423 : vector<2x1x16x16xf32>
    %435 = arith.addf %418, %434 : vector<2x1x16x16xf32>
    %c91 = arith.constant 91 : index
    %436 = memref.load %arg2[%c91] : memref<144xf32, #tpu.memory_space<smem>>
    %437 = vector.broadcast %436 : f32 to vector<2x1x16x16xf32>
    %438 = arith.mulf %437, %423 : vector<2x1x16x16xf32>
    %439 = arith.addf %422, %438 : vector<2x1x16x16xf32>
    %c0_178 = arith.constant 0 : index
    %c2_179 = arith.constant 2 : index
    %c2_180 = arith.constant 2 : index
    %c0_181 = arith.constant 0 : index
    %440 = vector.load %arg9[%c0_178, %c2_179, %c2_180, %c0_181] : memref<2x4x18x18xf32, #tpu.memory_space<vmem>>, vector<2x1x16x16xf32>
    %c104 = arith.constant 104 : index
    %441 = memref.load %arg2[%c104] : memref<144xf32, #tpu.memory_space<smem>>
    %442 = vector.broadcast %441 : f32 to vector<2x1x16x16xf32>
    %443 = arith.mulf %442, %440 : vector<2x1x16x16xf32>
    %444 = arith.addf %427, %443 : vector<2x1x16x16xf32>
    %c105 = arith.constant 105 : index
    %445 = memref.load %arg2[%c105] : memref<144xf32, #tpu.memory_space<smem>>
    %446 = vector.broadcast %445 : f32 to vector<2x1x16x16xf32>
    %447 = arith.mulf %446, %440 : vector<2x1x16x16xf32>
    %448 = arith.addf %431, %447 : vector<2x1x16x16xf32>
    %c106 = arith.constant 106 : index
    %449 = memref.load %arg2[%c106] : memref<144xf32, #tpu.memory_space<smem>>
    %450 = vector.broadcast %449 : f32 to vector<2x1x16x16xf32>
    %451 = arith.mulf %450, %440 : vector<2x1x16x16xf32>
    %452 = arith.addf %435, %451 : vector<2x1x16x16xf32>
    %c107 = arith.constant 107 : index
    %453 = memref.load %arg2[%c107] : memref<144xf32, #tpu.memory_space<smem>>
    %454 = vector.broadcast %453 : f32 to vector<2x1x16x16xf32>
    %455 = arith.mulf %454, %440 : vector<2x1x16x16xf32>
    %456 = arith.addf %439, %455 : vector<2x1x16x16xf32>
    %c0_182 = arith.constant 0 : index
    %c2_183 = arith.constant 2 : index
    %c2_184 = arith.constant 2 : index
    %c1_185 = arith.constant 1 : index
    %457 = vector.load %arg9[%c0_182, %c2_183, %c2_184, %c1_185] : memref<2x4x18x18xf32, #tpu.memory_space<vmem>>, vector<2x1x16x16xf32>
    %c120 = arith.constant 120 : index
    %458 = memref.load %arg2[%c120] : memref<144xf32, #tpu.memory_space<smem>>
    %459 = vector.broadcast %458 : f32 to vector<2x1x16x16xf32>
    %460 = arith.mulf %459, %457 : vector<2x1x16x16xf32>
    %461 = arith.addf %444, %460 : vector<2x1x16x16xf32>
    %c121 = arith.constant 121 : index
    %462 = memref.load %arg2[%c121] : memref<144xf32, #tpu.memory_space<smem>>
    %463 = vector.broadcast %462 : f32 to vector<2x1x16x16xf32>
    %464 = arith.mulf %463, %457 : vector<2x1x16x16xf32>
    %465 = arith.addf %448, %464 : vector<2x1x16x16xf32>
    %c122 = arith.constant 122 : index
    %466 = memref.load %arg2[%c122] : memref<144xf32, #tpu.memory_space<smem>>
    %467 = vector.broadcast %466 : f32 to vector<2x1x16x16xf32>
    %468 = arith.mulf %467, %457 : vector<2x1x16x16xf32>
    %469 = arith.addf %452, %468 : vector<2x1x16x16xf32>
    %c123 = arith.constant 123 : index
    %470 = memref.load %arg2[%c123] : memref<144xf32, #tpu.memory_space<smem>>
    %471 = vector.broadcast %470 : f32 to vector<2x1x16x16xf32>
    %472 = arith.mulf %471, %457 : vector<2x1x16x16xf32>
    %473 = arith.addf %456, %472 : vector<2x1x16x16xf32>
    %c0_186 = arith.constant 0 : index
    %c2_187 = arith.constant 2 : index
    %c2_188 = arith.constant 2 : index
    %c2_189 = arith.constant 2 : index
    %474 = vector.load %arg9[%c0_186, %c2_187, %c2_188, %c2_189] : memref<2x4x18x18xf32, #tpu.memory_space<vmem>>, vector<2x1x16x16xf32>
    %c136 = arith.constant 136 : index
    %475 = memref.load %arg2[%c136] : memref<144xf32, #tpu.memory_space<smem>>
    %476 = vector.broadcast %475 : f32 to vector<2x1x16x16xf32>
    %477 = arith.mulf %476, %474 : vector<2x1x16x16xf32>
    %478 = arith.addf %461, %477 : vector<2x1x16x16xf32>
    %c137 = arith.constant 137 : index
    %479 = memref.load %arg2[%c137] : memref<144xf32, #tpu.memory_space<smem>>
    %480 = vector.broadcast %479 : f32 to vector<2x1x16x16xf32>
    %481 = arith.mulf %480, %474 : vector<2x1x16x16xf32>
    %482 = arith.addf %465, %481 : vector<2x1x16x16xf32>
    %c138 = arith.constant 138 : index
    %483 = memref.load %arg2[%c138] : memref<144xf32, #tpu.memory_space<smem>>
    %484 = vector.broadcast %483 : f32 to vector<2x1x16x16xf32>
    %485 = arith.mulf %484, %474 : vector<2x1x16x16xf32>
    %486 = arith.addf %469, %485 : vector<2x1x16x16xf32>
    %c139 = arith.constant 139 : index
    %487 = memref.load %arg2[%c139] : memref<144xf32, #tpu.memory_space<smem>>
    %488 = vector.broadcast %487 : f32 to vector<2x1x16x16xf32>
    %489 = arith.mulf %488, %474 : vector<2x1x16x16xf32>
    %490 = arith.addf %473, %489 : vector<2x1x16x16xf32>
    %c0_190 = arith.constant 0 : index
    %c3_191 = arith.constant 3 : index
    %c0_192 = arith.constant 0 : index
    %c0_193 = arith.constant 0 : index
    %491 = vector.load %arg9[%c0_190, %c3_191, %c0_192, %c0_193] : memref<2x4x18x18xf32, #tpu.memory_space<vmem>>, vector<2x1x16x16xf32>
    %c12 = arith.constant 12 : index
    %492 = memref.load %arg2[%c12] : memref<144xf32, #tpu.memory_space<smem>>
    %493 = vector.broadcast %492 : f32 to vector<2x1x16x16xf32>
    %494 = arith.mulf %493, %491 : vector<2x1x16x16xf32>
    %495 = arith.addf %478, %494 : vector<2x1x16x16xf32>
    %c13 = arith.constant 13 : index
    %496 = memref.load %arg2[%c13] : memref<144xf32, #tpu.memory_space<smem>>
    %497 = vector.broadcast %496 : f32 to vector<2x1x16x16xf32>
    %498 = arith.mulf %497, %491 : vector<2x1x16x16xf32>
    %499 = arith.addf %482, %498 : vector<2x1x16x16xf32>
    %c14 = arith.constant 14 : index
    %500 = memref.load %arg2[%c14] : memref<144xf32, #tpu.memory_space<smem>>
    %501 = vector.broadcast %500 : f32 to vector<2x1x16x16xf32>
    %502 = arith.mulf %501, %491 : vector<2x1x16x16xf32>
    %503 = arith.addf %486, %502 : vector<2x1x16x16xf32>
    %c15_194 = arith.constant 15 : index
    %504 = memref.load %arg2[%c15_194] : memref<144xf32, #tpu.memory_space<smem>>
    %505 = vector.broadcast %504 : f32 to vector<2x1x16x16xf32>
    %506 = arith.mulf %505, %491 : vector<2x1x16x16xf32>
    %507 = arith.addf %490, %506 : vector<2x1x16x16xf32>
    %c0_195 = arith.constant 0 : index
    %c3_196 = arith.constant 3 : index
    %c0_197 = arith.constant 0 : index
    %c1_198 = arith.constant 1 : index
    %508 = vector.load %arg9[%c0_195, %c3_196, %c0_197, %c1_198] : memref<2x4x18x18xf32, #tpu.memory_space<vmem>>, vector<2x1x16x16xf32>
    %c28 = arith.constant 28 : index
    %509 = memref.load %arg2[%c28] : memref<144xf32, #tpu.memory_space<smem>>
    %510 = vector.broadcast %509 : f32 to vector<2x1x16x16xf32>
    %511 = arith.mulf %510, %508 : vector<2x1x16x16xf32>
    %512 = arith.addf %495, %511 : vector<2x1x16x16xf32>
    %c29 = arith.constant 29 : index
    %513 = memref.load %arg2[%c29] : memref<144xf32, #tpu.memory_space<smem>>
    %514 = vector.broadcast %513 : f32 to vector<2x1x16x16xf32>
    %515 = arith.mulf %514, %508 : vector<2x1x16x16xf32>
    %516 = arith.addf %499, %515 : vector<2x1x16x16xf32>
    %c30 = arith.constant 30 : index
    %517 = memref.load %arg2[%c30] : memref<144xf32, #tpu.memory_space<smem>>
    %518 = vector.broadcast %517 : f32 to vector<2x1x16x16xf32>
    %519 = arith.mulf %518, %508 : vector<2x1x16x16xf32>
    %520 = arith.addf %503, %519 : vector<2x1x16x16xf32>
    %c31 = arith.constant 31 : index
    %521 = memref.load %arg2[%c31] : memref<144xf32, #tpu.memory_space<smem>>
    %522 = vector.broadcast %521 : f32 to vector<2x1x16x16xf32>
    %523 = arith.mulf %522, %508 : vector<2x1x16x16xf32>
    %524 = arith.addf %507, %523 : vector<2x1x16x16xf32>
    %c0_199 = arith.constant 0 : index
    %c3_200 = arith.constant 3 : index
    %c0_201 = arith.constant 0 : index
    %c2_202 = arith.constant 2 : index
    %525 = vector.load %arg9[%c0_199, %c3_200, %c0_201, %c2_202] : memref<2x4x18x18xf32, #tpu.memory_space<vmem>>, vector<2x1x16x16xf32>
    %c44 = arith.constant 44 : index
    %526 = memref.load %arg2[%c44] : memref<144xf32, #tpu.memory_space<smem>>
    %527 = vector.broadcast %526 : f32 to vector<2x1x16x16xf32>
    %528 = arith.mulf %527, %525 : vector<2x1x16x16xf32>
    %529 = arith.addf %512, %528 : vector<2x1x16x16xf32>
    %c45 = arith.constant 45 : index
    %530 = memref.load %arg2[%c45] : memref<144xf32, #tpu.memory_space<smem>>
    %531 = vector.broadcast %530 : f32 to vector<2x1x16x16xf32>
    %532 = arith.mulf %531, %525 : vector<2x1x16x16xf32>
    %533 = arith.addf %516, %532 : vector<2x1x16x16xf32>
    %c46 = arith.constant 46 : index
    %534 = memref.load %arg2[%c46] : memref<144xf32, #tpu.memory_space<smem>>
    %535 = vector.broadcast %534 : f32 to vector<2x1x16x16xf32>
    %536 = arith.mulf %535, %525 : vector<2x1x16x16xf32>
    %537 = arith.addf %520, %536 : vector<2x1x16x16xf32>
    %c47 = arith.constant 47 : index
    %538 = memref.load %arg2[%c47] : memref<144xf32, #tpu.memory_space<smem>>
    %539 = vector.broadcast %538 : f32 to vector<2x1x16x16xf32>
    %540 = arith.mulf %539, %525 : vector<2x1x16x16xf32>
    %541 = arith.addf %524, %540 : vector<2x1x16x16xf32>
    %c0_203 = arith.constant 0 : index
    %c3_204 = arith.constant 3 : index
    %c1_205 = arith.constant 1 : index
    %c0_206 = arith.constant 0 : index
    %542 = vector.load %arg9[%c0_203, %c3_204, %c1_205, %c0_206] : memref<2x4x18x18xf32, #tpu.memory_space<vmem>>, vector<2x1x16x16xf32>
    %c60 = arith.constant 60 : index
    %543 = memref.load %arg2[%c60] : memref<144xf32, #tpu.memory_space<smem>>
    %544 = vector.broadcast %543 : f32 to vector<2x1x16x16xf32>
    %545 = arith.mulf %544, %542 : vector<2x1x16x16xf32>
    %546 = arith.addf %529, %545 : vector<2x1x16x16xf32>
    %c61 = arith.constant 61 : index
    %547 = memref.load %arg2[%c61] : memref<144xf32, #tpu.memory_space<smem>>
    %548 = vector.broadcast %547 : f32 to vector<2x1x16x16xf32>
    %549 = arith.mulf %548, %542 : vector<2x1x16x16xf32>
    %550 = arith.addf %533, %549 : vector<2x1x16x16xf32>
    %c62 = arith.constant 62 : index
    %551 = memref.load %arg2[%c62] : memref<144xf32, #tpu.memory_space<smem>>
    %552 = vector.broadcast %551 : f32 to vector<2x1x16x16xf32>
    %553 = arith.mulf %552, %542 : vector<2x1x16x16xf32>
    %554 = arith.addf %537, %553 : vector<2x1x16x16xf32>
    %c63 = arith.constant 63 : index
    %555 = memref.load %arg2[%c63] : memref<144xf32, #tpu.memory_space<smem>>
    %556 = vector.broadcast %555 : f32 to vector<2x1x16x16xf32>
    %557 = arith.mulf %556, %542 : vector<2x1x16x16xf32>
    %558 = arith.addf %541, %557 : vector<2x1x16x16xf32>
    %c0_207 = arith.constant 0 : index
    %c3_208 = arith.constant 3 : index
    %c1_209 = arith.constant 1 : index
    %c1_210 = arith.constant 1 : index
    %559 = vector.load %arg9[%c0_207, %c3_208, %c1_209, %c1_210] : memref<2x4x18x18xf32, #tpu.memory_space<vmem>>, vector<2x1x16x16xf32>
    %c76 = arith.constant 76 : index
    %560 = memref.load %arg2[%c76] : memref<144xf32, #tpu.memory_space<smem>>
    %561 = vector.broadcast %560 : f32 to vector<2x1x16x16xf32>
    %562 = arith.mulf %561, %559 : vector<2x1x16x16xf32>
    %563 = arith.addf %546, %562 : vector<2x1x16x16xf32>
    %c77 = arith.constant 77 : index
    %564 = memref.load %arg2[%c77] : memref<144xf32, #tpu.memory_space<smem>>
    %565 = vector.broadcast %564 : f32 to vector<2x1x16x16xf32>
    %566 = arith.mulf %565, %559 : vector<2x1x16x16xf32>
    %567 = arith.addf %550, %566 : vector<2x1x16x16xf32>
    %c78 = arith.constant 78 : index
    %568 = memref.load %arg2[%c78] : memref<144xf32, #tpu.memory_space<smem>>
    %569 = vector.broadcast %568 : f32 to vector<2x1x16x16xf32>
    %570 = arith.mulf %569, %559 : vector<2x1x16x16xf32>
    %571 = arith.addf %554, %570 : vector<2x1x16x16xf32>
    %c79 = arith.constant 79 : index
    %572 = memref.load %arg2[%c79] : memref<144xf32, #tpu.memory_space<smem>>
    %573 = vector.broadcast %572 : f32 to vector<2x1x16x16xf32>
    %574 = arith.mulf %573, %559 : vector<2x1x16x16xf32>
    %575 = arith.addf %558, %574 : vector<2x1x16x16xf32>
    %c0_211 = arith.constant 0 : index
    %c3_212 = arith.constant 3 : index
    %c1_213 = arith.constant 1 : index
    %c2_214 = arith.constant 2 : index
    %576 = vector.load %arg9[%c0_211, %c3_212, %c1_213, %c2_214] : memref<2x4x18x18xf32, #tpu.memory_space<vmem>>, vector<2x1x16x16xf32>
    %c92 = arith.constant 92 : index
    %577 = memref.load %arg2[%c92] : memref<144xf32, #tpu.memory_space<smem>>
    %578 = vector.broadcast %577 : f32 to vector<2x1x16x16xf32>
    %579 = arith.mulf %578, %576 : vector<2x1x16x16xf32>
    %580 = arith.addf %563, %579 : vector<2x1x16x16xf32>
    %c93 = arith.constant 93 : index
    %581 = memref.load %arg2[%c93] : memref<144xf32, #tpu.memory_space<smem>>
    %582 = vector.broadcast %581 : f32 to vector<2x1x16x16xf32>
    %583 = arith.mulf %582, %576 : vector<2x1x16x16xf32>
    %584 = arith.addf %567, %583 : vector<2x1x16x16xf32>
    %c94 = arith.constant 94 : index
    %585 = memref.load %arg2[%c94] : memref<144xf32, #tpu.memory_space<smem>>
    %586 = vector.broadcast %585 : f32 to vector<2x1x16x16xf32>
    %587 = arith.mulf %586, %576 : vector<2x1x16x16xf32>
    %588 = arith.addf %571, %587 : vector<2x1x16x16xf32>
    %c95 = arith.constant 95 : index
    %589 = memref.load %arg2[%c95] : memref<144xf32, #tpu.memory_space<smem>>
    %590 = vector.broadcast %589 : f32 to vector<2x1x16x16xf32>
    %591 = arith.mulf %590, %576 : vector<2x1x16x16xf32>
    %592 = arith.addf %575, %591 : vector<2x1x16x16xf32>
    %c0_215 = arith.constant 0 : index
    %c3_216 = arith.constant 3 : index
    %c2_217 = arith.constant 2 : index
    %c0_218 = arith.constant 0 : index
    %593 = vector.load %arg9[%c0_215, %c3_216, %c2_217, %c0_218] : memref<2x4x18x18xf32, #tpu.memory_space<vmem>>, vector<2x1x16x16xf32>
    %c108 = arith.constant 108 : index
    %594 = memref.load %arg2[%c108] : memref<144xf32, #tpu.memory_space<smem>>
    %595 = vector.broadcast %594 : f32 to vector<2x1x16x16xf32>
    %596 = arith.mulf %595, %593 : vector<2x1x16x16xf32>
    %597 = arith.addf %580, %596 : vector<2x1x16x16xf32>
    %c109 = arith.constant 109 : index
    %598 = memref.load %arg2[%c109] : memref<144xf32, #tpu.memory_space<smem>>
    %599 = vector.broadcast %598 : f32 to vector<2x1x16x16xf32>
    %600 = arith.mulf %599, %593 : vector<2x1x16x16xf32>
    %601 = arith.addf %584, %600 : vector<2x1x16x16xf32>
    %c110 = arith.constant 110 : index
    %602 = memref.load %arg2[%c110] : memref<144xf32, #tpu.memory_space<smem>>
    %603 = vector.broadcast %602 : f32 to vector<2x1x16x16xf32>
    %604 = arith.mulf %603, %593 : vector<2x1x16x16xf32>
    %605 = arith.addf %588, %604 : vector<2x1x16x16xf32>
    %c111 = arith.constant 111 : index
    %606 = memref.load %arg2[%c111] : memref<144xf32, #tpu.memory_space<smem>>
    %607 = vector.broadcast %606 : f32 to vector<2x1x16x16xf32>
    %608 = arith.mulf %607, %593 : vector<2x1x16x16xf32>
    %609 = arith.addf %592, %608 : vector<2x1x16x16xf32>
    %c0_219 = arith.constant 0 : index
    %c3_220 = arith.constant 3 : index
    %c2_221 = arith.constant 2 : index
    %c1_222 = arith.constant 1 : index
    %610 = vector.load %arg9[%c0_219, %c3_220, %c2_221, %c1_222] : memref<2x4x18x18xf32, #tpu.memory_space<vmem>>, vector<2x1x16x16xf32>
    %c124 = arith.constant 124 : index
    %611 = memref.load %arg2[%c124] : memref<144xf32, #tpu.memory_space<smem>>
    %612 = vector.broadcast %611 : f32 to vector<2x1x16x16xf32>
    %613 = arith.mulf %612, %610 : vector<2x1x16x16xf32>
    %614 = arith.addf %597, %613 : vector<2x1x16x16xf32>
    %c125 = arith.constant 125 : index
    %615 = memref.load %arg2[%c125] : memref<144xf32, #tpu.memory_space<smem>>
    %616 = vector.broadcast %615 : f32 to vector<2x1x16x16xf32>
    %617 = arith.mulf %616, %610 : vector<2x1x16x16xf32>
    %618 = arith.addf %601, %617 : vector<2x1x16x16xf32>
    %c126 = arith.constant 126 : index
    %619 = memref.load %arg2[%c126] : memref<144xf32, #tpu.memory_space<smem>>
    %620 = vector.broadcast %619 : f32 to vector<2x1x16x16xf32>
    %621 = arith.mulf %620, %610 : vector<2x1x16x16xf32>
    %622 = arith.addf %605, %621 : vector<2x1x16x16xf32>
    %c127 = arith.constant 127 : index
    %623 = memref.load %arg2[%c127] : memref<144xf32, #tpu.memory_space<smem>>
    %624 = vector.broadcast %623 : f32 to vector<2x1x16x16xf32>
    %625 = arith.mulf %624, %610 : vector<2x1x16x16xf32>
    %626 = arith.addf %609, %625 : vector<2x1x16x16xf32>
    %c0_223 = arith.constant 0 : index
    %c3_224 = arith.constant 3 : index
    %c2_225 = arith.constant 2 : index
    %c2_226 = arith.constant 2 : index
    %627 = vector.load %arg9[%c0_223, %c3_224, %c2_225, %c2_226] : memref<2x4x18x18xf32, #tpu.memory_space<vmem>>, vector<2x1x16x16xf32>
    %c140 = arith.constant 140 : index
    %628 = memref.load %arg2[%c140] : memref<144xf32, #tpu.memory_space<smem>>
    %629 = vector.broadcast %628 : f32 to vector<2x1x16x16xf32>
    %630 = arith.mulf %629, %627 : vector<2x1x16x16xf32>
    %631 = arith.addf %614, %630 : vector<2x1x16x16xf32>
    %c141 = arith.constant 141 : index
    %632 = memref.load %arg2[%c141] : memref<144xf32, #tpu.memory_space<smem>>
    %633 = vector.broadcast %632 : f32 to vector<2x1x16x16xf32>
    %634 = arith.mulf %633, %627 : vector<2x1x16x16xf32>
    %635 = arith.addf %618, %634 : vector<2x1x16x16xf32>
    %c142 = arith.constant 142 : index
    %636 = memref.load %arg2[%c142] : memref<144xf32, #tpu.memory_space<smem>>
    %637 = vector.broadcast %636 : f32 to vector<2x1x16x16xf32>
    %638 = arith.mulf %637, %627 : vector<2x1x16x16xf32>
    %639 = arith.addf %622, %638 : vector<2x1x16x16xf32>
    %c143 = arith.constant 143 : index
    %640 = memref.load %arg2[%c143] : memref<144xf32, #tpu.memory_space<smem>>
    %641 = vector.broadcast %640 : f32 to vector<2x1x16x16xf32>
    %642 = arith.mulf %641, %627 : vector<2x1x16x16xf32>
    %643 = arith.addf %626, %642 : vector<2x1x16x16xf32>
    %cst_227 = arith.constant dense<0.000000e+00> : vector<2x1x16xf32>
    %644 = vector.multi_reduction <add>, %631, %cst_227 [3] : vector<2x1x16x16xf32> to vector<2x1x16xf32>
    %645 = vector.shape_cast %644 : vector<2x1x16xf32> to vector<2x1x16x1xf32>
    %cst_228 = arith.constant dense<0.000000e+00> : vector<2x1x1xf32>
    %646 = vector.multi_reduction <add>, %645, %cst_228 [2] : vector<2x1x16x1xf32> to vector<2x1x1xf32>
    %647 = vector.shape_cast %646 : vector<2x1x1xf32> to vector<2x1x1x1xf32>
    %cst_229 = arith.constant dense<0.000000e+00> : vector<1x1x1xf32>
    %648 = vector.multi_reduction <add>, %647, %cst_229 [0] : vector<2x1x1x1xf32> to vector<1x1x1xf32>
    %649 = vector.shape_cast %648 : vector<1x1x1xf32> to vector<1x1x1x1xf32>
    %cst_230 = arith.constant 0.001953125 : f32
    %650 = vector.broadcast %cst_230 : f32 to vector<1x1x1x1xf32>
    %651 = arith.mulf %649, %650 : vector<1x1x1x1xf32>
    %652 = vector.broadcast %651 : vector<1x1x1x1xf32> to vector<2x1x16x16xf32>
    %653 = arith.subf %631, %652 : vector<2x1x16x16xf32>
    %654 = arith.mulf %653, %653 : vector<2x1x16x16xf32>
    %cst_231 = arith.constant dense<0.000000e+00> : vector<2x1x16xf32>
    %655 = vector.multi_reduction <add>, %654, %cst_231 [3] : vector<2x1x16x16xf32> to vector<2x1x16xf32>
    %656 = vector.shape_cast %655 : vector<2x1x16xf32> to vector<2x1x16x1xf32>
    %cst_232 = arith.constant dense<0.000000e+00> : vector<2x1x1xf32>
    %657 = vector.multi_reduction <add>, %656, %cst_232 [2] : vector<2x1x16x1xf32> to vector<2x1x1xf32>
    %658 = vector.shape_cast %657 : vector<2x1x1xf32> to vector<2x1x1x1xf32>
    %cst_233 = arith.constant dense<0.000000e+00> : vector<1x1x1xf32>
    %659 = vector.multi_reduction <add>, %658, %cst_233 [0] : vector<2x1x1x1xf32> to vector<1x1x1xf32>
    %660 = vector.shape_cast %659 : vector<1x1x1xf32> to vector<1x1x1x1xf32>
    %c0_234 = arith.constant 0 : index
    %661 = memref.load %arg3[%c0_234] : memref<4xf32, #tpu.memory_space<smem>>
    %cst_235 = arith.constant 0.001953125 : f32
    %662 = vector.broadcast %cst_235 : f32 to vector<1x1x1x1xf32>
    %663 = arith.mulf %660, %662 : vector<1x1x1x1xf32>
    %cst_236 = arith.constant 9.99999974E-6 : f32
    %664 = vector.broadcast %cst_236 : f32 to vector<1x1x1x1xf32>
    %665 = arith.addf %663, %664 : vector<1x1x1x1xf32>
    %666 = math.rsqrt %665 : vector<1x1x1x1xf32>
    %667 = vector.broadcast %661 : f32 to vector<1x1x1x1xf32>
    %668 = arith.mulf %667, %666 : vector<1x1x1x1xf32>
    %669 = vector.broadcast %668 : vector<1x1x1x1xf32> to vector<2x1x16x16xf32>
    %670 = arith.mulf %653, %669 : vector<2x1x16x16xf32>
    %c0_237 = arith.constant 0 : index
    %671 = memref.load %arg4[%c0_237] : memref<4xf32, #tpu.memory_space<smem>>
    %672 = vector.broadcast %671 : f32 to vector<2x1x16x16xf32>
    %673 = arith.addf %670, %672 : vector<2x1x16x16xf32>
    %cst_238 = arith.constant 0.000000e+00 : f32
    %674 = vector.broadcast %cst_238 : f32 to vector<2x1x16x16xf32>
    %675 = arith.cmpf oge, %673, %674 : vector<2x1x16x16xf32>
    %cst_239 = arith.constant 2.000000e-01 : f32
    %676 = vector.broadcast %cst_239 : f32 to vector<2x1x16x16xf32>
    %677 = arith.mulf %676, %673 : vector<2x1x16x16xf32>
    %678 = arith.select %675, %673, %677 : vector<2x1x16x16xi1>, vector<2x1x16x16xf32>
    %cst_240 = arith.constant dense<0.000000e+00> : vector<2x1x16xf32>
    %679 = vector.multi_reduction <add>, %635, %cst_240 [3] : vector<2x1x16x16xf32> to vector<2x1x16xf32>
    %680 = vector.shape_cast %679 : vector<2x1x16xf32> to vector<2x1x16x1xf32>
    %cst_241 = arith.constant dense<0.000000e+00> : vector<2x1x1xf32>
    %681 = vector.multi_reduction <add>, %680, %cst_241 [2] : vector<2x1x16x1xf32> to vector<2x1x1xf32>
    %682 = vector.shape_cast %681 : vector<2x1x1xf32> to vector<2x1x1x1xf32>
    %cst_242 = arith.constant dense<0.000000e+00> : vector<1x1x1xf32>
    %683 = vector.multi_reduction <add>, %682, %cst_242 [0] : vector<2x1x1x1xf32> to vector<1x1x1xf32>
    %684 = vector.shape_cast %683 : vector<1x1x1xf32> to vector<1x1x1x1xf32>
    %cst_243 = arith.constant 0.001953125 : f32
    %685 = vector.broadcast %cst_243 : f32 to vector<1x1x1x1xf32>
    %686 = arith.mulf %684, %685 : vector<1x1x1x1xf32>
    %687 = vector.broadcast %686 : vector<1x1x1x1xf32> to vector<2x1x16x16xf32>
    %688 = arith.subf %635, %687 : vector<2x1x16x16xf32>
    %689 = arith.mulf %688, %688 : vector<2x1x16x16xf32>
    %cst_244 = arith.constant dense<0.000000e+00> : vector<2x1x16xf32>
    %690 = vector.multi_reduction <add>, %689, %cst_244 [3] : vector<2x1x16x16xf32> to vector<2x1x16xf32>
    %691 = vector.shape_cast %690 : vector<2x1x16xf32> to vector<2x1x16x1xf32>
    %cst_245 = arith.constant dense<0.000000e+00> : vector<2x1x1xf32>
    %692 = vector.multi_reduction <add>, %691, %cst_245 [2] : vector<2x1x16x1xf32> to vector<2x1x1xf32>
    %693 = vector.shape_cast %692 : vector<2x1x1xf32> to vector<2x1x1x1xf32>
    %cst_246 = arith.constant dense<0.000000e+00> : vector<1x1x1xf32>
    %694 = vector.multi_reduction <add>, %693, %cst_246 [0] : vector<2x1x1x1xf32> to vector<1x1x1xf32>
    %695 = vector.shape_cast %694 : vector<1x1x1xf32> to vector<1x1x1x1xf32>
    %c1_247 = arith.constant 1 : index
    %696 = memref.load %arg3[%c1_247] : memref<4xf32, #tpu.memory_space<smem>>
    %cst_248 = arith.constant 0.001953125 : f32
    %697 = vector.broadcast %cst_248 : f32 to vector<1x1x1x1xf32>
    %698 = arith.mulf %695, %697 : vector<1x1x1x1xf32>
    %cst_249 = arith.constant 9.99999974E-6 : f32
    %699 = vector.broadcast %cst_249 : f32 to vector<1x1x1x1xf32>
    %700 = arith.addf %698, %699 : vector<1x1x1x1xf32>
    %701 = math.rsqrt %700 : vector<1x1x1x1xf32>
    %702 = vector.broadcast %696 : f32 to vector<1x1x1x1xf32>
    %703 = arith.mulf %702, %701 : vector<1x1x1x1xf32>
    %704 = vector.broadcast %703 : vector<1x1x1x1xf32> to vector<2x1x16x16xf32>
    %705 = arith.mulf %688, %704 : vector<2x1x16x16xf32>
    %c1_250 = arith.constant 1 : index
    %706 = memref.load %arg4[%c1_250] : memref<4xf32, #tpu.memory_space<smem>>
    %707 = vector.broadcast %706 : f32 to vector<2x1x16x16xf32>
    %708 = arith.addf %705, %707 : vector<2x1x16x16xf32>
    %cst_251 = arith.constant 0.000000e+00 : f32
    %709 = vector.broadcast %cst_251 : f32 to vector<2x1x16x16xf32>
    %710 = arith.cmpf oge, %708, %709 : vector<2x1x16x16xf32>
    %cst_252 = arith.constant 2.000000e-01 : f32
    %711 = vector.broadcast %cst_252 : f32 to vector<2x1x16x16xf32>
    %712 = arith.mulf %711, %708 : vector<2x1x16x16xf32>
    %713 = arith.select %710, %708, %712 : vector<2x1x16x16xi1>, vector<2x1x16x16xf32>
    %cst_253 = arith.constant dense<0.000000e+00> : vector<2x1x16xf32>
    %714 = vector.multi_reduction <add>, %639, %cst_253 [3] : vector<2x1x16x16xf32> to vector<2x1x16xf32>
    %715 = vector.shape_cast %714 : vector<2x1x16xf32> to vector<2x1x16x1xf32>
    %cst_254 = arith.constant dense<0.000000e+00> : vector<2x1x1xf32>
    %716 = vector.multi_reduction <add>, %715, %cst_254 [2] : vector<2x1x16x1xf32> to vector<2x1x1xf32>
    %717 = vector.shape_cast %716 : vector<2x1x1xf32> to vector<2x1x1x1xf32>
    %cst_255 = arith.constant dense<0.000000e+00> : vector<1x1x1xf32>
    %718 = vector.multi_reduction <add>, %717, %cst_255 [0] : vector<2x1x1x1xf32> to vector<1x1x1xf32>
    %719 = vector.shape_cast %718 : vector<1x1x1xf32> to vector<1x1x1x1xf32>
    %cst_256 = arith.constant 0.001953125 : f32
    %720 = vector.broadcast %cst_256 : f32 to vector<1x1x1x1xf32>
    %721 = arith.mulf %719, %720 : vector<1x1x1x1xf32>
    %722 = vector.broadcast %721 : vector<1x1x1x1xf32> to vector<2x1x16x16xf32>
    %723 = arith.subf %639, %722 : vector<2x1x16x16xf32>
    %724 = arith.mulf %723, %723 : vector<2x1x16x16xf32>
    %cst_257 = arith.constant dense<0.000000e+00> : vector<2x1x16xf32>
    %725 = vector.multi_reduction <add>, %724, %cst_257 [3] : vector<2x1x16x16xf32> to vector<2x1x16xf32>
    %726 = vector.shape_cast %725 : vector<2x1x16xf32> to vector<2x1x16x1xf32>
    %cst_258 = arith.constant dense<0.000000e+00> : vector<2x1x1xf32>
    %727 = vector.multi_reduction <add>, %726, %cst_258 [2] : vector<2x1x16x1xf32> to vector<2x1x1xf32>
    %728 = vector.shape_cast %727 : vector<2x1x1xf32> to vector<2x1x1x1xf32>
    %cst_259 = arith.constant dense<0.000000e+00> : vector<1x1x1xf32>
    %729 = vector.multi_reduction <add>, %728, %cst_259 [0] : vector<2x1x1x1xf32> to vector<1x1x1xf32>
    %730 = vector.shape_cast %729 : vector<1x1x1xf32> to vector<1x1x1x1xf32>
    %c2_260 = arith.constant 2 : index
    %731 = memref.load %arg3[%c2_260] : memref<4xf32, #tpu.memory_space<smem>>
    %cst_261 = arith.constant 0.001953125 : f32
    %732 = vector.broadcast %cst_261 : f32 to vector<1x1x1x1xf32>
    %733 = arith.mulf %730, %732 : vector<1x1x1x1xf32>
    %cst_262 = arith.constant 9.99999974E-6 : f32
    %734 = vector.broadcast %cst_262 : f32 to vector<1x1x1x1xf32>
    %735 = arith.addf %733, %734 : vector<1x1x1x1xf32>
    %736 = math.rsqrt %735 : vector<1x1x1x1xf32>
    %737 = vector.broadcast %731 : f32 to vector<1x1x1x1xf32>
    %738 = arith.mulf %737, %736 : vector<1x1x1x1xf32>
    %739 = vector.broadcast %738 : vector<1x1x1x1xf32> to vector<2x1x16x16xf32>
    %740 = arith.mulf %723, %739 : vector<2x1x16x16xf32>
    %c2_263 = arith.constant 2 : index
    %741 = memref.load %arg4[%c2_263] : memref<4xf32, #tpu.memory_space<smem>>
    %742 = vector.broadcast %741 : f32 to vector<2x1x16x16xf32>
    %743 = arith.addf %740, %742 : vector<2x1x16x16xf32>
    %cst_264 = arith.constant 0.000000e+00 : f32
    %744 = vector.broadcast %cst_264 : f32 to vector<2x1x16x16xf32>
    %745 = arith.cmpf oge, %743, %744 : vector<2x1x16x16xf32>
    %cst_265 = arith.constant 2.000000e-01 : f32
    %746 = vector.broadcast %cst_265 : f32 to vector<2x1x16x16xf32>
    %747 = arith.mulf %746, %743 : vector<2x1x16x16xf32>
    %748 = arith.select %745, %743, %747 : vector<2x1x16x16xi1>, vector<2x1x16x16xf32>
    %cst_266 = arith.constant dense<0.000000e+00> : vector<2x1x16xf32>
    %749 = vector.multi_reduction <add>, %643, %cst_266 [3] : vector<2x1x16x16xf32> to vector<2x1x16xf32>
    %750 = vector.shape_cast %749 : vector<2x1x16xf32> to vector<2x1x16x1xf32>
    %cst_267 = arith.constant dense<0.000000e+00> : vector<2x1x1xf32>
    %751 = vector.multi_reduction <add>, %750, %cst_267 [2] : vector<2x1x16x1xf32> to vector<2x1x1xf32>
    %752 = vector.shape_cast %751 : vector<2x1x1xf32> to vector<2x1x1x1xf32>
    %cst_268 = arith.constant dense<0.000000e+00> : vector<1x1x1xf32>
    %753 = vector.multi_reduction <add>, %752, %cst_268 [0] : vector<2x1x1x1xf32> to vector<1x1x1xf32>
    %754 = vector.shape_cast %753 : vector<1x1x1xf32> to vector<1x1x1x1xf32>
    %cst_269 = arith.constant 0.001953125 : f32
    %755 = vector.broadcast %cst_269 : f32 to vector<1x1x1x1xf32>
    %756 = arith.mulf %754, %755 : vector<1x1x1x1xf32>
    %757 = vector.broadcast %756 : vector<1x1x1x1xf32> to vector<2x1x16x16xf32>
    %758 = arith.subf %643, %757 : vector<2x1x16x16xf32>
    %759 = arith.mulf %758, %758 : vector<2x1x16x16xf32>
    %cst_270 = arith.constant dense<0.000000e+00> : vector<2x1x16xf32>
    %760 = vector.multi_reduction <add>, %759, %cst_270 [3] : vector<2x1x16x16xf32> to vector<2x1x16xf32>
    %761 = vector.shape_cast %760 : vector<2x1x16xf32> to vector<2x1x16x1xf32>
    %cst_271 = arith.constant dense<0.000000e+00> : vector<2x1x1xf32>
    %762 = vector.multi_reduction <add>, %761, %cst_271 [2] : vector<2x1x16x1xf32> to vector<2x1x1xf32>
    %763 = vector.shape_cast %762 : vector<2x1x1xf32> to vector<2x1x1x1xf32>
    %cst_272 = arith.constant dense<0.000000e+00> : vector<1x1x1xf32>
    %764 = vector.multi_reduction <add>, %763, %cst_272 [0] : vector<2x1x1x1xf32> to vector<1x1x1xf32>
    %765 = vector.shape_cast %764 : vector<1x1x1xf32> to vector<1x1x1x1xf32>
    %c3_273 = arith.constant 3 : index
    %766 = memref.load %arg3[%c3_273] : memref<4xf32, #tpu.memory_space<smem>>
    %cst_274 = arith.constant 0.001953125 : f32
    %767 = vector.broadcast %cst_274 : f32 to vector<1x1x1x1xf32>
    %768 = arith.mulf %765, %767 : vector<1x1x1x1xf32>
    %cst_275 = arith.constant 9.99999974E-6 : f32
    %769 = vector.broadcast %cst_275 : f32 to vector<1x1x1x1xf32>
    %770 = arith.addf %768, %769 : vector<1x1x1x1xf32>
    %771 = math.rsqrt %770 : vector<1x1x1x1xf32>
    %772 = vector.broadcast %766 : f32 to vector<1x1x1x1xf32>
    %773 = arith.mulf %772, %771 : vector<1x1x1x1xf32>
    %774 = vector.broadcast %773 : vector<1x1x1x1xf32> to vector<2x1x16x16xf32>
    %775 = arith.mulf %758, %774 : vector<2x1x16x16xf32>
    %c3_276 = arith.constant 3 : index
    %776 = memref.load %arg4[%c3_276] : memref<4xf32, #tpu.memory_space<smem>>
    %777 = vector.broadcast %776 : f32 to vector<2x1x16x16xf32>
    %778 = arith.addf %775, %777 : vector<2x1x16x16xf32>
    %cst_277 = arith.constant 0.000000e+00 : f32
    %779 = vector.broadcast %cst_277 : f32 to vector<2x1x16x16xf32>
    %780 = arith.cmpf oge, %778, %779 : vector<2x1x16x16xf32>
    %cst_278 = arith.constant 2.000000e-01 : f32
    %781 = vector.broadcast %cst_278 : f32 to vector<2x1x16x16xf32>
    %782 = arith.mulf %781, %778 : vector<2x1x16x16xf32>
    %783 = arith.select %780, %778, %782 : vector<2x1x16x16xi1>, vector<2x1x16x16xf32>
    %c0_279 = arith.constant 0 : index
    %c0_280 = arith.constant 0 : index
    %c1_281 = arith.constant 1 : index
    %c1_282 = arith.constant 1 : index
    %784 = vector.load %arg9[%c0_279, %c0_280, %c1_281, %c1_282] : memref<2x4x18x18xf32, #tpu.memory_space<vmem>>, vector<2x1x16x16xf32>
    tpu.vector_store %arg9[%c0_279, %c0_280, %c1_281, %c1_282], %678 {strides = array<i32>} : memref<2x4x18x18xf32, #tpu.memory_space<vmem>>, vector<2x1x16x16xf32>,
    %785 = vector.extract_strided_slice %678 {offsets = [0, 0, 1, 0], sizes = [2, 1, 1, 16], strides = [1, 1, 1, 1]} : vector<2x1x16x16xf32> to vector<2x1x1x16xf32>
    %c0_283 = arith.constant 0 : index
    %c0_284 = arith.constant 0 : index
    %c0_285 = arith.constant 0 : index
    %c1_286 = arith.constant 1 : index
    %786 = vector.load %arg9[%c0_283, %c0_284, %c0_285, %c1_286] : memref<2x4x18x18xf32, #tpu.memory_space<vmem>>, vector<2x1x1x16xf32>
    tpu.vector_store %arg9[%c0_283, %c0_284, %c0_285, %c1_286], %785 {strides = array<i32>} : memref<2x4x18x18xf32, #tpu.memory_space<vmem>>, vector<2x1x1x16xf32>,
    %787 = vector.extract_strided_slice %678 {offsets = [0, 0, 14, 0], sizes = [2, 1, 1, 16], strides = [1, 1, 1, 1]} : vector<2x1x16x16xf32> to vector<2x1x1x16xf32>
    %c0_287 = arith.constant 0 : index
    %c0_288 = arith.constant 0 : index
    %c17_289 = arith.constant 17 : index
    %c1_290 = arith.constant 1 : index
    %788 = vector.load %arg9[%c0_287, %c0_288, %c17_289, %c1_290] : memref<2x4x18x18xf32, #tpu.memory_space<vmem>>, vector<2x1x1x16xf32>
    tpu.vector_store %arg9[%c0_287, %c0_288, %c17_289, %c1_290], %787 {strides = array<i32>} : memref<2x4x18x18xf32, #tpu.memory_space<vmem>>, vector<2x1x1x16xf32>,
    %c0_291 = arith.constant 0 : index
    %c1_292 = arith.constant 1 : index
    %c1_293 = arith.constant 1 : index
    %c1_294 = arith.constant 1 : index
    %789 = vector.load %arg9[%c0_291, %c1_292, %c1_293, %c1_294] : memref<2x4x18x18xf32, #tpu.memory_space<vmem>>, vector<2x1x16x16xf32>
    tpu.vector_store %arg9[%c0_291, %c1_292, %c1_293, %c1_294], %713 {strides = array<i32>} : memref<2x4x18x18xf32, #tpu.memory_space<vmem>>, vector<2x1x16x16xf32>,
    %790 = vector.extract_strided_slice %713 {offsets = [0, 0, 1, 0], sizes = [2, 1, 1, 16], strides = [1, 1, 1, 1]} : vector<2x1x16x16xf32> to vector<2x1x1x16xf32>
    %c0_295 = arith.constant 0 : index
    %c1_296 = arith.constant 1 : index
    %c0_297 = arith.constant 0 : index
    %c1_298 = arith.constant 1 : index
    %791 = vector.load %arg9[%c0_295, %c1_296, %c0_297, %c1_298] : memref<2x4x18x18xf32, #tpu.memory_space<vmem>>, vector<2x1x1x16xf32>
    tpu.vector_store %arg9[%c0_295, %c1_296, %c0_297, %c1_298], %790 {strides = array<i32>} : memref<2x4x18x18xf32, #tpu.memory_space<vmem>>, vector<2x1x1x16xf32>,
    %792 = vector.extract_strided_slice %713 {offsets = [0, 0, 14, 0], sizes = [2, 1, 1, 16], strides = [1, 1, 1, 1]} : vector<2x1x16x16xf32> to vector<2x1x1x16xf32>
    %c0_299 = arith.constant 0 : index
    %c1_300 = arith.constant 1 : index
    %c17_301 = arith.constant 17 : index
    %c1_302 = arith.constant 1 : index
    %793 = vector.load %arg9[%c0_299, %c1_300, %c17_301, %c1_302] : memref<2x4x18x18xf32, #tpu.memory_space<vmem>>, vector<2x1x1x16xf32>
    tpu.vector_store %arg9[%c0_299, %c1_300, %c17_301, %c1_302], %792 {strides = array<i32>} : memref<2x4x18x18xf32, #tpu.memory_space<vmem>>, vector<2x1x1x16xf32>,
    %c0_303 = arith.constant 0 : index
    %c2_304 = arith.constant 2 : index
    %c1_305 = arith.constant 1 : index
    %c1_306 = arith.constant 1 : index
    %794 = vector.load %arg9[%c0_303, %c2_304, %c1_305, %c1_306] : memref<2x4x18x18xf32, #tpu.memory_space<vmem>>, vector<2x1x16x16xf32>
    tpu.vector_store %arg9[%c0_303, %c2_304, %c1_305, %c1_306], %748 {strides = array<i32>} : memref<2x4x18x18xf32, #tpu.memory_space<vmem>>, vector<2x1x16x16xf32>,
    %795 = vector.extract_strided_slice %748 {offsets = [0, 0, 1, 0], sizes = [2, 1, 1, 16], strides = [1, 1, 1, 1]} : vector<2x1x16x16xf32> to vector<2x1x1x16xf32>
    %c0_307 = arith.constant 0 : index
    %c2_308 = arith.constant 2 : index
    %c0_309 = arith.constant 0 : index
    %c1_310 = arith.constant 1 : index
    %796 = vector.load %arg9[%c0_307, %c2_308, %c0_309, %c1_310] : memref<2x4x18x18xf32, #tpu.memory_space<vmem>>, vector<2x1x1x16xf32>
    tpu.vector_store %arg9[%c0_307, %c2_308, %c0_309, %c1_310], %795 {strides = array<i32>} : memref<2x4x18x18xf32, #tpu.memory_space<vmem>>, vector<2x1x1x16xf32>,
    %797 = vector.extract_strided_slice %748 {offsets = [0, 0, 14, 0], sizes = [2, 1, 1, 16], strides = [1, 1, 1, 1]} : vector<2x1x16x16xf32> to vector<2x1x1x16xf32>
    %c0_311 = arith.constant 0 : index
    %c2_312 = arith.constant 2 : index
    %c17_313 = arith.constant 17 : index
    %c1_314 = arith.constant 1 : index
    %798 = vector.load %arg9[%c0_311, %c2_312, %c17_313, %c1_314] : memref<2x4x18x18xf32, #tpu.memory_space<vmem>>, vector<2x1x1x16xf32>
    tpu.vector_store %arg9[%c0_311, %c2_312, %c17_313, %c1_314], %797 {strides = array<i32>} : memref<2x4x18x18xf32, #tpu.memory_space<vmem>>, vector<2x1x1x16xf32>,
    %c0_315 = arith.constant 0 : index
    %c3_316 = arith.constant 3 : index
    %c1_317 = arith.constant 1 : index
    %c1_318 = arith.constant 1 : index
    %799 = vector.load %arg9[%c0_315, %c3_316, %c1_317, %c1_318] : memref<2x4x18x18xf32, #tpu.memory_space<vmem>>, vector<2x1x16x16xf32>
    tpu.vector_store %arg9[%c0_315, %c3_316, %c1_317, %c1_318], %783 {strides = array<i32>} : memref<2x4x18x18xf32, #tpu.memory_space<vmem>>, vector<2x1x16x16xf32>,
    %800 = vector.extract_strided_slice %783 {offsets = [0, 0, 1, 0], sizes = [2, 1, 1, 16], strides = [1, 1, 1, 1]} : vector<2x1x16x16xf32> to vector<2x1x1x16xf32>
    %c0_319 = arith.constant 0 : index
    %c3_320 = arith.constant 3 : index
    %c0_321 = arith.constant 0 : index
    %c1_322 = arith.constant 1 : index
    %801 = vector.load %arg9[%c0_319, %c3_320, %c0_321, %c1_322] : memref<2x4x18x18xf32, #tpu.memory_space<vmem>>, vector<2x1x1x16xf32>
    tpu.vector_store %arg9[%c0_319, %c3_320, %c0_321, %c1_322], %800 {strides = array<i32>} : memref<2x4x18x18xf32, #tpu.memory_space<vmem>>, vector<2x1x1x16xf32>,
    %802 = vector.extract_strided_slice %783 {offsets = [0, 0, 14, 0], sizes = [2, 1, 1, 16], strides = [1, 1, 1, 1]} : vector<2x1x16x16xf32> to vector<2x1x1x16xf32>
    %c0_323 = arith.constant 0 : index
    %c3_324 = arith.constant 3 : index
    %c17_325 = arith.constant 17 : index
    %c1_326 = arith.constant 1 : index
    %803 = vector.load %arg9[%c0_323, %c3_324, %c17_325, %c1_326] : memref<2x4x18x18xf32, #tpu.memory_space<vmem>>, vector<2x1x1x16xf32>
    tpu.vector_store %arg9[%c0_323, %c3_324, %c17_325, %c1_326], %802 {strides = array<i32>} : memref<2x4x18x18xf32, #tpu.memory_space<vmem>>, vector<2x1x1x16xf32>,
    %c0_327 = arith.constant 0 : index
    %c0_328 = arith.constant 0 : index
    %c0_329 = arith.constant 0 : index
    %c2_330 = arith.constant 2 : index
    %804 = vector.load %arg9[%c0_327, %c0_328, %c0_329, %c2_330] : memref<2x4x18x18xf32, #tpu.memory_space<vmem>>, vector<2x4x18x1xf32>
    %c0_331 = arith.constant 0 : index
    %c0_332 = arith.constant 0 : index
    %c0_333 = arith.constant 0 : index
    %c0_334 = arith.constant 0 : index
    %805 = vector.load %arg9[%c0_331, %c0_332, %c0_333, %c0_334] : memref<2x4x18x18xf32, #tpu.memory_space<vmem>>, vector<2x4x18x1xf32>
    tpu.vector_store %arg9[%c0_331, %c0_332, %c0_333, %c0_334], %804 {strides = array<i32>} : memref<2x4x18x18xf32, #tpu.memory_space<vmem>>, vector<2x4x18x1xf32>,
    %c0_335 = arith.constant 0 : index
    %c0_336 = arith.constant 0 : index
    %c0_337 = arith.constant 0 : index
    %c15_338 = arith.constant 15 : index
    %806 = vector.load %arg9[%c0_335, %c0_336, %c0_337, %c15_338] : memref<2x4x18x18xf32, #tpu.memory_space<vmem>>, vector<2x4x18x1xf32>
    %c0_339 = arith.constant 0 : index
    %c0_340 = arith.constant 0 : index
    %c0_341 = arith.constant 0 : index
    %c17_342 = arith.constant 17 : index
    %807 = vector.load %arg9[%c0_339, %c0_340, %c0_341, %c17_342] : memref<2x4x18x18xf32, #tpu.memory_space<vmem>>, vector<2x4x18x1xf32>
    tpu.vector_store %arg9[%c0_339, %c0_340, %c0_341, %c17_342], %806 {strides = array<i32>} : memref<2x4x18x18xf32, #tpu.memory_space<vmem>>, vector<2x4x18x1xf32>,
    %cst_343 = arith.constant 0.000000e+00 : f32
    %808 = vector.broadcast %cst_343 : f32 to vector<2x1x16x16xf32>
    %cst_344 = arith.constant 0.000000e+00 : f32
    %809 = vector.broadcast %cst_344 : f32 to vector<2x1x16x16xf32>
    %cst_345 = arith.constant 0.000000e+00 : f32
    %810 = vector.broadcast %cst_345 : f32 to vector<2x1x16x16xf32>
    %cst_346 = arith.constant 0.000000e+00 : f32
    %811 = vector.broadcast %cst_346 : f32 to vector<2x1x16x16xf32>
    %c0_347 = arith.constant 0 : index
    %c0_348 = arith.constant 0 : index
    %c0_349 = arith.constant 0 : index
    %c0_350 = arith.constant 0 : index
    %812 = vector.load %arg9[%c0_347, %c0_348, %c0_349, %c0_350] : memref<2x4x18x18xf32, #tpu.memory_space<vmem>>, vector<2x1x16x16xf32>
    %c0_351 = arith.constant 0 : index
    %813 = memref.load %arg5[%c0_351] : memref<144xf32, #tpu.memory_space<smem>>
    %814 = vector.broadcast %813 : f32 to vector<2x1x16x16xf32>
    %815 = arith.mulf %814, %812 : vector<2x1x16x16xf32>
    %816 = arith.addf %808, %815 : vector<2x1x16x16xf32>
    %c1_352 = arith.constant 1 : index
    %817 = memref.load %arg5[%c1_352] : memref<144xf32, #tpu.memory_space<smem>>
    %818 = vector.broadcast %817 : f32 to vector<2x1x16x16xf32>
    %819 = arith.mulf %818, %812 : vector<2x1x16x16xf32>
    %820 = arith.addf %809, %819 : vector<2x1x16x16xf32>
    %c2_353 = arith.constant 2 : index
    %821 = memref.load %arg5[%c2_353] : memref<144xf32, #tpu.memory_space<smem>>
    %822 = vector.broadcast %821 : f32 to vector<2x1x16x16xf32>
    %823 = arith.mulf %822, %812 : vector<2x1x16x16xf32>
    %824 = arith.addf %810, %823 : vector<2x1x16x16xf32>
    %c3_354 = arith.constant 3 : index
    %825 = memref.load %arg5[%c3_354] : memref<144xf32, #tpu.memory_space<smem>>
    %826 = vector.broadcast %825 : f32 to vector<2x1x16x16xf32>
    %827 = arith.mulf %826, %812 : vector<2x1x16x16xf32>
    %828 = arith.addf %811, %827 : vector<2x1x16x16xf32>
    %c0_355 = arith.constant 0 : index
    %c0_356 = arith.constant 0 : index
    %c0_357 = arith.constant 0 : index
    %c1_358 = arith.constant 1 : index
    %829 = vector.load %arg9[%c0_355, %c0_356, %c0_357, %c1_358] : memref<2x4x18x18xf32, #tpu.memory_space<vmem>>, vector<2x1x16x16xf32>
    %c16_359 = arith.constant 16 : index
    %830 = memref.load %arg5[%c16_359] : memref<144xf32, #tpu.memory_space<smem>>
    %831 = vector.broadcast %830 : f32 to vector<2x1x16x16xf32>
    %832 = arith.mulf %831, %829 : vector<2x1x16x16xf32>
    %833 = arith.addf %816, %832 : vector<2x1x16x16xf32>
    %c17_360 = arith.constant 17 : index
    %834 = memref.load %arg5[%c17_360] : memref<144xf32, #tpu.memory_space<smem>>
    %835 = vector.broadcast %834 : f32 to vector<2x1x16x16xf32>
    %836 = arith.mulf %835, %829 : vector<2x1x16x16xf32>
    %837 = arith.addf %820, %836 : vector<2x1x16x16xf32>
    %c18_361 = arith.constant 18 : index
    %838 = memref.load %arg5[%c18_361] : memref<144xf32, #tpu.memory_space<smem>>
    %839 = vector.broadcast %838 : f32 to vector<2x1x16x16xf32>
    %840 = arith.mulf %839, %829 : vector<2x1x16x16xf32>
    %841 = arith.addf %824, %840 : vector<2x1x16x16xf32>
    %c19_362 = arith.constant 19 : index
    %842 = memref.load %arg5[%c19_362] : memref<144xf32, #tpu.memory_space<smem>>
    %843 = vector.broadcast %842 : f32 to vector<2x1x16x16xf32>
    %844 = arith.mulf %843, %829 : vector<2x1x16x16xf32>
    %845 = arith.addf %828, %844 : vector<2x1x16x16xf32>
    %c0_363 = arith.constant 0 : index
    %c0_364 = arith.constant 0 : index
    %c0_365 = arith.constant 0 : index
    %c2_366 = arith.constant 2 : index
    %846 = vector.load %arg9[%c0_363, %c0_364, %c0_365, %c2_366] : memref<2x4x18x18xf32, #tpu.memory_space<vmem>>, vector<2x1x16x16xf32>
    %c32_367 = arith.constant 32 : index
    %847 = memref.load %arg5[%c32_367] : memref<144xf32, #tpu.memory_space<smem>>
    %848 = vector.broadcast %847 : f32 to vector<2x1x16x16xf32>
    %849 = arith.mulf %848, %846 : vector<2x1x16x16xf32>
    %850 = arith.addf %833, %849 : vector<2x1x16x16xf32>
    %c33_368 = arith.constant 33 : index
    %851 = memref.load %arg5[%c33_368] : memref<144xf32, #tpu.memory_space<smem>>
    %852 = vector.broadcast %851 : f32 to vector<2x1x16x16xf32>
    %853 = arith.mulf %852, %846 : vector<2x1x16x16xf32>
    %854 = arith.addf %837, %853 : vector<2x1x16x16xf32>
    %c34_369 = arith.constant 34 : index
    %855 = memref.load %arg5[%c34_369] : memref<144xf32, #tpu.memory_space<smem>>
    %856 = vector.broadcast %855 : f32 to vector<2x1x16x16xf32>
    %857 = arith.mulf %856, %846 : vector<2x1x16x16xf32>
    %858 = arith.addf %841, %857 : vector<2x1x16x16xf32>
    %c35_370 = arith.constant 35 : index
    %859 = memref.load %arg5[%c35_370] : memref<144xf32, #tpu.memory_space<smem>>
    %860 = vector.broadcast %859 : f32 to vector<2x1x16x16xf32>
    %861 = arith.mulf %860, %846 : vector<2x1x16x16xf32>
    %862 = arith.addf %845, %861 : vector<2x1x16x16xf32>
    %c0_371 = arith.constant 0 : index
    %c0_372 = arith.constant 0 : index
    %c1_373 = arith.constant 1 : index
    %c0_374 = arith.constant 0 : index
    %863 = vector.load %arg9[%c0_371, %c0_372, %c1_373, %c0_374] : memref<2x4x18x18xf32, #tpu.memory_space<vmem>>, vector<2x1x16x16xf32>
    %c48_375 = arith.constant 48 : index
    %864 = memref.load %arg5[%c48_375] : memref<144xf32, #tpu.memory_space<smem>>
    %865 = vector.broadcast %864 : f32 to vector<2x1x16x16xf32>
    %866 = arith.mulf %865, %863 : vector<2x1x16x16xf32>
    %867 = arith.addf %850, %866 : vector<2x1x16x16xf32>
    %c49_376 = arith.constant 49 : index
    %868 = memref.load %arg5[%c49_376] : memref<144xf32, #tpu.memory_space<smem>>
    %869 = vector.broadcast %868 : f32 to vector<2x1x16x16xf32>
    %870 = arith.mulf %869, %863 : vector<2x1x16x16xf32>
    %871 = arith.addf %854, %870 : vector<2x1x16x16xf32>
    %c50_377 = arith.constant 50 : index
    %872 = memref.load %arg5[%c50_377] : memref<144xf32, #tpu.memory_space<smem>>
    %873 = vector.broadcast %872 : f32 to vector<2x1x16x16xf32>
    %874 = arith.mulf %873, %863 : vector<2x1x16x16xf32>
    %875 = arith.addf %858, %874 : vector<2x1x16x16xf32>
    %c51_378 = arith.constant 51 : index
    %876 = memref.load %arg5[%c51_378] : memref<144xf32, #tpu.memory_space<smem>>
    %877 = vector.broadcast %876 : f32 to vector<2x1x16x16xf32>
    %878 = arith.mulf %877, %863 : vector<2x1x16x16xf32>
    %879 = arith.addf %862, %878 : vector<2x1x16x16xf32>
    %c0_379 = arith.constant 0 : index
    %c0_380 = arith.constant 0 : index
    %c1_381 = arith.constant 1 : index
    %c1_382 = arith.constant 1 : index
    %880 = vector.load %arg9[%c0_379, %c0_380, %c1_381, %c1_382] : memref<2x4x18x18xf32, #tpu.memory_space<vmem>>, vector<2x1x16x16xf32>
    %c64_383 = arith.constant 64 : index
    %881 = memref.load %arg5[%c64_383] : memref<144xf32, #tpu.memory_space<smem>>
    %882 = vector.broadcast %881 : f32 to vector<2x1x16x16xf32>
    %883 = arith.mulf %882, %880 : vector<2x1x16x16xf32>
    %884 = arith.addf %867, %883 : vector<2x1x16x16xf32>
    %c65_384 = arith.constant 65 : index
    %885 = memref.load %arg5[%c65_384] : memref<144xf32, #tpu.memory_space<smem>>
    %886 = vector.broadcast %885 : f32 to vector<2x1x16x16xf32>
    %887 = arith.mulf %886, %880 : vector<2x1x16x16xf32>
    %888 = arith.addf %871, %887 : vector<2x1x16x16xf32>
    %c66_385 = arith.constant 66 : index
    %889 = memref.load %arg5[%c66_385] : memref<144xf32, #tpu.memory_space<smem>>
    %890 = vector.broadcast %889 : f32 to vector<2x1x16x16xf32>
    %891 = arith.mulf %890, %880 : vector<2x1x16x16xf32>
    %892 = arith.addf %875, %891 : vector<2x1x16x16xf32>
    %c67_386 = arith.constant 67 : index
    %893 = memref.load %arg5[%c67_386] : memref<144xf32, #tpu.memory_space<smem>>
    %894 = vector.broadcast %893 : f32 to vector<2x1x16x16xf32>
    %895 = arith.mulf %894, %880 : vector<2x1x16x16xf32>
    %896 = arith.addf %879, %895 : vector<2x1x16x16xf32>
    %c0_387 = arith.constant 0 : index
    %c0_388 = arith.constant 0 : index
    %c1_389 = arith.constant 1 : index
    %c2_390 = arith.constant 2 : index
    %897 = vector.load %arg9[%c0_387, %c0_388, %c1_389, %c2_390] : memref<2x4x18x18xf32, #tpu.memory_space<vmem>>, vector<2x1x16x16xf32>
    %c80_391 = arith.constant 80 : index
    %898 = memref.load %arg5[%c80_391] : memref<144xf32, #tpu.memory_space<smem>>
    %899 = vector.broadcast %898 : f32 to vector<2x1x16x16xf32>
    %900 = arith.mulf %899, %897 : vector<2x1x16x16xf32>
    %901 = arith.addf %884, %900 : vector<2x1x16x16xf32>
    %c81_392 = arith.constant 81 : index
    %902 = memref.load %arg5[%c81_392] : memref<144xf32, #tpu.memory_space<smem>>
    %903 = vector.broadcast %902 : f32 to vector<2x1x16x16xf32>
    %904 = arith.mulf %903, %897 : vector<2x1x16x16xf32>
    %905 = arith.addf %888, %904 : vector<2x1x16x16xf32>
    %c82_393 = arith.constant 82 : index
    %906 = memref.load %arg5[%c82_393] : memref<144xf32, #tpu.memory_space<smem>>
    %907 = vector.broadcast %906 : f32 to vector<2x1x16x16xf32>
    %908 = arith.mulf %907, %897 : vector<2x1x16x16xf32>
    %909 = arith.addf %892, %908 : vector<2x1x16x16xf32>
    %c83_394 = arith.constant 83 : index
    %910 = memref.load %arg5[%c83_394] : memref<144xf32, #tpu.memory_space<smem>>
    %911 = vector.broadcast %910 : f32 to vector<2x1x16x16xf32>
    %912 = arith.mulf %911, %897 : vector<2x1x16x16xf32>
    %913 = arith.addf %896, %912 : vector<2x1x16x16xf32>
    %c0_395 = arith.constant 0 : index
    %c0_396 = arith.constant 0 : index
    %c2_397 = arith.constant 2 : index
    %c0_398 = arith.constant 0 : index
    %914 = vector.load %arg9[%c0_395, %c0_396, %c2_397, %c0_398] : memref<2x4x18x18xf32, #tpu.memory_space<vmem>>, vector<2x1x16x16xf32>
    %c96_399 = arith.constant 96 : index
    %915 = memref.load %arg5[%c96_399] : memref<144xf32, #tpu.memory_space<smem>>
    %916 = vector.broadcast %915 : f32 to vector<2x1x16x16xf32>
    %917 = arith.mulf %916, %914 : vector<2x1x16x16xf32>
    %918 = arith.addf %901, %917 : vector<2x1x16x16xf32>
    %c97_400 = arith.constant 97 : index
    %919 = memref.load %arg5[%c97_400] : memref<144xf32, #tpu.memory_space<smem>>
    %920 = vector.broadcast %919 : f32 to vector<2x1x16x16xf32>
    %921 = arith.mulf %920, %914 : vector<2x1x16x16xf32>
    %922 = arith.addf %905, %921 : vector<2x1x16x16xf32>
    %c98_401 = arith.constant 98 : index
    %923 = memref.load %arg5[%c98_401] : memref<144xf32, #tpu.memory_space<smem>>
    %924 = vector.broadcast %923 : f32 to vector<2x1x16x16xf32>
    %925 = arith.mulf %924, %914 : vector<2x1x16x16xf32>
    %926 = arith.addf %909, %925 : vector<2x1x16x16xf32>
    %c99_402 = arith.constant 99 : index
    %927 = memref.load %arg5[%c99_402] : memref<144xf32, #tpu.memory_space<smem>>
    %928 = vector.broadcast %927 : f32 to vector<2x1x16x16xf32>
    %929 = arith.mulf %928, %914 : vector<2x1x16x16xf32>
    %930 = arith.addf %913, %929 : vector<2x1x16x16xf32>
    %c0_403 = arith.constant 0 : index
    %c0_404 = arith.constant 0 : index
    %c2_405 = arith.constant 2 : index
    %c1_406 = arith.constant 1 : index
    %931 = vector.load %arg9[%c0_403, %c0_404, %c2_405, %c1_406] : memref<2x4x18x18xf32, #tpu.memory_space<vmem>>, vector<2x1x16x16xf32>
    %c112_407 = arith.constant 112 : index
    %932 = memref.load %arg5[%c112_407] : memref<144xf32, #tpu.memory_space<smem>>
    %933 = vector.broadcast %932 : f32 to vector<2x1x16x16xf32>
    %934 = arith.mulf %933, %931 : vector<2x1x16x16xf32>
    %935 = arith.addf %918, %934 : vector<2x1x16x16xf32>
    %c113_408 = arith.constant 113 : index
    %936 = memref.load %arg5[%c113_408] : memref<144xf32, #tpu.memory_space<smem>>
    %937 = vector.broadcast %936 : f32 to vector<2x1x16x16xf32>
    %938 = arith.mulf %937, %931 : vector<2x1x16x16xf32>
    %939 = arith.addf %922, %938 : vector<2x1x16x16xf32>
    %c114_409 = arith.constant 114 : index
    %940 = memref.load %arg5[%c114_409] : memref<144xf32, #tpu.memory_space<smem>>
    %941 = vector.broadcast %940 : f32 to vector<2x1x16x16xf32>
    %942 = arith.mulf %941, %931 : vector<2x1x16x16xf32>
    %943 = arith.addf %926, %942 : vector<2x1x16x16xf32>
    %c115_410 = arith.constant 115 : index
    %944 = memref.load %arg5[%c115_410] : memref<144xf32, #tpu.memory_space<smem>>
    %945 = vector.broadcast %944 : f32 to vector<2x1x16x16xf32>
    %946 = arith.mulf %945, %931 : vector<2x1x16x16xf32>
    %947 = arith.addf %930, %946 : vector<2x1x16x16xf32>
    %c0_411 = arith.constant 0 : index
    %c0_412 = arith.constant 0 : index
    %c2_413 = arith.constant 2 : index
    %c2_414 = arith.constant 2 : index
    %948 = vector.load %arg9[%c0_411, %c0_412, %c2_413, %c2_414] : memref<2x4x18x18xf32, #tpu.memory_space<vmem>>, vector<2x1x16x16xf32>
    %c128_415 = arith.constant 128 : index
    %949 = memref.load %arg5[%c128_415] : memref<144xf32, #tpu.memory_space<smem>>
    %950 = vector.broadcast %949 : f32 to vector<2x1x16x16xf32>
    %951 = arith.mulf %950, %948 : vector<2x1x16x16xf32>
    %952 = arith.addf %935, %951 : vector<2x1x16x16xf32>
    %c129_416 = arith.constant 129 : index
    %953 = memref.load %arg5[%c129_416] : memref<144xf32, #tpu.memory_space<smem>>
    %954 = vector.broadcast %953 : f32 to vector<2x1x16x16xf32>
    %955 = arith.mulf %954, %948 : vector<2x1x16x16xf32>
    %956 = arith.addf %939, %955 : vector<2x1x16x16xf32>
    %c130_417 = arith.constant 130 : index
    %957 = memref.load %arg5[%c130_417] : memref<144xf32, #tpu.memory_space<smem>>
    %958 = vector.broadcast %957 : f32 to vector<2x1x16x16xf32>
    %959 = arith.mulf %958, %948 : vector<2x1x16x16xf32>
    %960 = arith.addf %943, %959 : vector<2x1x16x16xf32>
    %c131_418 = arith.constant 131 : index
    %961 = memref.load %arg5[%c131_418] : memref<144xf32, #tpu.memory_space<smem>>
    %962 = vector.broadcast %961 : f32 to vector<2x1x16x16xf32>
    %963 = arith.mulf %962, %948 : vector<2x1x16x16xf32>
    %964 = arith.addf %947, %963 : vector<2x1x16x16xf32>
    %c0_419 = arith.constant 0 : index
    %c1_420 = arith.constant 1 : index
    %c0_421 = arith.constant 0 : index
    %c0_422 = arith.constant 0 : index
    %965 = vector.load %arg9[%c0_419, %c1_420, %c0_421, %c0_422] : memref<2x4x18x18xf32, #tpu.memory_space<vmem>>, vector<2x1x16x16xf32>
    %c4_423 = arith.constant 4 : index
    %966 = memref.load %arg5[%c4_423] : memref<144xf32, #tpu.memory_space<smem>>
    %967 = vector.broadcast %966 : f32 to vector<2x1x16x16xf32>
    %968 = arith.mulf %967, %965 : vector<2x1x16x16xf32>
    %969 = arith.addf %952, %968 : vector<2x1x16x16xf32>
    %c5_424 = arith.constant 5 : index
    %970 = memref.load %arg5[%c5_424] : memref<144xf32, #tpu.memory_space<smem>>
    %971 = vector.broadcast %970 : f32 to vector<2x1x16x16xf32>
    %972 = arith.mulf %971, %965 : vector<2x1x16x16xf32>
    %973 = arith.addf %956, %972 : vector<2x1x16x16xf32>
    %c6_425 = arith.constant 6 : index
    %974 = memref.load %arg5[%c6_425] : memref<144xf32, #tpu.memory_space<smem>>
    %975 = vector.broadcast %974 : f32 to vector<2x1x16x16xf32>
    %976 = arith.mulf %975, %965 : vector<2x1x16x16xf32>
    %977 = arith.addf %960, %976 : vector<2x1x16x16xf32>
    %c7_426 = arith.constant 7 : index
    %978 = memref.load %arg5[%c7_426] : memref<144xf32, #tpu.memory_space<smem>>
    %979 = vector.broadcast %978 : f32 to vector<2x1x16x16xf32>
    %980 = arith.mulf %979, %965 : vector<2x1x16x16xf32>
    %981 = arith.addf %964, %980 : vector<2x1x16x16xf32>
    %c0_427 = arith.constant 0 : index
    %c1_428 = arith.constant 1 : index
    %c0_429 = arith.constant 0 : index
    %c1_430 = arith.constant 1 : index
    %982 = vector.load %arg9[%c0_427, %c1_428, %c0_429, %c1_430] : memref<2x4x18x18xf32, #tpu.memory_space<vmem>>, vector<2x1x16x16xf32>
    %c20_431 = arith.constant 20 : index
    %983 = memref.load %arg5[%c20_431] : memref<144xf32, #tpu.memory_space<smem>>
    %984 = vector.broadcast %983 : f32 to vector<2x1x16x16xf32>
    %985 = arith.mulf %984, %982 : vector<2x1x16x16xf32>
    %986 = arith.addf %969, %985 : vector<2x1x16x16xf32>
    %c21_432 = arith.constant 21 : index
    %987 = memref.load %arg5[%c21_432] : memref<144xf32, #tpu.memory_space<smem>>
    %988 = vector.broadcast %987 : f32 to vector<2x1x16x16xf32>
    %989 = arith.mulf %988, %982 : vector<2x1x16x16xf32>
    %990 = arith.addf %973, %989 : vector<2x1x16x16xf32>
    %c22_433 = arith.constant 22 : index
    %991 = memref.load %arg5[%c22_433] : memref<144xf32, #tpu.memory_space<smem>>
    %992 = vector.broadcast %991 : f32 to vector<2x1x16x16xf32>
    %993 = arith.mulf %992, %982 : vector<2x1x16x16xf32>
    %994 = arith.addf %977, %993 : vector<2x1x16x16xf32>
    %c23_434 = arith.constant 23 : index
    %995 = memref.load %arg5[%c23_434] : memref<144xf32, #tpu.memory_space<smem>>
    %996 = vector.broadcast %995 : f32 to vector<2x1x16x16xf32>
    %997 = arith.mulf %996, %982 : vector<2x1x16x16xf32>
    %998 = arith.addf %981, %997 : vector<2x1x16x16xf32>
    %c0_435 = arith.constant 0 : index
    %c1_436 = arith.constant 1 : index
    %c0_437 = arith.constant 0 : index
    %c2_438 = arith.constant 2 : index
    %999 = vector.load %arg9[%c0_435, %c1_436, %c0_437, %c2_438] : memref<2x4x18x18xf32, #tpu.memory_space<vmem>>, vector<2x1x16x16xf32>
    %c36_439 = arith.constant 36 : index
    %1000 = memref.load %arg5[%c36_439] : memref<144xf32, #tpu.memory_space<smem>>
    %1001 = vector.broadcast %1000 : f32 to vector<2x1x16x16xf32>
    %1002 = arith.mulf %1001, %999 : vector<2x1x16x16xf32>
    %1003 = arith.addf %986, %1002 : vector<2x1x16x16xf32>
    %c37_440 = arith.constant 37 : index
    %1004 = memref.load %arg5[%c37_440] : memref<144xf32, #tpu.memory_space<smem>>
    %1005 = vector.broadcast %1004 : f32 to vector<2x1x16x16xf32>
    %1006 = arith.mulf %1005, %999 : vector<2x1x16x16xf32>
    %1007 = arith.addf %990, %1006 : vector<2x1x16x16xf32>
    %c38_441 = arith.constant 38 : index
    %1008 = memref.load %arg5[%c38_441] : memref<144xf32, #tpu.memory_space<smem>>
    %1009 = vector.broadcast %1008 : f32 to vector<2x1x16x16xf32>
    %1010 = arith.mulf %1009, %999 : vector<2x1x16x16xf32>
    %1011 = arith.addf %994, %1010 : vector<2x1x16x16xf32>
    %c39_442 = arith.constant 39 : index
    %1012 = memref.load %arg5[%c39_442] : memref<144xf32, #tpu.memory_space<smem>>
    %1013 = vector.broadcast %1012 : f32 to vector<2x1x16x16xf32>
    %1014 = arith.mulf %1013, %999 : vector<2x1x16x16xf32>
    %1015 = arith.addf %998, %1014 : vector<2x1x16x16xf32>
    %c0_443 = arith.constant 0 : index
    %c1_444 = arith.constant 1 : index
    %c1_445 = arith.constant 1 : index
    %c0_446 = arith.constant 0 : index
    %1016 = vector.load %arg9[%c0_443, %c1_444, %c1_445, %c0_446] : memref<2x4x18x18xf32, #tpu.memory_space<vmem>>, vector<2x1x16x16xf32>
    %c52_447 = arith.constant 52 : index
    %1017 = memref.load %arg5[%c52_447] : memref<144xf32, #tpu.memory_space<smem>>
    %1018 = vector.broadcast %1017 : f32 to vector<2x1x16x16xf32>
    %1019 = arith.mulf %1018, %1016 : vector<2x1x16x16xf32>
    %1020 = arith.addf %1003, %1019 : vector<2x1x16x16xf32>
    %c53_448 = arith.constant 53 : index
    %1021 = memref.load %arg5[%c53_448] : memref<144xf32, #tpu.memory_space<smem>>
    %1022 = vector.broadcast %1021 : f32 to vector<2x1x16x16xf32>
    %1023 = arith.mulf %1022, %1016 : vector<2x1x16x16xf32>
    %1024 = arith.addf %1007, %1023 : vector<2x1x16x16xf32>
    %c54_449 = arith.constant 54 : index
    %1025 = memref.load %arg5[%c54_449] : memref<144xf32, #tpu.memory_space<smem>>
    %1026 = vector.broadcast %1025 : f32 to vector<2x1x16x16xf32>
    %1027 = arith.mulf %1026, %1016 : vector<2x1x16x16xf32>
    %1028 = arith.addf %1011, %1027 : vector<2x1x16x16xf32>
    %c55_450 = arith.constant 55 : index
    %1029 = memref.load %arg5[%c55_450] : memref<144xf32, #tpu.memory_space<smem>>
    %1030 = vector.broadcast %1029 : f32 to vector<2x1x16x16xf32>
    %1031 = arith.mulf %1030, %1016 : vector<2x1x16x16xf32>
    %1032 = arith.addf %1015, %1031 : vector<2x1x16x16xf32>
    %c0_451 = arith.constant 0 : index
    %c1_452 = arith.constant 1 : index
    %c1_453 = arith.constant 1 : index
    %c1_454 = arith.constant 1 : index
    %1033 = vector.load %arg9[%c0_451, %c1_452, %c1_453, %c1_454] : memref<2x4x18x18xf32, #tpu.memory_space<vmem>>, vector<2x1x16x16xf32>
    %c68_455 = arith.constant 68 : index
    %1034 = memref.load %arg5[%c68_455] : memref<144xf32, #tpu.memory_space<smem>>
    %1035 = vector.broadcast %1034 : f32 to vector<2x1x16x16xf32>
    %1036 = arith.mulf %1035, %1033 : vector<2x1x16x16xf32>
    %1037 = arith.addf %1020, %1036 : vector<2x1x16x16xf32>
    %c69_456 = arith.constant 69 : index
    %1038 = memref.load %arg5[%c69_456] : memref<144xf32, #tpu.memory_space<smem>>
    %1039 = vector.broadcast %1038 : f32 to vector<2x1x16x16xf32>
    %1040 = arith.mulf %1039, %1033 : vector<2x1x16x16xf32>
    %1041 = arith.addf %1024, %1040 : vector<2x1x16x16xf32>
    %c70_457 = arith.constant 70 : index
    %1042 = memref.load %arg5[%c70_457] : memref<144xf32, #tpu.memory_space<smem>>
    %1043 = vector.broadcast %1042 : f32 to vector<2x1x16x16xf32>
    %1044 = arith.mulf %1043, %1033 : vector<2x1x16x16xf32>
    %1045 = arith.addf %1028, %1044 : vector<2x1x16x16xf32>
    %c71_458 = arith.constant 71 : index
    %1046 = memref.load %arg5[%c71_458] : memref<144xf32, #tpu.memory_space<smem>>
    %1047 = vector.broadcast %1046 : f32 to vector<2x1x16x16xf32>
    %1048 = arith.mulf %1047, %1033 : vector<2x1x16x16xf32>
    %1049 = arith.addf %1032, %1048 : vector<2x1x16x16xf32>
    %c0_459 = arith.constant 0 : index
    %c1_460 = arith.constant 1 : index
    %c1_461 = arith.constant 1 : index
    %c2_462 = arith.constant 2 : index
    %1050 = vector.load %arg9[%c0_459, %c1_460, %c1_461, %c2_462] : memref<2x4x18x18xf32, #tpu.memory_space<vmem>>, vector<2x1x16x16xf32>
    %c84_463 = arith.constant 84 : index
    %1051 = memref.load %arg5[%c84_463] : memref<144xf32, #tpu.memory_space<smem>>
    %1052 = vector.broadcast %1051 : f32 to vector<2x1x16x16xf32>
    %1053 = arith.mulf %1052, %1050 : vector<2x1x16x16xf32>
    %1054 = arith.addf %1037, %1053 : vector<2x1x16x16xf32>
    %c85_464 = arith.constant 85 : index
    %1055 = memref.load %arg5[%c85_464] : memref<144xf32, #tpu.memory_space<smem>>
    %1056 = vector.broadcast %1055 : f32 to vector<2x1x16x16xf32>
    %1057 = arith.mulf %1056, %1050 : vector<2x1x16x16xf32>
    %1058 = arith.addf %1041, %1057 : vector<2x1x16x16xf32>
    %c86_465 = arith.constant 86 : index
    %1059 = memref.load %arg5[%c86_465] : memref<144xf32, #tpu.memory_space<smem>>
    %1060 = vector.broadcast %1059 : f32 to vector<2x1x16x16xf32>
    %1061 = arith.mulf %1060, %1050 : vector<2x1x16x16xf32>
    %1062 = arith.addf %1045, %1061 : vector<2x1x16x16xf32>
    %c87_466 = arith.constant 87 : index
    %1063 = memref.load %arg5[%c87_466] : memref<144xf32, #tpu.memory_space<smem>>
    %1064 = vector.broadcast %1063 : f32 to vector<2x1x16x16xf32>
    %1065 = arith.mulf %1064, %1050 : vector<2x1x16x16xf32>
    %1066 = arith.addf %1049, %1065 : vector<2x1x16x16xf32>
    %c0_467 = arith.constant 0 : index
    %c1_468 = arith.constant 1 : index
    %c2_469 = arith.constant 2 : index
    %c0_470 = arith.constant 0 : index
    %1067 = vector.load %arg9[%c0_467, %c1_468, %c2_469, %c0_470] : memref<2x4x18x18xf32, #tpu.memory_space<vmem>>, vector<2x1x16x16xf32>
    %c100_471 = arith.constant 100 : index
    %1068 = memref.load %arg5[%c100_471] : memref<144xf32, #tpu.memory_space<smem>>
    %1069 = vector.broadcast %1068 : f32 to vector<2x1x16x16xf32>
    %1070 = arith.mulf %1069, %1067 : vector<2x1x16x16xf32>
    %1071 = arith.addf %1054, %1070 : vector<2x1x16x16xf32>
    %c101_472 = arith.constant 101 : index
    %1072 = memref.load %arg5[%c101_472] : memref<144xf32, #tpu.memory_space<smem>>
    %1073 = vector.broadcast %1072 : f32 to vector<2x1x16x16xf32>
    %1074 = arith.mulf %1073, %1067 : vector<2x1x16x16xf32>
    %1075 = arith.addf %1058, %1074 : vector<2x1x16x16xf32>
    %c102_473 = arith.constant 102 : index
    %1076 = memref.load %arg5[%c102_473] : memref<144xf32, #tpu.memory_space<smem>>
    %1077 = vector.broadcast %1076 : f32 to vector<2x1x16x16xf32>
    %1078 = arith.mulf %1077, %1067 : vector<2x1x16x16xf32>
    %1079 = arith.addf %1062, %1078 : vector<2x1x16x16xf32>
    %c103_474 = arith.constant 103 : index
    %1080 = memref.load %arg5[%c103_474] : memref<144xf32, #tpu.memory_space<smem>>
    %1081 = vector.broadcast %1080 : f32 to vector<2x1x16x16xf32>
    %1082 = arith.mulf %1081, %1067 : vector<2x1x16x16xf32>
    %1083 = arith.addf %1066, %1082 : vector<2x1x16x16xf32>
    %c0_475 = arith.constant 0 : index
    %c1_476 = arith.constant 1 : index
    %c2_477 = arith.constant 2 : index
    %c1_478 = arith.constant 1 : index
    %1084 = vector.load %arg9[%c0_475, %c1_476, %c2_477, %c1_478] : memref<2x4x18x18xf32, #tpu.memory_space<vmem>>, vector<2x1x16x16xf32>
    %c116_479 = arith.constant 116 : index
    %1085 = memref.load %arg5[%c116_479] : memref<144xf32, #tpu.memory_space<smem>>
    %1086 = vector.broadcast %1085 : f32 to vector<2x1x16x16xf32>
    %1087 = arith.mulf %1086, %1084 : vector<2x1x16x16xf32>
    %1088 = arith.addf %1071, %1087 : vector<2x1x16x16xf32>
    %c117_480 = arith.constant 117 : index
    %1089 = memref.load %arg5[%c117_480] : memref<144xf32, #tpu.memory_space<smem>>
    %1090 = vector.broadcast %1089 : f32 to vector<2x1x16x16xf32>
    %1091 = arith.mulf %1090, %1084 : vector<2x1x16x16xf32>
    %1092 = arith.addf %1075, %1091 : vector<2x1x16x16xf32>
    %c118_481 = arith.constant 118 : index
    %1093 = memref.load %arg5[%c118_481] : memref<144xf32, #tpu.memory_space<smem>>
    %1094 = vector.broadcast %1093 : f32 to vector<2x1x16x16xf32>
    %1095 = arith.mulf %1094, %1084 : vector<2x1x16x16xf32>
    %1096 = arith.addf %1079, %1095 : vector<2x1x16x16xf32>
    %c119_482 = arith.constant 119 : index
    %1097 = memref.load %arg5[%c119_482] : memref<144xf32, #tpu.memory_space<smem>>
    %1098 = vector.broadcast %1097 : f32 to vector<2x1x16x16xf32>
    %1099 = arith.mulf %1098, %1084 : vector<2x1x16x16xf32>
    %1100 = arith.addf %1083, %1099 : vector<2x1x16x16xf32>
    %c0_483 = arith.constant 0 : index
    %c1_484 = arith.constant 1 : index
    %c2_485 = arith.constant 2 : index
    %c2_486 = arith.constant 2 : index
    %1101 = vector.load %arg9[%c0_483, %c1_484, %c2_485, %c2_486] : memref<2x4x18x18xf32, #tpu.memory_space<vmem>>, vector<2x1x16x16xf32>
    %c132_487 = arith.constant 132 : index
    %1102 = memref.load %arg5[%c132_487] : memref<144xf32, #tpu.memory_space<smem>>
    %1103 = vector.broadcast %1102 : f32 to vector<2x1x16x16xf32>
    %1104 = arith.mulf %1103, %1101 : vector<2x1x16x16xf32>
    %1105 = arith.addf %1088, %1104 : vector<2x1x16x16xf32>
    %c133_488 = arith.constant 133 : index
    %1106 = memref.load %arg5[%c133_488] : memref<144xf32, #tpu.memory_space<smem>>
    %1107 = vector.broadcast %1106 : f32 to vector<2x1x16x16xf32>
    %1108 = arith.mulf %1107, %1101 : vector<2x1x16x16xf32>
    %1109 = arith.addf %1092, %1108 : vector<2x1x16x16xf32>
    %c134_489 = arith.constant 134 : index
    %1110 = memref.load %arg5[%c134_489] : memref<144xf32, #tpu.memory_space<smem>>
    %1111 = vector.broadcast %1110 : f32 to vector<2x1x16x16xf32>
    %1112 = arith.mulf %1111, %1101 : vector<2x1x16x16xf32>
    %1113 = arith.addf %1096, %1112 : vector<2x1x16x16xf32>
    %c135_490 = arith.constant 135 : index
    %1114 = memref.load %arg5[%c135_490] : memref<144xf32, #tpu.memory_space<smem>>
    %1115 = vector.broadcast %1114 : f32 to vector<2x1x16x16xf32>
    %1116 = arith.mulf %1115, %1101 : vector<2x1x16x16xf32>
    %1117 = arith.addf %1100, %1116 : vector<2x1x16x16xf32>
    %c0_491 = arith.constant 0 : index
    %c2_492 = arith.constant 2 : index
    %c0_493 = arith.constant 0 : index
    %c0_494 = arith.constant 0 : index
    %1118 = vector.load %arg9[%c0_491, %c2_492, %c0_493, %c0_494] : memref<2x4x18x18xf32, #tpu.memory_space<vmem>>, vector<2x1x16x16xf32>
    %c8_495 = arith.constant 8 : index
    %1119 = memref.load %arg5[%c8_495] : memref<144xf32, #tpu.memory_space<smem>>
    %1120 = vector.broadcast %1119 : f32 to vector<2x1x16x16xf32>
    %1121 = arith.mulf %1120, %1118 : vector<2x1x16x16xf32>
    %1122 = arith.addf %1105, %1121 : vector<2x1x16x16xf32>
    %c9_496 = arith.constant 9 : index
    %1123 = memref.load %arg5[%c9_496] : memref<144xf32, #tpu.memory_space<smem>>
    %1124 = vector.broadcast %1123 : f32 to vector<2x1x16x16xf32>
    %1125 = arith.mulf %1124, %1118 : vector<2x1x16x16xf32>
    %1126 = arith.addf %1109, %1125 : vector<2x1x16x16xf32>
    %c10_497 = arith.constant 10 : index
    %1127 = memref.load %arg5[%c10_497] : memref<144xf32, #tpu.memory_space<smem>>
    %1128 = vector.broadcast %1127 : f32 to vector<2x1x16x16xf32>
    %1129 = arith.mulf %1128, %1118 : vector<2x1x16x16xf32>
    %1130 = arith.addf %1113, %1129 : vector<2x1x16x16xf32>
    %c11_498 = arith.constant 11 : index
    %1131 = memref.load %arg5[%c11_498] : memref<144xf32, #tpu.memory_space<smem>>
    %1132 = vector.broadcast %1131 : f32 to vector<2x1x16x16xf32>
    %1133 = arith.mulf %1132, %1118 : vector<2x1x16x16xf32>
    %1134 = arith.addf %1117, %1133 : vector<2x1x16x16xf32>
    %c0_499 = arith.constant 0 : index
    %c2_500 = arith.constant 2 : index
    %c0_501 = arith.constant 0 : index
    %c1_502 = arith.constant 1 : index
    %1135 = vector.load %arg9[%c0_499, %c2_500, %c0_501, %c1_502] : memref<2x4x18x18xf32, #tpu.memory_space<vmem>>, vector<2x1x16x16xf32>
    %c24_503 = arith.constant 24 : index
    %1136 = memref.load %arg5[%c24_503] : memref<144xf32, #tpu.memory_space<smem>>
    %1137 = vector.broadcast %1136 : f32 to vector<2x1x16x16xf32>
    %1138 = arith.mulf %1137, %1135 : vector<2x1x16x16xf32>
    %1139 = arith.addf %1122, %1138 : vector<2x1x16x16xf32>
    %c25_504 = arith.constant 25 : index
    %1140 = memref.load %arg5[%c25_504] : memref<144xf32, #tpu.memory_space<smem>>
    %1141 = vector.broadcast %1140 : f32 to vector<2x1x16x16xf32>
    %1142 = arith.mulf %1141, %1135 : vector<2x1x16x16xf32>
    %1143 = arith.addf %1126, %1142 : vector<2x1x16x16xf32>
    %c26_505 = arith.constant 26 : index
    %1144 = memref.load %arg5[%c26_505] : memref<144xf32, #tpu.memory_space<smem>>
    %1145 = vector.broadcast %1144 : f32 to vector<2x1x16x16xf32>
    %1146 = arith.mulf %1145, %1135 : vector<2x1x16x16xf32>
    %1147 = arith.addf %1130, %1146 : vector<2x1x16x16xf32>
    %c27_506 = arith.constant 27 : index
    %1148 = memref.load %arg5[%c27_506] : memref<144xf32, #tpu.memory_space<smem>>
    %1149 = vector.broadcast %1148 : f32 to vector<2x1x16x16xf32>
    %1150 = arith.mulf %1149, %1135 : vector<2x1x16x16xf32>
    %1151 = arith.addf %1134, %1150 : vector<2x1x16x16xf32>
    %c0_507 = arith.constant 0 : index
    %c2_508 = arith.constant 2 : index
    %c0_509 = arith.constant 0 : index
    %c2_510 = arith.constant 2 : index
    %1152 = vector.load %arg9[%c0_507, %c2_508, %c0_509, %c2_510] : memref<2x4x18x18xf32, #tpu.memory_space<vmem>>, vector<2x1x16x16xf32>
    %c40_511 = arith.constant 40 : index
    %1153 = memref.load %arg5[%c40_511] : memref<144xf32, #tpu.memory_space<smem>>
    %1154 = vector.broadcast %1153 : f32 to vector<2x1x16x16xf32>
    %1155 = arith.mulf %1154, %1152 : vector<2x1x16x16xf32>
    %1156 = arith.addf %1139, %1155 : vector<2x1x16x16xf32>
    %c41_512 = arith.constant 41 : index
    %1157 = memref.load %arg5[%c41_512] : memref<144xf32, #tpu.memory_space<smem>>
    %1158 = vector.broadcast %1157 : f32 to vector<2x1x16x16xf32>
    %1159 = arith.mulf %1158, %1152 : vector<2x1x16x16xf32>
    %1160 = arith.addf %1143, %1159 : vector<2x1x16x16xf32>
    %c42_513 = arith.constant 42 : index
    %1161 = memref.load %arg5[%c42_513] : memref<144xf32, #tpu.memory_space<smem>>
    %1162 = vector.broadcast %1161 : f32 to vector<2x1x16x16xf32>
    %1163 = arith.mulf %1162, %1152 : vector<2x1x16x16xf32>
    %1164 = arith.addf %1147, %1163 : vector<2x1x16x16xf32>
    %c43_514 = arith.constant 43 : index
    %1165 = memref.load %arg5[%c43_514] : memref<144xf32, #tpu.memory_space<smem>>
    %1166 = vector.broadcast %1165 : f32 to vector<2x1x16x16xf32>
    %1167 = arith.mulf %1166, %1152 : vector<2x1x16x16xf32>
    %1168 = arith.addf %1151, %1167 : vector<2x1x16x16xf32>
    %c0_515 = arith.constant 0 : index
    %c2_516 = arith.constant 2 : index
    %c1_517 = arith.constant 1 : index
    %c0_518 = arith.constant 0 : index
    %1169 = vector.load %arg9[%c0_515, %c2_516, %c1_517, %c0_518] : memref<2x4x18x18xf32, #tpu.memory_space<vmem>>, vector<2x1x16x16xf32>
    %c56_519 = arith.constant 56 : index
    %1170 = memref.load %arg5[%c56_519] : memref<144xf32, #tpu.memory_space<smem>>
    %1171 = vector.broadcast %1170 : f32 to vector<2x1x16x16xf32>
    %1172 = arith.mulf %1171, %1169 : vector<2x1x16x16xf32>
    %1173 = arith.addf %1156, %1172 : vector<2x1x16x16xf32>
    %c57_520 = arith.constant 57 : index
    %1174 = memref.load %arg5[%c57_520] : memref<144xf32, #tpu.memory_space<smem>>
    %1175 = vector.broadcast %1174 : f32 to vector<2x1x16x16xf32>
    %1176 = arith.mulf %1175, %1169 : vector<2x1x16x16xf32>
    %1177 = arith.addf %1160, %1176 : vector<2x1x16x16xf32>
    %c58_521 = arith.constant 58 : index
    %1178 = memref.load %arg5[%c58_521] : memref<144xf32, #tpu.memory_space<smem>>
    %1179 = vector.broadcast %1178 : f32 to vector<2x1x16x16xf32>
    %1180 = arith.mulf %1179, %1169 : vector<2x1x16x16xf32>
    %1181 = arith.addf %1164, %1180 : vector<2x1x16x16xf32>
    %c59_522 = arith.constant 59 : index
    %1182 = memref.load %arg5[%c59_522] : memref<144xf32, #tpu.memory_space<smem>>
    %1183 = vector.broadcast %1182 : f32 to vector<2x1x16x16xf32>
    %1184 = arith.mulf %1183, %1169 : vector<2x1x16x16xf32>
    %1185 = arith.addf %1168, %1184 : vector<2x1x16x16xf32>
    %c0_523 = arith.constant 0 : index
    %c2_524 = arith.constant 2 : index
    %c1_525 = arith.constant 1 : index
    %c1_526 = arith.constant 1 : index
    %1186 = vector.load %arg9[%c0_523, %c2_524, %c1_525, %c1_526] : memref<2x4x18x18xf32, #tpu.memory_space<vmem>>, vector<2x1x16x16xf32>
    %c72_527 = arith.constant 72 : index
    %1187 = memref.load %arg5[%c72_527] : memref<144xf32, #tpu.memory_space<smem>>
    %1188 = vector.broadcast %1187 : f32 to vector<2x1x16x16xf32>
    %1189 = arith.mulf %1188, %1186 : vector<2x1x16x16xf32>
    %1190 = arith.addf %1173, %1189 : vector<2x1x16x16xf32>
    %c73_528 = arith.constant 73 : index
    %1191 = memref.load %arg5[%c73_528] : memref<144xf32, #tpu.memory_space<smem>>
    %1192 = vector.broadcast %1191 : f32 to vector<2x1x16x16xf32>
    %1193 = arith.mulf %1192, %1186 : vector<2x1x16x16xf32>
    %1194 = arith.addf %1177, %1193 : vector<2x1x16x16xf32>
    %c74_529 = arith.constant 74 : index
    %1195 = memref.load %arg5[%c74_529] : memref<144xf32, #tpu.memory_space<smem>>
    %1196 = vector.broadcast %1195 : f32 to vector<2x1x16x16xf32>
    %1197 = arith.mulf %1196, %1186 : vector<2x1x16x16xf32>
    %1198 = arith.addf %1181, %1197 : vector<2x1x16x16xf32>
    %c75_530 = arith.constant 75 : index
    %1199 = memref.load %arg5[%c75_530] : memref<144xf32, #tpu.memory_space<smem>>
    %1200 = vector.broadcast %1199 : f32 to vector<2x1x16x16xf32>
    %1201 = arith.mulf %1200, %1186 : vector<2x1x16x16xf32>
    %1202 = arith.addf %1185, %1201 : vector<2x1x16x16xf32>
    %c0_531 = arith.constant 0 : index
    %c2_532 = arith.constant 2 : index
    %c1_533 = arith.constant 1 : index
    %c2_534 = arith.constant 2 : index
    %1203 = vector.load %arg9[%c0_531, %c2_532, %c1_533, %c2_534] : memref<2x4x18x18xf32, #tpu.memory_space<vmem>>, vector<2x1x16x16xf32>
    %c88_535 = arith.constant 88 : index
    %1204 = memref.load %arg5[%c88_535] : memref<144xf32, #tpu.memory_space<smem>>
    %1205 = vector.broadcast %1204 : f32 to vector<2x1x16x16xf32>
    %1206 = arith.mulf %1205, %1203 : vector<2x1x16x16xf32>
    %1207 = arith.addf %1190, %1206 : vector<2x1x16x16xf32>
    %c89_536 = arith.constant 89 : index
    %1208 = memref.load %arg5[%c89_536] : memref<144xf32, #tpu.memory_space<smem>>
    %1209 = vector.broadcast %1208 : f32 to vector<2x1x16x16xf32>
    %1210 = arith.mulf %1209, %1203 : vector<2x1x16x16xf32>
    %1211 = arith.addf %1194, %1210 : vector<2x1x16x16xf32>
    %c90_537 = arith.constant 90 : index
    %1212 = memref.load %arg5[%c90_537] : memref<144xf32, #tpu.memory_space<smem>>
    %1213 = vector.broadcast %1212 : f32 to vector<2x1x16x16xf32>
    %1214 = arith.mulf %1213, %1203 : vector<2x1x16x16xf32>
    %1215 = arith.addf %1198, %1214 : vector<2x1x16x16xf32>
    %c91_538 = arith.constant 91 : index
    %1216 = memref.load %arg5[%c91_538] : memref<144xf32, #tpu.memory_space<smem>>
    %1217 = vector.broadcast %1216 : f32 to vector<2x1x16x16xf32>
    %1218 = arith.mulf %1217, %1203 : vector<2x1x16x16xf32>
    %1219 = arith.addf %1202, %1218 : vector<2x1x16x16xf32>
    %c0_539 = arith.constant 0 : index
    %c2_540 = arith.constant 2 : index
    %c2_541 = arith.constant 2 : index
    %c0_542 = arith.constant 0 : index
    %1220 = vector.load %arg9[%c0_539, %c2_540, %c2_541, %c0_542] : memref<2x4x18x18xf32, #tpu.memory_space<vmem>>, vector<2x1x16x16xf32>
    %c104_543 = arith.constant 104 : index
    %1221 = memref.load %arg5[%c104_543] : memref<144xf32, #tpu.memory_space<smem>>
    %1222 = vector.broadcast %1221 : f32 to vector<2x1x16x16xf32>
    %1223 = arith.mulf %1222, %1220 : vector<2x1x16x16xf32>
    %1224 = arith.addf %1207, %1223 : vector<2x1x16x16xf32>
    %c105_544 = arith.constant 105 : index
    %1225 = memref.load %arg5[%c105_544] : memref<144xf32, #tpu.memory_space<smem>>
    %1226 = vector.broadcast %1225 : f32 to vector<2x1x16x16xf32>
    %1227 = arith.mulf %1226, %1220 : vector<2x1x16x16xf32>
    %1228 = arith.addf %1211, %1227 : vector<2x1x16x16xf32>
    %c106_545 = arith.constant 106 : index
    %1229 = memref.load %arg5[%c106_545] : memref<144xf32, #tpu.memory_space<smem>>
    %1230 = vector.broadcast %1229 : f32 to vector<2x1x16x16xf32>
    %1231 = arith.mulf %1230, %1220 : vector<2x1x16x16xf32>
    %1232 = arith.addf %1215, %1231 : vector<2x1x16x16xf32>
    %c107_546 = arith.constant 107 : index
    %1233 = memref.load %arg5[%c107_546] : memref<144xf32, #tpu.memory_space<smem>>
    %1234 = vector.broadcast %1233 : f32 to vector<2x1x16x16xf32>
    %1235 = arith.mulf %1234, %1220 : vector<2x1x16x16xf32>
    %1236 = arith.addf %1219, %1235 : vector<2x1x16x16xf32>
    %c0_547 = arith.constant 0 : index
    %c2_548 = arith.constant 2 : index
    %c2_549 = arith.constant 2 : index
    %c1_550 = arith.constant 1 : index
    %1237 = vector.load %arg9[%c0_547, %c2_548, %c2_549, %c1_550] : memref<2x4x18x18xf32, #tpu.memory_space<vmem>>, vector<2x1x16x16xf32>
    %c120_551 = arith.constant 120 : index
    %1238 = memref.load %arg5[%c120_551] : memref<144xf32, #tpu.memory_space<smem>>
    %1239 = vector.broadcast %1238 : f32 to vector<2x1x16x16xf32>
    %1240 = arith.mulf %1239, %1237 : vector<2x1x16x16xf32>
    %1241 = arith.addf %1224, %1240 : vector<2x1x16x16xf32>
    %c121_552 = arith.constant 121 : index
    %1242 = memref.load %arg5[%c121_552] : memref<144xf32, #tpu.memory_space<smem>>
    %1243 = vector.broadcast %1242 : f32 to vector<2x1x16x16xf32>
    %1244 = arith.mulf %1243, %1237 : vector<2x1x16x16xf32>
    %1245 = arith.addf %1228, %1244 : vector<2x1x16x16xf32>
    %c122_553 = arith.constant 122 : index
    %1246 = memref.load %arg5[%c122_553] : memref<144xf32, #tpu.memory_space<smem>>
    %1247 = vector.broadcast %1246 : f32 to vector<2x1x16x16xf32>
    %1248 = arith.mulf %1247, %1237 : vector<2x1x16x16xf32>
    %1249 = arith.addf %1232, %1248 : vector<2x1x16x16xf32>
    %c123_554 = arith.constant 123 : index
    %1250 = memref.load %arg5[%c123_554] : memref<144xf32, #tpu.memory_space<smem>>
    %1251 = vector.broadcast %1250 : f32 to vector<2x1x16x16xf32>
    %1252 = arith.mulf %1251, %1237 : vector<2x1x16x16xf32>
    %1253 = arith.addf %1236, %1252 : vector<2x1x16x16xf32>
    %c0_555 = arith.constant 0 : index
    %c2_556 = arith.constant 2 : index
    %c2_557 = arith.constant 2 : index
    %c2_558 = arith.constant 2 : index
    %1254 = vector.load %arg9[%c0_555, %c2_556, %c2_557, %c2_558] : memref<2x4x18x18xf32, #tpu.memory_space<vmem>>, vector<2x1x16x16xf32>
    %c136_559 = arith.constant 136 : index
    %1255 = memref.load %arg5[%c136_559] : memref<144xf32, #tpu.memory_space<smem>>
    %1256 = vector.broadcast %1255 : f32 to vector<2x1x16x16xf32>
    %1257 = arith.mulf %1256, %1254 : vector<2x1x16x16xf32>
    %1258 = arith.addf %1241, %1257 : vector<2x1x16x16xf32>
    %c137_560 = arith.constant 137 : index
    %1259 = memref.load %arg5[%c137_560] : memref<144xf32, #tpu.memory_space<smem>>
    %1260 = vector.broadcast %1259 : f32 to vector<2x1x16x16xf32>
    %1261 = arith.mulf %1260, %1254 : vector<2x1x16x16xf32>
    %1262 = arith.addf %1245, %1261 : vector<2x1x16x16xf32>
    %c138_561 = arith.constant 138 : index
    %1263 = memref.load %arg5[%c138_561] : memref<144xf32, #tpu.memory_space<smem>>
    %1264 = vector.broadcast %1263 : f32 to vector<2x1x16x16xf32>
    %1265 = arith.mulf %1264, %1254 : vector<2x1x16x16xf32>
    %1266 = arith.addf %1249, %1265 : vector<2x1x16x16xf32>
    %c139_562 = arith.constant 139 : index
    %1267 = memref.load %arg5[%c139_562] : memref<144xf32, #tpu.memory_space<smem>>
    %1268 = vector.broadcast %1267 : f32 to vector<2x1x16x16xf32>
    %1269 = arith.mulf %1268, %1254 : vector<2x1x16x16xf32>
    %1270 = arith.addf %1253, %1269 : vector<2x1x16x16xf32>
    %c0_563 = arith.constant 0 : index
    %c3_564 = arith.constant 3 : index
    %c0_565 = arith.constant 0 : index
    %c0_566 = arith.constant 0 : index
    %1271 = vector.load %arg9[%c0_563, %c3_564, %c0_565, %c0_566] : memref<2x4x18x18xf32, #tpu.memory_space<vmem>>, vector<2x1x16x16xf32>
    %c12_567 = arith.constant 12 : index
    %1272 = memref.load %arg5[%c12_567] : memref<144xf32, #tpu.memory_space<smem>>
    %1273 = vector.broadcast %1272 : f32 to vector<2x1x16x16xf32>
    %1274 = arith.mulf %1273, %1271 : vector<2x1x16x16xf32>
    %1275 = arith.addf %1258, %1274 : vector<2x1x16x16xf32>
    %c13_568 = arith.constant 13 : index
    %1276 = memref.load %arg5[%c13_568] : memref<144xf32, #tpu.memory_space<smem>>
    %1277 = vector.broadcast %1276 : f32 to vector<2x1x16x16xf32>
    %1278 = arith.mulf %1277, %1271 : vector<2x1x16x16xf32>
    %1279 = arith.addf %1262, %1278 : vector<2x1x16x16xf32>
    %c14_569 = arith.constant 14 : index
    %1280 = memref.load %arg5[%c14_569] : memref<144xf32, #tpu.memory_space<smem>>
    %1281 = vector.broadcast %1280 : f32 to vector<2x1x16x16xf32>
    %1282 = arith.mulf %1281, %1271 : vector<2x1x16x16xf32>
    %1283 = arith.addf %1266, %1282 : vector<2x1x16x16xf32>
    %c15_570 = arith.constant 15 : index
    %1284 = memref.load %arg5[%c15_570] : memref<144xf32, #tpu.memory_space<smem>>
    %1285 = vector.broadcast %1284 : f32 to vector<2x1x16x16xf32>
    %1286 = arith.mulf %1285, %1271 : vector<2x1x16x16xf32>
    %1287 = arith.addf %1270, %1286 : vector<2x1x16x16xf32>
    %c0_571 = arith.constant 0 : index
    %c3_572 = arith.constant 3 : index
    %c0_573 = arith.constant 0 : index
    %c1_574 = arith.constant 1 : index
    %1288 = vector.load %arg9[%c0_571, %c3_572, %c0_573, %c1_574] : memref<2x4x18x18xf32, #tpu.memory_space<vmem>>, vector<2x1x16x16xf32>
    %c28_575 = arith.constant 28 : index
    %1289 = memref.load %arg5[%c28_575] : memref<144xf32, #tpu.memory_space<smem>>
    %1290 = vector.broadcast %1289 : f32 to vector<2x1x16x16xf32>
    %1291 = arith.mulf %1290, %1288 : vector<2x1x16x16xf32>
    %1292 = arith.addf %1275, %1291 : vector<2x1x16x16xf32>
    %c29_576 = arith.constant 29 : index
    %1293 = memref.load %arg5[%c29_576] : memref<144xf32, #tpu.memory_space<smem>>
    %1294 = vector.broadcast %1293 : f32 to vector<2x1x16x16xf32>
    %1295 = arith.mulf %1294, %1288 : vector<2x1x16x16xf32>
    %1296 = arith.addf %1279, %1295 : vector<2x1x16x16xf32>
    %c30_577 = arith.constant 30 : index
    %1297 = memref.load %arg5[%c30_577] : memref<144xf32, #tpu.memory_space<smem>>
    %1298 = vector.broadcast %1297 : f32 to vector<2x1x16x16xf32>
    %1299 = arith.mulf %1298, %1288 : vector<2x1x16x16xf32>
    %1300 = arith.addf %1283, %1299 : vector<2x1x16x16xf32>
    %c31_578 = arith.constant 31 : index
    %1301 = memref.load %arg5[%c31_578] : memref<144xf32, #tpu.memory_space<smem>>
    %1302 = vector.broadcast %1301 : f32 to vector<2x1x16x16xf32>
    %1303 = arith.mulf %1302, %1288 : vector<2x1x16x16xf32>
    %1304 = arith.addf %1287, %1303 : vector<2x1x16x16xf32>
    %c0_579 = arith.constant 0 : index
    %c3_580 = arith.constant 3 : index
    %c0_581 = arith.constant 0 : index
    %c2_582 = arith.constant 2 : index
    %1305 = vector.load %arg9[%c0_579, %c3_580, %c0_581, %c2_582] : memref<2x4x18x18xf32, #tpu.memory_space<vmem>>, vector<2x1x16x16xf32>
    %c44_583 = arith.constant 44 : index
    %1306 = memref.load %arg5[%c44_583] : memref<144xf32, #tpu.memory_space<smem>>
    %1307 = vector.broadcast %1306 : f32 to vector<2x1x16x16xf32>
    %1308 = arith.mulf %1307, %1305 : vector<2x1x16x16xf32>
    %1309 = arith.addf %1292, %1308 : vector<2x1x16x16xf32>
    %c45_584 = arith.constant 45 : index
    %1310 = memref.load %arg5[%c45_584] : memref<144xf32, #tpu.memory_space<smem>>
    %1311 = vector.broadcast %1310 : f32 to vector<2x1x16x16xf32>
    %1312 = arith.mulf %1311, %1305 : vector<2x1x16x16xf32>
    %1313 = arith.addf %1296, %1312 : vector<2x1x16x16xf32>
    %c46_585 = arith.constant 46 : index
    %1314 = memref.load %arg5[%c46_585] : memref<144xf32, #tpu.memory_space<smem>>
    %1315 = vector.broadcast %1314 : f32 to vector<2x1x16x16xf32>
    %1316 = arith.mulf %1315, %1305 : vector<2x1x16x16xf32>
    %1317 = arith.addf %1300, %1316 : vector<2x1x16x16xf32>
    %c47_586 = arith.constant 47 : index
    %1318 = memref.load %arg5[%c47_586] : memref<144xf32, #tpu.memory_space<smem>>
    %1319 = vector.broadcast %1318 : f32 to vector<2x1x16x16xf32>
    %1320 = arith.mulf %1319, %1305 : vector<2x1x16x16xf32>
    %1321 = arith.addf %1304, %1320 : vector<2x1x16x16xf32>
    %c0_587 = arith.constant 0 : index
    %c3_588 = arith.constant 3 : index
    %c1_589 = arith.constant 1 : index
    %c0_590 = arith.constant 0 : index
    %1322 = vector.load %arg9[%c0_587, %c3_588, %c1_589, %c0_590] : memref<2x4x18x18xf32, #tpu.memory_space<vmem>>, vector<2x1x16x16xf32>
    %c60_591 = arith.constant 60 : index
    %1323 = memref.load %arg5[%c60_591] : memref<144xf32, #tpu.memory_space<smem>>
    %1324 = vector.broadcast %1323 : f32 to vector<2x1x16x16xf32>
    %1325 = arith.mulf %1324, %1322 : vector<2x1x16x16xf32>
    %1326 = arith.addf %1309, %1325 : vector<2x1x16x16xf32>
    %c61_592 = arith.constant 61 : index
    %1327 = memref.load %arg5[%c61_592] : memref<144xf32, #tpu.memory_space<smem>>
    %1328 = vector.broadcast %1327 : f32 to vector<2x1x16x16xf32>
    %1329 = arith.mulf %1328, %1322 : vector<2x1x16x16xf32>
    %1330 = arith.addf %1313, %1329 : vector<2x1x16x16xf32>
    %c62_593 = arith.constant 62 : index
    %1331 = memref.load %arg5[%c62_593] : memref<144xf32, #tpu.memory_space<smem>>
    %1332 = vector.broadcast %1331 : f32 to vector<2x1x16x16xf32>
    %1333 = arith.mulf %1332, %1322 : vector<2x1x16x16xf32>
    %1334 = arith.addf %1317, %1333 : vector<2x1x16x16xf32>
    %c63_594 = arith.constant 63 : index
    %1335 = memref.load %arg5[%c63_594] : memref<144xf32, #tpu.memory_space<smem>>
    %1336 = vector.broadcast %1335 : f32 to vector<2x1x16x16xf32>
    %1337 = arith.mulf %1336, %1322 : vector<2x1x16x16xf32>
    %1338 = arith.addf %1321, %1337 : vector<2x1x16x16xf32>
    %c0_595 = arith.constant 0 : index
    %c3_596 = arith.constant 3 : index
    %c1_597 = arith.constant 1 : index
    %c1_598 = arith.constant 1 : index
    %1339 = vector.load %arg9[%c0_595, %c3_596, %c1_597, %c1_598] : memref<2x4x18x18xf32, #tpu.memory_space<vmem>>, vector<2x1x16x16xf32>
    %c76_599 = arith.constant 76 : index
    %1340 = memref.load %arg5[%c76_599] : memref<144xf32, #tpu.memory_space<smem>>
    %1341 = vector.broadcast %1340 : f32 to vector<2x1x16x16xf32>
    %1342 = arith.mulf %1341, %1339 : vector<2x1x16x16xf32>
    %1343 = arith.addf %1326, %1342 : vector<2x1x16x16xf32>
    %c77_600 = arith.constant 77 : index
    %1344 = memref.load %arg5[%c77_600] : memref<144xf32, #tpu.memory_space<smem>>
    %1345 = vector.broadcast %1344 : f32 to vector<2x1x16x16xf32>
    %1346 = arith.mulf %1345, %1339 : vector<2x1x16x16xf32>
    %1347 = arith.addf %1330, %1346 : vector<2x1x16x16xf32>
    %c78_601 = arith.constant 78 : index
    %1348 = memref.load %arg5[%c78_601] : memref<144xf32, #tpu.memory_space<smem>>
    %1349 = vector.broadcast %1348 : f32 to vector<2x1x16x16xf32>
    %1350 = arith.mulf %1349, %1339 : vector<2x1x16x16xf32>
    %1351 = arith.addf %1334, %1350 : vector<2x1x16x16xf32>
    %c79_602 = arith.constant 79 : index
    %1352 = memref.load %arg5[%c79_602] : memref<144xf32, #tpu.memory_space<smem>>
    %1353 = vector.broadcast %1352 : f32 to vector<2x1x16x16xf32>
    %1354 = arith.mulf %1353, %1339 : vector<2x1x16x16xf32>
    %1355 = arith.addf %1338, %1354 : vector<2x1x16x16xf32>
    %c0_603 = arith.constant 0 : index
    %c3_604 = arith.constant 3 : index
    %c1_605 = arith.constant 1 : index
    %c2_606 = arith.constant 2 : index
    %1356 = vector.load %arg9[%c0_603, %c3_604, %c1_605, %c2_606] : memref<2x4x18x18xf32, #tpu.memory_space<vmem>>, vector<2x1x16x16xf32>
    %c92_607 = arith.constant 92 : index
    %1357 = memref.load %arg5[%c92_607] : memref<144xf32, #tpu.memory_space<smem>>
    %1358 = vector.broadcast %1357 : f32 to vector<2x1x16x16xf32>
    %1359 = arith.mulf %1358, %1356 : vector<2x1x16x16xf32>
    %1360 = arith.addf %1343, %1359 : vector<2x1x16x16xf32>
    %c93_608 = arith.constant 93 : index
    %1361 = memref.load %arg5[%c93_608] : memref<144xf32, #tpu.memory_space<smem>>
    %1362 = vector.broadcast %1361 : f32 to vector<2x1x16x16xf32>
    %1363 = arith.mulf %1362, %1356 : vector<2x1x16x16xf32>
    %1364 = arith.addf %1347, %1363 : vector<2x1x16x16xf32>
    %c94_609 = arith.constant 94 : index
    %1365 = memref.load %arg5[%c94_609] : memref<144xf32, #tpu.memory_space<smem>>
    %1366 = vector.broadcast %1365 : f32 to vector<2x1x16x16xf32>
    %1367 = arith.mulf %1366, %1356 : vector<2x1x16x16xf32>
    %1368 = arith.addf %1351, %1367 : vector<2x1x16x16xf32>
    %c95_610 = arith.constant 95 : index
    %1369 = memref.load %arg5[%c95_610] : memref<144xf32, #tpu.memory_space<smem>>
    %1370 = vector.broadcast %1369 : f32 to vector<2x1x16x16xf32>
    %1371 = arith.mulf %1370, %1356 : vector<2x1x16x16xf32>
    %1372 = arith.addf %1355, %1371 : vector<2x1x16x16xf32>
    %c0_611 = arith.constant 0 : index
    %c3_612 = arith.constant 3 : index
    %c2_613 = arith.constant 2 : index
    %c0_614 = arith.constant 0 : index
    %1373 = vector.load %arg9[%c0_611, %c3_612, %c2_613, %c0_614] : memref<2x4x18x18xf32, #tpu.memory_space<vmem>>, vector<2x1x16x16xf32>
    %c108_615 = arith.constant 108 : index
    %1374 = memref.load %arg5[%c108_615] : memref<144xf32, #tpu.memory_space<smem>>
    %1375 = vector.broadcast %1374 : f32 to vector<2x1x16x16xf32>
    %1376 = arith.mulf %1375, %1373 : vector<2x1x16x16xf32>
    %1377 = arith.addf %1360, %1376 : vector<2x1x16x16xf32>
    %c109_616 = arith.constant 109 : index
    %1378 = memref.load %arg5[%c109_616] : memref<144xf32, #tpu.memory_space<smem>>
    %1379 = vector.broadcast %1378 : f32 to vector<2x1x16x16xf32>
    %1380 = arith.mulf %1379, %1373 : vector<2x1x16x16xf32>
    %1381 = arith.addf %1364, %1380 : vector<2x1x16x16xf32>
    %c110_617 = arith.constant 110 : index
    %1382 = memref.load %arg5[%c110_617] : memref<144xf32, #tpu.memory_space<smem>>
    %1383 = vector.broadcast %1382 : f32 to vector<2x1x16x16xf32>
    %1384 = arith.mulf %1383, %1373 : vector<2x1x16x16xf32>
    %1385 = arith.addf %1368, %1384 : vector<2x1x16x16xf32>
    %c111_618 = arith.constant 111 : index
    %1386 = memref.load %arg5[%c111_618] : memref<144xf32, #tpu.memory_space<smem>>
    %1387 = vector.broadcast %1386 : f32 to vector<2x1x16x16xf32>
    %1388 = arith.mulf %1387, %1373 : vector<2x1x16x16xf32>
    %1389 = arith.addf %1372, %1388 : vector<2x1x16x16xf32>
    %c0_619 = arith.constant 0 : index
    %c3_620 = arith.constant 3 : index
    %c2_621 = arith.constant 2 : index
    %c1_622 = arith.constant 1 : index
    %1390 = vector.load %arg9[%c0_619, %c3_620, %c2_621, %c1_622] : memref<2x4x18x18xf32, #tpu.memory_space<vmem>>, vector<2x1x16x16xf32>
    %c124_623 = arith.constant 124 : index
    %1391 = memref.load %arg5[%c124_623] : memref<144xf32, #tpu.memory_space<smem>>
    %1392 = vector.broadcast %1391 : f32 to vector<2x1x16x16xf32>
    %1393 = arith.mulf %1392, %1390 : vector<2x1x16x16xf32>
    %1394 = arith.addf %1377, %1393 : vector<2x1x16x16xf32>
    %c125_624 = arith.constant 125 : index
    %1395 = memref.load %arg5[%c125_624] : memref<144xf32, #tpu.memory_space<smem>>
    %1396 = vector.broadcast %1395 : f32 to vector<2x1x16x16xf32>
    %1397 = arith.mulf %1396, %1390 : vector<2x1x16x16xf32>
    %1398 = arith.addf %1381, %1397 : vector<2x1x16x16xf32>
    %c126_625 = arith.constant 126 : index
    %1399 = memref.load %arg5[%c126_625] : memref<144xf32, #tpu.memory_space<smem>>
    %1400 = vector.broadcast %1399 : f32 to vector<2x1x16x16xf32>
    %1401 = arith.mulf %1400, %1390 : vector<2x1x16x16xf32>
    %1402 = arith.addf %1385, %1401 : vector<2x1x16x16xf32>
    %c127_626 = arith.constant 127 : index
    %1403 = memref.load %arg5[%c127_626] : memref<144xf32, #tpu.memory_space<smem>>
    %1404 = vector.broadcast %1403 : f32 to vector<2x1x16x16xf32>
    %1405 = arith.mulf %1404, %1390 : vector<2x1x16x16xf32>
    %1406 = arith.addf %1389, %1405 : vector<2x1x16x16xf32>
    %c0_627 = arith.constant 0 : index
    %c3_628 = arith.constant 3 : index
    %c2_629 = arith.constant 2 : index
    %c2_630 = arith.constant 2 : index
    %1407 = vector.load %arg9[%c0_627, %c3_628, %c2_629, %c2_630] : memref<2x4x18x18xf32, #tpu.memory_space<vmem>>, vector<2x1x16x16xf32>
    %c140_631 = arith.constant 140 : index
    %1408 = memref.load %arg5[%c140_631] : memref<144xf32, #tpu.memory_space<smem>>
    %1409 = vector.broadcast %1408 : f32 to vector<2x1x16x16xf32>
    %1410 = arith.mulf %1409, %1407 : vector<2x1x16x16xf32>
    %1411 = arith.addf %1394, %1410 : vector<2x1x16x16xf32>
    %c141_632 = arith.constant 141 : index
    %1412 = memref.load %arg5[%c141_632] : memref<144xf32, #tpu.memory_space<smem>>
    %1413 = vector.broadcast %1412 : f32 to vector<2x1x16x16xf32>
    %1414 = arith.mulf %1413, %1407 : vector<2x1x16x16xf32>
    %1415 = arith.addf %1398, %1414 : vector<2x1x16x16xf32>
    %c142_633 = arith.constant 142 : index
    %1416 = memref.load %arg5[%c142_633] : memref<144xf32, #tpu.memory_space<smem>>
    %1417 = vector.broadcast %1416 : f32 to vector<2x1x16x16xf32>
    %1418 = arith.mulf %1417, %1407 : vector<2x1x16x16xf32>
    %1419 = arith.addf %1402, %1418 : vector<2x1x16x16xf32>
    %c143_634 = arith.constant 143 : index
    %1420 = memref.load %arg5[%c143_634] : memref<144xf32, #tpu.memory_space<smem>>
    %1421 = vector.broadcast %1420 : f32 to vector<2x1x16x16xf32>
    %1422 = arith.mulf %1421, %1407 : vector<2x1x16x16xf32>
    %1423 = arith.addf %1406, %1422 : vector<2x1x16x16xf32>
    %cst_635 = arith.constant dense<0.000000e+00> : vector<2x1x16xf32>
    %1424 = vector.multi_reduction <add>, %1411, %cst_635 [3] : vector<2x1x16x16xf32> to vector<2x1x16xf32>
    %1425 = vector.shape_cast %1424 : vector<2x1x16xf32> to vector<2x1x16x1xf32>
    %cst_636 = arith.constant dense<0.000000e+00> : vector<2x1x1xf32>
    %1426 = vector.multi_reduction <add>, %1425, %cst_636 [2] : vector<2x1x16x1xf32> to vector<2x1x1xf32>
    %1427 = vector.shape_cast %1426 : vector<2x1x1xf32> to vector<2x1x1x1xf32>
    %cst_637 = arith.constant dense<0.000000e+00> : vector<1x1x1xf32>
    %1428 = vector.multi_reduction <add>, %1427, %cst_637 [0] : vector<2x1x1x1xf32> to vector<1x1x1xf32>
    %1429 = vector.shape_cast %1428 : vector<1x1x1xf32> to vector<1x1x1x1xf32>
    %cst_638 = arith.constant 0.001953125 : f32
    %1430 = vector.broadcast %cst_638 : f32 to vector<1x1x1x1xf32>
    %1431 = arith.mulf %1429, %1430 : vector<1x1x1x1xf32>
    %1432 = vector.broadcast %1431 : vector<1x1x1x1xf32> to vector<2x1x16x16xf32>
    %1433 = arith.subf %1411, %1432 : vector<2x1x16x16xf32>
    %1434 = arith.mulf %1433, %1433 : vector<2x1x16x16xf32>
    %cst_639 = arith.constant dense<0.000000e+00> : vector<2x1x16xf32>
    %1435 = vector.multi_reduction <add>, %1434, %cst_639 [3] : vector<2x1x16x16xf32> to vector<2x1x16xf32>
    %1436 = vector.shape_cast %1435 : vector<2x1x16xf32> to vector<2x1x16x1xf32>
    %cst_640 = arith.constant dense<0.000000e+00> : vector<2x1x1xf32>
    %1437 = vector.multi_reduction <add>, %1436, %cst_640 [2] : vector<2x1x16x1xf32> to vector<2x1x1xf32>
    %1438 = vector.shape_cast %1437 : vector<2x1x1xf32> to vector<2x1x1x1xf32>
    %cst_641 = arith.constant dense<0.000000e+00> : vector<1x1x1xf32>
    %1439 = vector.multi_reduction <add>, %1438, %cst_641 [0] : vector<2x1x1x1xf32> to vector<1x1x1xf32>
    %1440 = vector.shape_cast %1439 : vector<1x1x1xf32> to vector<1x1x1x1xf32>
    %c0_642 = arith.constant 0 : index
    %1441 = memref.load %arg6[%c0_642] : memref<4xf32, #tpu.memory_space<smem>>
    %cst_643 = arith.constant 0.001953125 : f32
    %1442 = vector.broadcast %cst_643 : f32 to vector<1x1x1x1xf32>
    %1443 = arith.mulf %1440, %1442 : vector<1x1x1x1xf32>
    %cst_644 = arith.constant 9.99999974E-6 : f32
    %1444 = vector.broadcast %cst_644 : f32 to vector<1x1x1x1xf32>
    %1445 = arith.addf %1443, %1444 : vector<1x1x1x1xf32>
    %1446 = math.rsqrt %1445 : vector<1x1x1x1xf32>
    %1447 = vector.broadcast %1441 : f32 to vector<1x1x1x1xf32>
    %1448 = arith.mulf %1447, %1446 : vector<1x1x1x1xf32>
    %1449 = vector.broadcast %1448 : vector<1x1x1x1xf32> to vector<2x1x16x16xf32>
    %1450 = arith.mulf %1433, %1449 : vector<2x1x16x16xf32>
    %c0_645 = arith.constant 0 : index
    %1451 = memref.load %arg7[%c0_645] : memref<4xf32, #tpu.memory_space<smem>>
    %1452 = vector.broadcast %1451 : f32 to vector<2x1x16x16xf32>
    %1453 = arith.addf %1450, %1452 : vector<2x1x16x16xf32>
    %cst_646 = arith.constant dense<0.000000e+00> : vector<2x1x16xf32>
    %1454 = vector.multi_reduction <add>, %1415, %cst_646 [3] : vector<2x1x16x16xf32> to vector<2x1x16xf32>
    %1455 = vector.shape_cast %1454 : vector<2x1x16xf32> to vector<2x1x16x1xf32>
    %cst_647 = arith.constant dense<0.000000e+00> : vector<2x1x1xf32>
    %1456 = vector.multi_reduction <add>, %1455, %cst_647 [2] : vector<2x1x16x1xf32> to vector<2x1x1xf32>
    %1457 = vector.shape_cast %1456 : vector<2x1x1xf32> to vector<2x1x1x1xf32>
    %cst_648 = arith.constant dense<0.000000e+00> : vector<1x1x1xf32>
    %1458 = vector.multi_reduction <add>, %1457, %cst_648 [0] : vector<2x1x1x1xf32> to vector<1x1x1xf32>
    %1459 = vector.shape_cast %1458 : vector<1x1x1xf32> to vector<1x1x1x1xf32>
    %cst_649 = arith.constant 0.001953125 : f32
    %1460 = vector.broadcast %cst_649 : f32 to vector<1x1x1x1xf32>
    %1461 = arith.mulf %1459, %1460 : vector<1x1x1x1xf32>
    %1462 = vector.broadcast %1461 : vector<1x1x1x1xf32> to vector<2x1x16x16xf32>
    %1463 = arith.subf %1415, %1462 : vector<2x1x16x16xf32>
    %1464 = arith.mulf %1463, %1463 : vector<2x1x16x16xf32>
    %cst_650 = arith.constant dense<0.000000e+00> : vector<2x1x16xf32>
    %1465 = vector.multi_reduction <add>, %1464, %cst_650 [3] : vector<2x1x16x16xf32> to vector<2x1x16xf32>
    %1466 = vector.shape_cast %1465 : vector<2x1x16xf32> to vector<2x1x16x1xf32>
    %cst_651 = arith.constant dense<0.000000e+00> : vector<2x1x1xf32>
    %1467 = vector.multi_reduction <add>, %1466, %cst_651 [2] : vector<2x1x16x1xf32> to vector<2x1x1xf32>
    %1468 = vector.shape_cast %1467 : vector<2x1x1xf32> to vector<2x1x1x1xf32>
    %cst_652 = arith.constant dense<0.000000e+00> : vector<1x1x1xf32>
    %1469 = vector.multi_reduction <add>, %1468, %cst_652 [0] : vector<2x1x1x1xf32> to vector<1x1x1xf32>
    %1470 = vector.shape_cast %1469 : vector<1x1x1xf32> to vector<1x1x1x1xf32>
    %c1_653 = arith.constant 1 : index
    %1471 = memref.load %arg6[%c1_653] : memref<4xf32, #tpu.memory_space<smem>>
    %cst_654 = arith.constant 0.001953125 : f32
    %1472 = vector.broadcast %cst_654 : f32 to vector<1x1x1x1xf32>
    %1473 = arith.mulf %1470, %1472 : vector<1x1x1x1xf32>
    %cst_655 = arith.constant 9.99999974E-6 : f32
    %1474 = vector.broadcast %cst_655 : f32 to vector<1x1x1x1xf32>
    %1475 = arith.addf %1473, %1474 : vector<1x1x1x1xf32>
    %1476 = math.rsqrt %1475 : vector<1x1x1x1xf32>
    %1477 = vector.broadcast %1471 : f32 to vector<1x1x1x1xf32>
    %1478 = arith.mulf %1477, %1476 : vector<1x1x1x1xf32>
    %1479 = vector.broadcast %1478 : vector<1x1x1x1xf32> to vector<2x1x16x16xf32>
    %1480 = arith.mulf %1463, %1479 : vector<2x1x16x16xf32>
    %c1_656 = arith.constant 1 : index
    %1481 = memref.load %arg7[%c1_656] : memref<4xf32, #tpu.memory_space<smem>>
    %1482 = vector.broadcast %1481 : f32 to vector<2x1x16x16xf32>
    %1483 = arith.addf %1480, %1482 : vector<2x1x16x16xf32>
    %cst_657 = arith.constant dense<0.000000e+00> : vector<2x1x16xf32>
    %1484 = vector.multi_reduction <add>, %1419, %cst_657 [3] : vector<2x1x16x16xf32> to vector<2x1x16xf32>
    %1485 = vector.shape_cast %1484 : vector<2x1x16xf32> to vector<2x1x16x1xf32>
    %cst_658 = arith.constant dense<0.000000e+00> : vector<2x1x1xf32>
    %1486 = vector.multi_reduction <add>, %1485, %cst_658 [2] : vector<2x1x16x1xf32> to vector<2x1x1xf32>
    %1487 = vector.shape_cast %1486 : vector<2x1x1xf32> to vector<2x1x1x1xf32>
    %cst_659 = arith.constant dense<0.000000e+00> : vector<1x1x1xf32>
    %1488 = vector.multi_reduction <add>, %1487, %cst_659 [0] : vector<2x1x1x1xf32> to vector<1x1x1xf32>
    %1489 = vector.shape_cast %1488 : vector<1x1x1xf32> to vector<1x1x1x1xf32>
    %cst_660 = arith.constant 0.001953125 : f32
    %1490 = vector.broadcast %cst_660 : f32 to vector<1x1x1x1xf32>
    %1491 = arith.mulf %1489, %1490 : vector<1x1x1x1xf32>
    %1492 = vector.broadcast %1491 : vector<1x1x1x1xf32> to vector<2x1x16x16xf32>
    %1493 = arith.subf %1419, %1492 : vector<2x1x16x16xf32>
    %1494 = arith.mulf %1493, %1493 : vector<2x1x16x16xf32>
    %cst_661 = arith.constant dense<0.000000e+00> : vector<2x1x16xf32>
    %1495 = vector.multi_reduction <add>, %1494, %cst_661 [3] : vector<2x1x16x16xf32> to vector<2x1x16xf32>
    %1496 = vector.shape_cast %1495 : vector<2x1x16xf32> to vector<2x1x16x1xf32>
    %cst_662 = arith.constant dense<0.000000e+00> : vector<2x1x1xf32>
    %1497 = vector.multi_reduction <add>, %1496, %cst_662 [2] : vector<2x1x16x1xf32> to vector<2x1x1xf32>
    %1498 = vector.shape_cast %1497 : vector<2x1x1xf32> to vector<2x1x1x1xf32>
    %cst_663 = arith.constant dense<0.000000e+00> : vector<1x1x1xf32>
    %1499 = vector.multi_reduction <add>, %1498, %cst_663 [0] : vector<2x1x1x1xf32> to vector<1x1x1xf32>
    %1500 = vector.shape_cast %1499 : vector<1x1x1xf32> to vector<1x1x1x1xf32>
    %c2_664 = arith.constant 2 : index
    %1501 = memref.load %arg6[%c2_664] : memref<4xf32, #tpu.memory_space<smem>>
    %cst_665 = arith.constant 0.001953125 : f32
    %1502 = vector.broadcast %cst_665 : f32 to vector<1x1x1x1xf32>
    %1503 = arith.mulf %1500, %1502 : vector<1x1x1x1xf32>
    %cst_666 = arith.constant 9.99999974E-6 : f32
    %1504 = vector.broadcast %cst_666 : f32 to vector<1x1x1x1xf32>
    %1505 = arith.addf %1503, %1504 : vector<1x1x1x1xf32>
    %1506 = math.rsqrt %1505 : vector<1x1x1x1xf32>
    %1507 = vector.broadcast %1501 : f32 to vector<1x1x1x1xf32>
    %1508 = arith.mulf %1507, %1506 : vector<1x1x1x1xf32>
    %1509 = vector.broadcast %1508 : vector<1x1x1x1xf32> to vector<2x1x16x16xf32>
    %1510 = arith.mulf %1493, %1509 : vector<2x1x16x16xf32>
    %c2_667 = arith.constant 2 : index
    %1511 = memref.load %arg7[%c2_667] : memref<4xf32, #tpu.memory_space<smem>>
    %1512 = vector.broadcast %1511 : f32 to vector<2x1x16x16xf32>
    %1513 = arith.addf %1510, %1512 : vector<2x1x16x16xf32>
    %cst_668 = arith.constant dense<0.000000e+00> : vector<2x1x16xf32>
    %1514 = vector.multi_reduction <add>, %1423, %cst_668 [3] : vector<2x1x16x16xf32> to vector<2x1x16xf32>
    %1515 = vector.shape_cast %1514 : vector<2x1x16xf32> to vector<2x1x16x1xf32>
    %cst_669 = arith.constant dense<0.000000e+00> : vector<2x1x1xf32>
    %1516 = vector.multi_reduction <add>, %1515, %cst_669 [2] : vector<2x1x16x1xf32> to vector<2x1x1xf32>
    %1517 = vector.shape_cast %1516 : vector<2x1x1xf32> to vector<2x1x1x1xf32>
    %cst_670 = arith.constant dense<0.000000e+00> : vector<1x1x1xf32>
    %1518 = vector.multi_reduction <add>, %1517, %cst_670 [0] : vector<2x1x1x1xf32> to vector<1x1x1xf32>
    %1519 = vector.shape_cast %1518 : vector<1x1x1xf32> to vector<1x1x1x1xf32>
    %cst_671 = arith.constant 0.001953125 : f32
    %1520 = vector.broadcast %cst_671 : f32 to vector<1x1x1x1xf32>
    %1521 = arith.mulf %1519, %1520 : vector<1x1x1x1xf32>
    %1522 = vector.broadcast %1521 : vector<1x1x1x1xf32> to vector<2x1x16x16xf32>
    %1523 = arith.subf %1423, %1522 : vector<2x1x16x16xf32>
    %1524 = arith.mulf %1523, %1523 : vector<2x1x16x16xf32>
    %cst_672 = arith.constant dense<0.000000e+00> : vector<2x1x16xf32>
    %1525 = vector.multi_reduction <add>, %1524, %cst_672 [3] : vector<2x1x16x16xf32> to vector<2x1x16xf32>
    %1526 = vector.shape_cast %1525 : vector<2x1x16xf32> to vector<2x1x16x1xf32>
    %cst_673 = arith.constant dense<0.000000e+00> : vector<2x1x1xf32>
    %1527 = vector.multi_reduction <add>, %1526, %cst_673 [2] : vector<2x1x16x1xf32> to vector<2x1x1xf32>
    %1528 = vector.shape_cast %1527 : vector<2x1x1xf32> to vector<2x1x1x1xf32>
    %cst_674 = arith.constant dense<0.000000e+00> : vector<1x1x1xf32>
    %1529 = vector.multi_reduction <add>, %1528, %cst_674 [0] : vector<2x1x1x1xf32> to vector<1x1x1xf32>
    %1530 = vector.shape_cast %1529 : vector<1x1x1xf32> to vector<1x1x1x1xf32>
    %c3_675 = arith.constant 3 : index
    %1531 = memref.load %arg6[%c3_675] : memref<4xf32, #tpu.memory_space<smem>>
    %cst_676 = arith.constant 0.001953125 : f32
    %1532 = vector.broadcast %cst_676 : f32 to vector<1x1x1x1xf32>
    %1533 = arith.mulf %1530, %1532 : vector<1x1x1x1xf32>
    %cst_677 = arith.constant 9.99999974E-6 : f32
    %1534 = vector.broadcast %cst_677 : f32 to vector<1x1x1x1xf32>
    %1535 = arith.addf %1533, %1534 : vector<1x1x1x1xf32>
    %1536 = math.rsqrt %1535 : vector<1x1x1x1xf32>
    %1537 = vector.broadcast %1531 : f32 to vector<1x1x1x1xf32>
    %1538 = arith.mulf %1537, %1536 : vector<1x1x1x1xf32>
    %1539 = vector.broadcast %1538 : vector<1x1x1x1xf32> to vector<2x1x16x16xf32>
    %1540 = arith.mulf %1523, %1539 : vector<2x1x16x16xf32>
    %c3_678 = arith.constant 3 : index
    %1541 = memref.load %arg7[%c3_678] : memref<4xf32, #tpu.memory_space<smem>>
    %1542 = vector.broadcast %1541 : f32 to vector<2x1x16x16xf32>
    %1543 = arith.addf %1540, %1542 : vector<2x1x16x16xf32>
    %1544 = arith.addf %1453, %0 : vector<2x1x16x16xf32>
    %c0_679 = arith.constant 0 : index
    %c0_680 = arith.constant 0 : index
    %c0_681 = arith.constant 0 : index
    %c0_682 = arith.constant 0 : index
    %1545 = vector.load %arg8[%c0_679, %c0_680, %c0_681, %c0_682] : memref<2x4x16x16xf32, #tpu.memory_space<vmem>>, vector<2x1x16x16xf32>
    tpu.vector_store %arg8[%c0_679, %c0_680, %c0_681, %c0_682], %1544 {strides = array<i32>} : memref<2x4x16x16xf32, #tpu.memory_space<vmem>>, vector<2x1x16x16xf32>,
    %1546 = arith.addf %1483, %1 : vector<2x1x16x16xf32>
    %c0_683 = arith.constant 0 : index
    %c1_684 = arith.constant 1 : index
    %c0_685 = arith.constant 0 : index
    %c0_686 = arith.constant 0 : index
    %1547 = vector.load %arg8[%c0_683, %c1_684, %c0_685, %c0_686] : memref<2x4x16x16xf32, #tpu.memory_space<vmem>>, vector<2x1x16x16xf32>
    tpu.vector_store %arg8[%c0_683, %c1_684, %c0_685, %c0_686], %1546 {strides = array<i32>} : memref<2x4x16x16xf32, #tpu.memory_space<vmem>>, vector<2x1x16x16xf32>,
    %1548 = arith.addf %1513, %2 : vector<2x1x16x16xf32>
    %c0_687 = arith.constant 0 : index
    %c2_688 = arith.constant 2 : index
    %c0_689 = arith.constant 0 : index
    %c0_690 = arith.constant 0 : index
    %1549 = vector.load %arg8[%c0_687, %c2_688, %c0_689, %c0_690] : memref<2x4x16x16xf32, #tpu.memory_space<vmem>>, vector<2x1x16x16xf32>
    tpu.vector_store %arg8[%c0_687, %c2_688, %c0_689, %c0_690], %1548 {strides = array<i32>} : memref<2x4x16x16xf32, #tpu.memory_space<vmem>>, vector<2x1x16x16xf32>,
    %1550 = arith.addf %1543, %3 : vector<2x1x16x16xf32>
    %c0_691 = arith.constant 0 : index
    %c3_692 = arith.constant 3 : index
    %c0_693 = arith.constant 0 : index
    %c0_694 = arith.constant 0 : index
    %1551 = vector.load %arg8[%c0_691, %c3_692, %c0_693, %c0_694] : memref<2x4x16x16xf32, #tpu.memory_space<vmem>>, vector<2x1x16x16xf32>
    tpu.vector_store %arg8[%c0_691, %c3_692, %c0_693, %c0_694], %1550 {strides = array<i32>} : memref<2x4x16x16xf32, #tpu.memory_space<vmem>>, vector<2x1x16x16xf32>,
    return
  }
  func.func @transform_0(%arg0: i32) -> (i32, i32, i32, i32) {
    %c0_i32 = arith.constant 0 : i32
    %c0_i32_0 = arith.constant 0 : i32
    %c0_i32_1 = arith.constant 0 : i32
    %c0_i32_2 = arith.constant 0 : i32
    %c0_i32_3 = arith.constant 0 : i32
    return %c0_i32, %c0_i32_0, %c0_i32_1, %c0_i32_2 : i32, i32, i32, i32
  }
  func.func @transform_1(%arg0: i32) -> i32 {
    %c0_i32 = arith.constant 0 : i32
    %c0_i32_0 = arith.constant 0 : i32
    return %c0_i32 : i32
  }
  func.func @transform_2(%arg0: i32) -> i32 {
    %c0_i32 = arith.constant 0 : i32
    %c0_i32_0 = arith.constant 0 : i32
    return %c0_i32 : i32
  }
  func.func @transform_3(%arg0: i32) -> i32 {
    %c0_i32 = arith.constant 0 : i32
    %c0_i32_0 = arith.constant 0 : i32
    return %c0_i32 : i32
  }
  func.func @transform_4(%arg0: i32) -> i32 {
    %c0_i32 = arith.constant 0 : i32
    %c0_i32_0 = arith.constant 0 : i32
    return %c0_i32 : i32
  }
  func.func @transform_5(%arg0: i32) -> i32 {
    %c0_i32 = arith.constant 0 : i32
    %c0_i32_0 = arith.constant 0 : i32
    return %c0_i32 : i32
  }
  func.func @transform_6(%arg0: i32) -> i32 {
    %c0_i32 = arith.constant 0 : i32
    %c0_i32_0 = arith.constant 0 : i32
    return %c0_i32 : i32
  }
  func.func @transform_7(%arg0: i32) -> (i32, i32, i32, i32) {
    %c0_i32 = arith.constant 0 : i32
    %c0_i32_0 = arith.constant 0 : i32
    %c0_i32_1 = arith.constant 0 : i32
    %c0_i32_2 = arith.constant 0 : i32
    %c0_i32_3 = arith.constant 0 : i32
    return %c0_i32, %c0_i32_0, %c0_i32_1, %c0_i32_2 : i32, i32, i32, i32
  }
}

</mosaic_0001>

<llo_original>
// kernel: resblock_forward.1
$region0: #{resblock_forward.1}
  #allocation0 [shape = 'u32[]', space=smem, size = 0x4, offset = 0x4, fixed_abs, tag = 'smem constant byte address 0x4 - core index']
  #allocation1 [shape = 'u32[144,128]{1,0:T(1,128)}', space=vmem, size = 0x12000, scoped, tag = 'internal scratch']
  #allocation2 [shape = 'f32[2,4,18,18]{3,2,1,0:T(8,128)}', space=vmem, size = 0x18000, scoped, tag = 'scratch operand']
  %s0 = inlined_call_operand.hbm [shape: f32[2,4,16,16], index: 0, kind: input, shape index: {}]
  %s1 = inlined_call_operand.vmem [shape: f32[144], index: 1, kind: input, shape index: {}]
  %s2 = inlined_call_operand.vmem [shape: f32[4], index: 2, kind: input, shape index: {}]
  %s3 = inlined_call_operand.vmem [shape: f32[4], index: 3, kind: input, shape index: {}]
  %s4 = inlined_call_operand.vmem [shape: f32[144], index: 4, kind: input, shape index: {}]
  %s5 = inlined_call_operand.vmem [shape: f32[4], index: 5, kind: input, shape index: {}]
  %s6 = inlined_call_operand.vmem [shape: f32[4], index: 6, kind: input, shape index: {}]
  %s7 = inlined_call_operand.hbm [shape: f32[2,4,16,16], index: 7, kind: output, shape index: {}]
  %s8 = sld [smem:[#allocation0]]
  $region66: #{resblock_forward.1} parent=0
    _
  %s10 = ssub.s32 1, %s8
  %s11 = scalar_select 0, %s10, %s8
  $region1: #{resblock_forward.1} parent=0
    #allocation3 [shape = 'u8[65536]{0}', space=vmem, size = 0x10000, scoped, tag = 'input window, operand 0, single buffered']
    #allocation4 [shape = 's32[1]{0}', space=sflag, size = 0x4, scoped, tag = 'scoped memory for resblock_forward.1']
    #allocation5 [shape = 's32[1]{0}', space=sflag, size = 0x4, scoped, tag = 'scoped memory for resblock_forward.1']
    #allocation6 [shape = 's32[1]{0}', space=sflag, size = 0x4, scoped, tag = 'scoped memory for resblock_forward.1']
    #allocation7 [shape = 'u8[1024]{0}', space=smem, size = 0x400, scoped, tag = 'input window, operand 1, single buffered']
    #allocation8 [shape = 'u8[512]{0}', space=smem, size = 0x200, scoped, tag = 'input window, operand 2, single buffered']
    #allocation9 [shape = 's32[1]{0}', space=sflag, size = 0x4, scoped, tag = 'scoped memory for resblock_forward.1']
    #allocation10 [shape = 'u8[512]{0}', space=smem, size = 0x200, scoped, tag = 'input window, operand 3, single buffered']
    #allocation11 [shape = 'u8[1024]{0}', space=smem, size = 0x400, scoped, tag = 'input window, operand 4, single buffered']
    #allocation12 [shape = 's32[1]{0}', space=sflag, size = 0x4, scoped, tag = 'scoped memory for resblock_forward.1']
    #allocation13 [shape = 'u8[512]{0}', space=smem, size = 0x200, scoped, tag = 'input window, operand 5, single buffered']
    #allocation14 [shape = 'u8[512]{0}', space=smem, size = 0x200, scoped, tag = 'input window, operand 6, single buffered']
    #allocation15 [shape = 's32[1]{0}', space=sflag, size = 0x4, scoped, tag = 'scoped memory for resblock_forward.1']
    #allocation16 [shape = 'u8[65536]{0}', space=vmem, size = 0x10000, scoped, tag = 'output window, operand 0, single buffered']
    %12 = vsyncpa [#allocation4], 0
    %13 = vsyncpa [#allocation6], 0
    %14 = vsyncpa [#allocation9], 0
    %15 = vsyncpa [#allocation12], 0
    %16 = vsyncpa [#allocation15], 0
    %17 = vsyncpa [#allocation5], 0
    // Predicated region
    $region2: #{resblock_forward.1} parent=1 // pred_check
      _
    $region3: #{resblock_forward.1} parent=1 // pred_check_branch
      %19 = sbr.rel (0) target = $region5
    $region4: #{resblock_forward.1} parent=1 // pred_region
      %s21 = ssub.s32 2048, 2048
      %22 = vsyncadd [#allocation4], %s21
      %s23 = sshll.u32 [#allocation3], 4
      %s24 = int_to_ptr.vmem [resolvable:$true] %s23
      %29 = dma.hbm_to_vmem [thread:$0]  %s0, 2048, %s24, [#allocation4], 128, 128, 8
    $region5: #{resblock_forward.1} parent=1 // pred_fallthru
      _
    // Predicated region
    $region6: #{resblock_forward.1} parent=1 // pred_check
      _
    $region7: #{resblock_forward.1} parent=1 // pred_check_branch
      %31 = sbr.rel (0) target = $region9
    $region8: #{resblock_forward.1} parent=1 // pred_region
      %s33 = ssub.s32 32, 32
      %34 = vsyncadd [#allocation6], %s33
      %s36 = sshll.u32 %s1, 4
      %s37 = int_to_ptr.vmem [resolvable:$true] %s36
      %39 = dma.vmem_to_smem %s37, 32, [#allocation7], [#allocation6]
    $region9: #{resblock_forward.1} parent=1 // pred_fallthru
      _
    // Predicated region
    $region10: #{resblock_forward.1} parent=1 // pred_check
      _
    $region11: #{resblock_forward.1} parent=1 // pred_check_branch
      %41 = sbr.rel (0) target = $region13
    $region12: #{resblock_forward.1} parent=1 // pred_region
      %s43 = ssub.s32 16, 16
      %44 = vsyncadd [#allocation9], %s43
      %s46 = sshll.u32 %s2, 4
      %s47 = int_to_ptr.vmem [resolvable:$true] %s46
      %49 = dma.vmem_to_smem %s47, 16, [#allocation8], [#allocation9]
    $region13: #{resblock_forward.1} parent=1 // pred_fallthru
      _
    // Predicated region
    $region14: #{resblock_forward.1} parent=1 // pred_check
      _
    $region15: #{resblock_forward.1} parent=1 // pred_check_branch
      %51 = sbr.rel (0) target = $region17
    $region16: #{resblock_forward.1} parent=1 // pred_region
      %s53 = ssub.s32 16, 16
      %54 = vsyncadd [#allocation9], %s53
      %s56 = sshll.u32 %s3, 4
      %s57 = int_to_ptr.vmem [resolvable:$true] %s56
      %59 = dma.vmem_to_smem %s57, 16, [#allocation10], [#allocation9]
    $region17: #{resblock_forward.1} parent=1 // pred_fallthru
      _
    // Predicated region
    $region18: #{resblock_forward.1} parent=1 // pred_check
      _
    $region19: #{resblock_forward.1} parent=1 // pred_check_branch
      %61 = sbr.rel (0) target = $region21
    $region20: #{resblock_forward.1} parent=1 // pred_region
      %s63 = ssub.s32 32, 32
      %64 = vsyncadd [#allocation12], %s63
      %s66 = sshll.u32 %s4, 4
      %s67 = int_to_ptr.vmem [resolvable:$true] %s66
      %69 = dma.vmem_to_smem %s67, 32, [#allocation11], [#allocation12]
    $region21: #{resblock_forward.1} parent=1 // pred_fallthru
      _
    // Predicated region
    $region22: #{resblock_forward.1} parent=1 // pred_check
      _
    $region23: #{resblock_forward.1} parent=1 // pred_check_branch
      %71 = sbr.rel (0) target = $region25
    $region24: #{resblock_forward.1} parent=1 // pred_region
      %s73 = ssub.s32 16, 16
      %74 = vsyncadd [#allocation12], %s73
      %s76 = sshll.u32 %s5, 4
      %s77 = int_to_ptr.vmem [resolvable:$true] %s76
      %79 = dma.vmem_to_smem %s77, 16, [#allocation13], [#allocation12]
    $region25: #{resblock_forward.1} parent=1 // pred_fallthru
      _
    // Predicated region
    $region26: #{resblock_forward.1} parent=1 // pred_check
      _
    $region27: #{resblock_forward.1} parent=1 // pred_check_branch
      %81 = sbr.rel (0) target = $region29
    $region28: #{resblock_forward.1} parent=1 // pred_region
      %s83 = ssub.s32 16, 16
      %84 = vsyncadd [#allocation15], %s83
      %s86 = sshll.u32 %s6, 4
      %s87 = int_to_ptr.vmem [resolvable:$true] %s86
      %89 = dma.vmem_to_smem %s87, 16, [#allocation14], [#allocation15]
    $region29: #{resblock_forward.1} parent=1 // pred_fallthru
      _
    // Predicated region
    $region30: #{resblock_forward.1} parent=1 // pred_check
      _
    $region31: #{resblock_forward.1} parent=1 // pred_check_branch
      %91 = sbr.rel (0) target = $region33
    $region32: #{resblock_forward.1} parent=1 // pred_region
      %92 = dma.done [#allocation4], 2048
    $region33: #{resblock_forward.1} parent=1 // pred_fallthru
      _
    // Predicated region
    $region34: #{resblock_forward.1} parent=1 // pred_check
      _
    $region35: #{resblock_forward.1} parent=1 // pred_check_branch
      %94 = sbr.rel (0) target = $region37
    $region36: #{resblock_forward.1} parent=1 // pred_region
      %95 = dma.done [#allocation6], 32
    $region37: #{resblock_forward.1} parent=1 // pred_fallthru
      _
    // Predicated region
    $region38: #{resblock_forward.1} parent=1 // pred_check
      _
    $region39: #{resblock_forward.1} parent=1 // pred_check_branch
      %97 = sbr.rel (0) target = $region41
    $region40: #{resblock_forward.1} parent=1 // pred_region
      %98 = dma.done [#allocation9], 16
    $region41: #{resblock_forward.1} parent=1 // pred_fallthru
      _
    // Predicated region
    $region42: #{resblock_forward.1} parent=1 // pred_check
      _
    $region43: #{resblock_forward.1} parent=1 // pred_check_branch
      %100 = sbr.rel (0) target = $region45
    $region44: #{resblock_forward.1} parent=1 // pred_region
      %101 = dma.done [#allocation9], 16
    $region45: #{resblock_forward.1} parent=1 // pred_fallthru
      _
    // Predicated region
    $region46: #{resblock_forward.1} parent=1 // pred_check
      _
    $region47: #{resblock_forward.1} parent=1 // pred_check_branch
      %103 = sbr.rel (0) target = $region49
    $region48: #{resblock_forward.1} parent=1 // pred_region
      %104 = dma.done [#allocation12], 32
    $region49: #{resblock_forward.1} parent=1 // pred_fallthru
      _
    // Predicated region
    $region50: #{resblock_forward.1} parent=1 // pred_check
      _
    $region51: #{resblock_forward.1} parent=1 // pred_check_branch
      %106 = sbr.rel (0) target = $region53
    $region52: #{resblock_forward.1} parent=1 // pred_region
      %107 = dma.done [#allocation12], 16
    $region53: #{resblock_forward.1} parent=1 // pred_fallthru
      _
    // Predicated region
    $region54: #{resblock_forward.1} parent=1 // pred_check
      _
    $region55: #{resblock_forward.1} parent=1 // pred_check_branch
      %109 = sbr.rel (0) target = $region57
    $region56: #{resblock_forward.1} parent=1 // pred_region
      %110 = dma.done [#allocation15], 16
    $region57: #{resblock_forward.1} parent=1 // pred_fallthru
      _
    %111 = sfence
    %v112 = vld [vmem:[#allocation3] sm:$0xff]
    %v113 = vld [vmem:[#allocation3 + $0x8] sm:$0xff]
    %v114 = vld [vmem:[#allocation3 + $0x40] sm:$0xff]
    %v115 = vld [vmem:[#allocation3 + $0x48] sm:$0xff]
    %s116 = scalar_lea.vmem [#allocation3], 16
    %v117 = vld [vmem:[%s116] sm:$0xff]
    %v118 = vld [vmem:[%s116 + $0x8] sm:$0xff]
    %v119 = vld [vmem:[%s116 + $0x40] sm:$0xff]
    %v120 = vld [vmem:[%s116 + $0x48] sm:$0xff]
    %s121 = scalar_lea.vmem [#allocation3], 32
    %v122 = vld [vmem:[%s121] sm:$0xff]
    %v123 = vld [vmem:[%s121 + $0x8] sm:$0xff]
    %v124 = vld [vmem:[%s121 + $0x40] sm:$0xff]
    %v125 = vld [vmem:[%s121 + $0x48] sm:$0xff]
    %s126 = scalar_lea.vmem [#allocation3], 48
    %v127 = vld [vmem:[%s126] sm:$0xff]
    %v128 = vld [vmem:[%s126 + $0x8] sm:$0xff]
    %v129 = vld [vmem:[%s126 + $0x40] sm:$0xff]
    %v130 = vld [vmem:[%s126 + $0x48] sm:$0xff]
    %135 = vrot.lane.b32.xlu0 %v112, 1
    %v136 = vpop.permute.xlu0 %135
    %137 = vrot.lane.b32.xlu0 %v113, 1
    %v138 = vpop.permute.xlu0 %137
    %139 = vrot.lane.b32.xlu0 %v114, 1
    %v140 = vpop.permute.xlu0 %139
    %141 = vrot.lane.b32.xlu0 %v115, 1
    %v142 = vpop.permute.xlu0 %141
    %vm147 = vcmask 138248
    %148 = vst.msk [vmem:[#allocation2 + $0x1] sm:$0xff] %vm147, %v136
    %149 = vst.msk [vmem:[#allocation2 + $0x9] sm:$0xff] %vm147, %v138
    %150 = vst.msk [vmem:[#allocation2 + $0x61] sm:$0xff] %vm147, %v140
    %151 = vst.msk [vmem:[#allocation2 + $0x69] sm:$0xff] %vm147, %v142
    %vm152 = vcmask 132105
    %153 = vst.msk [vmem:[#allocation2 - $0x1] sm:$0x2] %vm152, %v136
    %154 = vst.msk [vmem:[#allocation2 + $0x5f] sm:$0x2] %vm152, %v140
    %vm155 = vcmask 137230
    %156 = vst.msk [vmem:[#allocation2 + $0xb] sm:$0x40] %vm155, %v138
    %157 = vst.msk [vmem:[#allocation2 + $0x6b] sm:$0x40] %vm155, %v142
    %162 = vrot.lane.b32.xlu0 %v117, 1
    %v163 = vpop.permute.xlu0 %162
    %164 = vrot.lane.b32.xlu0 %v118, 1
    %v165 = vpop.permute.xlu0 %164
    %166 = vrot.lane.b32.xlu0 %v119, 1
    %v167 = vpop.permute.xlu0 %166
    %168 = vrot.lane.b32.xlu0 %v120, 1
    %v169 = vpop.permute.xlu0 %168
    %s174 = scalar_lea.vmem [#allocation2], 24
    %175 = vst.msk [vmem:[%s174 + $0x1] sm:$0xff] %vm147, %v163
    %176 = vst.msk [vmem:[%s174 + $0x9] sm:$0xff] %vm147, %v165
    %177 = vst.msk [vmem:[%s174 + $0x61] sm:$0xff] %vm147, %v167
    %178 = vst.msk [vmem:[%s174 + $0x69] sm:$0xff] %vm147, %v169
    %179 = vst.msk [vmem:[%s174 - $0x1] sm:$0x2] %vm152, %v163
    %180 = vst.msk [vmem:[%s174 + $0x5f] sm:$0x2] %vm152, %v167
    %181 = vst.msk [vmem:[%s174 + $0xb] sm:$0x40] %vm155, %v165
    %182 = vst.msk [vmem:[%s174 + $0x6b] sm:$0x40] %vm155, %v169
    %187 = vrot.lane.b32.xlu0 %v122, 1
    %v188 = vpop.permute.xlu0 %187
    %189 = vrot.lane.b32.xlu0 %v123, 1
    %v190 = vpop.permute.xlu0 %189
    %191 = vrot.lane.b32.xlu0 %v124, 1
    %v192 = vpop.permute.xlu0 %191
    %193 = vrot.lane.b32.xlu0 %v125, 1
    %v194 = vpop.permute.xlu0 %193
    %s199 = scalar_lea.vmem [#allocation2], 48
    %200 = vst.msk [vmem:[%s199 + $0x1] sm:$0xff] %vm147, %v188
    %201 = vst.msk [vmem:[%s199 + $0x9] sm:$0xff] %vm147, %v190
    %202 = vst.msk [vmem:[%s199 + $0x61] sm:$0xff] %vm147, %v192
    %203 = vst.msk [vmem:[%s199 + $0x69] sm:$0xff] %vm147, %v194
    %204 = vst.msk [vmem:[%s199 - $0x1] sm:$0x2] %vm152, %v188
    %205 = vst.msk [vmem:[%s199 + $0x5f] sm:$0x2] %vm152, %v192
    %206 = vst.msk [vmem:[%s199 + $0xb] sm:$0x40] %vm155, %v190
    %207 = vst.msk [vmem:[%s199 + $0x6b] sm:$0x40] %vm155, %v194
    %212 = vrot.lane.b32.xlu0 %v127, 1
    %v213 = vpop.permute.xlu0 %212
    %214 = vrot.lane.b32.xlu0 %v128, 1
    %v215 = vpop.permute.xlu0 %214
    %216 = vrot.lane.b32.xlu0 %v129, 1
    %v217 = vpop.permute.xlu0 %216
    %218 = vrot.lane.b32.xlu0 %v130, 1
    %v219 = vpop.permute.xlu0 %218
    %s224 = scalar_lea.vmem [#allocation2], 72
    %225 = vst.msk [vmem:[%s224 + $0x1] sm:$0xff] %vm147, %v213
    %226 = vst.msk [vmem:[%s224 + $0x9] sm:$0xff] %vm147, %v215
    %227 = vst.msk [vmem:[%s224 + $0x61] sm:$0xff] %vm147, %v217
    %228 = vst.msk [vmem:[%s224 + $0x69] sm:$0xff] %vm147, %v219
    %229 = vst.msk [vmem:[%s224 - $0x1] sm:$0x2] %vm152, %v213
    %230 = vst.msk [vmem:[%s224 + $0x5f] sm:$0x2] %vm152, %v217
    %231 = vst.msk [vmem:[%s224 + $0xb] sm:$0x40] %vm155, %v215
    %232 = vst.msk [vmem:[%s224 + $0x6b] sm:$0x40] %vm155, %v219
    %v233 = vld [vmem:[#allocation2] sm:$0xff]
    %v234 = vld [vmem:[#allocation2 + $0x8] sm:$0xff]
    %v235 = vld [vmem:[#allocation2 + $0x10] sm:$0x3]
    %v236 = vld [vmem:[#allocation2 + $0x18] sm:$0xff]
    %v237 = vld [vmem:[#allocation2 + $0x20] sm:$0xff]
    %v238 = vld [vmem:[#allocation2 + $0x28] sm:$0x3]
    %v239 = vld [vmem:[#allocation2 + $0x30] sm:$0xff]
    %v240 = vld [vmem:[#allocation2 + $0x38] sm:$0xff]
    %v241 = vld [vmem:[#allocation2 + $0x40] sm:$0x3]
    %v242 = vld [vmem:[#allocation2 + $0x48] sm:$0xff]
    %v243 = vld [vmem:[#allocation2 + $0x50] sm:$0xff]
    %v244 = vld [vmem:[#allocation2 + $0x58] sm:$0x3]
    %v245 = vld [vmem:[#allocation2 + $0x60] sm:$0xff]
    %v246 = vld [vmem:[#allocation2 + $0x68] sm:$0xff]
    %v247 = vld [vmem:[#allocation2 + $0x70] sm:$0x3]
    %v248 = vld [vmem:[#allocation2 + $0x78] sm:$0xff]
    %v249 = vld [vmem:[#allocation2 + $0x80] sm:$0xff]
    %v250 = vld [vmem:[#allocation2 + $0x88] sm:$0x3]
    %v251 = vld [vmem:[#allocation2 + $0x90] sm:$0xff]
    %v252 = vld [vmem:[#allocation2 + $0x98] sm:$0xff]
    %v253 = vld [vmem:[#allocation2 + $0xa0] sm:$0x3]
    %v254 = vld [vmem:[#allocation2 + $0xa8] sm:$0xff]
    %v255 = vld [vmem:[#allocation2 + $0xb0] sm:$0xff]
    %v256 = vld [vmem:[#allocation2 + $0xb8] sm:$0x3]
    %281 = vrot.lane.b32.xlu0 %v233, 126
    %v282 = vpop.permute.xlu0 %281
    %283 = vrot.lane.b32.xlu0 %v234, 126
    %v284 = vpop.permute.xlu0 %283
    %285 = vrot.lane.b32.xlu0 %v235, 126
    %v286 = vpop.permute.xlu0 %285
    %287 = vrot.lane.b32.xlu0 %v236, 126
    %v288 = vpop.permute.xlu0 %287
    %289 = vrot.lane.b32.xlu0 %v237, 126
    %v290 = vpop.permute.xlu0 %289
    %291 = vrot.lane.b32.xlu0 %v238, 126
    %v292 = vpop.permute.xlu0 %291
    %293 = vrot.lane.b32.xlu0 %v239, 126
    %v294 = vpop.permute.xlu0 %293
    %295 = vrot.lane.b32.xlu0 %v240, 126
    %v296 = vpop.permute.xlu0 %295
    %297 = vrot.lane.b32.xlu0 %v241, 126
    %v298 = vpop.permute.xlu0 %297
    %299 = vrot.lane.b32.xlu0 %v242, 126
    %v300 = vpop.permute.xlu0 %299
    %301 = vrot.lane.b32.xlu0 %v243, 126
    %v302 = vpop.permute.xlu0 %301
    %303 = vrot.lane.b32.xlu0 %v244, 126
    %v304 = vpop.permute.xlu0 %303
    %305 = vrot.lane.b32.xlu0 %v245, 126
    %v306 = vpop.permute.xlu0 %305
    %307 = vrot.lane.b32.xlu0 %v246, 126
    %v308 = vpop.permute.xlu0 %307
    %309 = vrot.lane.b32.xlu0 %v247, 126
    %v310 = vpop.permute.xlu0 %309
    %311 = vrot.lane.b32.xlu0 %v248, 126
    %v312 = vpop.permute.xlu0 %311
    %313 = vrot.lane.b32.xlu0 %v249, 126
    %v314 = vpop.permute.xlu0 %313
    %315 = vrot.lane.b32.xlu0 %v250, 126
    %v316 = vpop.permute.xlu0 %315
    %317 = vrot.lane.b32.xlu0 %v251, 126
    %v318 = vpop.permute.xlu0 %317
    %319 = vrot.lane.b32.xlu0 %v252, 126
    %v320 = vpop.permute.xlu0 %319
    %321 = vrot.lane.b32.xlu0 %v253, 126
    %v322 = vpop.permute.xlu0 %321
    %323 = vrot.lane.b32.xlu0 %v254, 126
    %v324 = vpop.permute.xlu0 %323
    %325 = vrot.lane.b32.xlu0 %v255, 126
    %v326 = vpop.permute.xlu0 %325
    %327 = vrot.lane.b32.xlu0 %v256, 126
    %v328 = vpop.permute.xlu0 %327
    %vm353 = vcmask 7168
    %354 = vst.msk [vmem:[#allocation2] sm:$0xff] %vm353, %v282
    %355 = vst.msk [vmem:[#allocation2 + $0x8] sm:$0xff] %vm353, %v284
    %vm356 = vcmask 1024
    %357 = vst.msk [vmem:[#allocation2 + $0x10] sm:$0x3] %vm356, %v286
    %358 = vst.msk [vmem:[#allocation2 + $0x18] sm:$0xff] %vm353, %v288
    %359 = vst.msk [vmem:[#allocation2 + $0x20] sm:$0xff] %vm353, %v290
    %360 = vst.msk [vmem:[#allocation2 + $0x28] sm:$0x3] %vm356, %v292
    %361 = vst.msk [vmem:[#allocation2 + $0x30] sm:$0xff] %vm353, %v294
    %362 = vst.msk [vmem:[#allocation2 + $0x38] sm:$0xff] %vm353, %v296
    %363 = vst.msk [vmem:[#allocation2 + $0x40] sm:$0x3] %vm356, %v298
    %364 = vst.msk [vmem:[#allocation2 + $0x48] sm:$0xff] %vm353, %v300
    %365 = vst.msk [vmem:[#allocation2 + $0x50] sm:$0xff] %vm353, %v302
    %366 = vst.msk [vmem:[#allocation2 + $0x58] sm:$0x3] %vm356, %v304
    %367 = vst.msk [vmem:[#allocation2 + $0x60] sm:$0xff] %vm353, %v306
    %368 = vst.msk [vmem:[#allocation2 + $0x68] sm:$0xff] %vm353, %v308
    %369 = vst.msk [vmem:[#allocation2 + $0x70] sm:$0x3] %vm356, %v310
    %370 = vst.msk [vmem:[#allocation2 + $0x78] sm:$0xff] %vm353, %v312
    %371 = vst.msk [vmem:[#allocation2 + $0x80] sm:$0xff] %vm353, %v314
    %372 = vst.msk [vmem:[#allocation2 + $0x88] sm:$0x3] %vm356, %v316
    %373 = vst.msk [vmem:[#allocation2 + $0x90] sm:$0xff] %vm353, %v318
    %374 = vst.msk [vmem:[#allocation2 + $0x98] sm:$0xff] %vm353, %v320
    %375 = vst.msk [vmem:[#allocation2 + $0xa0] sm:$0x3] %vm356, %v322
    %376 = vst.msk [vmem:[#allocation2 + $0xa8] sm:$0xff] %vm353, %v324
    %377 = vst.msk [vmem:[#allocation2 + $0xb0] sm:$0xff] %vm353, %v326
    %378 = vst.msk [vmem:[#allocation2 + $0xb8] sm:$0x3] %vm356, %v328
    %v379 = vld [vmem:[#allocation2] sm:$0xff]
    %v380 = vld [vmem:[#allocation2 + $0x8] sm:$0xff]
    %v381 = vld [vmem:[#allocation2 + $0x10] sm:$0x3]
    %v382 = vld [vmem:[#allocation2 + $0x18] sm:$0xff]
    %v383 = vld [vmem:[#allocation2 + $0x20] sm:$0xff]
    %v384 = vld [vmem:[#allocation2 + $0x28] sm:$0x3]
    %v385 = vld [vmem:[#allocation2 + $0x30] sm:$0xff]
    %v386 = vld [vmem:[#allocation2 + $0x38] sm:$0xff]
    %v387 = vld [vmem:[#allocation2 + $0x40] sm:$0x3]
    %v388 = vld [vmem:[#allocation2 + $0x48] sm:$0xff]
    %v389 = vld [vmem:[#allocation2 + $0x50] sm:$0xff]
    %v390 = vld [vmem:[#allocation2 + $0x58] sm:$0x3]
    %v391 = vld [vmem:[#allocation2 + $0x60] sm:$0xff]
    %v392 = vld [vmem:[#allocation2 + $0x68] sm:$0xff]
    %v393 = vld [vmem:[#allocation2 + $0x70] sm:$0x3]
    %v394 = vld [vmem:[#allocation2 + $0x78] sm:$0xff]
    %v395 = vld [vmem:[#allocation2 + $0x80] sm:$0xff]
    %v396 = vld [vmem:[#allocation2 + $0x88] sm:$0x3]
    %v397 = vld [vmem:[#allocation2 + $0x90] sm:$0xff]
    %v398 = vld [vmem:[#allocation2 + $0x98] sm:$0xff]
    %v399 = vld [vmem:[#allocation2 + $0xa0] sm:$0x3]
    %v400 = vld [vmem:[#allocation2 + $0xa8] sm:$0xff]
    %v401 = vld [vmem:[#allocation2 + $0xb0] sm:$0xff]
    %v402 = vld [vmem:[#allocation2 + $0xb8] sm:$0x3]
    %427 = vrot.lane.b32.xlu0 %v379, 2
    %v428 = vpop.permute.xlu0 %427
    %429 = vrot.lane.b32.xlu0 %v380, 2
    %v430 = vpop.permute.xlu0 %429
    %431 = vrot.lane.b32.xlu0 %v381, 2
    %v432 = vpop.permute.xlu0 %431
    %433 = vrot.lane.b32.xlu0 %v382, 2
    %v434 = vpop.permute.xlu0 %433
    %435 = vrot.lane.b32.xlu0 %v383, 2
    %v436 = vpop.permute.xlu0 %435
    %437 = vrot.lane.b32.xlu0 %v384, 2
    %v438 = vpop.permute.xlu0 %437
    %439 = vrot.lane.b32.xlu0 %v385, 2
    %v440 = vpop.permute.xlu0 %439
    %441 = vrot.lane.b32.xlu0 %v386, 2
    %v442 = vpop.permute.xlu0 %441
    %443 = vrot.lane.b32.xlu0 %v387, 2
    %v444 = vpop.permute.xlu0 %443
    %445 = vrot.lane.b32.xlu0 %v388, 2
    %v446 = vpop.permute.xlu0 %445
    %447 = vrot.lane.b32.xlu0 %v389, 2
    %v448 = vpop.permute.xlu0 %447
    %449 = vrot.lane.b32.xlu0 %v390, 2
    %v450 = vpop.permute.xlu0 %449
    %451 = vrot.lane.b32.xlu0 %v391, 2
    %v452 = vpop.permute.xlu0 %451
    %453 = vrot.lane.b32.xlu0 %v392, 2
    %v454 = vpop.permute.xlu0 %453
    %455 = vrot.lane.b32.xlu0 %v393, 2
    %v456 = vpop.permute.xlu0 %455
    %457 = vrot.lane.b32.xlu0 %v394, 2
    %v458 = vpop.permute.xlu0 %457
    %459 = vrot.lane.b32.xlu0 %v395, 2
    %v460 = vpop.permute.xlu0 %459
    %461 = vrot.lane.b32.xlu0 %v396, 2
    %v462 = vpop.permute.xlu0 %461
    %463 = vrot.lane.b32.xlu0 %v397, 2
    %v464 = vpop.permute.xlu0 %463
    %465 = vrot.lane.b32.xlu0 %v398, 2
    %v466 = vpop.permute.xlu0 %465
    %467 = vrot.lane.b32.xlu0 %v399, 2
    %v468 = vpop.permute.xlu0 %467
    %469 = vrot.lane.b32.xlu0 %v400, 2
    %v470 = vpop.permute.xlu0 %469
    %471 = vrot.lane.b32.xlu0 %v401, 2
    %v472 = vpop.permute.xlu0 %471
    %473 = vrot.lane.b32.xlu0 %v402, 2
    %v474 = vpop.permute.xlu0 %473
    %vm499 = vcmask 146568
    %500 = vst.msk [vmem:[#allocation2] sm:$0xff] %vm499, %v428
    %501 = vst.msk [vmem:[#allocation2 + $0x8] sm:$0xff] %vm499, %v430
    %vm502 = vcmask 140424
    %503 = vst.msk [vmem:[#allocation2 + $0x10] sm:$0x3] %vm502, %v432
    %504 = vst.msk [vmem:[#allocation2 + $0x18] sm:$0xff] %vm499, %v434
    %505 = vst.msk [vmem:[#allocation2 + $0x20] sm:$0xff] %vm499, %v436
    %506 = vst.msk [vmem:[#allocation2 + $0x28] sm:$0x3] %vm502, %v438
    %507 = vst.msk [vmem:[#allocation2 + $0x30] sm:$0xff] %vm499, %v440
    %508 = vst.msk [vmem:[#allocation2 + $0x38] sm:$0xff] %vm499, %v442
    %509 = vst.msk [vmem:[#allocation2 + $0x40] sm:$0x3] %vm502, %v444
    %510 = vst.msk [vmem:[#allocation2 + $0x48] sm:$0xff] %vm499, %v446
    %511 = vst.msk [vmem:[#allocation2 + $0x50] sm:$0xff] %vm499, %v448
    %512 = vst.msk [vmem:[#allocation2 + $0x58] sm:$0x3] %vm502, %v450
    %513 = vst.msk [vmem:[#allocation2 + $0x60] sm:$0xff] %vm499, %v452
    %514 = vst.msk [vmem:[#allocation2 + $0x68] sm:$0xff] %vm499, %v454
    %515 = vst.msk [vmem:[#allocation2 + $0x70] sm:$0x3] %vm502, %v456
    %516 = vst.msk [vmem:[#allocation2 + $0x78] sm:$0xff] %vm499, %v458
    %517 = vst.msk [vmem:[#allocation2 + $0x80] sm:$0xff] %vm499, %v460
    %518 = vst.msk [vmem:[#allocation2 + $0x88] sm:$0x3] %vm502, %v462
    %519 = vst.msk [vmem:[#allocation2 + $0x90] sm:$0xff] %vm499, %v464
    %520 = vst.msk [vmem:[#allocation2 + $0x98] sm:$0xff] %vm499, %v466
    %521 = vst.msk [vmem:[#allocation2 + $0xa0] sm:$0x3] %vm502, %v468
    %522 = vst.msk [vmem:[#allocation2 + $0xa8] sm:$0xff] %vm499, %v470
    %523 = vst.msk [vmem:[#allocation2 + $0xb0] sm:$0xff] %vm499, %v472
    %524 = vst.msk [vmem:[#allocation2 + $0xb8] sm:$0x3] %vm502, %v474
    %v525 = vld [vmem:[#allocation2] sm:$0xff]
    %v526 = vld [vmem:[#allocation2 + $0x8] sm:$0xff]
    %v527 = vld [vmem:[#allocation2 + $0x60] sm:$0xff]
    %v528 = vld [vmem:[#allocation2 + $0x68] sm:$0xff]
    %s529 = sld [smem:[#allocation7]]
    %v530 = vstv %s529
    %v531 = vmul.f32 %v530, %v525
    %v532 = vmul.f32 %v530, %v526
    %v533 = vmul.f32 %v530, %v527
    %v534 = vmul.f32 %v530, %v528
    %v535 = vadd.f32 %v531, 0.0
    %v536 = vadd.f32 %v532, 0.0
    %v537 = vadd.f32 %v533, 0.0
    %v538 = vadd.f32 %v534, 0.0
    %s539 = sld [smem:[#allocation7 + $0x1]]
    %v540 = vstv %s539
    %v541 = vmul.f32 %v540, %v525
    %v542 = vmul.f32 %v540, %v526
    %v543 = vmul.f32 %v540, %v527
    %v544 = vmul.f32 %v540, %v528
    %v545 = vadd.f32 %v541, 0.0
    %v546 = vadd.f32 %v542, 0.0
    %v547 = vadd.f32 %v543, 0.0
    %v548 = vadd.f32 %v544, 0.0
    %s549 = sld [smem:[#allocation7 + $0x2]]
    %v550 = vstv %s549
    %v551 = vmul.f32 %v550, %v525
    %v552 = vmul.f32 %v550, %v526
    %v553 = vmul.f32 %v550, %v527
    %v554 = vmul.f32 %v550, %v528
    %v555 = vadd.f32 %v551, 0.0
    %v556 = vadd.f32 %v552, 0.0
    %v557 = vadd.f32 %v553, 0.0
    %v558 = vadd.f32 %v554, 0.0
    %s559 = sld [smem:[#allocation7 + $0x3]]
    %v560 = vstv %s559
    %v561 = vmul.f32 %v560, %v525
    %v562 = vmul.f32 %v560, %v526
    %v563 = vmul.f32 %v560, %v527
    %v564 = vmul.f32 %v560, %v528
    %v565 = vadd.f32 %v561, 0.0
    %v566 = vadd.f32 %v562, 0.0
    %v567 = vadd.f32 %v563, 0.0
    %v568 = vadd.f32 %v564, 0.0
    %s569 = sld [smem:[#allocation7 + $0x10]]
    %v570 = vstv %s569
    %v571 = vmul.f32 %v570, %v525
    %v572 = vmul.f32 %v570, %v526
    %v573 = vmul.f32 %v570, %v527
    %v574 = vmul.f32 %v570, %v528
    %579 = vrot.lane.b32.xlu0 %v571, 127
    %v580 = vpop.permute.xlu0 %579
    %581 = vrot.lane.b32.xlu0 %v572, 127
    %v582 = vpop.permute.xlu0 %581
    %583 = vrot.lane.b32.xlu0 %v573, 127
    %v584 = vpop.permute.xlu0 %583
    %585 = vrot.lane.b32.xlu0 %v574, 127
    %v586 = vpop.permute.xlu0 %585
    %v591 = vadd.f32 %v535, %v580
    %v592 = vadd.f32 %v536, %v582
    %v593 = vadd.f32 %v537, %v584
    %v594 = vadd.f32 %v538, %v586
    %s595 = sld [smem:[#allocation7 + $0x11]]
    %v596 = vstv %s595
    %v597 = vmul.f32 %v596, %v525
    %v598 = vmul.f32 %v596, %v526
    %v599 = vmul.f32 %v596, %v527
    %v600 = vmul.f32 %v596, %v528
    %605 = vrot.lane.b32.xlu0 %v597, 127
    %v606 = vpop.permute.xlu0 %605
    %607 = vrot.lane.b32.xlu0 %v598, 127
    %v608 = vpop.permute.xlu0 %607
    %609 = vrot.lane.b32.xlu0 %v599, 127
    %v610 = vpop.permute.xlu0 %609
    %611 = vrot.lane.b32.xlu0 %v600, 127
    %v612 = vpop.permute.xlu0 %611
    %v617 = vadd.f32 %v545, %v606
    %v618 = vadd.f32 %v546, %v608
    %v619 = vadd.f32 %v547, %v610
    %v620 = vadd.f32 %v548, %v612
    %s621 = sld [smem:[#allocation7 + $0x12]]
    %v622 = vstv %s621
    %v623 = vmul.f32 %v622, %v525
    %v624 = vmul.f32 %v622, %v526
    %v625 = vmul.f32 %v622, %v527
    %v626 = vmul.f32 %v622, %v528
    %631 = vrot.lane.b32.xlu0 %v623, 127
    %v632 = vpop.permute.xlu0 %631
    %633 = vrot.lane.b32.xlu0 %v624, 127
    %v634 = vpop.permute.xlu0 %633
    %635 = vrot.lane.b32.xlu0 %v625, 127
    %v636 = vpop.permute.xlu0 %635
    %637 = vrot.lane.b32.xlu0 %v626, 127
    %v638 = vpop.permute.xlu0 %637
    %v643 = vadd.f32 %v555, %v632
    %v644 = vadd.f32 %v556, %v634
    %v645 = vadd.f32 %v557, %v636
    %v646 = vadd.f32 %v558, %v638
    %s647 = sld [smem:[#allocation7 + $0x13]]
    %v648 = vstv %s647
    %v649 = vmul.f32 %v648, %v525
    %v650 = vmul.f32 %v648, %v526
    %v651 = vmul.f32 %v648, %v527
    %v652 = vmul.f32 %v648, %v528
    %657 = vrot.lane.b32.xlu0 %v649, 127
    %v658 = vpop.permute.xlu0 %657
    %659 = vrot.lane.b32.xlu0 %v650, 127
    %v660 = vpop.permute.xlu0 %659
    %661 = vrot.lane.b32.xlu0 %v651, 127
    %v662 = vpop.permute.xlu0 %661
    %663 = vrot.lane.b32.xlu0 %v652, 127
    %v664 = vpop.permute.xlu0 %663
    %v669 = vadd.f32 %v565, %v658
    %v670 = vadd.f32 %v566, %v660
    %v671 = vadd.f32 %v567, %v662
    %v672 = vadd.f32 %v568, %v664
    %s673 = sld [smem:[#allocation7 + $0x20]]
    %v674 = vstv %s673
    %v675 = vmul.f32 %v674, %v525
    %v676 = vmul.f32 %v674, %v526
    %v677 = vmul.f32 %v674, %v527
    %v678 = vmul.f32 %v674, %v528
    %683 = vrot.lane.b32.xlu0 %v675, 126
    %v684 = vpop.permute.xlu0 %683
    %685 = vrot.lane.b32.xlu0 %v676, 126
    %v686 = vpop.permute.xlu0 %685
    %687 = vrot.lane.b32.xlu0 %v677, 126
    %v688 = vpop.permute.xlu0 %687
    %689 = vrot.lane.b32.xlu0 %v678, 126
    %v690 = vpop.permute.xlu0 %689
    %v695 = vadd.f32 %v591, %v684
    %v696 = vadd.f32 %v592, %v686
    %v697 = vadd.f32 %v593, %v688
    %v698 = vadd.f32 %v594, %v690
    %s699 = sld [smem:[#allocation7 + $0x21]]
    %v700 = vstv %s699
    %v701 = vmul.f32 %v700, %v525
    %v702 = vmul.f32 %v700, %v526
    %v703 = vmul.f32 %v700, %v527
    %v704 = vmul.f32 %v700, %v528
    %709 = vrot.lane.b32.xlu0 %v701, 126
    %v710 = vpop.permute.xlu0 %709
    %711 = vrot.lane.b32.xlu0 %v702, 126
    %v712 = vpop.permute.xlu0 %711
    %713 = vrot.lane.b32.xlu0 %v703, 126
    %v714 = vpop.permute.xlu0 %713
    %715 = vrot.lane.b32.xlu0 %v704, 126
    %v716 = vpop.permute.xlu0 %715
    %v721 = vadd.f32 %v617, %v710
    %v722 = vadd.f32 %v618, %v712
    %v723 = vadd.f32 %v619, %v714
    %v724 = vadd.f32 %v620, %v716
    %s725 = sld [smem:[#allocation7 + $0x22]]
    %v726 = vstv %s725
    %v727 = vmul.f32 %v726, %v525
    %v728 = vmul.f32 %v726, %v526
    %v729 = vmul.f32 %v726, %v527
    %v730 = vmul.f32 %v726, %v528
    %735 = vrot.lane.b32.xlu0 %v727, 126
    %v736 = vpop.permute.xlu0 %735
    %737 = vrot.lane.b32.xlu0 %v728, 126
    %v738 = vpop.permute.xlu0 %737
    %739 = vrot.lane.b32.xlu0 %v729, 126
    %v740 = vpop.permute.xlu0 %739
    %741 = vrot.lane.b32.xlu0 %v730, 126
    %v742 = vpop.permute.xlu0 %741
    %v747 = vadd.f32 %v643, %v736
    %v748 = vadd.f32 %v644, %v738
    %v749 = vadd.f32 %v645, %v740
    %v750 = vadd.f32 %v646, %v742
    %s751 = sld [smem:[#allocation7 + $0x23]]
    %v752 = vstv %s751
    %v753 = vmul.f32 %v752, %v525
    %v754 = vmul.f32 %v752, %v526
    %v755 = vmul.f32 %v752, %v527
    %v756 = vmul.f32 %v752, %v528
    %761 = vrot.lane.b32.xlu0 %v753, 126
    %v762 = vpop.permute.xlu0 %761
    %763 = vrot.lane.b32.xlu0 %v754, 126
    %v764 = vpop.permute.xlu0 %763
    %765 = vrot.lane.b32.xlu0 %v755, 126
    %v766 = vpop.permute.xlu0 %765
    %767 = vrot.lane.b32.xlu0 %v756, 126
    %v768 = vpop.permute.xlu0 %767
    %v773 = vadd.f32 %v669, %v762
    %v774 = vadd.f32 %v670, %v764
    %v775 = vadd.f32 %v671, %v766
    %v776 = vadd.f32 %v672, %v768
    %v777 = vld [vmem:[#allocation2 + $0x1] sm:$0xff]
    %v778 = vld [vmem:[#allocation2 + $0x9] sm:$0xff]
    %v779 = vld [vmem:[#allocation2 + $0x61] sm:$0xff]
    %v780 = vld [vmem:[#allocation2 + $0x69] sm:$0xff]
    %s781 = sld [smem:[#allocation7 + $0x30]]
    %v782 = vstv %s781
    %v783 = vmul.f32 %v782, %v777
    %v784 = vmul.f32 %v782, %v778
    %v785 = vmul.f32 %v782, %v779
    %v786 = vmul.f32 %v782, %v780
    %v787 = vadd.f32 %v695, %v783
    %v788 = vadd.f32 %v696, %v784
    %v789 = vadd.f32 %v697, %v785
    %v790 = vadd.f32 %v698, %v786
    %s791 = sld [smem:[#allocation7 + $0x31]]
    %v792 = vstv %s791
    %v793 = vmul.f32 %v792, %v777
    %v794 = vmul.f32 %v792, %v778
    %v795 = vmul.f32 %v792, %v779
    %v796 = vmul.f32 %v792, %v780
    %v797 = vadd.f32 %v721, %v793
    %v798 = vadd.f32 %v722, %v794
    %v799 = vadd.f32 %v723, %v795
    %v800 = vadd.f32 %v724, %v796
    %s801 = sld [smem:[#allocation7 + $0x32]]
    %v802 = vstv %s801
    %v803 = vmul.f32 %v802, %v777
    %v804 = vmul.f32 %v802, %v778
    %v805 = vmul.f32 %v802, %v779
    %v806 = vmul.f32 %v802, %v780
    %v807 = vadd.f32 %v747, %v803
    %v808 = vadd.f32 %v748, %v804
    %v809 = vadd.f32 %v749, %v805
    %v810 = vadd.f32 %v750, %v806
    %s811 = sld [smem:[#allocation7 + $0x33]]
    %v812 = vstv %s811
    %v813 = vmul.f32 %v812, %v777
    %v814 = vmul.f32 %v812, %v778
    %v815 = vmul.f32 %v812, %v779
    %v816 = vmul.f32 %v812, %v780
    %v817 = vadd.f32 %v773, %v813
    %v818 = vadd.f32 %v774, %v814
    %v819 = vadd.f32 %v775, %v815
    %v820 = vadd.f32 %v776, %v816
    %s821 = sld [smem:[#allocation7 + $0x40]]
    %v822 = vstv %s821
    %v823 = vmul.f32 %v822, %v777
    %v824 = vmul.f32 %v822, %v778
    %v825 = vmul.f32 %v822, %v779
    %v826 = vmul.f32 %v822, %v780
    %831 = vrot.lane.b32.xlu0 %v823, 127
    %v832 = vpop.permute.xlu0 %831
    %833 = vrot.lane.b32.xlu0 %v824, 127
    %v834 = vpop.permute.xlu0 %833
    %835 = vrot.lane.b32.xlu0 %v825, 127
    %v836 = vpop.permute.xlu0 %835
    %837 = vrot.lane.b32.xlu0 %v826, 127
    %v838 = vpop.permute.xlu0 %837
    %v843 = vadd.f32 %v787, %v832
    %v844 = vadd.f32 %v788, %v834
    %v845 = vadd.f32 %v789, %v836
    %v846 = vadd.f32 %v790, %v838
    %s847 = sld [smem:[#allocation7 + $0x41]]
    %v848 = vstv %s847
    %v849 = vmul.f32 %v848, %v777
    %v850 = vmul.f32 %v848, %v778
    %v851 = vmul.f32 %v848, %v779
    %v852 = vmul.f32 %v848, %v780
    %857 = vrot.lane.b32.xlu0 %v849, 127
    %v858 = vpop.permute.xlu0 %857
    %859 = vrot.lane.b32.xlu0 %v850, 127
    %v860 = vpop.permute.xlu0 %859
    %861 = vrot.lane.b32.xlu0 %v851, 127
    %v862 = vpop.permute.xlu0 %861
    %863 = vrot.lane.b32.xlu0 %v852, 127
    %v864 = vpop.permute.xlu0 %863
    %v869 = vadd.f32 %v797, %v858
    %v870 = vadd.f32 %v798, %v860
    %v871 = vadd.f32 %v799, %v862
    %v872 = vadd.f32 %v800, %v864
    %s873 = sld [smem:[#allocation7 + $0x42]]
    %v874 = vstv %s873
    %v875 = vmul.f32 %v874, %v777
    %v876 = vmul.f32 %v874, %v778
    %v877 = vmul.f32 %v874, %v779
    %v878 = vmul.f32 %v874, %v780
    %883 = vrot.lane.b32.xlu0 %v875, 127
    %v884 = vpop.permute.xlu0 %883
    %885 = vrot.lane.b32.xlu0 %v876, 127
    %v886 = vpop.permute.xlu0 %885
    %887 = vrot.lane.b32.xlu0 %v877, 127
    %v888 = vpop.permute.xlu0 %887
    %889 = vrot.lane.b32.xlu0 %v878, 127
    %v890 = vpop.permute.xlu0 %889
    %v895 = vadd.f32 %v807, %v884
    %v896 = vadd.f32 %v808, %v886
    %v897 = vadd.f32 %v809, %v888
    %v898 = vadd.f32 %v810, %v890
    %s899 = sld [smem:[#allocation7 + $0x43]]
    %v900 = vstv %s899
    %v901 = vmul.f32 %v900, %v777
    %v902 = vmul.f32 %v900, %v778
    %v903 = vmul.f32 %v900, %v779
    %v904 = vmul.f32 %v900, %v780
    %909 = vrot.lane.b32.xlu0 %v901, 127
    %v910 = vpop.permute.xlu0 %909
    %911 = vrot.lane.b32.xlu0 %v902, 127
    %v912 = vpop.permute.xlu0 %911
    %913 = vrot.lane.b32.xlu0 %v903, 127
    %v914 = vpop.permute.xlu0 %913
    %915 = vrot.lane.b32.xlu0 %v904, 127
    %v916 = vpop.permute.xlu0 %915
    %v921 = vadd.f32 %v817, %v910
    %v922 = vadd.f32 %v818, %v912
    %v923 = vadd.f32 %v819, %v914
    %v924 = vadd.f32 %v820, %v916
    %s925 = sld [smem:[#allocation7 + $0x50]]
    %v926 = vstv %s925
    %v927 = vmul.f32 %v926, %v777
    %v928 = vmul.f32 %v926, %v778
    %v929 = vmul.f32 %v926, %v779
    %v930 = vmul.f32 %v926, %v780
    %935 = vrot.lane.b32.xlu0 %v927, 126
    %v936 = vpop.permute.xlu0 %935
    %937 = vrot.lane.b32.xlu0 %v928, 126
    %v938 = vpop.permute.xlu0 %937
    %939 = vrot.lane.b32.xlu0 %v929, 126
    %v940 = vpop.permute.xlu0 %939
    %941 = vrot.lane.b32.xlu0 %v930, 126
    %v942 = vpop.permute.xlu0 %941
    %v947 = vadd.f32 %v843, %v936
    %v948 = vadd.f32 %v844, %v938
    %v949 = vadd.f32 %v845, %v940
    %v950 = vadd.f32 %v846, %v942
    %s951 = sld [smem:[#allocation7 + $0x51]]
    %v952 = vstv %s951
    %v953 = vmul.f32 %v952, %v777
    %v954 = vmul.f32 %v952, %v778
    %v955 = vmul.f32 %v952, %v779
    %v956 = vmul.f32 %v952, %v780
    %961 = vrot.lane.b32.xlu0 %v953, 126
    %v962 = vpop.permute.xlu0 %961
    %963 = vrot.lane.b32.xlu0 %v954, 126
    %v964 = vpop.permute.xlu0 %963
    %965 = vrot.lane.b32.xlu0 %v955, 126
    %v966 = vpop.permute.xlu0 %965
    %967 = vrot.lane.b32.xlu0 %v956, 126
    %v968 = vpop.permute.xlu0 %967
    %v973 = vadd.f32 %v869, %v962
    %v974 = vadd.f32 %v870, %v964
    %v975 = vadd.f32 %v871, %v966
    %v976 = vadd.f32 %v872, %v968
    %s977 = sld [smem:[#allocation7 + $0x52]]
    %v978 = vstv %s977
    %v979 = vmul.f32 %v978, %v777
    %v980 = vmul.f32 %v978, %v778
    %v981 = vmul.f32 %v978, %v779
    %v982 = vmul.f32 %v978, %v780
    %987 = vrot.lane.b32.xlu0 %v979, 126
    %v988 = vpop.permute.xlu0 %987
    %989 = vrot.lane.b32.xlu0 %v980, 126
    %v990 = vpop.permute.xlu0 %989
    %991 = vrot.lane.b32.xlu0 %v981, 126
    %v992 = vpop.permute.xlu0 %991
    %993 = vrot.lane.b32.xlu0 %v982, 126
    %v994 = vpop.permute.xlu0 %993
    %v999 = vadd.f32 %v895, %v988
    %v1000 = vadd.f32 %v896, %v990
    %v1001 = vadd.f32 %v897, %v992
    %v1002 = vadd.f32 %v898, %v994
    %s1003 = sld [smem:[#allocation7 + $0x53]]
    %v1004 = vstv %s1003
    %v1005 = vmul.f32 %v1004, %v777
    %v1006 = vmul.f32 %v1004, %v778
    %v1007 = vmul.f32 %v1004, %v779
    %v1008 = vmul.f32 %v1004, %v780
    %1013 = vrot.lane.b32.xlu0 %v1005, 126
    %v1014 = vpop.permute.xlu0 %1013
    %1015 = vrot.lane.b32.xlu0 %v1006, 126
    %v1016 = vpop.permute.xlu0 %1015
    %1017 = vrot.lane.b32.xlu0 %v1007, 126
    %v1018 = vpop.permute.xlu0 %1017
    %1019 = vrot.lane.b32.xlu0 %v1008, 126
    %v1020 = vpop.permute.xlu0 %1019
    %v1025 = vadd.f32 %v921, %v1014
    %v1026 = vadd.f32 %v922, %v1016
    %v1027 = vadd.f32 %v923, %v1018
    %v1028 = vadd.f32 %v924, %v1020
    %v1029 = vld [vmem:[#allocation2 + $0x2] sm:$0xff]
    %v1030 = vld [vmem:[#allocation2 + $0xa] sm:$0xff]
    %v1031 = vld [vmem:[#allocation2 + $0x62] sm:$0xff]
    %v1032 = vld [vmem:[#allocation2 + $0x6a] sm:$0xff]
    %s1033 = sld [smem:[#allocation7 + $0x60]]
    %v1034 = vstv %s1033
    %v1035 = vmul.f32 %v1034, %v1029
    %v1036 = vmul.f32 %v1034, %v1030
    %v1037 = vmul.f32 %v1034, %v1031
    %v1038 = vmul.f32 %v1034, %v1032
    %v1039 = vadd.f32 %v947, %v1035
    %v1040 = vadd.f32 %v948, %v1036
    %v1041 = vadd.f32 %v949, %v1037
    %v1042 = vadd.f32 %v950, %v1038
    %s1043 = sld [smem:[#allocation7 + $0x61]]
    %v1044 = vstv %s1043
    %v1045 = vmul.f32 %v1044, %v1029
    %v1046 = vmul.f32 %v1044, %v1030
    %v1047 = vmul.f32 %v1044, %v1031
    %v1048 = vmul.f32 %v1044, %v1032
    %v1049 = vadd.f32 %v973, %v1045
    %v1050 = vadd.f32 %v974, %v1046
    %v1051 = vadd.f32 %v975, %v1047
    %v1052 = vadd.f32 %v976, %v1048
    %s1053 = sld [smem:[#allocation7 + $0x62]]
    %v1054 = vstv %s1053
    %v1055 = vmul.f32 %v1054, %v1029
    %v1056 = vmul.f32 %v1054, %v1030
    %v1057 = vmul.f32 %v1054, %v1031
    %v1058 = vmul.f32 %v1054, %v1032
    %v1059 = vadd.f32 %v999, %v1055
    %v1060 = vadd.f32 %v1000, %v1056
    %v1061 = vadd.f32 %v1001, %v1057
    %v1062 = vadd.f32 %v1002, %v1058
    %s1063 = sld [smem:[#allocation7 + $0x63]]
    %v1064 = vstv %s1063
    %v1065 = vmul.f32 %v1064, %v1029
    %v1066 = vmul.f32 %v1064, %v1030
    %v1067 = vmul.f32 %v1064, %v1031
    %v1068 = vmul.f32 %v1064, %v1032
    %v1069 = vadd.f32 %v1025, %v1065
    %v1070 = vadd.f32 %v1026, %v1066
    %v1071 = vadd.f32 %v1027, %v1067
    %v1072 = vadd.f32 %v1028, %v1068
    %s1073 = sld [smem:[#allocation7 + $0x70]]
    %v1074 = vstv %s1073
    %v1075 = vmul.f32 %v1074, %v1029
    %v1076 = vmul.f32 %v1074, %v1030
    %v1077 = vmul.f32 %v1074, %v1031
    %v1078 = vmul.f32 %v1074, %v1032
    %1083 = vrot.lane.b32.xlu0 %v1075, 127
    %v1084 = vpop.permute.xlu0 %1083
    %1085 = vrot.lane.b32.xlu0 %v1076, 127
    %v1086 = vpop.permute.xlu0 %1085
    %1087 = vrot.lane.b32.xlu0 %v1077, 127
    %v1088 = vpop.permute.xlu0 %1087
    %1089 = vrot.lane.b32.xlu0 %v1078, 127
    %v1090 = vpop.permute.xlu0 %1089
    %v1095 = vadd.f32 %v1039, %v1084
    %v1096 = vadd.f32 %v1040, %v1086
    %v1097 = vadd.f32 %v1041, %v1088
    %v1098 = vadd.f32 %v1042, %v1090
    %s1099 = sld [smem:[#allocation7 + $0x71]]
    %v1100 = vstv %s1099
    %v1101 = vmul.f32 %v1100, %v1029
    %v1102 = vmul.f32 %v1100, %v1030
    %v1103 = vmul.f32 %v1100, %v1031
    %v1104 = vmul.f32 %v1100, %v1032
    %1109 = vrot.lane.b32.xlu0 %v1101, 127
    %v1110 = vpop.permute.xlu0 %1109
    %1111 = vrot.lane.b32.xlu0 %v1102, 127
    %v1112 = vpop.permute.xlu0 %1111
    %1113 = vrot.lane.b32.xlu0 %v1103, 127
    %v1114 = vpop.permute.xlu0 %1113
    %1115 = vrot.lane.b32.xlu0 %v1104, 127
    %v1116 = vpop.permute.xlu0 %1115
    %v1121 = vadd.f32 %v1049, %v1110
    %v1122 = vadd.f32 %v1050, %v1112
    %v1123 = vadd.f32 %v1051, %v1114
    %v1124 = vadd.f32 %v1052, %v1116
    %s1125 = sld [smem:[#allocation7 + $0x72]]
    %v1126 = vstv %s1125
    %v1127 = vmul.f32 %v1126, %v1029
    %v1128 = vmul.f32 %v1126, %v1030
    %v1129 = vmul.f32 %v1126, %v1031
    %v1130 = vmul.f32 %v1126, %v1032
    %1135 = vrot.lane.b32.xlu0 %v1127, 127
    %v1136 = vpop.permute.xlu0 %1135
    %1137 = vrot.lane.b32.xlu0 %v1128, 127
    %v1138 = vpop.permute.xlu0 %1137
    %1139 = vrot.lane.b32.xlu0 %v1129, 127
    %v1140 = vpop.permute.xlu0 %1139
    %1141 = vrot.lane.b32.xlu0 %v1130, 127
    %v1142 = vpop.permute.xlu0 %1141
    %v1147 = vadd.f32 %v1059, %v1136
    %v1148 = vadd.f32 %v1060, %v1138
    %v1149 = vadd.f32 %v1061, %v1140
    %v1150 = vadd.f32 %v1062, %v1142
    %s1151 = sld [smem:[#allocation7 + $0x73]]
    %v1152 = vstv %s1151
    %v1153 = vmul.f32 %v1152, %v1029
    %v1154 = vmul.f32 %v1152, %v1030
    %v1155 = vmul.f32 %v1152, %v1031
    %v1156 = vmul.f32 %v1152, %v1032
    %1161 = vrot.lane.b32.xlu0 %v1153, 127
    %v1162 = vpop.permute.xlu0 %1161
    %1163 = vrot.lane.b32.xlu0 %v1154, 127
    %v1164 = vpop.permute.xlu0 %1163
    %1165 = vrot.lane.b32.xlu0 %v1155, 127
    %v1166 = vpop.permute.xlu0 %1165
    %1167 = vrot.lane.b32.xlu0 %v1156, 127
    %v1168 = vpop.permute.xlu0 %1167
    %v1173 = vadd.f32 %v1069, %v1162
    %v1174 = vadd.f32 %v1070, %v1164
    %v1175 = vadd.f32 %v1071, %v1166
    %v1176 = vadd.f32 %v1072, %v1168
    %s1177 = sld [smem:[#allocation7 + $0x80]]
    %v1178 = vstv %s1177
    %v1179 = vmul.f32 %v1178, %v1029
    %v1180 = vmul.f32 %v1178, %v1030
    %v1181 = vmul.f32 %v1178, %v1031
    %v1182 = vmul.f32 %v1178, %v1032
    %1187 = vrot.lane.b32.xlu0 %v1179, 126
    %v1188 = vpop.permute.xlu0 %1187
    %1189 = vrot.lane.b32.xlu0 %v1180, 126
    %v1190 = vpop.permute.xlu0 %1189
    %1191 = vrot.lane.b32.xlu0 %v1181, 126
    %v1192 = vpop.permute.xlu0 %1191
    %1193 = vrot.lane.b32.xlu0 %v1182, 126
    %v1194 = vpop.permute.xlu0 %1193
    %v1199 = vadd.f32 %v1095, %v1188
    %v1200 = vadd.f32 %v1096, %v1190
    %v1201 = vadd.f32 %v1097, %v1192
    %v1202 = vadd.f32 %v1098, %v1194
    %s1203 = sld [smem:[#allocation7 + $0x81]]
    %v1204 = vstv %s1203
    %v1205 = vmul.f32 %v1204, %v1029
    %v1206 = vmul.f32 %v1204, %v1030
    %v1207 = vmul.f32 %v1204, %v1031
    %v1208 = vmul.f32 %v1204, %v1032
    %1213 = vrot.lane.b32.xlu0 %v1205, 126
    %v1214 = vpop.permute.xlu0 %1213
    %1215 = vrot.lane.b32.xlu0 %v1206, 126
    %v1216 = vpop.permute.xlu0 %1215
    %1217 = vrot.lane.b32.xlu0 %v1207, 126
    %v1218 = vpop.permute.xlu0 %1217
    %1219 = vrot.lane.b32.xlu0 %v1208, 126
    %v1220 = vpop.permute.xlu0 %1219
    %v1225 = vadd.f32 %v1121, %v1214
    %v1226 = vadd.f32 %v1122, %v1216
    %v1227 = vadd.f32 %v1123, %v1218
    %v1228 = vadd.f32 %v1124, %v1220
    %s1229 = sld [smem:[#allocation7 + $0x82]]
    %v1230 = vstv %s1229
    %v1231 = vmul.f32 %v1230, %v1029
    %v1232 = vmul.f32 %v1230, %v1030
    %v1233 = vmul.f32 %v1230, %v1031
    %v1234 = vmul.f32 %v1230, %v1032
    %1239 = vrot.lane.b32.xlu0 %v1231, 126
    %v1240 = vpop.permute.xlu0 %1239
    %1241 = vrot.lane.b32.xlu0 %v1232, 126
    %v1242 = vpop.permute.xlu0 %1241
    %1243 = vrot.lane.b32.xlu0 %v1233, 126
    %v1244 = vpop.permute.xlu0 %1243
    %1245 = vrot.lane.b32.xlu0 %v1234, 126
    %v1246 = vpop.permute.xlu0 %1245
    %v1251 = vadd.f32 %v1147, %v1240
    %v1252 = vadd.f32 %v1148, %v1242
    %v1253 = vadd.f32 %v1149, %v1244
    %v1254 = vadd.f32 %v1150, %v1246
    %s1255 = sld [smem:[#allocation7 + $0x83]]
    %v1256 = vstv %s1255
    %v1257 = vmul.f32 %v1256, %v1029
    %v1258 = vmul.f32 %v1256, %v1030
    %v1259 = vmul.f32 %v1256, %v1031
    %v1260 = vmul.f32 %v1256, %v1032
    %1265 = vrot.lane.b32.xlu0 %v1257, 126
    %v1266 = vpop.permute.xlu0 %1265
    %1267 = vrot.lane.b32.xlu0 %v1258, 126
    %v1268 = vpop.permute.xlu0 %1267
    %1269 = vrot.lane.b32.xlu0 %v1259, 126
    %v1270 = vpop.permute.xlu0 %1269
    %1271 = vrot.lane.b32.xlu0 %v1260, 126
    %v1272 = vpop.permute.xlu0 %1271
    %v1277 = vadd.f32 %v1173, %v1266
    %v1278 = vadd.f32 %v1174, %v1268
    %v1279 = vadd.f32 %v1175, %v1270
    %v1280 = vadd.f32 %v1176, %v1272
    %v1281 = vld [vmem:[%s174] sm:$0xff]
    %v1282 = vld [vmem:[%s174 + $0x8] sm:$0xff]
    %v1283 = vld [vmem:[%s174 + $0x60] sm:$0xff]
    %v1284 = vld [vmem:[%s174 + $0x68] sm:$0xff]
    %s1285 = sld [smem:[#allocation7 + $0x4]]
    %v1286 = vstv %s1285
    %v1287 = vmul.f32 %v1286, %v1281
    %v1288 = vmul.f32 %v1286, %v1282
    %v1289 = vmul.f32 %v1286, %v1283
    %v1290 = vmul.f32 %v1286, %v1284
    %v1291 = vadd.f32 %v1199, %v1287
    %v1292 = vadd.f32 %v1200, %v1288
    %v1293 = vadd.f32 %v1201, %v1289
    %v1294 = vadd.f32 %v1202, %v1290
    %s1295 = sld [smem:[#allocation7 + $0x5]]
    %v1296 = vstv %s1295
    %v1297 = vmul.f32 %v1296, %v1281
    %v1298 = vmul.f32 %v1296, %v1282
    %v1299 = vmul.f32 %v1296, %v1283
    %v1300 = vmul.f32 %v1296, %v1284
    %v1301 = vadd.f32 %v1225, %v1297
    %v1302 = vadd.f32 %v1226, %v1298
    %v1303 = vadd.f32 %v1227, %v1299
    %v1304 = vadd.f32 %v1228, %v1300
    %s1305 = sld [smem:[#allocation7 + $0x6]]
    %v1306 = vstv %s1305
    %v1307 = vmul.f32 %v1306, %v1281
    %v1308 = vmul.f32 %v1306, %v1282
    %v1309 = vmul.f32 %v1306, %v1283
    %v1310 = vmul.f32 %v1306, %v1284
    %v1311 = vadd.f32 %v1251, %v1307
    %v1312 = vadd.f32 %v1252, %v1308
    %v1313 = vadd.f32 %v1253, %v1309
    %v1314 = vadd.f32 %v1254, %v1310
    %s1315 = sld [smem:[#allocation7 + $0x7]]
    %v1316 = vstv %s1315
    %v1317 = vmul.f32 %v1316, %v1281
    %v1318 = vmul.f32 %v1316, %v1282
    %v1319 = vmul.f32 %v1316, %v1283
    %v1320 = vmul.f32 %v1316, %v1284
    %v1321 = vadd.f32 %v1277, %v1317
    %v1322 = vadd.f32 %v1278, %v1318
    %v1323 = vadd.f32 %v1279, %v1319
    %v1324 = vadd.f32 %v1280, %v1320
    %s1325 = sld [smem:[#allocation7 + $0x14]]
    %v1326 = vstv %s1325
    %v1327 = vmul.f32 %v1326, %v1281
    %v1328 = vmul.f32 %v1326, %v1282
    %v1329 = vmul.f32 %v1326, %v1283
    %v1330 = vmul.f32 %v1326, %v1284
    %1335 = vrot.lane.b32.xlu0 %v1327, 127
    %v1336 = vpop.permute.xlu0 %1335
    %1337 = vrot.lane.b32.xlu0 %v1328, 127
    %v1338 = vpop.permute.xlu0 %1337
    %1339 = vrot.lane.b32.xlu0 %v1329, 127
    %v1340 = vpop.permute.xlu0 %1339
    %1341 = vrot.lane.b32.xlu0 %v1330, 127
    %v1342 = vpop.permute.xlu0 %1341
    %v1347 = vadd.f32 %v1291, %v1336
    %v1348 = vadd.f32 %v1292, %v1338
    %v1349 = vadd.f32 %v1293, %v1340
    %v1350 = vadd.f32 %v1294, %v1342
    %s1351 = sld [smem:[#allocation7 + $0x15]]
    %v1352 = vstv %s1351
    %v1353 = vmul.f32 %v1352, %v1281
    %v1354 = vmul.f32 %v1352, %v1282
    %v1355 = vmul.f32 %v1352, %v1283
    %v1356 = vmul.f32 %v1352, %v1284
    %1361 = vrot.lane.b32.xlu0 %v1353, 127
    %v1362 = vpop.permute.xlu0 %1361
    %1363 = vrot.lane.b32.xlu0 %v1354, 127
    %v1364 = vpop.permute.xlu0 %1363
    %1365 = vrot.lane.b32.xlu0 %v1355, 127
    %v1366 = vpop.permute.xlu0 %1365
    %1367 = vrot.lane.b32.xlu0 %v1356, 127
    %v1368 = vpop.permute.xlu0 %1367
    %v1373 = vadd.f32 %v1301, %v1362
    %v1374 = vadd.f32 %v1302, %v1364
    %v1375 = vadd.f32 %v1303, %v1366
    %v1376 = vadd.f32 %v1304, %v1368
    %s1377 = sld [smem:[#allocation7 + $0x16]]
    %v1378 = vstv %s1377
    %v1379 = vmul.f32 %v1378, %v1281
    %v1380 = vmul.f32 %v1378, %v1282
    %v1381 = vmul.f32 %v1378, %v1283
    %v1382 = vmul.f32 %v1378, %v1284
    %1387 = vrot.lane.b32.xlu0 %v1379, 127
    %v1388 = vpop.permute.xlu0 %1387
    %1389 = vrot.lane.b32.xlu0 %v1380, 127
    %v1390 = vpop.permute.xlu0 %1389
    %1391 = vrot.lane.b32.xlu0 %v1381, 127
    %v1392 = vpop.permute.xlu0 %1391
    %1393 = vrot.lane.b32.xlu0 %v1382, 127
    %v1394 = vpop.permute.xlu0 %1393
    %v1399 = vadd.f32 %v1311, %v1388
    %v1400 = vadd.f32 %v1312, %v1390
    %v1401 = vadd.f32 %v1313, %v1392
    %v1402 = vadd.f32 %v1314, %v1394
    %s1403 = sld [smem:[#allocation7 + $0x17]]
    %v1404 = vstv %s1403
    %v1405 = vmul.f32 %v1404, %v1281
    %v1406 = vmul.f32 %v1404, %v1282
    %v1407 = vmul.f32 %v1404, %v1283
    %v1408 = vmul.f32 %v1404, %v1284
    %1413 = vrot.lane.b32.xlu0 %v1405, 127
    %v1414 = vpop.permute.xlu0 %1413
    %1415 = vrot.lane.b32.xlu0 %v1406, 127
    %v1416 = vpop.permute.xlu0 %1415
    %1417 = vrot.lane.b32.xlu0 %v1407, 127
    %v1418 = vpop.permute.xlu0 %1417
    %1419 = vrot.lane.b32.xlu0 %v1408, 127
    %v1420 = vpop.permute.xlu0 %1419
    %v1425 = vadd.f32 %v1321, %v1414
    %v1426 = vadd.f32 %v1322, %v1416
    %v1427 = vadd.f32 %v1323, %v1418
    %v1428 = vadd.f32 %v1324, %v1420
    %s1429 = sld [smem:[#allocation7 + $0x24]]
    %v1430 = vstv %s1429
    %v1431 = vmul.f32 %v1430, %v1281
    %v1432 = vmul.f32 %v1430, %v1282
    %v1433 = vmul.f32 %v1430, %v1283
    %v1434 = vmul.f32 %v1430, %v1284
    %1439 = vrot.lane.b32.xlu0 %v1431, 126
    %v1440 = vpop.permute.xlu0 %1439
    %1441 = vrot.lane.b32.xlu0 %v1432, 126
    %v1442 = vpop.permute.xlu0 %1441
    %1443 = vrot.lane.b32.xlu0 %v1433, 126
    %v1444 = vpop.permute.xlu0 %1443
    %1445 = vrot.lane.b32.xlu0 %v1434, 126
    %v1446 = vpop.permute.xlu0 %1445
    %v1451 = vadd.f32 %v1347, %v1440
    %v1452 = vadd.f32 %v1348, %v1442
    %v1453 = vadd.f32 %v1349, %v1444
    %v1454 = vadd.f32 %v1350, %v1446
    %s1455 = sld [smem:[#allocation7 + $0x25]]
    %v1456 = vstv %s1455
    %v1457 = vmul.f32 %v1456, %v1281
    %v1458 = vmul.f32 %v1456, %v1282
    %v1459 = vmul.f32 %v1456, %v1283
    %v1460 = vmul.f32 %v1456, %v1284
    %1465 = vrot.lane.b32.xlu0 %v1457, 126
    %v1466 = vpop.permute.xlu0 %1465
    %1467 = vrot.lane.b32.xlu0 %v1458, 126
    %v1468 = vpop.permute.xlu0 %1467
    %1469 = vrot.lane.b32.xlu0 %v1459, 126
    %v1470 = vpop.permute.xlu0 %1469
    %1471 = vrot.lane.b32.xlu0 %v1460, 126
    %v1472 = vpop.permute.xlu0 %1471
    %v1477 = vadd.f32 %v1373, %v1466
    %v1478 = vadd.f32 %v1374, %v1468
    %v1479 = vadd.f32 %v1375, %v1470
    %v1480 = vadd.f32 %v1376, %v1472
    %s1481 = sld [smem:[#allocation7 + $0x26]]
    %v1482 = vstv %s1481
    %v1483 = vmul.f32 %v1482, %v1281
    %v1484 = vmul.f32 %v1482, %v1282
    %v1485 = vmul.f32 %v1482, %v1283
    %v1486 = vmul.f32 %v1482, %v1284
    %1491 = vrot.lane.b32.xlu0 %v1483, 126
    %v1492 = vpop.permute.xlu0 %1491
    %1493 = vrot.lane.b32.xlu0 %v1484, 126
    %v1494 = vpop.permute.xlu0 %1493
    %1495 = vrot.lane.b32.xlu0 %v1485, 126
    %v1496 = vpop.permute.xlu0 %1495
    %1497 = vrot.lane.b32.xlu0 %v1486, 126
    %v1498 = vpop.permute.xlu0 %1497
    %v1503 = vadd.f32 %v1399, %v1492
    %v1504 = vadd.f32 %v1400, %v1494
    %v1505 = vadd.f32 %v1401, %v1496
    %v1506 = vadd.f32 %v1402, %v1498
    %s1507 = sld [smem:[#allocation7 + $0x27]]
    %v1508 = vstv %s1507
    %v1509 = vmul.f32 %v1508, %v1281
    %v1510 = vmul.f32 %v1508, %v1282
    %v1511 = vmul.f32 %v1508, %v1283
    %v1512 = vmul.f32 %v1508, %v1284
    %1517 = vrot.lane.b32.xlu0 %v1509, 126
    %v1518 = vpop.permute.xlu0 %1517
    %1519 = vrot.lane.b32.xlu0 %v1510, 126
    %v1520 = vpop.permute.xlu0 %1519
    %1521 = vrot.lane.b32.xlu0 %v1511, 126
    %v1522 = vpop.permute.xlu0 %1521
    %1523 = vrot.lane.b32.xlu0 %v1512, 126
    %v1524 = vpop.permute.xlu0 %1523
    %v1529 = vadd.f32 %v1425, %v1518
    %v1530 = vadd.f32 %v1426, %v1520
    %v1531 = vadd.f32 %v1427, %v1522
    %v1532 = vadd.f32 %v1428, %v1524
    %v1533 = vld [vmem:[%s174 + $0x1] sm:$0xff]
    %v1534 = vld [vmem:[%s174 + $0x9] sm:$0xff]
    %v1535 = vld [vmem:[%s174 + $0x61] sm:$0xff]
    %v1536 = vld [vmem:[%s174 + $0x69] sm:$0xff]
    %s1537 = sld [smem:[#allocation7 + $0x34]]
    %v1538 = vstv %s1537
    %v1539 = vmul.f32 %v1538, %v1533
    %v1540 = vmul.f32 %v1538, %v1534
    %v1541 = vmul.f32 %v1538, %v1535
    %v1542 = vmul.f32 %v1538, %v1536
    %v1543 = vadd.f32 %v1451, %v1539
    %v1544 = vadd.f32 %v1452, %v1540
    %v1545 = vadd.f32 %v1453, %v1541
    %v1546 = vadd.f32 %v1454, %v1542
    %s1547 = sld [smem:[#allocation7 + $0x35]]
    %v1548 = vstv %s1547
    %v1549 = vmul.f32 %v1548, %v1533
    %v1550 = vmul.f32 %v1548, %v1534
    %v1551 = vmul.f32 %v1548, %v1535
    %v1552 = vmul.f32 %v1548, %v1536
    %v1553 = vadd.f32 %v1477, %v1549
    %v1554 = vadd.f32 %v1478, %v1550
    %v1555 = vadd.f32 %v1479, %v1551
    %v1556 = vadd.f32 %v1480, %v1552
    %s1557 = sld [smem:[#allocation7 + $0x36]]
    %v1558 = vstv %s1557
    %v1559 = vmul.f32 %v1558, %v1533
    %v1560 = vmul.f32 %v1558, %v1534
    %v1561 = vmul.f32 %v1558, %v1535
    %v1562 = vmul.f32 %v1558, %v1536
    %v1563 = vadd.f32 %v1503, %v1559
    %v1564 = vadd.f32 %v1504, %v1560
    %v1565 = vadd.f32 %v1505, %v1561
    %v1566 = vadd.f32 %v1506, %v1562
    %s1567 = sld [smem:[#allocation7 + $0x37]]
    %v1568 = vstv %s1567
    %v1569 = vmul.f32 %v1568, %v1533
    %v1570 = vmul.f32 %v1568, %v1534
    %v1571 = vmul.f32 %v1568, %v1535
    %v1572 = vmul.f32 %v1568, %v1536
    %v1573 = vadd.f32 %v1529, %v1569
    %v1574 = vadd.f32 %v1530, %v1570
    %v1575 = vadd.f32 %v1531, %v1571
    %v1576 = vadd.f32 %v1532, %v1572
    %s1577 = sld [smem:[#allocation7 + $0x44]]
    %v1578 = vstv %s1577
    %v1579 = vmul.f32 %v1578, %v1533
    %v1580 = vmul.f32 %v1578, %v1534
    %v1581 = vmul.f32 %v1578, %v1535
    %v1582 = vmul.f32 %v1578, %v1536
    %1587 = vrot.lane.b32.xlu0 %v1579, 127
    %v1588 = vpop.permute.xlu0 %1587
    %1589 = vrot.lane.b32.xlu0 %v1580, 127
    %v1590 = vpop.permute.xlu0 %1589
    %1591 = vrot.lane.b32.xlu0 %v1581, 127
    %v1592 = vpop.permute.xlu0 %1591
    %1593 = vrot.lane.b32.xlu0 %v1582, 127
    %v1594 = vpop.permute.xlu0 %1593
    %v1599 = vadd.f32 %v1543, %v1588
    %v1600 = vadd.f32 %v1544, %v1590
    %v1601 = vadd.f32 %v1545, %v1592
    %v1602 = vadd.f32 %v1546, %v1594
    %s1603 = sld [smem:[#allocation7 + $0x45]]
    %v1604 = vstv %s1603
    %v1605 = vmul.f32 %v1604, %v1533
    %v1606 = vmul.f32 %v1604, %v1534
    %v1607 = vmul.f32 %v1604, %v1535
    %v1608 = vmul.f32 %v1604, %v1536
    %1613 = vrot.lane.b32.xlu0 %v1605, 127
    %v1614 = vpop.permute.xlu0 %1613
    %1615 = vrot.lane.b32.xlu0 %v1606, 127
    %v1616 = vpop.permute.xlu0 %1615
    %1617 = vrot.lane.b32.xlu0 %v1607, 127
    %v1618 = vpop.permute.xlu0 %1617
    %1619 = vrot.lane.b32.xlu0 %v1608, 127
    %v1620 = vpop.permute.xlu0 %1619
    %v1625 = vadd.f32 %v1553, %v1614
    %v1626 = vadd.f32 %v1554, %v1616
    %v1627 = vadd.f32 %v1555, %v1618
    %v1628 = vadd.f32 %v1556, %v1620
    %s1629 = sld [smem:[#allocation7 + $0x46]]
    %v1630 = vstv %s1629
    %v1631 = vmul.f32 %v1630, %v1533
    %v1632 = vmul.f32 %v1630, %v1534
    %v1633 = vmul.f32 %v1630, %v1535
    %v1634 = vmul.f32 %v1630, %v1536
    %1639 = vrot.lane.b32.xlu0 %v1631, 127
    %v1640 = vpop.permute.xlu0 %1639
    %1641 = vrot.lane.b32.xlu0 %v1632, 127
    %v1642 = vpop.permute.xlu0 %1641
    %1643 = vrot.lane.b32.xlu0 %v1633, 127
    %v1644 = vpop.permute.xlu0 %1643
    %1645 = vrot.lane.b32.xlu0 %v1634, 127
    %v1646 = vpop.permute.xlu0 %1645
    %v1651 = vadd.f32 %v1563, %v1640
    %v1652 = vadd.f32 %v1564, %v1642
    %v1653 = vadd.f32 %v1565, %v1644
    %v1654 = vadd.f32 %v1566, %v1646
    %s1655 = sld [smem:[#allocation7 + $0x47]]
    %v1656 = vstv %s1655
    %v1657 = vmul.f32 %v1656, %v1533
    %v1658 = vmul.f32 %v1656, %v1534
    %v1659 = vmul.f32 %v1656, %v1535
    %v1660 = vmul.f32 %v1656, %v1536
    %1665 = vrot.lane.b32.xlu0 %v1657, 127
    %v1666 = vpop.permute.xlu0 %1665
    %1667 = vrot.lane.b32.xlu0 %v1658, 127
    %v1668 = vpop.permute.xlu0 %1667
    %1669 = vrot.lane.b32.xlu0 %v1659, 127
    %v1670 = vpop.permute.xlu0 %1669
    %1671 = vrot.lane.b32.xlu0 %v1660, 127
    %v1672 = vpop.permute.xlu0 %1671
    %v1677 = vadd.f32 %v1573, %v1666
    %v1678 = vadd.f32 %v1574, %v1668
    %v1679 = vadd.f32 %v1575, %v1670
    %v1680 = vadd.f32 %v1576, %v1672
    %s1681 = sld [smem:[#allocation7 + $0x54]]
    %v1682 = vstv %s1681
    %v1683 = vmul.f32 %v1682, %v1533
    %v1684 = vmul.f32 %v1682, %v1534
    %v1685 = vmul.f32 %v1682, %v1535
    %v1686 = vmul.f32 %v1682, %v1536
    %1691 = vrot.lane.b32.xlu0 %v1683, 126
    %v1692 = vpop.permute.xlu0 %1691
    %1693 = vrot.lane.b32.xlu0 %v1684, 126
    %v1694 = vpop.permute.xlu0 %1693
    %1695 = vrot.lane.b32.xlu0 %v1685, 126
    %v1696 = vpop.permute.xlu0 %1695
    %1697 = vrot.lane.b32.xlu0 %v1686, 126
    %v1698 = vpop.permute.xlu0 %1697
    %v1703 = vadd.f32 %v1599, %v1692
    %v1704 = vadd.f32 %v1600, %v1694
    %v1705 = vadd.f32 %v1601, %v1696
    %v1706 = vadd.f32 %v1602, %v1698
    %s1707 = sld [smem:[#allocation7 + $0x55]]
    %v1708 = vstv %s1707
    %v1709 = vmul.f32 %v1708, %v1533
    %v1710 = vmul.f32 %v1708, %v1534
    %v1711 = vmul.f32 %v1708, %v1535
    %v1712 = vmul.f32 %v1708, %v1536
    %1717 = vrot.lane.b32.xlu0 %v1709, 126
    %v1718 = vpop.permute.xlu0 %1717
    %1719 = vrot.lane.b32.xlu0 %v1710, 126
    %v1720 = vpop.permute.xlu0 %1719
    %1721 = vrot.lane.b32.xlu0 %v1711, 126
    %v1722 = vpop.permute.xlu0 %1721
    %1723 = vrot.lane.b32.xlu0 %v1712, 126
    %v1724 = vpop.permute.xlu0 %1723
    %v1729 = vadd.f32 %v1625, %v1718
    %v1730 = vadd.f32 %v1626, %v1720
    %v1731 = vadd.f32 %v1627, %v1722
    %v1732 = vadd.f32 %v1628, %v1724
    %s1733 = sld [smem:[#allocation7 + $0x56]]
    %v1734 = vstv %s1733
    %v1735 = vmul.f32 %v1734, %v1533
    %v1736 = vmul.f32 %v1734, %v1534
    %v1737 = vmul.f32 %v1734, %v1535
    %v1738 = vmul.f32 %v1734, %v1536
    %1743 = vrot.lane.b32.xlu0 %v1735, 126
    %v1744 = vpop.permute.xlu0 %1743
    %1745 = vrot.lane.b32.xlu0 %v1736, 126
    %v1746 = vpop.permute.xlu0 %1745
    %1747 = vrot.lane.b32.xlu0 %v1737, 126
    %v1748 = vpop.permute.xlu0 %1747
    %1749 = vrot.lane.b32.xlu0 %v1738, 126
    %v1750 = vpop.permute.xlu0 %1749
    %v1755 = vadd.f32 %v1651, %v1744
    %v1756 = vadd.f32 %v1652, %v1746
    %v1757 = vadd.f32 %v1653, %v1748
    %v1758 = vadd.f32 %v1654, %v1750
    %s1759 = sld [smem:[#allocation7 + $0x57]]
    %v1760 = vstv %s1759
    %v1761 = vmul.f32 %v1760, %v1533
    %v1762 = vmul.f32 %v1760, %v1534
    %v1763 = vmul.f32 %v1760, %v1535
    %v1764 = vmul.f32 %v1760, %v1536
    %1769 = vrot.lane.b32.xlu0 %v1761, 126
    %v1770 = vpop.permute.xlu0 %1769
    %1771 = vrot.lane.b32.xlu0 %v1762, 126
    %v1772 = vpop.permute.xlu0 %1771
    %1773 = vrot.lane.b32.xlu0 %v1763, 126
    %v1774 = vpop.permute.xlu0 %1773
    %1775 = vrot.lane.b32.xlu0 %v1764, 126
    %v1776 = vpop.permute.xlu0 %1775
    %v1781 = vadd.f32 %v1677, %v1770
    %v1782 = vadd.f32 %v1678, %v1772
    %v1783 = vadd.f32 %v1679, %v1774
    %v1784 = vadd.f32 %v1680, %v1776
    %v1785 = vld [vmem:[%s174 + $0x2] sm:$0xff]
    %v1786 = vld [vmem:[%s174 + $0xa] sm:$0xff]
    %v1787 = vld [vmem:[%s174 + $0x62] sm:$0xff]
    %v1788 = vld [vmem:[%s174 + $0x6a] sm:$0xff]
    %s1789 = sld [smem:[#allocation7 + $0x64]]
    %v1790 = vstv %s1789
    %v1791 = vmul.f32 %v1790, %v1785
    %v1792 = vmul.f32 %v1790, %v1786
    %v1793 = vmul.f32 %v1790, %v1787
    %v1794 = vmul.f32 %v1790, %v1788
    %v1795 = vadd.f32 %v1703, %v1791
    %v1796 = vadd.f32 %v1704, %v1792
    %v1797 = vadd.f32 %v1705, %v1793
    %v1798 = vadd.f32 %v1706, %v1794
    %s1799 = sld [smem:[#allocation7 + $0x65]]
    %v1800 = vstv %s1799
    %v1801 = vmul.f32 %v1800, %v1785
    %v1802 = vmul.f32 %v1800, %v1786
    %v1803 = vmul.f32 %v1800, %v1787
    %v1804 = vmul.f32 %v1800, %v1788
    %v1805 = vadd.f32 %v1729, %v1801
    %v1806 = vadd.f32 %v1730, %v1802
    %v1807 = vadd.f32 %v1731, %v1803
    %v1808 = vadd.f32 %v1732, %v1804
    %s1809 = sld [smem:[#allocation7 + $0x66]]
    %v1810 = vstv %s1809
    %v1811 = vmul.f32 %v1810, %v1785
    %v1812 = vmul.f32 %v1810, %v1786
    %v1813 = vmul.f32 %v1810, %v1787
    %v1814 = vmul.f32 %v1810, %v1788
    %v1815 = vadd.f32 %v1755, %v1811
    %v1816 = vadd.f32 %v1756, %v1812
    %v1817 = vadd.f32 %v1757, %v1813
    %v1818 = vadd.f32 %v1758, %v1814
    %s1819 = sld [smem:[#allocation7 + $0x67]]
    %v1820 = vstv %s1819
    %v1821 = vmul.f32 %v1820, %v1785
    %v1822 = vmul.f32 %v1820, %v1786
    %v1823 = vmul.f32 %v1820, %v1787
    %v1824 = vmul.f32 %v1820, %v1788
    %v1825 = vadd.f32 %v1781, %v1821
    %v1826 = vadd.f32 %v1782, %v1822
    %v1827 = vadd.f32 %v1783, %v1823
    %v1828 = vadd.f32 %v1784, %v1824
    %s1829 = sld [smem:[#allocation7 + $0x74]]
    %v1830 = vstv %s1829
    %v1831 = vmul.f32 %v1830, %v1785
    %v1832 = vmul.f32 %v1830, %v1786
    %v1833 = vmul.f32 %v1830, %v1787
    %v1834 = vmul.f32 %v1830, %v1788
    %1839 = vrot.lane.b32.xlu0 %v1831, 127
    %v1840 = vpop.permute.xlu0 %1839
    %1841 = vrot.lane.b32.xlu0 %v1832, 127
    %v1842 = vpop.permute.xlu0 %1841
    %1843 = vrot.lane.b32.xlu0 %v1833, 127
    %v1844 = vpop.permute.xlu0 %1843
    %1845 = vrot.lane.b32.xlu0 %v1834, 127
    %v1846 = vpop.permute.xlu0 %1845
    %v1851 = vadd.f32 %v1795, %v1840
    %v1852 = vadd.f32 %v1796, %v1842
    %v1853 = vadd.f32 %v1797, %v1844
    %v1854 = vadd.f32 %v1798, %v1846
    %s1855 = sld [smem:[#allocation7 + $0x75]]
    %v1856 = vstv %s1855
    %v1857 = vmul.f32 %v1856, %v1785
    %v1858 = vmul.f32 %v1856, %v1786
    %v1859 = vmul.f32 %v1856, %v1787
    %v1860 = vmul.f32 %v1856, %v1788
    %1865 = vrot.lane.b32.xlu0 %v1857, 127
    %v1866 = vpop.permute.xlu0 %1865
    %1867 = vrot.lane.b32.xlu0 %v1858, 127
    %v1868 = vpop.permute.xlu0 %1867
    %1869 = vrot.lane.b32.xlu0 %v1859, 127
    %v1870 = vpop.permute.xlu0 %1869
    %1871 = vrot.lane.b32.xlu0 %v1860, 127
    %v1872 = vpop.permute.xlu0 %1871
    %v1877 = vadd.f32 %v1805, %v1866
    %v1878 = vadd.f32 %v1806, %v1868
    %v1879 = vadd.f32 %v1807, %v1870
    %v1880 = vadd.f32 %v1808, %v1872
    %s1881 = sld [smem:[#allocation7 + $0x76]]
    %v1882 = vstv %s1881
    %v1883 = vmul.f32 %v1882, %v1785
    %v1884 = vmul.f32 %v1882, %v1786
    %v1885 = vmul.f32 %v1882, %v1787
    %v1886 = vmul.f32 %v1882, %v1788
    %1891 = vrot.lane.b32.xlu0 %v1883, 127
    %v1892 = vpop.permute.xlu0 %1891
    %1893 = vrot.lane.b32.xlu0 %v1884, 127
    %v1894 = vpop.permute.xlu0 %1893
    %1895 = vrot.lane.b32.xlu0 %v1885, 127
    %v1896 = vpop.permute.xlu0 %1895
    %1897 = vrot.lane.b32.xlu0 %v1886, 127
    %v1898 = vpop.permute.xlu0 %1897
    %v1903 = vadd.f32 %v1815, %v1892
    %v1904 = vadd.f32 %v1816, %v1894
    %v1905 = vadd.f32 %v1817, %v1896
    %v1906 = vadd.f32 %v1818, %v1898
    %s1907 = sld [smem:[#allocation7 + $0x77]]
    %v1908 = vstv %s1907
    %v1909 = vmul.f32 %v1908, %v1785
    %v1910 = vmul.f32 %v1908, %v1786
    %v1911 = vmul.f32 %v1908, %v1787
    %v1912 = vmul.f32 %v1908, %v1788
    %1917 = vrot.lane.b32.xlu0 %v1909, 127
    %v1918 = vpop.permute.xlu0 %1917
    %1919 = vrot.lane.b32.xlu0 %v1910, 127
    %v1920 = vpop.permute.xlu0 %1919
    %1921 = vrot.lane.b32.xlu0 %v1911, 127
    %v1922 = vpop.permute.xlu0 %1921
    %1923 = vrot.lane.b32.xlu0 %v1912, 127
    %v1924 = vpop.permute.xlu0 %1923
    %v1929 = vadd.f32 %v1825, %v1918
    %v1930 = vadd.f32 %v1826, %v1920
    %v1931 = vadd.f32 %v1827, %v1922
    %v1932 = vadd.f32 %v1828, %v1924
    %s1933 = sld [smem:[#allocation7 + $0x84]]
    %v1934 = vstv %s1933
    %v1935 = vmul.f32 %v1934, %v1785
    %v1936 = vmul.f32 %v1934, %v1786
    %v1937 = vmul.f32 %v1934, %v1787
    %v1938 = vmul.f32 %v1934, %v1788
    %1943 = vrot.lane.b32.xlu0 %v1935, 126
    %v1944 = vpop.permute.xlu0 %1943
    %1945 = vrot.lane.b32.xlu0 %v1936, 126
    %v1946 = vpop.permute.xlu0 %1945
    %1947 = vrot.lane.b32.xlu0 %v1937, 126
    %v1948 = vpop.permute.xlu0 %1947
    %1949 = vrot.lane.b32.xlu0 %v1938, 126
    %v1950 = vpop.permute.xlu0 %1949
    %v1955 = vadd.f32 %v1851, %v1944
    %v1956 = vadd.f32 %v1852, %v1946
    %v1957 = vadd.f32 %v1853, %v1948
    %v1958 = vadd.f32 %v1854, %v1950
    %s1959 = sld [smem:[#allocation7 + $0x85]]
    %v1960 = vstv %s1959
    %v1961 = vmul.f32 %v1960, %v1785
    %v1962 = vmul.f32 %v1960, %v1786
    %v1963 = vmul.f32 %v1960, %v1787
    %v1964 = vmul.f32 %v1960, %v1788
    %1969 = vrot.lane.b32.xlu0 %v1961, 126
    %v1970 = vpop.permute.xlu0 %1969
    %1971 = vrot.lane.b32.xlu0 %v1962, 126
    %v1972 = vpop.permute.xlu0 %1971
    %1973 = vrot.lane.b32.xlu0 %v1963, 126
    %v1974 = vpop.permute.xlu0 %1973
    %1975 = vrot.lane.b32.xlu0 %v1964, 126
    %v1976 = vpop.permute.xlu0 %1975
    %v1981 = vadd.f32 %v1877, %v1970
    %v1982 = vadd.f32 %v1878, %v1972
    %v1983 = vadd.f32 %v1879, %v1974
    %v1984 = vadd.f32 %v1880, %v1976
    %s1985 = sld [smem:[#allocation7 + $0x86]]
    %v1986 = vstv %s1985
    %v1987 = vmul.f32 %v1986, %v1785
    %v1988 = vmul.f32 %v1986, %v1786
    %v1989 = vmul.f32 %v1986, %v1787
    %v1990 = vmul.f32 %v1986, %v1788
    %1995 = vrot.lane.b32.xlu0 %v1987, 126
    %v1996 = vpop.permute.xlu0 %1995
    %1997 = vrot.lane.b32.xlu0 %v1988, 126
    %v1998 = vpop.permute.xlu0 %1997
    %1999 = vrot.lane.b32.xlu0 %v1989, 126
    %v2000 = vpop.permute.xlu0 %1999
    %2001 = vrot.lane.b32.xlu0 %v1990, 126
    %v2002 = vpop.permute.xlu0 %2001
    %v2007 = vadd.f32 %v1903, %v1996
    %v2008 = vadd.f32 %v1904, %v1998
    %v2009 = vadd.f32 %v1905, %v2000
    %v2010 = vadd.f32 %v1906, %v2002
    %s2011 = sld [smem:[#allocation7 + $0x87]]
    %v2012 = vstv %s2011
    %v2013 = vmul.f32 %v2012, %v1785
    %v2014 = vmul.f32 %v2012, %v1786
    %v2015 = vmul.f32 %v2012, %v1787
    %v2016 = vmul.f32 %v2012, %v1788
    %2021 = vrot.lane.b32.xlu0 %v2013, 126
    %v2022 = vpop.permute.xlu0 %2021
    %2023 = vrot.lane.b32.xlu0 %v2014, 126
    %v2024 = vpop.permute.xlu0 %2023
    %2025 = vrot.lane.b32.xlu0 %v2015, 126
    %v2026 = vpop.permute.xlu0 %2025
    %2027 = vrot.lane.b32.xlu0 %v2016, 126
    %v2028 = vpop.permute.xlu0 %2027
    %v2033 = vadd.f32 %v1929, %v2022
    %v2034 = vadd.f32 %v1930, %v2024
    %v2035 = vadd.f32 %v1931, %v2026
    %v2036 = vadd.f32 %v1932, %v2028
    %v2037 = vld [vmem:[%s199] sm:$0xff]
    %v2038 = vld [vmem:[%s199 + $0x8] sm:$0xff]
    %v2039 = vld [vmem:[%s199 + $0x60] sm:$0xff]
    %v2040 = vld [vmem:[%s199 + $0x68] sm:$0xff]
    %s2041 = sld [smem:[#allocation7 + $0x8]]
    %v2042 = vstv %s2041
    %v2043 = vmul.f32 %v2042, %v2037
    %v2044 = vmul.f32 %v2042, %v2038
    %v2045 = vmul.f32 %v2042, %v2039
    %v2046 = vmul.f32 %v2042, %v2040
    %v2047 = vadd.f32 %v1955, %v2043
    %v2048 = vadd.f32 %v1956, %v2044
    %v2049 = vadd.f32 %v1957, %v2045
    %v2050 = vadd.f32 %v1958, %v2046
    %s2051 = sld [smem:[#allocation7 + $0x9]]
    %v2052 = vstv %s2051
    %v2053 = vmul.f32 %v2052, %v2037
    %v2054 = vmul.f32 %v2052, %v2038
    %v2055 = vmul.f32 %v2052, %v2039
    %v2056 = vmul.f32 %v2052, %v2040
    %v2057 = vadd.f32 %v1981, %v2053
    %v2058 = vadd.f32 %v1982, %v2054
    %v2059 = vadd.f32 %v1983, %v2055
    %v2060 = vadd.f32 %v1984, %v2056
    %s2061 = sld [smem:[#allocation7 + $0xa]]
    %v2062 = vstv %s2061
    %v2063 = vmul.f32 %v2062, %v2037
    %v2064 = vmul.f32 %v2062, %v2038
    %v2065 = vmul.f32 %v2062, %v2039
    %v2066 = vmul.f32 %v2062, %v2040
    %v2067 = vadd.f32 %v2007, %v2063
    %v2068 = vadd.f32 %v2008, %v2064
    %v2069 = vadd.f32 %v2009, %v2065
    %v2070 = vadd.f32 %v2010, %v2066
    %s2071 = sld [smem:[#allocation7 + $0xb]]
    %v2072 = vstv %s2071
    %v2073 = vmul.f32 %v2072, %v2037
    %v2074 = vmul.f32 %v2072, %v2038
    %v2075 = vmul.f32 %v2072, %v2039
    %v2076 = vmul.f32 %v2072, %v2040
    %v2077 = vadd.f32 %v2033, %v2073
    %v2078 = vadd.f32 %v2034, %v2074
    %v2079 = vadd.f32 %v2035, %v2075
    %v2080 = vadd.f32 %v2036, %v2076
    %s2081 = sld [smem:[#allocation7 + $0x18]]
    %v2082 = vstv %s2081
    %v2083 = vmul.f32 %v2082, %v2037
    %v2084 = vmul.f32 %v2082, %v2038
    %v2085 = vmul.f32 %v2082, %v2039
    %v2086 = vmul.f32 %v2082, %v2040
    %2091 = vrot.lane.b32.xlu0 %v2083, 127
    %v2092 = vpop.permute.xlu0 %2091
    %2093 = vrot.lane.b32.xlu0 %v2084, 127
    %v2094 = vpop.permute.xlu0 %2093
    %2095 = vrot.lane.b32.xlu0 %v2085, 127
    %v2096 = vpop.permute.xlu0 %2095
    %2097 = vrot.lane.b32.xlu0 %v2086, 127
    %v2098 = vpop.permute.xlu0 %2097
    %v2103 = vadd.f32 %v2047, %v2092
    %v2104 = vadd.f32 %v2048, %v2094
    %v2105 = vadd.f32 %v2049, %v2096
    %v2106 = vadd.f32 %v2050, %v2098
    %s2107 = sld [smem:[#allocation7 + $0x19]]
    %v2108 = vstv %s2107
    %v2109 = vmul.f32 %v2108, %v2037
    %v2110 = vmul.f32 %v2108, %v2038
    %v2111 = vmul.f32 %v2108, %v2039
    %v2112 = vmul.f32 %v2108, %v2040
    %2117 = vrot.lane.b32.xlu0 %v2109, 127
    %v2118 = vpop.permute.xlu0 %2117
    %2119 = vrot.lane.b32.xlu0 %v2110, 127
    %v2120 = vpop.permute.xlu0 %2119
    %2121 = vrot.lane.b32.xlu0 %v2111, 127
    %v2122 = vpop.permute.xlu0 %2121
    %2123 = vrot.lane.b32.xlu0 %v2112, 127
    %v2124 = vpop.permute.xlu0 %2123
    %v2129 = vadd.f32 %v2057, %v2118
    %v2130 = vadd.f32 %v2058, %v2120
    %v2131 = vadd.f32 %v2059, %v2122
    %v2132 = vadd.f32 %v2060, %v2124
    %s2133 = sld [smem:[#allocation7 + $0x1a]]
    %v2134 = vstv %s2133
    %v2135 = vmul.f32 %v2134, %v2037
    %v2136 = vmul.f32 %v2134, %v2038
    %v2137 = vmul.f32 %v2134, %v2039
    %v2138 = vmul.f32 %v2134, %v2040
    %2143 = vrot.lane.b32.xlu0 %v2135, 127
    %v2144 = vpop.permute.xlu0 %2143
    %2145 = vrot.lane.b32.xlu0 %v2136, 127
    %v2146 = vpop.permute.xlu0 %2145
    %2147 = vrot.lane.b32.xlu0 %v2137, 127
    %v2148 = vpop.permute.xlu0 %2147
    %2149 = vrot.lane.b32.xlu0 %v2138, 127
    %v2150 = vpop.permute.xlu0 %2149
    %v2155 = vadd.f32 %v2067, %v2144
    %v2156 = vadd.f32 %v2068, %v2146
    %v2157 = vadd.f32 %v2069, %v2148
    %v2158 = vadd.f32 %v2070, %v2150
    %s2159 = sld [smem:[#allocation7 + $0x1b]]
    %v2160 = vstv %s2159
    %v2161 = vmul.f32 %v2160, %v2037
    %v2162 = vmul.f32 %v2160, %v2038
    %v2163 = vmul.f32 %v2160, %v2039
    %v2164 = vmul.f32 %v2160, %v2040
    %2169 = vrot.lane.b32.xlu0 %v2161, 127
    %v2170 = vpop.permute.xlu0 %2169
    %2171 = vrot.lane.b32.xlu0 %v2162, 127
    %v2172 = vpop.permute.xlu0 %2171
    %2173 = vrot.lane.b32.xlu0 %v2163, 127
    %v2174 = vpop.permute.xlu0 %2173
    %2175 = vrot.lane.b32.xlu0 %v2164, 127
    %v2176 = vpop.permute.xlu0 %2175
    %v2181 = vadd.f32 %v2077, %v2170
    %v2182 = vadd.f32 %v2078, %v2172
    %v2183 = vadd.f32 %v2079, %v2174
    %v2184 = vadd.f32 %v2080, %v2176
    %s2185 = sld [smem:[#allocation7 + $0x28]]
    %v2186 = vstv %s2185
    %v2187 = vmul.f32 %v2186, %v2037
    %v2188 = vmul.f32 %v2186, %v2038
    %v2189 = vmul.f32 %v2186, %v2039
    %v2190 = vmul.f32 %v2186, %v2040
    %2195 = vrot.lane.b32.xlu0 %v2187, 126
    %v2196 = vpop.permute.xlu0 %2195
    %2197 = vrot.lane.b32.xlu0 %v2188, 126
    %v2198 = vpop.permute.xlu0 %2197
    %2199 = vrot.lane.b32.xlu0 %v2189, 126
    %v2200 = vpop.permute.xlu0 %2199
    %2201 = vrot.lane.b32.xlu0 %v2190, 126
    %v2202 = vpop.permute.xlu0 %2201
    %v2207 = vadd.f32 %v2103, %v2196
    %v2208 = vadd.f32 %v2104, %v2198
    %v2209 = vadd.f32 %v2105, %v2200
    %v2210 = vadd.f32 %v2106, %v2202
    %s2211 = sld [smem:[#allocation7 + $0x29]]
    %v2212 = vstv %s2211
    %v2213 = vmul.f32 %v2212, %v2037
    %v2214 = vmul.f32 %v2212, %v2038
    %v2215 = vmul.f32 %v2212, %v2039
    %v2216 = vmul.f32 %v2212, %v2040
    %2221 = vrot.lane.b32.xlu0 %v2213, 126
    %v2222 = vpop.permute.xlu0 %2221
    %2223 = vrot.lane.b32.xlu0 %v2214, 126
    %v2224 = vpop.permute.xlu0 %2223
    %2225 = vrot.lane.b32.xlu0 %v2215, 126
    %v2226 = vpop.permute.xlu0 %2225
    %2227 = vrot.lane.b32.xlu0 %v2216, 126
    %v2228 = vpop.permute.xlu0 %2227
    %v2233 = vadd.f32 %v2129, %v2222
    %v2234 = vadd.f32 %v2130, %v2224
    %v2235 = vadd.f32 %v2131, %v2226
    %v2236 = vadd.f32 %v2132, %v2228
    %s2237 = sld [smem:[#allocation7 + $0x2a]]
    %v2238 = vstv %s2237
    %v2239 = vmul.f32 %v2238, %v2037
    %v2240 = vmul.f32 %v2238, %v2038
    %v2241 = vmul.f32 %v2238, %v2039
    %v2242 = vmul.f32 %v2238, %v2040
    %2247 = vrot.lane.b32.xlu0 %v2239, 126
    %v2248 = vpop.permute.xlu0 %2247
    %2249 = vrot.lane.b32.xlu0 %v2240, 126
    %v2250 = vpop.permute.xlu0 %2249
    %2251 = vrot.lane.b32.xlu0 %v2241, 126
    %v2252 = vpop.permute.xlu0 %2251
    %2253 = vrot.lane.b32.xlu0 %v2242, 126
    %v2254 = vpop.permute.xlu0 %2253
    %v2259 = vadd.f32 %v2155, %v2248
    %v2260 = vadd.f32 %v2156, %v2250
    %v2261 = vadd.f32 %v2157, %v2252
    %v2262 = vadd.f32 %v2158, %v2254
    %s2263 = sld [smem:[#allocation7 + $0x2b]]
    %v2264 = vstv %s2263
    %v2265 = vmul.f32 %v2264, %v2037
    %v2266 = vmul.f32 %v2264, %v2038
    %v2267 = vmul.f32 %v2264, %v2039
    %v2268 = vmul.f32 %v2264, %v2040
    %2273 = vrot.lane.b32.xlu0 %v2265, 126
    %v2274 = vpop.permute.xlu0 %2273
    %2275 = vrot.lane.b32.xlu0 %v2266, 126
    %v2276 = vpop.permute.xlu0 %2275
    %2277 = vrot.lane.b32.xlu0 %v2267, 126
    %v2278 = vpop.permute.xlu0 %2277
    %2279 = vrot.lane.b32.xlu0 %v2268, 126
    %v2280 = vpop.permute.xlu0 %2279
    %v2285 = vadd.f32 %v2181, %v2274
    %v2286 = vadd.f32 %v2182, %v2276
    %v2287 = vadd.f32 %v2183, %v2278
    %v2288 = vadd.f32 %v2184, %v2280
    %v2289 = vld [vmem:[%s199 + $0x1] sm:$0xff]
    %v2290 = vld [vmem:[%s199 + $0x9] sm:$0xff]
    %v2291 = vld [vmem:[%s199 + $0x61] sm:$0xff]
    %v2292 = vld [vmem:[%s199 + $0x69] sm:$0xff]
    %s2293 = sld [smem:[#allocation7 + $0x38]]
    %v2294 = vstv %s2293
    %v2295 = vmul.f32 %v2294, %v2289
    %v2296 = vmul.f32 %v2294, %v2290
    %v2297 = vmul.f32 %v2294, %v2291
    %v2298 = vmul.f32 %v2294, %v2292
    %v2299 = vadd.f32 %v2207, %v2295
    %v2300 = vadd.f32 %v2208, %v2296
    %v2301 = vadd.f32 %v2209, %v2297
    %v2302 = vadd.f32 %v2210, %v2298
    %s2303 = sld [smem:[#allocation7 + $0x39]]
    %v2304 = vstv %s2303
    %v2305 = vmul.f32 %v2304, %v2289
    %v2306 = vmul.f32 %v2304, %v2290
    %v2307 = vmul.f32 %v2304, %v2291
    %v2308 = vmul.f32 %v2304, %v2292
    %v2309 = vadd.f32 %v2233, %v2305
    %v2310 = vadd.f32 %v2234, %v2306
    %v2311 = vadd.f32 %v2235, %v2307
    %v2312 = vadd.f32 %v2236, %v2308
    %s2313 = sld [smem:[#allocation7 + $0x3a]]
    %v2314 = vstv %s2313
    %v2315 = vmul.f32 %v2314, %v2289
    %v2316 = vmul.f32 %v2314, %v2290
    %v2317 = vmul.f32 %v2314, %v2291
    %v2318 = vmul.f32 %v2314, %v2292
    %v2319 = vadd.f32 %v2259, %v2315
    %v2320 = vadd.f32 %v2260, %v2316
    %v2321 = vadd.f32 %v2261, %v2317
    %v2322 = vadd.f32 %v2262, %v2318
    %s2323 = sld [smem:[#allocation7 + $0x3b]]
    %v2324 = vstv %s2323
    %v2325 = vmul.f32 %v2324, %v2289
    %v2326 = vmul.f32 %v2324, %v2290
    %v2327 = vmul.f32 %v2324, %v2291
    %v2328 = vmul.f32 %v2324, %v2292
    %v2329 = vadd.f32 %v2285, %v2325
    %v2330 = vadd.f32 %v2286, %v2326
    %v2331 = vadd.f32 %v2287, %v2327
    %v2332 = vadd.f32 %v2288, %v2328
    %s2333 = sld [smem:[#allocation7 + $0x48]]
    %v2334 = vstv %s2333
    %v2335 = vmul.f32 %v2334, %v2289
    %v2336 = vmul.f32 %v2334, %v2290
    %v2337 = vmul.f32 %v2334, %v2291
    %v2338 = vmul.f32 %v2334, %v2292
    %2343 = vrot.lane.b32.xlu0 %v2335, 127
    %v2344 = vpop.permute.xlu0 %2343
    %2345 = vrot.lane.b32.xlu0 %v2336, 127
    %v2346 = vpop.permute.xlu0 %2345
    %2347 = vrot.lane.b32.xlu0 %v2337, 127
    %v2348 = vpop.permute.xlu0 %2347
    %2349 = vrot.lane.b32.xlu0 %v2338, 127
    %v2350 = vpop.permute.xlu0 %2349
    %v2355 = vadd.f32 %v2299, %v2344
    %v2356 = vadd.f32 %v2300, %v2346
    %v2357 = vadd.f32 %v2301, %v2348
    %v2358 = vadd.f32 %v2302, %v2350
    %s2359 = sld [smem:[#allocation7 + $0x49]]
    %v2360 = vstv %s2359
    %v2361 = vmul.f32 %v2360, %v2289
    %v2362 = vmul.f32 %v2360, %v2290
    %v2363 = vmul.f32 %v2360, %v2291
    %v2364 = vmul.f32 %v2360, %v2292
    %2369 = vrot.lane.b32.xlu0 %v2361, 127
    %v2370 = vpop.permute.xlu0 %2369
    %2371 = vrot.lane.b32.xlu0 %v2362, 127
    %v2372 = vpop.permute.xlu0 %2371
    %2373 = vrot.lane.b32.xlu0 %v2363, 127
    %v2374 = vpop.permute.xlu0 %2373
    %2375 = vrot.lane.b32.xlu0 %v2364, 127
    %v2376 = vpop.permute.xlu0 %2375
    %v2381 = vadd.f32 %v2309, %v2370
    %v2382 = vadd.f32 %v2310, %v2372
    %v2383 = vadd.f32 %v2311, %v2374
    %v2384 = vadd.f32 %v2312, %v2376
    %s2385 = sld [smem:[#allocation7 + $0x4a]]
    %v2386 = vstv %s2385
    %v2387 = vmul.f32 %v2386, %v2289
    %v2388 = vmul.f32 %v2386, %v2290
    %v2389 = vmul.f32 %v2386, %v2291
    %v2390 = vmul.f32 %v2386, %v2292
    %2395 = vrot.lane.b32.xlu0 %v2387, 127
    %v2396 = vpop.permute.xlu0 %2395
    %2397 = vrot.lane.b32.xlu0 %v2388, 127
    %v2398 = vpop.permute.xlu0 %2397
    %2399 = vrot.lane.b32.xlu0 %v2389, 127
    %v2400 = vpop.permute.xlu0 %2399
    %2401 = vrot.lane.b32.xlu0 %v2390, 127
    %v2402 = vpop.permute.xlu0 %2401
    %v2407 = vadd.f32 %v2319, %v2396
    %v2408 = vadd.f32 %v2320, %v2398
    %v2409 = vadd.f32 %v2321, %v2400
    %v2410 = vadd.f32 %v2322, %v2402
    %s2411 = sld [smem:[#allocation7 + $0x4b]]
    %v2412 = vstv %s2411
    %v2413 = vmul.f32 %v2412, %v2289
    %v2414 = vmul.f32 %v2412, %v2290
    %v2415 = vmul.f32 %v2412, %v2291
    %v2416 = vmul.f32 %v2412, %v2292
    %2421 = vrot.lane.b32.xlu0 %v2413, 127
    %v2422 = vpop.permute.xlu0 %2421
    %2423 = vrot.lane.b32.xlu0 %v2414, 127
    %v2424 = vpop.permute.xlu0 %2423
    %2425 = vrot.lane.b32.xlu0 %v2415, 127
    %v2426 = vpop.permute.xlu0 %2425
    %2427 = vrot.lane.b32.xlu0 %v2416, 127
    %v2428 = vpop.permute.xlu0 %2427
    %v2433 = vadd.f32 %v2329, %v2422
    %v2434 = vadd.f32 %v2330, %v2424
    %v2435 = vadd.f32 %v2331, %v2426
    %v2436 = vadd.f32 %v2332, %v2428
    %s2437 = sld [smem:[#allocation7 + $0x58]]
    %v2438 = vstv %s2437
    %v2439 = vmul.f32 %v2438, %v2289
    %v2440 = vmul.f32 %v2438, %v2290
    %v2441 = vmul.f32 %v2438, %v2291
    %v2442 = vmul.f32 %v2438, %v2292
    %2447 = vrot.lane.b32.xlu0 %v2439, 126
    %v2448 = vpop.permute.xlu0 %2447
    %2449 = vrot.lane.b32.xlu0 %v2440, 126
    %v2450 = vpop.permute.xlu0 %2449
    %2451 = vrot.lane.b32.xlu0 %v2441, 126
    %v2452 = vpop.permute.xlu0 %2451
    %2453 = vrot.lane.b32.xlu0 %v2442, 126
    %v2454 = vpop.permute.xlu0 %2453
    %v2459 = vadd.f32 %v2355, %v2448
    %v2460 = vadd.f32 %v2356, %v2450
    %v2461 = vadd.f32 %v2357, %v2452
    %v2462 = vadd.f32 %v2358, %v2454
    %s2463 = sld [smem:[#allocation7 + $0x59]]
    %v2464 = vstv %s2463
    %v2465 = vmul.f32 %v2464, %v2289
    %v2466 = vmul.f32 %v2464, %v2290
    %v2467 = vmul.f32 %v2464, %v2291
    %v2468 = vmul.f32 %v2464, %v2292
    %2473 = vrot.lane.b32.xlu0 %v2465, 126
    %v2474 = vpop.permute.xlu0 %2473
    %2475 = vrot.lane.b32.xlu0 %v2466, 126
    %v2476 = vpop.permute.xlu0 %2475
    %2477 = vrot.lane.b32.xlu0 %v2467, 126
    %v2478 = vpop.permute.xlu0 %2477
    %2479 = vrot.lane.b32.xlu0 %v2468, 126
    %v2480 = vpop.permute.xlu0 %2479
    %v2485 = vadd.f32 %v2381, %v2474
    %v2486 = vadd.f32 %v2382, %v2476
    %v2487 = vadd.f32 %v2383, %v2478
    %v2488 = vadd.f32 %v2384, %v2480
    %s2489 = sld [smem:[#allocation7 + $0x5a]]
    %v2490 = vstv %s2489
    %v2491 = vmul.f32 %v2490, %v2289
    %v2492 = vmul.f32 %v2490, %v2290
    %v2493 = vmul.f32 %v2490, %v2291
    %v2494 = vmul.f32 %v2490, %v2292
    %2499 = vrot.lane.b32.xlu0 %v2491, 126
    %v2500 = vpop.permute.xlu0 %2499
    %2501 = vrot.lane.b32.xlu0 %v2492, 126
    %v2502 = vpop.permute.xlu0 %2501
    %2503 = vrot.lane.b32.xlu0 %v2493, 126
    %v2504 = vpop.permute.xlu0 %2503
    %2505 = vrot.lane.b32.xlu0 %v2494, 126
    %v2506 = vpop.permute.xlu0 %2505
    %v2511 = vadd.f32 %v2407, %v2500
    %v2512 = vadd.f32 %v2408, %v2502
    %v2513 = vadd.f32 %v2409, %v2504
    %v2514 = vadd.f32 %v2410, %v2506
    %s2515 = sld [smem:[#allocation7 + $0x5b]]
    %v2516 = vstv %s2515
    %v2517 = vmul.f32 %v2516, %v2289
    %v2518 = vmul.f32 %v2516, %v2290
    %v2519 = vmul.f32 %v2516, %v2291
    %v2520 = vmul.f32 %v2516, %v2292
    %2525 = vrot.lane.b32.xlu0 %v2517, 126
    %v2526 = vpop.permute.xlu0 %2525
    %2527 = vrot.lane.b32.xlu0 %v2518, 126
    %v2528 = vpop.permute.xlu0 %2527
    %2529 = vrot.lane.b32.xlu0 %v2519, 126
    %v2530 = vpop.permute.xlu0 %2529
    %2531 = vrot.lane.b32.xlu0 %v2520, 126
    %v2532 = vpop.permute.xlu0 %2531
    %v2537 = vadd.f32 %v2433, %v2526
    %v2538 = vadd.f32 %v2434, %v2528
    %v2539 = vadd.f32 %v2435, %v2530
    %v2540 = vadd.f32 %v2436, %v2532
    %v2541 = vld [vmem:[%s199 + $0x2] sm:$0xff]
    %v2542 = vld [vmem:[%s199 + $0xa] sm:$0xff]
    %v2543 = vld [vmem:[%s199 + $0x62] sm:$0xff]
    %v2544 = vld [vmem:[%s199 + $0x6a] sm:$0xff]
    %s2545 = sld [smem:[#allocation7 + $0x68]]
    %v2546 = vstv %s2545
    %v2547 = vmul.f32 %v2546, %v2541
    %v2548 = vmul.f32 %v2546, %v2542
    %v2549 = vmul.f32 %v2546, %v2543
    %v2550 = vmul.f32 %v2546, %v2544
    %v2551 = vadd.f32 %v2459, %v2547
    %v2552 = vadd.f32 %v2460, %v2548
    %v2553 = vadd.f32 %v2461, %v2549
    %v2554 = vadd.f32 %v2462, %v2550
    %s2555 = sld [smem:[#allocation7 + $0x69]]
    %v2556 = vstv %s2555
    %v2557 = vmul.f32 %v2556, %v2541
    %v2558 = vmul.f32 %v2556, %v2542
    %v2559 = vmul.f32 %v2556, %v2543
    %v2560 = vmul.f32 %v2556, %v2544
    %v2561 = vadd.f32 %v2485, %v2557
    %v2562 = vadd.f32 %v2486, %v2558
    %v2563 = vadd.f32 %v2487, %v2559
    %v2564 = vadd.f32 %v2488, %v2560
    %s2565 = sld [smem:[#allocation7 + $0x6a]]
    %v2566 = vstv %s2565
    %v2567 = vmul.f32 %v2566, %v2541
    %v2568 = vmul.f32 %v2566, %v2542
    %v2569 = vmul.f32 %v2566, %v2543
    %v2570 = vmul.f32 %v2566, %v2544
    %v2571 = vadd.f32 %v2511, %v2567
    %v2572 = vadd.f32 %v2512, %v2568
    %v2573 = vadd.f32 %v2513, %v2569
    %v2574 = vadd.f32 %v2514, %v2570
    %s2575 = sld [smem:[#allocation7 + $0x6b]]
    %v2576 = vstv %s2575
    %v2577 = vmul.f32 %v2576, %v2541
    %v2578 = vmul.f32 %v2576, %v2542
    %v2579 = vmul.f32 %v2576, %v2543
    %v2580 = vmul.f32 %v2576, %v2544
    %v2581 = vadd.f32 %v2537, %v2577
    %v2582 = vadd.f32 %v2538, %v2578
    %v2583 = vadd.f32 %v2539, %v2579
    %v2584 = vadd.f32 %v2540, %v2580
    %s2585 = sld [smem:[#allocation7 + $0x78]]
    %v2586 = vstv %s2585
    %v2587 = vmul.f32 %v2586, %v2541
    %v2588 = vmul.f32 %v2586, %v2542
    %v2589 = vmul.f32 %v2586, %v2543
    %v2590 = vmul.f32 %v2586, %v2544
    %2595 = vrot.lane.b32.xlu0 %v2587, 127
    %v2596 = vpop.permute.xlu0 %2595
    %2597 = vrot.lane.b32.xlu0 %v2588, 127
    %v2598 = vpop.permute.xlu0 %2597
    %2599 = vrot.lane.b32.xlu0 %v2589, 127
    %v2600 = vpop.permute.xlu0 %2599
    %2601 = vrot.lane.b32.xlu0 %v2590, 127
    %v2602 = vpop.permute.xlu0 %2601
    %v2607 = vadd.f32 %v2551, %v2596
    %v2608 = vadd.f32 %v2552, %v2598
    %v2609 = vadd.f32 %v2553, %v2600
    %v2610 = vadd.f32 %v2554, %v2602
    %s2611 = sld [smem:[#allocation7 + $0x79]]
    %v2612 = vstv %s2611
    %v2613 = vmul.f32 %v2612, %v2541
    %v2614 = vmul.f32 %v2612, %v2542
    %v2615 = vmul.f32 %v2612, %v2543
    %v2616 = vmul.f32 %v2612, %v2544
    %2621 = vrot.lane.b32.xlu0 %v2613, 127
    %v2622 = vpop.permute.xlu0 %2621
    %2623 = vrot.lane.b32.xlu0 %v2614, 127
    %v2624 = vpop.permute.xlu0 %2623
    %2625 = vrot.lane.b32.xlu0 %v2615, 127
    %v2626 = vpop.permute.xlu0 %2625
    %2627 = vrot.lane.b32.xlu0 %v2616, 127
    %v2628 = vpop.permute.xlu0 %2627
    %v2633 = vadd.f32 %v2561, %v2622
    %v2634 = vadd.f32 %v2562, %v2624
    %v2635 = vadd.f32 %v2563, %v2626
    %v2636 = vadd.f32 %v2564, %v2628
    %s2637 = sld [smem:[#allocation7 + $0x7a]]
    %v2638 = vstv %s2637
    %v2639 = vmul.f32 %v2638, %v2541
    %v2640 = vmul.f32 %v2638, %v2542
    %v2641 = vmul.f32 %v2638, %v2543
    %v2642 = vmul.f32 %v2638, %v2544
    %2647 = vrot.lane.b32.xlu0 %v2639, 127
    %v2648 = vpop.permute.xlu0 %2647
    %2649 = vrot.lane.b32.xlu0 %v2640, 127
    %v2650 = vpop.permute.xlu0 %2649
    %2651 = vrot.lane.b32.xlu0 %v2641, 127
    %v2652 = vpop.permute.xlu0 %2651
    %2653 = vrot.lane.b32.xlu0 %v2642, 127
    %v2654 = vpop.permute.xlu0 %2653
    %v2659 = vadd.f32 %v2571, %v2648
    %v2660 = vadd.f32 %v2572, %v2650
    %v2661 = vadd.f32 %v2573, %v2652
    %v2662 = vadd.f32 %v2574, %v2654
    %s2663 = sld [smem:[#allocation7 + $0x7b]]
    %v2664 = vstv %s2663
    %v2665 = vmul.f32 %v2664, %v2541
    %v2666 = vmul.f32 %v2664, %v2542
    %v2667 = vmul.f32 %v2664, %v2543
    %v2668 = vmul.f32 %v2664, %v2544
    %2673 = vrot.lane.b32.xlu0 %v2665, 127
    %v2674 = vpop.permute.xlu0 %2673
    %2675 = vrot.lane.b32.xlu0 %v2666, 127
    %v2676 = vpop.permute.xlu0 %2675
    %2677 = vrot.lane.b32.xlu0 %v2667, 127
    %v2678 = vpop.permute.xlu0 %2677
    %2679 = vrot.lane.b32.xlu0 %v2668, 127
    %v2680 = vpop.permute.xlu0 %2679
    %v2685 = vadd.f32 %v2581, %v2674
    %v2686 = vadd.f32 %v2582, %v2676
    %v2687 = vadd.f32 %v2583, %v2678
    %v2688 = vadd.f32 %v2584, %v2680
    %s2689 = sld [smem:[#allocation7 + $0x88]]
    %v2690 = vstv %s2689
    %v2691 = vmul.f32 %v2690, %v2541
    %v2692 = vmul.f32 %v2690, %v2542
    %v2693 = vmul.f32 %v2690, %v2543
    %v2694 = vmul.f32 %v2690, %v2544
    %2699 = vrot.lane.b32.xlu0 %v2691, 126
    %v2700 = vpop.permute.xlu0 %2699
    %2701 = vrot.lane.b32.xlu0 %v2692, 126
    %v2702 = vpop.permute.xlu0 %2701
    %2703 = vrot.lane.b32.xlu0 %v2693, 126
    %v2704 = vpop.permute.xlu0 %2703
    %2705 = vrot.lane.b32.xlu0 %v2694, 126
    %v2706 = vpop.permute.xlu0 %2705
    %v2711 = vadd.f32 %v2607, %v2700
    %v2712 = vadd.f32 %v2608, %v2702
    %v2713 = vadd.f32 %v2609, %v2704
    %v2714 = vadd.f32 %v2610, %v2706
    %s2715 = sld [smem:[#allocation7 + $0x89]]
    %v2716 = vstv %s2715
    %v2717 = vmul.f32 %v2716, %v2541
    %v2718 = vmul.f32 %v2716, %v2542
    %v2719 = vmul.f32 %v2716, %v2543
    %v2720 = vmul.f32 %v2716, %v2544
    %2725 = vrot.lane.b32.xlu0 %v2717, 126
    %v2726 = vpop.permute.xlu0 %2725
    %2727 = vrot.lane.b32.xlu0 %v2718, 126
    %v2728 = vpop.permute.xlu0 %2727
    %2729 = vrot.lane.b32.xlu0 %v2719, 126
    %v2730 = vpop.permute.xlu0 %2729
    %2731 = vrot.lane.b32.xlu0 %v2720, 126
    %v2732 = vpop.permute.xlu0 %2731
    %v2737 = vadd.f32 %v2633, %v2726
    %v2738 = vadd.f32 %v2634, %v2728
    %v2739 = vadd.f32 %v2635, %v2730
    %v2740 = vadd.f32 %v2636, %v2732
    %s2741 = sld [smem:[#allocation7 + $0x8a]]
    %v2742 = vstv %s2741
    %v2743 = vmul.f32 %v2742, %v2541
    %v2744 = vmul.f32 %v2742, %v2542
    %v2745 = vmul.f32 %v2742, %v2543
    %v2746 = vmul.f32 %v2742, %v2544
    %2751 = vrot.lane.b32.xlu0 %v2743, 126
    %v2752 = vpop.permute.xlu0 %2751
    %2753 = vrot.lane.b32.xlu0 %v2744, 126
    %v2754 = vpop.permute.xlu0 %2753
    %2755 = vrot.lane.b32.xlu0 %v2745, 126
    %v2756 = vpop.permute.xlu0 %2755
    %2757 = vrot.lane.b32.xlu0 %v2746, 126
    %v2758 = vpop.permute.xlu0 %2757
    %v2763 = vadd.f32 %v2659, %v2752
    %v2764 = vadd.f32 %v2660, %v2754
    %v2765 = vadd.f32 %v2661, %v2756
    %v2766 = vadd.f32 %v2662, %v2758
    %s2767 = sld [smem:[#allocation7 + $0x8b]]
    %v2768 = vstv %s2767
    %v2769 = vmul.f32 %v2768, %v2541
    %v2770 = vmul.f32 %v2768, %v2542
    %v2771 = vmul.f32 %v2768, %v2543
    %v2772 = vmul.f32 %v2768, %v2544
    %2777 = vrot.lane.b32.xlu0 %v2769, 126
    %v2778 = vpop.permute.xlu0 %2777
    %2779 = vrot.lane.b32.xlu0 %v2770, 126
    %v2780 = vpop.permute.xlu0 %2779
    %2781 = vrot.lane.b32.xlu0 %v2771, 126
    %v2782 = vpop.permute.xlu0 %2781
    %2783 = vrot.lane.b32.xlu0 %v2772, 126
    %v2784 = vpop.permute.xlu0 %2783
    %v2789 = vadd.f32 %v2685, %v2778
    %v2790 = vadd.f32 %v2686, %v2780
    %v2791 = vadd.f32 %v2687, %v2782
    %v2792 = vadd.f32 %v2688, %v2784
    %v2793 = vld [vmem:[%s224] sm:$0xff]
    %v2794 = vld [vmem:[%s224 + $0x8] sm:$0xff]
    %v2795 = vld [vmem:[%s224 + $0x60] sm:$0xff]
    %v2796 = vld [vmem:[%s224 + $0x68] sm:$0xff]
    %s2797 = sld [smem:[#allocation7 + $0xc]]
    %v2798 = vstv %s2797
    %v2799 = vmul.f32 %v2798, %v2793
    %v2800 = vmul.f32 %v2798, %v2794
    %v2801 = vmul.f32 %v2798, %v2795
    %v2802 = vmul.f32 %v2798, %v2796
    %v2803 = vadd.f32 %v2711, %v2799
    %v2804 = vadd.f32 %v2712, %v2800
    %v2805 = vadd.f32 %v2713, %v2801
    %v2806 = vadd.f32 %v2714, %v2802
    %s2807 = sld [smem:[#allocation7 + $0xd]]
    %v2808 = vstv %s2807
    %v2809 = vmul.f32 %v2808, %v2793
    %v2810 = vmul.f32 %v2808, %v2794
    %v2811 = vmul.f32 %v2808, %v2795
    %v2812 = vmul.f32 %v2808, %v2796
    %v2813 = vadd.f32 %v2737, %v2809
    %v2814 = vadd.f32 %v2738, %v2810
    %v2815 = vadd.f32 %v2739, %v2811
    %v2816 = vadd.f32 %v2740, %v2812
    %s2817 = sld [smem:[#allocation7 + $0xe]]
    %v2818 = vstv %s2817
    %v2819 = vmul.f32 %v2818, %v2793
    %v2820 = vmul.f32 %v2818, %v2794
    %v2821 = vmul.f32 %v2818, %v2795
    %v2822 = vmul.f32 %v2818, %v2796
    %v2823 = vadd.f32 %v2763, %v2819
    %v2824 = vadd.f32 %v2764, %v2820
    %v2825 = vadd.f32 %v2765, %v2821
    %v2826 = vadd.f32 %v2766, %v2822
    %s2827 = sld [smem:[#allocation7 + $0xf]]
    %v2828 = vstv %s2827
    %v2829 = vmul.f32 %v2828, %v2793
    %v2830 = vmul.f32 %v2828, %v2794
    %v2831 = vmul.f32 %v2828, %v2795
    %v2832 = vmul.f32 %v2828, %v2796
    %v2833 = vadd.f32 %v2789, %v2829
    %v2834 = vadd.f32 %v2790, %v2830
    %v2835 = vadd.f32 %v2791, %v2831
    %v2836 = vadd.f32 %v2792, %v2832
    %s2837 = sld [smem:[#allocation7 + $0x1c]]
    %v2838 = vstv %s2837
    %v2839 = vmul.f32 %v2838, %v2793
    %v2840 = vmul.f32 %v2838, %v2794
    %v2841 = vmul.f32 %v2838, %v2795
    %v2842 = vmul.f32 %v2838, %v2796
    %2847 = vrot.lane.b32.xlu0 %v2839, 127
    %v2848 = vpop.permute.xlu0 %2847
    %2849 = vrot.lane.b32.xlu0 %v2840, 127
    %v2850 = vpop.permute.xlu0 %2849
    %2851 = vrot.lane.b32.xlu0 %v2841, 127
    %v2852 = vpop.permute.xlu0 %2851
    %2853 = vrot.lane.b32.xlu0 %v2842, 127
    %v2854 = vpop.permute.xlu0 %2853
    %v2859 = vadd.f32 %v2803, %v2848
    %v2860 = vadd.f32 %v2804, %v2850
    %v2861 = vadd.f32 %v2805, %v2852
    %v2862 = vadd.f32 %v2806, %v2854
    %s2863 = sld [smem:[#allocation7 + $0x1d]]
    %v2864 = vstv %s2863
    %v2865 = vmul.f32 %v2864, %v2793
    %v2866 = vmul.f32 %v2864, %v2794
    %v2867 = vmul.f32 %v2864, %v2795
    %v2868 = vmul.f32 %v2864, %v2796
    %2873 = vrot.lane.b32.xlu0 %v2865, 127
    %v2874 = vpop.permute.xlu0 %2873
    %2875 = vrot.lane.b32.xlu0 %v2866, 127
    %v2876 = vpop.permute.xlu0 %2875
    %2877 = vrot.lane.b32.xlu0 %v2867, 127
    %v2878 = vpop.permute.xlu0 %2877
    %2879 = vrot.lane.b32.xlu0 %v2868, 127
    %v2880 = vpop.permute.xlu0 %2879
    %v2885 = vadd.f32 %v2813, %v2874
    %v2886 = vadd.f32 %v2814, %v2876
    %v2887 = vadd.f32 %v2815, %v2878
    %v2888 = vadd.f32 %v2816, %v2880
    %s2889 = sld [smem:[#allocation7 + $0x1e]]
    %v2890 = vstv %s2889
    %v2891 = vmul.f32 %v2890, %v2793
    %v2892 = vmul.f32 %v2890, %v2794
    %v2893 = vmul.f32 %v2890, %v2795
    %v2894 = vmul.f32 %v2890, %v2796
    %2899 = vrot.lane.b32.xlu0 %v2891, 127
    %v2900 = vpop.permute.xlu0 %2899
    %2901 = vrot.lane.b32.xlu0 %v2892, 127
    %v2902 = vpop.permute.xlu0 %2901
    %2903 = vrot.lane.b32.xlu0 %v2893, 127
    %v2904 = vpop.permute.xlu0 %2903
    %2905 = vrot.lane.b32.xlu0 %v2894, 127
    %v2906 = vpop.permute.xlu0 %2905
    %v2911 = vadd.f32 %v2823, %v2900
    %v2912 = vadd.f32 %v2824, %v2902
    %v2913 = vadd.f32 %v2825, %v2904
    %v2914 = vadd.f32 %v2826, %v2906
    %s2915 = sld [smem:[#allocation7 + $0x1f]]
    %v2916 = vstv %s2915
    %v2917 = vmul.f32 %v2916, %v2793
    %v2918 = vmul.f32 %v2916, %v2794
    %v2919 = vmul.f32 %v2916, %v2795
    %v2920 = vmul.f32 %v2916, %v2796
    %2925 = vrot.lane.b32.xlu0 %v2917, 127
    %v2926 = vpop.permute.xlu0 %2925
    %2927 = vrot.lane.b32.xlu0 %v2918, 127
    %v2928 = vpop.permute.xlu0 %2927
    %2929 = vrot.lane.b32.xlu0 %v2919, 127
    %v2930 = vpop.permute.xlu0 %2929
    %2931 = vrot.lane.b32.xlu0 %v2920, 127
    %v2932 = vpop.permute.xlu0 %2931
    %v2937 = vadd.f32 %v2833, %v2926
    %v2938 = vadd.f32 %v2834, %v2928
    %v2939 = vadd.f32 %v2835, %v2930
    %v2940 = vadd.f32 %v2836, %v2932
    %s2941 = sld [smem:[#allocation7 + $0x2c]]
    %v2942 = vstv %s2941
    %v2943 = vmul.f32 %v2942, %v2793
    %v2944 = vmul.f32 %v2942, %v2794
    %v2945 = vmul.f32 %v2942, %v2795
    %v2946 = vmul.f32 %v2942, %v2796
    %2951 = vrot.lane.b32.xlu0 %v2943, 126
    %v2952 = vpop.permute.xlu0 %2951
    %2953 = vrot.lane.b32.xlu0 %v2944, 126
    %v2954 = vpop.permute.xlu0 %2953
    %2955 = vrot.lane.b32.xlu0 %v2945, 126
    %v2956 = vpop.permute.xlu0 %2955
    %2957 = vrot.lane.b32.xlu0 %v2946, 126
    %v2958 = vpop.permute.xlu0 %2957
    %v2963 = vadd.f32 %v2859, %v2952
    %v2964 = vadd.f32 %v2860, %v2954
    %v2965 = vadd.f32 %v2861, %v2956
    %v2966 = vadd.f32 %v2862, %v2958
    %s2967 = sld [smem:[#allocation7 + $0x2d]]
    %v2968 = vstv %s2967
    %v2969 = vmul.f32 %v2968, %v2793
    %v2970 = vmul.f32 %v2968, %v2794
    %v2971 = vmul.f32 %v2968, %v2795
    %v2972 = vmul.f32 %v2968, %v2796
    %2977 = vrot.lane.b32.xlu0 %v2969, 126
    %v2978 = vpop.permute.xlu0 %2977
    %2979 = vrot.lane.b32.xlu0 %v2970, 126
    %v2980 = vpop.permute.xlu0 %2979
    %2981 = vrot.lane.b32.xlu0 %v2971, 126
    %v2982 = vpop.permute.xlu0 %2981
    %2983 = vrot.lane.b32.xlu0 %v2972, 126
    %v2984 = vpop.permute.xlu0 %2983
    %v2989 = vadd.f32 %v2885, %v2978
    %v2990 = vadd.f32 %v2886, %v2980
    %v2991 = vadd.f32 %v2887, %v2982
    %v2992 = vadd.f32 %v2888, %v2984
    %s2993 = sld [smem:[#allocation7 + $0x2e]]
    %v2994 = vstv %s2993
    %v2995 = vmul.f32 %v2994, %v2793
    %v2996 = vmul.f32 %v2994, %v2794
    %v2997 = vmul.f32 %v2994, %v2795
    %v2998 = vmul.f32 %v2994, %v2796
    %3003 = vrot.lane.b32.xlu0 %v2995, 126
    %v3004 = vpop.permute.xlu0 %3003
    %3005 = vrot.lane.b32.xlu0 %v2996, 126
    %v3006 = vpop.permute.xlu0 %3005
    %3007 = vrot.lane.b32.xlu0 %v2997, 126
    %v3008 = vpop.permute.xlu0 %3007
    %3009 = vrot.lane.b32.xlu0 %v2998, 126
    %v3010 = vpop.permute.xlu0 %3009
    %v3015 = vadd.f32 %v2911, %v3004
    %v3016 = vadd.f32 %v2912, %v3006
    %v3017 = vadd.f32 %v2913, %v3008
    %v3018 = vadd.f32 %v2914, %v3010
    %s3019 = sld [smem:[#allocation7 + $0x2f]]
    %v3020 = vstv %s3019
    %v3021 = vmul.f32 %v3020, %v2793
    %v3022 = vmul.f32 %v3020, %v2794
    %v3023 = vmul.f32 %v3020, %v2795
    %v3024 = vmul.f32 %v3020, %v2796
    %3029 = vrot.lane.b32.xlu0 %v3021, 126
    %v3030 = vpop.permute.xlu0 %3029
    %3031 = vrot.lane.b32.xlu0 %v3022, 126
    %v3032 = vpop.permute.xlu0 %3031
    %3033 = vrot.lane.b32.xlu0 %v3023, 126
    %v3034 = vpop.permute.xlu0 %3033
    %3035 = vrot.lane.b32.xlu0 %v3024, 126
    %v3036 = vpop.permute.xlu0 %3035
    %v3041 = vadd.f32 %v2937, %v3030
    %v3042 = vadd.f32 %v2938, %v3032
    %v3043 = vadd.f32 %v2939, %v3034
    %v3044 = vadd.f32 %v2940, %v3036
    %v3045 = vld [vmem:[%s224 + $0x1] sm:$0xff]
    %v3046 = vld [vmem:[%s224 + $0x9] sm:$0xff]
    %v3047 = vld [vmem:[%s224 + $0x61] sm:$0xff]
    %v3048 = vld [vmem:[%s224 + $0x69] sm:$0xff]
    %s3049 = sld [smem:[#allocation7 + $0x3c]]
    %v3050 = vstv %s3049
    %v3051 = vmul.f32 %v3050, %v3045
    %v3052 = vmul.f32 %v3050, %v3046
    %v3053 = vmul.f32 %v3050, %v3047
    %v3054 = vmul.f32 %v3050, %v3048
    %v3055 = vadd.f32 %v2963, %v3051
    %v3056 = vadd.f32 %v2964, %v3052
    %v3057 = vadd.f32 %v2965, %v3053
    %v3058 = vadd.f32 %v2966, %v3054
    %s3059 = sld [smem:[#allocation7 + $0x3d]]
    %v3060 = vstv %s3059
    %v3061 = vmul.f32 %v3060, %v3045
    %v3062 = vmul.f32 %v3060, %v3046
    %v3063 = vmul.f32 %v3060, %v3047
    %v3064 = vmul.f32 %v3060, %v3048
    %v3065 = vadd.f32 %v2989, %v3061
    %v3066 = vadd.f32 %v2990, %v3062
    %v3067 = vadd.f32 %v2991, %v3063
    %v3068 = vadd.f32 %v2992, %v3064
    %s3069 = sld [smem:[#allocation7 + $0x3e]]
    %v3070 = vstv %s3069
    %v3071 = vmul.f32 %v3070, %v3045
    %v3072 = vmul.f32 %v3070, %v3046
    %v3073 = vmul.f32 %v3070, %v3047
    %v3074 = vmul.f32 %v3070, %v3048
    %v3075 = vadd.f32 %v3015, %v3071
    %v3076 = vadd.f32 %v3016, %v3072
    %v3077 = vadd.f32 %v3017, %v3073
    %v3078 = vadd.f32 %v3018, %v3074
    %s3079 = sld [smem:[#allocation7 + $0x3f]]
    %v3080 = vstv %s3079
    %v3081 = vmul.f32 %v3080, %v3045
    %v3082 = vmul.f32 %v3080, %v3046
    %v3083 = vmul.f32 %v3080, %v3047
    %v3084 = vmul.f32 %v3080, %v3048
    %v3085 = vadd.f32 %v3041, %v3081
    %v3086 = vadd.f32 %v3042, %v3082
    %v3087 = vadd.f32 %v3043, %v3083
    %v3088 = vadd.f32 %v3044, %v3084
    %s3089 = sld [smem:[#allocation7 + $0x4c]]
    %v3090 = vstv %s3089
    %v3091 = vmul.f32 %v3090, %v3045
    %v3092 = vmul.f32 %v3090, %v3046
    %v3093 = vmul.f32 %v3090, %v3047
    %v3094 = vmul.f32 %v3090, %v3048
    %3099 = vrot.lane.b32.xlu0 %v3091, 127
    %v3100 = vpop.permute.xlu0 %3099
    %3101 = vrot.lane.b32.xlu0 %v3092, 127
    %v3102 = vpop.permute.xlu0 %3101
    %3103 = vrot.lane.b32.xlu0 %v3093, 127
    %v3104 = vpop.permute.xlu0 %3103
    %3105 = vrot.lane.b32.xlu0 %v3094, 127
    %v3106 = vpop.permute.xlu0 %3105
    %v3111 = vadd.f32 %v3055, %v3100
    %v3112 = vadd.f32 %v3056, %v3102
    %v3113 = vadd.f32 %v3057, %v3104
    %v3114 = vadd.f32 %v3058, %v3106
    %s3115 = sld [smem:[#allocation7 + $0x4d]]
    %v3116 = vstv %s3115
    %v3117 = vmul.f32 %v3116, %v3045
    %v3118 = vmul.f32 %v3116, %v3046
    %v3119 = vmul.f32 %v3116, %v3047
    %v3120 = vmul.f32 %v3116, %v3048
    %3125 = vrot.lane.b32.xlu0 %v3117, 127
    %v3126 = vpop.permute.xlu0 %3125
    %3127 = vrot.lane.b32.xlu0 %v3118, 127
    %v3128 = vpop.permute.xlu0 %3127
    %3129 = vrot.lane.b32.xlu0 %v3119, 127
    %v3130 = vpop.permute.xlu0 %3129
    %3131 = vrot.lane.b32.xlu0 %v3120, 127
    %v3132 = vpop.permute.xlu0 %3131
    %v3137 = vadd.f32 %v3065, %v3126
    %v3138 = vadd.f32 %v3066, %v3128
    %v3139 = vadd.f32 %v3067, %v3130
    %v3140 = vadd.f32 %v3068, %v3132
    %s3141 = sld [smem:[#allocation7 + $0x4e]]
    %v3142 = vstv %s3141
    %v3143 = vmul.f32 %v3142, %v3045
    %v3144 = vmul.f32 %v3142, %v3046
    %v3145 = vmul.f32 %v3142, %v3047
    %v3146 = vmul.f32 %v3142, %v3048
    %3151 = vrot.lane.b32.xlu0 %v3143, 127
    %v3152 = vpop.permute.xlu0 %3151
    %3153 = vrot.lane.b32.xlu0 %v3144, 127
    %v3154 = vpop.permute.xlu0 %3153
    %3155 = vrot.lane.b32.xlu0 %v3145, 127
    %v3156 = vpop.permute.xlu0 %3155
    %3157 = vrot.lane.b32.xlu0 %v3146, 127
    %v3158 = vpop.permute.xlu0 %3157
    %v3163 = vadd.f32 %v3075, %v3152
    %v3164 = vadd.f32 %v3076, %v3154
    %v3165 = vadd.f32 %v3077, %v3156
    %v3166 = vadd.f32 %v3078, %v3158
    %s3167 = sld [smem:[#allocation7 + $0x4f]]
    %v3168 = vstv %s3167
    %v3169 = vmul.f32 %v3168, %v3045
    %v3170 = vmul.f32 %v3168, %v3046
    %v3171 = vmul.f32 %v3168, %v3047
    %v3172 = vmul.f32 %v3168, %v3048
    %3177 = vrot.lane.b32.xlu0 %v3169, 127
    %v3178 = vpop.permute.xlu0 %3177
    %3179 = vrot.lane.b32.xlu0 %v3170, 127
    %v3180 = vpop.permute.xlu0 %3179
    %3181 = vrot.lane.b32.xlu0 %v3171, 127
    %v3182 = vpop.permute.xlu0 %3181
    %3183 = vrot.lane.b32.xlu0 %v3172, 127
    %v3184 = vpop.permute.xlu0 %3183
    %v3189 = vadd.f32 %v3085, %v3178
    %v3190 = vadd.f32 %v3086, %v3180
    %v3191 = vadd.f32 %v3087, %v3182
    %v3192 = vadd.f32 %v3088, %v3184
    %s3193 = sld [smem:[#allocation7 + $0x5c]]
    %v3194 = vstv %s3193
    %v3195 = vmul.f32 %v3194, %v3045
    %v3196 = vmul.f32 %v3194, %v3046
    %v3197 = vmul.f32 %v3194, %v3047
    %v3198 = vmul.f32 %v3194, %v3048
    %3203 = vrot.lane.b32.xlu0 %v3195, 126
    %v3204 = vpop.permute.xlu0 %3203
    %3205 = vrot.lane.b32.xlu0 %v3196, 126
    %v3206 = vpop.permute.xlu0 %3205
    %3207 = vrot.lane.b32.xlu0 %v3197, 126
    %v3208 = vpop.permute.xlu0 %3207
    %3209 = vrot.lane.b32.xlu0 %v3198, 126
    %v3210 = vpop.permute.xlu0 %3209
    %v3215 = vadd.f32 %v3111, %v3204
    %v3216 = vadd.f32 %v3112, %v3206
    %v3217 = vadd.f32 %v3113, %v3208
    %v3218 = vadd.f32 %v3114, %v3210
    %s3219 = sld [smem:[#allocation7 + $0x5d]]
    %v3220 = vstv %s3219
    %v3221 = vmul.f32 %v3220, %v3045
    %v3222 = vmul.f32 %v3220, %v3046
    %v3223 = vmul.f32 %v3220, %v3047
    %v3224 = vmul.f32 %v3220, %v3048
    %3229 = vrot.lane.b32.xlu0 %v3221, 126
    %v3230 = vpop.permute.xlu0 %3229
    %3231 = vrot.lane.b32.xlu0 %v3222, 126
    %v3232 = vpop.permute.xlu0 %3231
    %3233 = vrot.lane.b32.xlu0 %v3223, 126
    %v3234 = vpop.permute.xlu0 %3233
    %3235 = vrot.lane.b32.xlu0 %v3224, 126
    %v3236 = vpop.permute.xlu0 %3235
    %v3241 = vadd.f32 %v3137, %v3230
    %v3242 = vadd.f32 %v3138, %v3232
    %v3243 = vadd.f32 %v3139, %v3234
    %v3244 = vadd.f32 %v3140, %v3236
    %s3245 = sld [smem:[#allocation7 + $0x5e]]
    %v3246 = vstv %s3245
    %v3247 = vmul.f32 %v3246, %v3045
    %v3248 = vmul.f32 %v3246, %v3046
    %v3249 = vmul.f32 %v3246, %v3047
    %v3250 = vmul.f32 %v3246, %v3048
    %3255 = vrot.lane.b32.xlu0 %v3247, 126
    %v3256 = vpop.permute.xlu0 %3255
    %3257 = vrot.lane.b32.xlu0 %v3248, 126
    %v3258 = vpop.permute.xlu0 %3257
    %3259 = vrot.lane.b32.xlu0 %v3249, 126
    %v3260 = vpop.permute.xlu0 %3259
    %3261 = vrot.lane.b32.xlu0 %v3250, 126
    %v3262 = vpop.permute.xlu0 %3261
    %v3267 = vadd.f32 %v3163, %v3256
    %v3268 = vadd.f32 %v3164, %v3258
    %v3269 = vadd.f32 %v3165, %v3260
    %v3270 = vadd.f32 %v3166, %v3262
    %s3271 = sld [smem:[#allocation7 + $0x5f]]
    %v3272 = vstv %s3271
    %v3273 = vmul.f32 %v3272, %v3045
    %v3274 = vmul.f32 %v3272, %v3046
    %v3275 = vmul.f32 %v3272, %v3047
    %v3276 = vmul.f32 %v3272, %v3048
    %3281 = vrot.lane.b32.xlu0 %v3273, 126
    %v3282 = vpop.permute.xlu0 %3281
    %3283 = vrot.lane.b32.xlu0 %v3274, 126
    %v3284 = vpop.permute.xlu0 %3283
    %3285 = vrot.lane.b32.xlu0 %v3275, 126
    %v3286 = vpop.permute.xlu0 %3285
    %3287 = vrot.lane.b32.xlu0 %v3276, 126
    %v3288 = vpop.permute.xlu0 %3287
    %v3293 = vadd.f32 %v3189, %v3282
    %v3294 = vadd.f32 %v3190, %v3284
    %v3295 = vadd.f32 %v3191, %v3286
    %v3296 = vadd.f32 %v3192, %v3288
    %v3297 = vld [vmem:[%s224 + $0x2] sm:$0xff]
    %v3298 = vld [vmem:[%s224 + $0xa] sm:$0xff]
    %v3299 = vld [vmem:[%s224 + $0x62] sm:$0xff]
    %v3300 = vld [vmem:[%s224 + $0x6a] sm:$0xff]
    %s3301 = sld [smem:[#allocation7 + $0x6c]]
    %v3302 = vstv %s3301
    %v3303 = vmul.f32 %v3302, %v3297
    %v3304 = vmul.f32 %v3302, %v3298
    %v3305 = vmul.f32 %v3302, %v3299
    %v3306 = vmul.f32 %v3302, %v3300
    %v3307 = vadd.f32 %v3215, %v3303
    %v3308 = vadd.f32 %v3216, %v3304
    %v3309 = vadd.f32 %v3217, %v3305
    %v3310 = vadd.f32 %v3218, %v3306
    %s3311 = sld [smem:[#allocation7 + $0x6d]]
    %v3312 = vstv %s3311
    %v3313 = vmul.f32 %v3312, %v3297
    %v3314 = vmul.f32 %v3312, %v3298
    %v3315 = vmul.f32 %v3312, %v3299
    %v3316 = vmul.f32 %v3312, %v3300
    %v3317 = vadd.f32 %v3241, %v3313
    %v3318 = vadd.f32 %v3242, %v3314
    %v3319 = vadd.f32 %v3243, %v3315
    %v3320 = vadd.f32 %v3244, %v3316
    %s3321 = sld [smem:[#allocation7 + $0x6e]]
    %v3322 = vstv %s3321
    %v3323 = vmul.f32 %v3322, %v3297
    %v3324 = vmul.f32 %v3322, %v3298
    %v3325 = vmul.f32 %v3322, %v3299
    %v3326 = vmul.f32 %v3322, %v3300
    %v3327 = vadd.f32 %v3267, %v3323
    %v3328 = vadd.f32 %v3268, %v3324
    %v3329 = vadd.f32 %v3269, %v3325
    %v3330 = vadd.f32 %v3270, %v3326
    %s3331 = sld [smem:[#allocation7 + $0x6f]]
    %v3332 = vstv %s3331
    %v3333 = vmul.f32 %v3332, %v3297
    %v3334 = vmul.f32 %v3332, %v3298
    %v3335 = vmul.f32 %v3332, %v3299
    %v3336 = vmul.f32 %v3332, %v3300
    %v3337 = vadd.f32 %v3293, %v3333
    %v3338 = vadd.f32 %v3294, %v3334
    %v3339 = vadd.f32 %v3295, %v3335
    %v3340 = vadd.f32 %v3296, %v3336
    %s3341 = sld [smem:[#allocation7 + $0x7c]]
    %v3342 = vstv %s3341
    %v3343 = vmul.f32 %v3342, %v3297
    %v3344 = vmul.f32 %v3342, %v3298
    %v3345 = vmul.f32 %v3342, %v3299
    %v3346 = vmul.f32 %v3342, %v3300
    %3351 = vrot.lane.b32.xlu0 %v3343, 127
    %v3352 = vpop.permute.xlu0 %3351
    %3353 = vrot.lane.b32.xlu0 %v3344, 127
    %v3354 = vpop.permute.xlu0 %3353
    %3355 = vrot.lane.b32.xlu0 %v3345, 127
    %v3356 = vpop.permute.xlu0 %3355
    %3357 = vrot.lane.b32.xlu0 %v3346, 127
    %v3358 = vpop.permute.xlu0 %3357
    %v3363 = vadd.f32 %v3307, %v3352
    %v3364 = vadd.f32 %v3308, %v3354
    %v3365 = vadd.f32 %v3309, %v3356
    %v3366 = vadd.f32 %v3310, %v3358
    %s3367 = sld [smem:[#allocation7 + $0x7d]]
    %v3368 = vstv %s3367
    %v3369 = vmul.f32 %v3368, %v3297
    %v3370 = vmul.f32 %v3368, %v3298
    %v3371 = vmul.f32 %v3368, %v3299
    %v3372 = vmul.f32 %v3368, %v3300
    %3377 = vrot.lane.b32.xlu0 %v3369, 127
    %v3378 = vpop.permute.xlu0 %3377
    %3379 = vrot.lane.b32.xlu0 %v3370, 127
    %v3380 = vpop.permute.xlu0 %3379
    %3381 = vrot.lane.b32.xlu0 %v3371, 127
    %v3382 = vpop.permute.xlu0 %3381
    %3383 = vrot.lane.b32.xlu0 %v3372, 127
    %v3384 = vpop.permute.xlu0 %3383
    %v3389 = vadd.f32 %v3317, %v3378
    %v3390 = vadd.f32 %v3318, %v3380
    %v3391 = vadd.f32 %v3319, %v3382
    %v3392 = vadd.f32 %v3320, %v3384
    %s3393 = sld [smem:[#allocation7 + $0x7e]]
    %v3394 = vstv %s3393
    %v3395 = vmul.f32 %v3394, %v3297
    %v3396 = vmul.f32 %v3394, %v3298
    %v3397 = vmul.f32 %v3394, %v3299
    %v3398 = vmul.f32 %v3394, %v3300
    %3403 = vrot.lane.b32.xlu0 %v3395, 127
    %v3404 = vpop.permute.xlu0 %3403
    %3405 = vrot.lane.b32.xlu0 %v3396, 127
    %v3406 = vpop.permute.xlu0 %3405
    %3407 = vrot.lane.b32.xlu0 %v3397, 127
    %v3408 = vpop.permute.xlu0 %3407
    %3409 = vrot.lane.b32.xlu0 %v3398, 127
    %v3410 = vpop.permute.xlu0 %3409
    %v3415 = vadd.f32 %v3327, %v3404
    %v3416 = vadd.f32 %v3328, %v3406
    %v3417 = vadd.f32 %v3329, %v3408
    %v3418 = vadd.f32 %v3330, %v3410
    %s3419 = sld [smem:[#allocation7 + $0x7f]]
    %v3420 = vstv %s3419
    %v3421 = vmul.f32 %v3420, %v3297
    %v3422 = vmul.f32 %v3420, %v3298
    %v3423 = vmul.f32 %v3420, %v3299
    %v3424 = vmul.f32 %v3420, %v3300
    %3429 = vrot.lane.b32.xlu0 %v3421, 127
    %v3430 = vpop.permute.xlu0 %3429
    %3431 = vrot.lane.b32.xlu0 %v3422, 127
    %v3432 = vpop.permute.xlu0 %3431
    %3433 = vrot.lane.b32.xlu0 %v3423, 127
    %v3434 = vpop.permute.xlu0 %3433
    %3435 = vrot.lane.b32.xlu0 %v3424, 127
    %v3436 = vpop.permute.xlu0 %3435
    %v3441 = vadd.f32 %v3337, %v3430
    %v3442 = vadd.f32 %v3338, %v3432
    %v3443 = vadd.f32 %v3339, %v3434
    %v3444 = vadd.f32 %v3340, %v3436
    %s3445 = sld [smem:[#allocation7 + $0x8c]]
    %v3446 = vstv %s3445
    %v3447 = vmul.f32 %v3446, %v3297
    %v3448 = vmul.f32 %v3446, %v3298
    %v3449 = vmul.f32 %v3446, %v3299
    %v3450 = vmul.f32 %v3446, %v3300
    %3455 = vrot.lane.b32.xlu0 %v3447, 126
    %v3456 = vpop.permute.xlu0 %3455
    %3457 = vrot.lane.b32.xlu0 %v3448, 126
    %v3458 = vpop.permute.xlu0 %3457
    %3459 = vrot.lane.b32.xlu0 %v3449, 126
    %v3460 = vpop.permute.xlu0 %3459
    %3461 = vrot.lane.b32.xlu0 %v3450, 126
    %v3462 = vpop.permute.xlu0 %3461
    %v3467 = vadd.f32 %v3363, %v3456
    %v3468 = vadd.f32 %v3364, %v3458
    %v3469 = vadd.f32 %v3365, %v3460
    %v3470 = vadd.f32 %v3366, %v3462
    %s3471 = sld [smem:[#allocation7 + $0x8d]]
    %v3472 = vstv %s3471
    %v3473 = vmul.f32 %v3472, %v3297
    %v3474 = vmul.f32 %v3472, %v3298
    %v3475 = vmul.f32 %v3472, %v3299
    %v3476 = vmul.f32 %v3472, %v3300
    %3481 = vrot.lane.b32.xlu0 %v3473, 126
    %v3482 = vpop.permute.xlu0 %3481
    %3483 = vrot.lane.b32.xlu0 %v3474, 126
    %v3484 = vpop.permute.xlu0 %3483
    %3485 = vrot.lane.b32.xlu0 %v3475, 126
    %v3486 = vpop.permute.xlu0 %3485
    %3487 = vrot.lane.b32.xlu0 %v3476, 126
    %v3488 = vpop.permute.xlu0 %3487
    %v3493 = vadd.f32 %v3389, %v3482
    %v3494 = vadd.f32 %v3390, %v3484
    %v3495 = vadd.f32 %v3391, %v3486
    %v3496 = vadd.f32 %v3392, %v3488
    %s3497 = sld [smem:[#allocation7 + $0x8e]]
    %v3498 = vstv %s3497
    %v3499 = vmul.f32 %v3498, %v3297
    %v3500 = vmul.f32 %v3498, %v3298
    %v3501 = vmul.f32 %v3498, %v3299
    %v3502 = vmul.f32 %v3498, %v3300
    %3507 = vrot.lane.b32.xlu0 %v3499, 126
    %v3508 = vpop.permute.xlu0 %3507
    %3509 = vrot.lane.b32.xlu0 %v3500, 126
    %v3510 = vpop.permute.xlu0 %3509
    %3511 = vrot.lane.b32.xlu0 %v3501, 126
    %v3512 = vpop.permute.xlu0 %3511
    %3513 = vrot.lane.b32.xlu0 %v3502, 126
    %v3514 = vpop.permute.xlu0 %3513
    %v3519 = vadd.f32 %v3415, %v3508
    %v3520 = vadd.f32 %v3416, %v3510
    %v3521 = vadd.f32 %v3417, %v3512
    %v3522 = vadd.f32 %v3418, %v3514
    %s3523 = sld [smem:[#allocation7 + $0x8f]]
    %v3524 = vstv %s3523
    %v3525 = vmul.f32 %v3524, %v3297
    %v3526 = vmul.f32 %v3524, %v3298
    %v3527 = vmul.f32 %v3524, %v3299
    %v3528 = vmul.f32 %v3524, %v3300
    %3533 = vrot.lane.b32.xlu0 %v3525, 126
    %v3534 = vpop.permute.xlu0 %3533
    %3535 = vrot.lane.b32.xlu0 %v3526, 126
    %v3536 = vpop.permute.xlu0 %3535
    %3537 = vrot.lane.b32.xlu0 %v3527, 126
    %v3538 = vpop.permute.xlu0 %3537
    %3539 = vrot.lane.b32.xlu0 %v3528, 126
    %v3540 = vpop.permute.xlu0 %3539
    %v3545 = vadd.f32 %v3441, %v3534
    %v3546 = vadd.f32 %v3442, %v3536
    %v3547 = vadd.f32 %v3443, %v3538
    %v3548 = vadd.f32 %v3444, %v3540
    %vm3549 = vcmask 130048
    %v3550 = vsel %vm3549, %v3467, 0.0
    %3551 = vadd.xlane.f32.xlu0 %v3550
    %v3552 = vpop.xlane.xlu0 %3551
    %v3553 = vsel %vm3549, %v3468, 0.0
    %3554 = vadd.xlane.f32.xlu0 %v3553
    %v3555 = vpop.xlane.xlu0 %3554
    %v3556 = vsel %vm3549, %v3469, 0.0
    %3557 = vadd.xlane.f32.xlu0 %v3556
    %v3558 = vpop.xlane.xlu0 %3557
    %v3559 = vsel %vm3549, %v3470, 0.0
    %3560 = vadd.xlane.f32.xlu0 %v3559
    %v3561 = vpop.xlane.xlu0 %3560
    %v3562 = vadd.f32 %v3552, %v3555
    %v3563 = vrot.slane %v3562, 4
    %v3564 = vadd.f32 %v3562, %v3563
    %v3565 = vrot.slane %v3564, 2
    %v3566 = vadd.f32 %v3564, %v3565
    %v3567 = vrot.slane %v3566, 1
    %v3568 = vadd.f32 %v3566, %v3567
    %v3569 = vadd.f32 %v3558, %v3561
    %v3570 = vrot.slane %v3569, 4
    %v3571 = vadd.f32 %v3569, %v3570
    %v3572 = vrot.slane %v3571, 2
    %v3573 = vadd.f32 %v3571, %v3572
    %v3574 = vrot.slane %v3573, 1
    %v3575 = vadd.f32 %v3573, %v3574
    %v3576 = vadd.f32 %v3568, %v3575
    %v3577 = vmul.f32 %v3576, 0.001953125
    %v3578 = vsub.f32 %v3467, %v3577
    %v3579 = vsub.f32 %v3468, %v3577
    %v3580 = vsub.f32 %v3469, %v3577
    %v3581 = vsub.f32 %v3470, %v3577
    %v3582 = vmul.f32 %v3578, %v3578
    %v3583 = vmul.f32 %v3579, %v3579
    %v3584 = vmul.f32 %v3580, %v3580
    %v3585 = vmul.f32 %v3581, %v3581
    %v3586 = vsel %vm3549, %v3582, 0.0
    %3587 = vadd.xlane.f32.xlu0 %v3586
    %v3588 = vpop.xlane.xlu0 %3587
    %v3589 = vsel %vm3549, %v3583, 0.0
    %3590 = vadd.xlane.f32.xlu0 %v3589
    %v3591 = vpop.xlane.xlu0 %3590
    %v3592 = vsel %vm3549, %v3584, 0.0
    %3593 = vadd.xlane.f32.xlu0 %v3592
    %v3594 = vpop.xlane.xlu0 %3593
    %v3595 = vsel %vm3549, %v3585, 0.0
    %3596 = vadd.xlane.f32.xlu0 %v3595
    %v3597 = vpop.xlane.xlu0 %3596
    %v3598 = vadd.f32 %v3588, %v3591
    %v3599 = vrot.slane %v3598, 4
    %v3600 = vadd.f32 %v3598, %v3599
    %v3601 = vrot.slane %v3600, 2
    %v3602 = vadd.f32 %v3600, %v3601
    %v3603 = vrot.slane %v3602, 1
    %v3604 = vadd.f32 %v3602, %v3603
    %v3605 = vadd.f32 %v3594, %v3597
    %v3606 = vrot.slane %v3605, 4
    %v3607 = vadd.f32 %v3605, %v3606
    %v3608 = vrot.slane %v3607, 2
    %v3609 = vadd.f32 %v3607, %v3608
    %v3610 = vrot.slane %v3609, 1
    %v3611 = vadd.f32 %v3609, %v3610
    %v3612 = vadd.f32 %v3604, %v3611
    %s3613 = sld [smem:[#allocation8]]
    %v3614 = vmul.f32 %v3612, 0.001953125
    %v3615 = vadd.f32 %v3614, 1e-05
    %v3616 = vrsqrt.pop %v3615
    %v3617 = vstv %s3613
    %v3618 = vmul.f32 %v3617, %v3616
    %v3619 = vmul.f32 %v3578, %v3618
    %v3620 = vmul.f32 %v3579, %v3618
    %v3621 = vmul.f32 %v3580, %v3618
    %v3622 = vmul.f32 %v3581, %v3618
    %s3623 = sld [smem:[#allocation10]]
    %v3624 = vstv %s3623
    %v3625 = vadd.f32 %v3619, %v3624
    %v3626 = vadd.f32 %v3620, %v3624
    %v3627 = vadd.f32 %v3621, %v3624
    %v3628 = vadd.f32 %v3622, %v3624
    %vm3629 = vcmp.ge.f32.partialorder %v3625, 0.0
    %vm3630 = vcmp.ge.f32.partialorder %v3626, 0.0
    %vm3631 = vcmp.ge.f32.partialorder %v3627, 0.0
    %vm3632 = vcmp.ge.f32.partialorder %v3628, 0.0
    %v3633 = vmul.f32 %v3625, 0.2
    %v3634 = vmul.f32 %v3626, 0.2
    %v3635 = vmul.f32 %v3627, 0.2
    %v3636 = vmul.f32 %v3628, 0.2
    %v3637 = vsel %vm3629, %v3625, %v3633
    %v3638 = vsel %vm3630, %v3626, %v3634
    %v3639 = vsel %vm3631, %v3627, %v3635
    %v3640 = vsel %vm3632, %v3628, %v3636
    %v3641 = vsel %vm3549, %v3493, 0.0
    %3642 = vadd.xlane.f32.xlu0 %v3641
    %v3643 = vpop.xlane.xlu0 %3642
    %v3644 = vsel %vm3549, %v3494, 0.0
    %3645 = vadd.xlane.f32.xlu0 %v3644
    %v3646 = vpop.xlane.xlu0 %3645
    %v3647 = vsel %vm3549, %v3495, 0.0
    %3648 = vadd.xlane.f32.xlu0 %v3647
    %v3649 = vpop.xlane.xlu0 %3648
    %v3650 = vsel %vm3549, %v3496, 0.0
    %3651 = vadd.xlane.f32.xlu0 %v3650
    %v3652 = vpop.xlane.xlu0 %3651
    %v3653 = vadd.f32 %v3643, %v3646
    %v3654 = vrot.slane %v3653, 4
    %v3655 = vadd.f32 %v3653, %v3654
    %v3656 = vrot.slane %v3655, 2
    %v3657 = vadd.f32 %v3655, %v3656
    %v3658 = vrot.slane %v3657, 1
    %v3659 = vadd.f32 %v3657, %v3658
    %v3660 = vadd.f32 %v3649, %v3652
    %v3661 = vrot.slane %v3660, 4
    %v3662 = vadd.f32 %v3660, %v3661
    %v3663 = vrot.slane %v3662, 2
    %v3664 = vadd.f32 %v3662, %v3663
    %v3665 = vrot.slane %v3664, 1
    %v3666 = vadd.f32 %v3664, %v3665
    %v3667 = vadd.f32 %v3659, %v3666
    %v3668 = vmul.f32 %v3667, 0.001953125
    %v3669 = vsub.f32 %v3493, %v3668
    %v3670 = vsub.f32 %v3494, %v3668
    %v3671 = vsub.f32 %v3495, %v3668
    %v3672 = vsub.f32 %v3496, %v3668
    %v3673 = vmul.f32 %v3669, %v3669
    %v3674 = vmul.f32 %v3670, %v3670
    %v3675 = vmul.f32 %v3671, %v3671
    %v3676 = vmul.f32 %v3672, %v3672
    %v3677 = vsel %vm3549, %v3673, 0.0
    %3678 = vadd.xlane.f32.xlu0 %v3677
    %v3679 = vpop.xlane.xlu0 %3678
    %v3680 = vsel %vm3549, %v3674, 0.0
    %3681 = vadd.xlane.f32.xlu0 %v3680
    %v3682 = vpop.xlane.xlu0 %3681
    %v3683 = vsel %vm3549, %v3675, 0.0
    %3684 = vadd.xlane.f32.xlu0 %v3683
    %v3685 = vpop.xlane.xlu0 %3684
    %v3686 = vsel %vm3549, %v3676, 0.0
    %3687 = vadd.xlane.f32.xlu0 %v3686
    %v3688 = vpop.xlane.xlu0 %3687
    %v3689 = vadd.f32 %v3679, %v3682
    %v3690 = vrot.slane %v3689, 4
    %v3691 = vadd.f32 %v3689, %v3690
    %v3692 = vrot.slane %v3691, 2
    %v3693 = vadd.f32 %v3691, %v3692
    %v3694 = vrot.slane %v3693, 1
    %v3695 = vadd.f32 %v3693, %v3694
    %v3696 = vadd.f32 %v3685, %v3688
    %v3697 = vrot.slane %v3696, 4
    %v3698 = vadd.f32 %v3696, %v3697
    %v3699 = vrot.slane %v3698, 2
    %v3700 = vadd.f32 %v3698, %v3699
    %v3701 = vrot.slane %v3700, 1
    %v3702 = vadd.f32 %v3700, %v3701
    %v3703 = vadd.f32 %v3695, %v3702
    %s3704 = sld [smem:[#allocation8 + $0x1]]
    %v3705 = vmul.f32 %v3703, 0.001953125
    %v3706 = vadd.f32 %v3705, 1e-05
    %v3707 = vrsqrt.pop %v3706
    %v3708 = vstv %s3704
    %v3709 = vmul.f32 %v3708, %v3707
    %v3710 = vmul.f32 %v3669, %v3709
    %v3711 = vmul.f32 %v3670, %v3709
    %v3712 = vmul.f32 %v3671, %v3709
    %v3713 = vmul.f32 %v3672, %v3709
    %s3714 = sld [smem:[#allocation10 + $0x1]]
    %v3715 = vstv %s3714
    %v3716 = vadd.f32 %v3710, %v3715
    %v3717 = vadd.f32 %v3711, %v3715
    %v3718 = vadd.f32 %v3712, %v3715
    %v3719 = vadd.f32 %v3713, %v3715
    %vm3720 = vcmp.ge.f32.partialorder %v3716, 0.0
    %vm3721 = vcmp.ge.f32.partialorder %v3717, 0.0
    %vm3722 = vcmp.ge.f32.partialorder %v3718, 0.0
    %vm3723 = vcmp.ge.f32.partialorder %v3719, 0.0
    %v3724 = vmul.f32 %v3716, 0.2
    %v3725 = vmul.f32 %v3717, 0.2
    %v3726 = vmul.f32 %v3718, 0.2
    %v3727 = vmul.f32 %v3719, 0.2
    %v3728 = vsel %vm3720, %v3716, %v3724
    %v3729 = vsel %vm3721, %v3717, %v3725
    %v3730 = vsel %vm3722, %v3718, %v3726
    %v3731 = vsel %vm3723, %v3719, %v3727
    %v3732 = vsel %vm3549, %v3519, 0.0
    %3733 = vadd.xlane.f32.xlu0 %v3732
    %v3734 = vpop.xlane.xlu0 %3733
    %v3735 = vsel %vm3549, %v3520, 0.0
    %3736 = vadd.xlane.f32.xlu0 %v3735
    %v3737 = vpop.xlane.xlu0 %3736
    %v3738 = vsel %vm3549, %v3521, 0.0
    %3739 = vadd.xlane.f32.xlu0 %v3738
    %v3740 = vpop.xlane.xlu0 %3739
    %v3741 = vsel %vm3549, %v3522, 0.0
    %3742 = vadd.xlane.f32.xlu0 %v3741
    %v3743 = vpop.xlane.xlu0 %3742
    %v3744 = vadd.f32 %v3734, %v3737
    %v3745 = vrot.slane %v3744, 4
    %v3746 = vadd.f32 %v3744, %v3745
    %v3747 = vrot.slane %v3746, 2
    %v3748 = vadd.f32 %v3746, %v3747
    %v3749 = vrot.slane %v3748, 1
    %v3750 = vadd.f32 %v3748, %v3749
    %v3751 = vadd.f32 %v3740, %v3743
    %v3752 = vrot.slane %v3751, 4
    %v3753 = vadd.f32 %v3751, %v3752
    %v3754 = vrot.slane %v3753, 2
    %v3755 = vadd.f32 %v3753, %v3754
    %v3756 = vrot.slane %v3755, 1
    %v3757 = vadd.f32 %v3755, %v3756
    %v3758 = vadd.f32 %v3750, %v3757
    %v3759 = vmul.f32 %v3758, 0.001953125
    %v3760 = vsub.f32 %v3519, %v3759
    %v3761 = vsub.f32 %v3520, %v3759
    %v3762 = vsub.f32 %v3521, %v3759
    %v3763 = vsub.f32 %v3522, %v3759
    %v3764 = vmul.f32 %v3760, %v3760
    %v3765 = vmul.f32 %v3761, %v3761
    %v3766 = vmul.f32 %v3762, %v3762
    %v3767 = vmul.f32 %v3763, %v3763
    %v3768 = vsel %vm3549, %v3764, 0.0
    %3769 = vadd.xlane.f32.xlu0 %v3768
    %v3770 = vpop.xlane.xlu0 %3769
    %v3771 = vsel %vm3549, %v3765, 0.0
    %3772 = vadd.xlane.f32.xlu0 %v3771
    %v3773 = vpop.xlane.xlu0 %3772
    %v3774 = vsel %vm3549, %v3766, 0.0
    %3775 = vadd.xlane.f32.xlu0 %v3774
    %v3776 = vpop.xlane.xlu0 %3775
    %v3777 = vsel %vm3549, %v3767, 0.0
    %3778 = vadd.xlane.f32.xlu0 %v3777
    %v3779 = vpop.xlane.xlu0 %3778
    %v3780 = vadd.f32 %v3770, %v3773
    %v3781 = vrot.slane %v3780, 4
    %v3782 = vadd.f32 %v3780, %v3781
    %v3783 = vrot.slane %v3782, 2
    %v3784 = vadd.f32 %v3782, %v3783
    %v3785 = vrot.slane %v3784, 1
    %v3786 = vadd.f32 %v3784, %v3785
    %v3787 = vadd.f32 %v3776, %v3779
    %v3788 = vrot.slane %v3787, 4
    %v3789 = vadd.f32 %v3787, %v3788
    %v3790 = vrot.slane %v3789, 2
    %v3791 = vadd.f32 %v3789, %v3790
    %v3792 = vrot.slane %v3791, 1
    %v3793 = vadd.f32 %v3791, %v3792
    %v3794 = vadd.f32 %v3786, %v3793
    %s3795 = sld [smem:[#allocation8 + $0x2]]
    %v3796 = vmul.f32 %v3794, 0.001953125
    %v3797 = vadd.f32 %v3796, 1e-05
    %v3798 = vrsqrt.pop %v3797
    %v3799 = vstv %s3795
    %v3800 = vmul.f32 %v3799, %v3798
    %v3801 = vmul.f32 %v3760, %v3800
    %v3802 = vmul.f32 %v3761, %v3800
    %v3803 = vmul.f32 %v3762, %v3800
    %v3804 = vmul.f32 %v3763, %v3800
    %s3805 = sld [smem:[#allocation10 + $0x2]]
    %v3806 = vstv %s3805
    %v3807 = vadd.f32 %v3801, %v3806
    %v3808 = vadd.f32 %v3802, %v3806
    %v3809 = vadd.f32 %v3803, %v3806
    %v3810 = vadd.f32 %v3804, %v3806
    %vm3811 = vcmp.ge.f32.partialorder %v3807, 0.0
    %vm3812 = vcmp.ge.f32.partialorder %v3808, 0.0
    %vm3813 = vcmp.ge.f32.partialorder %v3809, 0.0
    %vm3814 = vcmp.ge.f32.partialorder %v3810, 0.0
    %v3815 = vmul.f32 %v3807, 0.2
    %v3816 = vmul.f32 %v3808, 0.2
    %v3817 = vmul.f32 %v3809, 0.2
    %v3818 = vmul.f32 %v3810, 0.2
    %v3819 = vsel %vm3811, %v3807, %v3815
    %v3820 = vsel %vm3812, %v3808, %v3816
    %v3821 = vsel %vm3813, %v3809, %v3817
    %v3822 = vsel %vm3814, %v3810, %v3818
    %v3823 = vsel %vm3549, %v3545, 0.0
    %3824 = vadd.xlane.f32.xlu0 %v3823
    %v3825 = vpop.xlane.xlu0 %3824
    %v3826 = vsel %vm3549, %v3546, 0.0
    %3827 = vadd.xlane.f32.xlu0 %v3826
    %v3828 = vpop.xlane.xlu0 %3827
    %v3829 = vsel %vm3549, %v3547, 0.0
    %3830 = vadd.xlane.f32.xlu0 %v3829
    %v3831 = vpop.xlane.xlu0 %3830
    %v3832 = vsel %vm3549, %v3548, 0.0
    %3833 = vadd.xlane.f32.xlu0 %v3832
    %v3834 = vpop.xlane.xlu0 %3833
    %v3835 = vadd.f32 %v3825, %v3828
    %v3836 = vrot.slane %v3835, 4
    %v3837 = vadd.f32 %v3835, %v3836
    %v3838 = vrot.slane %v3837, 2
    %v3839 = vadd.f32 %v3837, %v3838
    %v3840 = vrot.slane %v3839, 1
    %v3841 = vadd.f32 %v3839, %v3840
    %v3842 = vadd.f32 %v3831, %v3834
    %v3843 = vrot.slane %v3842, 4
    %v3844 = vadd.f32 %v3842, %v3843
    %v3845 = vrot.slane %v3844, 2
    %v3846 = vadd.f32 %v3844, %v3845
    %v3847 = vrot.slane %v3846, 1
    %v3848 = vadd.f32 %v3846, %v3847
    %v3849 = vadd.f32 %v3841, %v3848
    %v3850 = vmul.f32 %v3849, 0.001953125
    %v3851 = vsub.f32 %v3545, %v3850
    %v3852 = vsub.f32 %v3546, %v3850
    %v3853 = vsub.f32 %v3547, %v3850
    %v3854 = vsub.f32 %v3548, %v3850
    %v3855 = vmul.f32 %v3851, %v3851
    %v3856 = vmul.f32 %v3852, %v3852
    %v3857 = vmul.f32 %v3853, %v3853
    %v3858 = vmul.f32 %v3854, %v3854
    %v3859 = vsel %vm3549, %v3855, 0.0
    %3860 = vadd.xlane.f32.xlu0 %v3859
    %v3861 = vpop.xlane.xlu0 %3860
    %v3862 = vsel %vm3549, %v3856, 0.0
    %3863 = vadd.xlane.f32.xlu0 %v3862
    %v3864 = vpop.xlane.xlu0 %3863
    %v3865 = vsel %vm3549, %v3857, 0.0
    %3866 = vadd.xlane.f32.xlu0 %v3865
    %v3867 = vpop.xlane.xlu0 %3866
    %v3868 = vsel %vm3549, %v3858, 0.0
    %3869 = vadd.xlane.f32.xlu0 %v3868
    %v3870 = vpop.xlane.xlu0 %3869
    %v3871 = vadd.f32 %v3861, %v3864
    %v3872 = vrot.slane %v3871, 4
    %v3873 = vadd.f32 %v3871, %v3872
    %v3874 = vrot.slane %v3873, 2
    %v3875 = vadd.f32 %v3873, %v3874
    %v3876 = vrot.slane %v3875, 1
    %v3877 = vadd.f32 %v3875, %v3876
    %v3878 = vadd.f32 %v3867, %v3870
    %v3879 = vrot.slane %v3878, 4
    %v3880 = vadd.f32 %v3878, %v3879
    %v3881 = vrot.slane %v3880, 2
    %v3882 = vadd.f32 %v3880, %v3881
    %v3883 = vrot.slane %v3882, 1
    %v3884 = vadd.f32 %v3882, %v3883
    %v3885 = vadd.f32 %v3877, %v3884
    %s3886 = sld [smem:[#allocation8 + $0x3]]
    %v3887 = vmul.f32 %v3885, 0.001953125
    %v3888 = vadd.f32 %v3887, 1e-05
    %v3889 = vrsqrt.pop %v3888
    %v3890 = vstv %s3886
    %v3891 = vmul.f32 %v3890, %v3889
    %v3892 = vmul.f32 %v3851, %v3891
    %v3893 = vmul.f32 %v3852, %v3891
    %v3894 = vmul.f32 %v3853, %v3891
    %v3895 = vmul.f32 %v3854, %v3891
    %s3896 = sld [smem:[#allocation10 + $0x3]]
    %v3897 = vstv %s3896
    %v3898 = vadd.f32 %v3892, %v3897
    %v3899 = vadd.f32 %v3893, %v3897
    %v3900 = vadd.f32 %v3894, %v3897
    %v3901 = vadd.f32 %v3895, %v3897
    %vm3902 = vcmp.ge.f32.partialorder %v3898, 0.0
    %vm3903 = vcmp.ge.f32.partialorder %v3899, 0.0
    %vm3904 = vcmp.ge.f32.partialorder %v3900, 0.0
    %vm3905 = vcmp.ge.f32.partialorder %v3901, 0.0
    %v3906 = vmul.f32 %v3898, 0.2
    %v3907 = vmul.f32 %v3899, 0.2
    %v3908 = vmul.f32 %v3900, 0.2
    %v3909 = vmul.f32 %v3901, 0.2
    %v3910 = vsel %vm3902, %v3898, %v3906
    %v3911 = vsel %vm3903, %v3899, %v3907
    %v3912 = vsel %vm3904, %v3900, %v3908
    %v3913 = vsel %vm3905, %v3901, %v3909
    %3918 = vrot.lane.b32.xlu0 %v3637, 1
    %v3919 = vpop.permute.xlu0 %3918
    %3920 = vrot.lane.b32.xlu0 %v3638, 1
    %v3921 = vpop.permute.xlu0 %3920
    %3922 = vrot.lane.b32.xlu0 %v3639, 1
    %v3923 = vpop.permute.xlu0 %3922
    %3924 = vrot.lane.b32.xlu0 %v3640, 1
    %v3925 = vpop.permute.xlu0 %3924
    %3930 = vst.msk [vmem:[#allocation2 + $0x1] sm:$0xff] %vm147, %v3919
    %3931 = vst.msk [vmem:[#allocation2 + $0x9] sm:$0xff] %vm147, %v3921
    %3932 = vst.msk [vmem:[#allocation2 + $0x61] sm:$0xff] %vm147, %v3923
    %3933 = vst.msk [vmem:[#allocation2 + $0x69] sm:$0xff] %vm147, %v3925
    %3934 = vst.msk [vmem:[#allocation2 - $0x1] sm:$0x2] %vm152, %v3919
    %3935 = vst.msk [vmem:[#allocation2 + $0x5f] sm:$0x2] %vm152, %v3923
    %3936 = vst.msk [vmem:[#allocation2 + $0xb] sm:$0x40] %vm155, %v3921
    %3937 = vst.msk [vmem:[#allocation2 + $0x6b] sm:$0x40] %vm155, %v3925
    %3942 = vrot.lane.b32.xlu0 %v3728, 1
    %v3943 = vpop.permute.xlu0 %3942
    %3944 = vrot.lane.b32.xlu0 %v3729, 1
    %v3945 = vpop.permute.xlu0 %3944
    %3946 = vrot.lane.b32.xlu0 %v3730, 1
    %v3947 = vpop.permute.xlu0 %3946
    %3948 = vrot.lane.b32.xlu0 %v3731, 1
    %v3949 = vpop.permute.xlu0 %3948
    %3954 = vst.msk [vmem:[%s174 + $0x1] sm:$0xff] %vm147, %v3943
    %3955 = vst.msk [vmem:[%s174 + $0x9] sm:$0xff] %vm147, %v3945
    %3956 = vst.msk [vmem:[%s174 + $0x61] sm:$0xff] %vm147, %v3947
    %3957 = vst.msk [vmem:[%s174 + $0x69] sm:$0xff] %vm147, %v3949
    %3958 = vst.msk [vmem:[%s174 - $0x1] sm:$0x2] %vm152, %v3943
    %3959 = vst.msk [vmem:[%s174 + $0x5f] sm:$0x2] %vm152, %v3947
    %3960 = vst.msk [vmem:[%s174 + $0xb] sm:$0x40] %vm155, %v3945
    %3961 = vst.msk [vmem:[%s174 + $0x6b] sm:$0x40] %vm155, %v3949
    %3966 = vrot.lane.b32.xlu0 %v3819, 1
    %v3967 = vpop.permute.xlu0 %3966
    %3968 = vrot.lane.b32.xlu0 %v3820, 1
    %v3969 = vpop.permute.xlu0 %3968
    %3970 = vrot.lane.b32.xlu0 %v3821, 1
    %v3971 = vpop.permute.xlu0 %3970
    %3972 = vrot.lane.b32.xlu0 %v3822, 1
    %v3973 = vpop.permute.xlu0 %3972
    %3978 = vst.msk [vmem:[%s199 + $0x1] sm:$0xff] %vm147, %v3967
    %3979 = vst.msk [vmem:[%s199 + $0x9] sm:$0xff] %vm147, %v3969
    %3980 = vst.msk [vmem:[%s199 + $0x61] sm:$0xff] %vm147, %v3971
    %3981 = vst.msk [vmem:[%s199 + $0x69] sm:$0xff] %vm147, %v3973
    %3982 = vst.msk [vmem:[%s199 - $0x1] sm:$0x2] %vm152, %v3967
    %3983 = vst.msk [vmem:[%s199 + $0x5f] sm:$0x2] %vm152, %v3971
    %3984 = vst.msk [vmem:[%s199 + $0xb] sm:$0x40] %vm155, %v3969
    %3985 = vst.msk [vmem:[%s199 + $0x6b] sm:$0x40] %vm155, %v3973
    %3990 = vrot.lane.b32.xlu0 %v3910, 1
    %v3991 = vpop.permute.xlu0 %3990
    %3992 = vrot.lane.b32.xlu0 %v3911, 1
    %v3993 = vpop.permute.xlu0 %3992
    %3994 = vrot.lane.b32.xlu0 %v3912, 1
    %v3995 = vpop.permute.xlu0 %3994
    %3996 = vrot.lane.b32.xlu0 %v3913, 1
    %v3997 = vpop.permute.xlu0 %3996
    %4002 = vst.msk [vmem:[%s224 + $0x1] sm:$0xff] %vm147, %v3991
    %4003 = vst.msk [vmem:[%s224 + $0x9] sm:$0xff] %vm147, %v3993
    %4004 = vst.msk [vmem:[%s224 + $0x61] sm:$0xff] %vm147, %v3995
    %4005 = vst.msk [vmem:[%s224 + $0x69] sm:$0xff] %vm147, %v3997
    %4006 = vst.msk [vmem:[%s224 - $0x1] sm:$0x2] %vm152, %v3991
    %4007 = vst.msk [vmem:[%s224 + $0x5f] sm:$0x2] %vm152, %v3995
    %4008 = vst.msk [vmem:[%s224 + $0xb] sm:$0x40] %vm155, %v3993
    %4009 = vst.msk [vmem:[%s224 + $0x6b] sm:$0x40] %vm155, %v3997
    %v4010 = vld [vmem:[#allocation2] sm:$0xff]
    %v4011 = vld [vmem:[#allocation2 + $0x8] sm:$0xff]
    %v4012 = vld [vmem:[#allocation2 + $0x10] sm:$0x3]
    %v4013 = vld [vmem:[#allocation2 + $0x18] sm:$0xff]
    %v4014 = vld [vmem:[#allocation2 + $0x20] sm:$0xff]
    %v4015 = vld [vmem:[#allocation2 + $0x28] sm:$0x3]
    %v4016 = vld [vmem:[#allocation2 + $0x30] sm:$0xff]
    %v4017 = vld [vmem:[#allocation2 + $0x38] sm:$0xff]
    %v4018 = vld [vmem:[#allocation2 + $0x40] sm:$0x3]
    %v4019 = vld [vmem:[#allocation2 + $0x48] sm:$0xff]
    %v4020 = vld [vmem:[#allocation2 + $0x50] sm:$0xff]
    %v4021 = vld [vmem:[#allocation2 + $0x58] sm:$0x3]
    %v4022 = vld [vmem:[#allocation2 + $0x60] sm:$0xff]
    %v4023 = vld [vmem:[#allocation2 + $0x68] sm:$0xff]
    %v4024 = vld [vmem:[#allocation2 + $0x70] sm:$0x3]
    %v4025 = vld [vmem:[#allocation2 + $0x78] sm:$0xff]
    %v4026 = vld [vmem:[#allocation2 + $0x80] sm:$0xff]
    %v4027 = vld [vmem:[#allocation2 + $0x88] sm:$0x3]
    %v4028 = vld [vmem:[#allocation2 + $0x90] sm:$0xff]
    %v4029 = vld [vmem:[#allocation2 + $0x98] sm:$0xff]
    %v4030 = vld [vmem:[#allocation2 + $0xa0] sm:$0x3]
    %v4031 = vld [vmem:[#allocation2 + $0xa8] sm:$0xff]
    %v4032 = vld [vmem:[#allocation2 + $0xb0] sm:$0xff]
    %v4033 = vld [vmem:[#allocation2 + $0xb8] sm:$0x3]
    %4058 = vrot.lane.b32.xlu0 %v4010, 126
    %v4059 = vpop.permute.xlu0 %4058
    %4060 = vrot.lane.b32.xlu0 %v4011, 126
    %v4061 = vpop.permute.xlu0 %4060
    %4062 = vrot.lane.b32.xlu0 %v4012, 126
    %v4063 = vpop.permute.xlu0 %4062
    %4064 = vrot.lane.b32.xlu0 %v4013, 126
    %v4065 = vpop.permute.xlu0 %4064
    %4066 = vrot.lane.b32.xlu0 %v4014, 126
    %v4067 = vpop.permute.xlu0 %4066
    %4068 = vrot.lane.b32.xlu0 %v4015, 126
    %v4069 = vpop.permute.xlu0 %4068
    %4070 = vrot.lane.b32.xlu0 %v4016, 126
    %v4071 = vpop.permute.xlu0 %4070
    %4072 = vrot.lane.b32.xlu0 %v4017, 126
    %v4073 = vpop.permute.xlu0 %4072
    %4074 = vrot.lane.b32.xlu0 %v4018, 126
    %v4075 = vpop.permute.xlu0 %4074
    %4076 = vrot.lane.b32.xlu0 %v4019, 126
    %v4077 = vpop.permute.xlu0 %4076
    %4078 = vrot.lane.b32.xlu0 %v4020, 126
    %v4079 = vpop.permute.xlu0 %4078
    %4080 = vrot.lane.b32.xlu0 %v4021, 126
    %v4081 = vpop.permute.xlu0 %4080
    %4082 = vrot.lane.b32.xlu0 %v4022, 126
    %v4083 = vpop.permute.xlu0 %4082
    %4084 = vrot.lane.b32.xlu0 %v4023, 126
    %v4085 = vpop.permute.xlu0 %4084
    %4086 = vrot.lane.b32.xlu0 %v4024, 126
    %v4087 = vpop.permute.xlu0 %4086
    %4088 = vrot.lane.b32.xlu0 %v4025, 126
    %v4089 = vpop.permute.xlu0 %4088
    %4090 = vrot.lane.b32.xlu0 %v4026, 126
    %v4091 = vpop.permute.xlu0 %4090
    %4092 = vrot.lane.b32.xlu0 %v4027, 126
    %v4093 = vpop.permute.xlu0 %4092
    %4094 = vrot.lane.b32.xlu0 %v4028, 126
    %v4095 = vpop.permute.xlu0 %4094
    %4096 = vrot.lane.b32.xlu0 %v4029, 126
    %v4097 = vpop.permute.xlu0 %4096
    %4098 = vrot.lane.b32.xlu0 %v4030, 126
    %v4099 = vpop.permute.xlu0 %4098
    %4100 = vrot.lane.b32.xlu0 %v4031, 126
    %v4101 = vpop.permute.xlu0 %4100
    %4102 = vrot.lane.b32.xlu0 %v4032, 126
    %v4103 = vpop.permute.xlu0 %4102
    %4104 = vrot.lane.b32.xlu0 %v4033, 126
    %v4105 = vpop.permute.xlu0 %4104
    %4130 = vst.msk [vmem:[#allocation2] sm:$0xff] %vm353, %v4059
    %4131 = vst.msk [vmem:[#allocation2 + $0x8] sm:$0xff] %vm353, %v4061
    %4132 = vst.msk [vmem:[#allocation2 + $0x10] sm:$0x3] %vm356, %v4063
    %4133 = vst.msk [vmem:[#allocation2 + $0x18] sm:$0xff] %vm353, %v4065
    %4134 = vst.msk [vmem:[#allocation2 + $0x20] sm:$0xff] %vm353, %v4067
    %4135 = vst.msk [vmem:[#allocation2 + $0x28] sm:$0x3] %vm356, %v4069
    %4136 = vst.msk [vmem:[#allocation2 + $0x30] sm:$0xff] %vm353, %v4071
    %4137 = vst.msk [vmem:[#allocation2 + $0x38] sm:$0xff] %vm353, %v4073
    %4138 = vst.msk [vmem:[#allocation2 + $0x40] sm:$0x3] %vm356, %v4075
    %4139 = vst.msk [vmem:[#allocation2 + $0x48] sm:$0xff] %vm353, %v4077
    %4140 = vst.msk [vmem:[#allocation2 + $0x50] sm:$0xff] %vm353, %v4079
    %4141 = vst.msk [vmem:[#allocation2 + $0x58] sm:$0x3] %vm356, %v4081
    %4142 = vst.msk [vmem:[#allocation2 + $0x60] sm:$0xff] %vm353, %v4083
    %4143 = vst.msk [vmem:[#allocation2 + $0x68] sm:$0xff] %vm353, %v4085
    %4144 = vst.msk [vmem:[#allocation2 + $0x70] sm:$0x3] %vm356, %v4087
    %4145 = vst.msk [vmem:[#allocation2 + $0x78] sm:$0xff] %vm353, %v4089
    %4146 = vst.msk [vmem:[#allocation2 + $0x80] sm:$0xff] %vm353, %v4091
    %4147 = vst.msk [vmem:[#allocation2 + $0x88] sm:$0x3] %vm356, %v4093
    %4148 = vst.msk [vmem:[#allocation2 + $0x90] sm:$0xff] %vm353, %v4095
    %4149 = vst.msk [vmem:[#allocation2 + $0x98] sm:$0xff] %vm353, %v4097
    %4150 = vst.msk [vmem:[#allocation2 + $0xa0] sm:$0x3] %vm356, %v4099
    %4151 = vst.msk [vmem:[#allocation2 + $0xa8] sm:$0xff] %vm353, %v4101
    %4152 = vst.msk [vmem:[#allocation2 + $0xb0] sm:$0xff] %vm353, %v4103
    %4153 = vst.msk [vmem:[#allocation2 + $0xb8] sm:$0x3] %vm356, %v4105
    %v4154 = vld [vmem:[#allocation2] sm:$0xff]
    %v4155 = vld [vmem:[#allocation2 + $0x8] sm:$0xff]
    %v4156 = vld [vmem:[#allocation2 + $0x10] sm:$0x3]
    %v4157 = vld [vmem:[#allocation2 + $0x18] sm:$0xff]
    %v4158 = vld [vmem:[#allocation2 + $0x20] sm:$0xff]
    %v4159 = vld [vmem:[#allocation2 + $0x28] sm:$0x3]
    %v4160 = vld [vmem:[#allocation2 + $0x30] sm:$0xff]
    %v4161 = vld [vmem:[#allocation2 + $0x38] sm:$0xff]
    %v4162 = vld [vmem:[#allocation2 + $0x40] sm:$0x3]
    %v4163 = vld [vmem:[#allocation2 + $0x48] sm:$0xff]
    %v4164 = vld [vmem:[#allocation2 + $0x50] sm:$0xff]
    %v4165 = vld [vmem:[#allocation2 + $0x58] sm:$0x3]
    %v4166 = vld [vmem:[#allocation2 + $0x60] sm:$0xff]
    %v4167 = vld [vmem:[#allocation2 + $0x68] sm:$0xff]
    %v4168 = vld [vmem:[#allocation2 + $0x70] sm:$0x3]
    %v4169 = vld [vmem:[#allocation2 + $0x78] sm:$0xff]
    %v4170 = vld [vmem:[#allocation2 + $0x80] sm:$0xff]
    %v4171 = vld [vmem:[#allocation2 + $0x88] sm:$0x3]
    %v4172 = vld [vmem:[#allocation2 + $0x90] sm:$0xff]
    %v4173 = vld [vmem:[#allocation2 + $0x98] sm:$0xff]
    %v4174 = vld [vmem:[#allocation2 + $0xa0] sm:$0x3]
    %v4175 = vld [vmem:[#allocation2 + $0xa8] sm:$0xff]
    %v4176 = vld [vmem:[#allocation2 + $0xb0] sm:$0xff]
    %v4177 = vld [vmem:[#allocation2 + $0xb8] sm:$0x3]
    %4202 = vrot.lane.b32.xlu0 %v4154, 2
    %v4203 = vpop.permute.xlu0 %4202
    %4204 = vrot.lane.b32.xlu0 %v4155, 2
    %v4205 = vpop.permute.xlu0 %4204
    %4206 = vrot.lane.b32.xlu0 %v4156, 2
    %v4207 = vpop.permute.xlu0 %4206
    %4208 = vrot.lane.b32.xlu0 %v4157, 2
    %v4209 = vpop.permute.xlu0 %4208
    %4210 = vrot.lane.b32.xlu0 %v4158, 2
    %v4211 = vpop.permute.xlu0 %4210
    %4212 = vrot.lane.b32.xlu0 %v4159, 2
    %v4213 = vpop.permute.xlu0 %4212
    %4214 = vrot.lane.b32.xlu0 %v4160, 2
    %v4215 = vpop.permute.xlu0 %4214
    %4216 = vrot.lane.b32.xlu0 %v4161, 2
    %v4217 = vpop.permute.xlu0 %4216
    %4218 = vrot.lane.b32.xlu0 %v4162, 2
    %v4219 = vpop.permute.xlu0 %4218
    %4220 = vrot.lane.b32.xlu0 %v4163, 2
    %v4221 = vpop.permute.xlu0 %4220
    %4222 = vrot.lane.b32.xlu0 %v4164, 2
    %v4223 = vpop.permute.xlu0 %4222
    %4224 = vrot.lane.b32.xlu0 %v4165, 2
    %v4225 = vpop.permute.xlu0 %4224
    %4226 = vrot.lane.b32.xlu0 %v4166, 2
    %v4227 = vpop.permute.xlu0 %4226
    %4228 = vrot.lane.b32.xlu0 %v4167, 2
    %v4229 = vpop.permute.xlu0 %4228
    %4230 = vrot.lane.b32.xlu0 %v4168, 2
    %v4231 = vpop.permute.xlu0 %4230
    %4232 = vrot.lane.b32.xlu0 %v4169, 2
    %v4233 = vpop.permute.xlu0 %4232
    %4234 = vrot.lane.b32.xlu0 %v4170, 2
    %v4235 = vpop.permute.xlu0 %4234
    %4236 = vrot.lane.b32.xlu0 %v4171, 2
    %v4237 = vpop.permute.xlu0 %4236
    %4238 = vrot.lane.b32.xlu0 %v4172, 2
    %v4239 = vpop.permute.xlu0 %4238
    %4240 = vrot.lane.b32.xlu0 %v4173, 2
    %v4241 = vpop.permute.xlu0 %4240
    %4242 = vrot.lane.b32.xlu0 %v4174, 2
    %v4243 = vpop.permute.xlu0 %4242
    %4244 = vrot.lane.b32.xlu0 %v4175, 2
    %v4245 = vpop.permute.xlu0 %4244
    %4246 = vrot.lane.b32.xlu0 %v4176, 2
    %v4247 = vpop.permute.xlu0 %4246
    %4248 = vrot.lane.b32.xlu0 %v4177, 2
    %v4249 = vpop.permute.xlu0 %4248
    %4274 = vst.msk [vmem:[#allocation2] sm:$0xff] %vm499, %v4203
    %4275 = vst.msk [vmem:[#allocation2 + $0x8] sm:$0xff] %vm499, %v4205
    %4276 = vst.msk [vmem:[#allocation2 + $0x10] sm:$0x3] %vm502, %v4207
    %4277 = vst.msk [vmem:[#allocation2 + $0x18] sm:$0xff] %vm499, %v4209
    %4278 = vst.msk [vmem:[#allocation2 + $0x20] sm:$0xff] %vm499, %v4211
    %4279 = vst.msk [vmem:[#allocation2 + $0x28] sm:$0x3] %vm502, %v4213
    %4280 = vst.msk [vmem:[#allocation2 + $0x30] sm:$0xff] %vm499, %v4215
    %4281 = vst.msk [vmem:[#allocation2 + $0x38] sm:$0xff] %vm499, %v4217
    %4282 = vst.msk [vmem:[#allocation2 + $0x40] sm:$0x3] %vm502, %v4219
    %4283 = vst.msk [vmem:[#allocation2 + $0x48] sm:$0xff] %vm499, %v4221
    %4284 = vst.msk [vmem:[#allocation2 + $0x50] sm:$0xff] %vm499, %v4223
    %4285 = vst.msk [vmem:[#allocation2 + $0x58] sm:$0x3] %vm502, %v4225
    %4286 = vst.msk [vmem:[#allocation2 + $0x60] sm:$0xff] %vm499, %v4227
    %4287 = vst.msk [vmem:[#allocation2 + $0x68] sm:$0xff] %vm499, %v4229
    %4288 = vst.msk [vmem:[#allocation2 + $0x70] sm:$0x3] %vm502, %v4231
    %4289 = vst.msk [vmem:[#allocation2 + $0x78] sm:$0xff] %vm499, %v4233
    %4290 = vst.msk [vmem:[#allocation2 + $0x80] sm:$0xff] %vm499, %v4235
    %4291 = vst.msk [vmem:[#allocation2 + $0x88] sm:$0x3] %vm502, %v4237
    %4292 = vst.msk [vmem:[#allocation2 + $0x90] sm:$0xff] %vm499, %v4239
    %4293 = vst.msk [vmem:[#allocation2 + $0x98] sm:$0xff] %vm499, %v4241
    %4294 = vst.msk [vmem:[#allocation2 + $0xa0] sm:$0x3] %vm502, %v4243
    %4295 = vst.msk [vmem:[#allocation2 + $0xa8] sm:$0xff] %vm499, %v4245
    %4296 = vst.msk [vmem:[#allocation2 + $0xb0] sm:$0xff] %vm499, %v4247
    %4297 = vst.msk [vmem:[#allocation2 + $0xb8] sm:$0x3] %vm502, %v4249
    %v4298 = vld [vmem:[#allocation2] sm:$0xff]
    %v4299 = vld [vmem:[#allocation2 + $0x8] sm:$0xff]
    %v4300 = vld [vmem:[#allocation2 + $0x60] sm:$0xff]
    %v4301 = vld [vmem:[#allocation2 + $0x68] sm:$0xff]
    %s4302 = sld [smem:[#allocation11]]
    %v4303 = vstv %s4302
    %v4304 = vmul.f32 %v4303, %v4298
    %v4305 = vmul.f32 %v4303, %v4299
    %v4306 = vmul.f32 %v4303, %v4300
    %v4307 = vmul.f32 %v4303, %v4301
    %v4308 = vadd.f32 %v4304, 0.0
    %v4309 = vadd.f32 %v4305, 0.0
    %v4310 = vadd.f32 %v4306, 0.0
    %v4311 = vadd.f32 %v4307, 0.0
    %s4312 = sld [smem:[#allocation11 + $0x1]]
    %v4313 = vstv %s4312
    %v4314 = vmul.f32 %v4313, %v4298
    %v4315 = vmul.f32 %v4313, %v4299
    %v4316 = vmul.f32 %v4313, %v4300
    %v4317 = vmul.f32 %v4313, %v4301
    %v4318 = vadd.f32 %v4314, 0.0
    %v4319 = vadd.f32 %v4315, 0.0
    %v4320 = vadd.f32 %v4316, 0.0
    %v4321 = vadd.f32 %v4317, 0.0
    %s4322 = sld [smem:[#allocation11 + $0x2]]
    %v4323 = vstv %s4322
    %v4324 = vmul.f32 %v4323, %v4298
    %v4325 = vmul.f32 %v4323, %v4299
    %v4326 = vmul.f32 %v4323, %v4300
    %v4327 = vmul.f32 %v4323, %v4301
    %v4328 = vadd.f32 %v4324, 0.0
    %v4329 = vadd.f32 %v4325, 0.0
    %v4330 = vadd.f32 %v4326, 0.0
    %v4331 = vadd.f32 %v4327, 0.0
    %s4332 = sld [smem:[#allocation11 + $0x3]]
    %v4333 = vstv %s4332
    %v4334 = vmul.f32 %v4333, %v4298
    %v4335 = vmul.f32 %v4333, %v4299
    %v4336 = vmul.f32 %v4333, %v4300
    %v4337 = vmul.f32 %v4333, %v4301
    %v4338 = vadd.f32 %v4334, 0.0
    %v4339 = vadd.f32 %v4335, 0.0
    %v4340 = vadd.f32 %v4336, 0.0
    %v4341 = vadd.f32 %v4337, 0.0
    %s4342 = sld [smem:[#allocation11 + $0x10]]
    %v4343 = vstv %s4342
    %v4344 = vmul.f32 %v4343, %v4298
    %v4345 = vmul.f32 %v4343, %v4299
    %v4346 = vmul.f32 %v4343, %v4300
    %v4347 = vmul.f32 %v4343, %v4301
    %4352 = vrot.lane.b32.xlu0 %v4344, 127
    %v4353 = vpop.permute.xlu0 %4352
    %4354 = vrot.lane.b32.xlu0 %v4345, 127
    %v4355 = vpop.permute.xlu0 %4354
    %4356 = vrot.lane.b32.xlu0 %v4346, 127
    %v4357 = vpop.permute.xlu0 %4356
    %4358 = vrot.lane.b32.xlu0 %v4347, 127
    %v4359 = vpop.permute.xlu0 %4358
    %v4364 = vadd.f32 %v4308, %v4353
    %v4365 = vadd.f32 %v4309, %v4355
    %v4366 = vadd.f32 %v4310, %v4357
    %v4367 = vadd.f32 %v4311, %v4359
    %s4368 = sld [smem:[#allocation11 + $0x11]]
    %v4369 = vstv %s4368
    %v4370 = vmul.f32 %v4369, %v4298
    %v4371 = vmul.f32 %v4369, %v4299
    %v4372 = vmul.f32 %v4369, %v4300
    %v4373 = vmul.f32 %v4369, %v4301
    %4378 = vrot.lane.b32.xlu0 %v4370, 127
    %v4379 = vpop.permute.xlu0 %4378
    %4380 = vrot.lane.b32.xlu0 %v4371, 127
    %v4381 = vpop.permute.xlu0 %4380
    %4382 = vrot.lane.b32.xlu0 %v4372, 127
    %v4383 = vpop.permute.xlu0 %4382
    %4384 = vrot.lane.b32.xlu0 %v4373, 127
    %v4385 = vpop.permute.xlu0 %4384
    %v4390 = vadd.f32 %v4318, %v4379
    %v4391 = vadd.f32 %v4319, %v4381
    %v4392 = vadd.f32 %v4320, %v4383
    %v4393 = vadd.f32 %v4321, %v4385
    %s4394 = sld [smem:[#allocation11 + $0x12]]
    %v4395 = vstv %s4394
    %v4396 = vmul.f32 %v4395, %v4298
    %v4397 = vmul.f32 %v4395, %v4299
    %v4398 = vmul.f32 %v4395, %v4300
    %v4399 = vmul.f32 %v4395, %v4301
    %4404 = vrot.lane.b32.xlu0 %v4396, 127
    %v4405 = vpop.permute.xlu0 %4404
    %4406 = vrot.lane.b32.xlu0 %v4397, 127
    %v4407 = vpop.permute.xlu0 %4406
    %4408 = vrot.lane.b32.xlu0 %v4398, 127
    %v4409 = vpop.permute.xlu0 %4408
    %4410 = vrot.lane.b32.xlu0 %v4399, 127
    %v4411 = vpop.permute.xlu0 %4410
    %v4416 = vadd.f32 %v4328, %v4405
    %v4417 = vadd.f32 %v4329, %v4407
    %v4418 = vadd.f32 %v4330, %v4409
    %v4419 = vadd.f32 %v4331, %v4411
    %s4420 = sld [smem:[#allocation11 + $0x13]]
    %v4421 = vstv %s4420
    %v4422 = vmul.f32 %v4421, %v4298
    %v4423 = vmul.f32 %v4421, %v4299
    %v4424 = vmul.f32 %v4421, %v4300
    %v4425 = vmul.f32 %v4421, %v4301
    %4430 = vrot.lane.b32.xlu0 %v4422, 127
    %v4431 = vpop.permute.xlu0 %4430
    %4432 = vrot.lane.b32.xlu0 %v4423, 127
    %v4433 = vpop.permute.xlu0 %4432
    %4434 = vrot.lane.b32.xlu0 %v4424, 127
    %v4435 = vpop.permute.xlu0 %4434
    %4436 = vrot.lane.b32.xlu0 %v4425, 127
    %v4437 = vpop.permute.xlu0 %4436
    %v4442 = vadd.f32 %v4338, %v4431
    %v4443 = vadd.f32 %v4339, %v4433
    %v4444 = vadd.f32 %v4340, %v4435
    %v4445 = vadd.f32 %v4341, %v4437
    %s4446 = sld [smem:[#allocation11 + $0x20]]
    %v4447 = vstv %s4446
    %v4448 = vmul.f32 %v4447, %v4298
    %v4449 = vmul.f32 %v4447, %v4299
    %v4450 = vmul.f32 %v4447, %v4300
    %v4451 = vmul.f32 %v4447, %v4301
    %4456 = vrot.lane.b32.xlu0 %v4448, 126
    %v4457 = vpop.permute.xlu0 %4456
    %4458 = vrot.lane.b32.xlu0 %v4449, 126
    %v4459 = vpop.permute.xlu0 %4458
    %4460 = vrot.lane.b32.xlu0 %v4450, 126
    %v4461 = vpop.permute.xlu0 %4460
    %4462 = vrot.lane.b32.xlu0 %v4451, 126
    %v4463 = vpop.permute.xlu0 %4462
    %v4468 = vadd.f32 %v4364, %v4457
    %v4469 = vadd.f32 %v4365, %v4459
    %v4470 = vadd.f32 %v4366, %v4461
    %v4471 = vadd.f32 %v4367, %v4463
    %s4472 = sld [smem:[#allocation11 + $0x21]]
    %v4473 = vstv %s4472
    %v4474 = vmul.f32 %v4473, %v4298
    %v4475 = vmul.f32 %v4473, %v4299
    %v4476 = vmul.f32 %v4473, %v4300
    %v4477 = vmul.f32 %v4473, %v4301
    %4482 = vrot.lane.b32.xlu0 %v4474, 126
    %v4483 = vpop.permute.xlu0 %4482
    %4484 = vrot.lane.b32.xlu0 %v4475, 126
    %v4485 = vpop.permute.xlu0 %4484
    %4486 = vrot.lane.b32.xlu0 %v4476, 126
    %v4487 = vpop.permute.xlu0 %4486
    %4488 = vrot.lane.b32.xlu0 %v4477, 126
    %v4489 = vpop.permute.xlu0 %4488
    %v4494 = vadd.f32 %v4390, %v4483
    %v4495 = vadd.f32 %v4391, %v4485
    %v4496 = vadd.f32 %v4392, %v4487
    %v4497 = vadd.f32 %v4393, %v4489
    %s4498 = sld [smem:[#allocation11 + $0x22]]
    %v4499 = vstv %s4498
    %v4500 = vmul.f32 %v4499, %v4298
    %v4501 = vmul.f32 %v4499, %v4299
    %v4502 = vmul.f32 %v4499, %v4300
    %v4503 = vmul.f32 %v4499, %v4301
    %4508 = vrot.lane.b32.xlu0 %v4500, 126
    %v4509 = vpop.permute.xlu0 %4508
    %4510 = vrot.lane.b32.xlu0 %v4501, 126
    %v4511 = vpop.permute.xlu0 %4510
    %4512 = vrot.lane.b32.xlu0 %v4502, 126
    %v4513 = vpop.permute.xlu0 %4512
    %4514 = vrot.lane.b32.xlu0 %v4503, 126
    %v4515 = vpop.permute.xlu0 %4514
    %v4520 = vadd.f32 %v4416, %v4509
    %v4521 = vadd.f32 %v4417, %v4511
    %v4522 = vadd.f32 %v4418, %v4513
    %v4523 = vadd.f32 %v4419, %v4515
    %s4524 = sld [smem:[#allocation11 + $0x23]]
    %v4525 = vstv %s4524
    %v4526 = vmul.f32 %v4525, %v4298
    %v4527 = vmul.f32 %v4525, %v4299
    %v4528 = vmul.f32 %v4525, %v4300
    %v4529 = vmul.f32 %v4525, %v4301
    %4534 = vrot.lane.b32.xlu0 %v4526, 126
    %v4535 = vpop.permute.xlu0 %4534
    %4536 = vrot.lane.b32.xlu0 %v4527, 126
    %v4537 = vpop.permute.xlu0 %4536
    %4538 = vrot.lane.b32.xlu0 %v4528, 126
    %v4539 = vpop.permute.xlu0 %4538
    %4540 = vrot.lane.b32.xlu0 %v4529, 126
    %v4541 = vpop.permute.xlu0 %4540
    %v4546 = vadd.f32 %v4442, %v4535
    %v4547 = vadd.f32 %v4443, %v4537
    %v4548 = vadd.f32 %v4444, %v4539
    %v4549 = vadd.f32 %v4445, %v4541
    %v4550 = vld [vmem:[#allocation2 + $0x1] sm:$0xff]
    %v4551 = vld [vmem:[#allocation2 + $0x9] sm:$0xff]
    %v4552 = vld [vmem:[#allocation2 + $0x61] sm:$0xff]
    %v4553 = vld [vmem:[#allocation2 + $0x69] sm:$0xff]
    %s4554 = sld [smem:[#allocation11 + $0x30]]
    %v4555 = vstv %s4554
    %v4556 = vmul.f32 %v4555, %v4550
    %v4557 = vmul.f32 %v4555, %v4551
    %v4558 = vmul.f32 %v4555, %v4552
    %v4559 = vmul.f32 %v4555, %v4553
    %v4560 = vadd.f32 %v4468, %v4556
    %v4561 = vadd.f32 %v4469, %v4557
    %v4562 = vadd.f32 %v4470, %v4558
    %v4563 = vadd.f32 %v4471, %v4559
    %s4564 = sld [smem:[#allocation11 + $0x31]]
    %v4565 = vstv %s4564
    %v4566 = vmul.f32 %v4565, %v4550
    %v4567 = vmul.f32 %v4565, %v4551
    %v4568 = vmul.f32 %v4565, %v4552
    %v4569 = vmul.f32 %v4565, %v4553
    %v4570 = vadd.f32 %v4494, %v4566
    %v4571 = vadd.f32 %v4495, %v4567
    %v4572 = vadd.f32 %v4496, %v4568
    %v4573 = vadd.f32 %v4497, %v4569
    %s4574 = sld [smem:[#allocation11 + $0x32]]
    %v4575 = vstv %s4574
    %v4576 = vmul.f32 %v4575, %v4550
    %v4577 = vmul.f32 %v4575, %v4551
    %v4578 = vmul.f32 %v4575, %v4552
    %v4579 = vmul.f32 %v4575, %v4553
    %v4580 = vadd.f32 %v4520, %v4576
    %v4581 = vadd.f32 %v4521, %v4577
    %v4582 = vadd.f32 %v4522, %v4578
    %v4583 = vadd.f32 %v4523, %v4579
    %s4584 = sld [smem:[#allocation11 + $0x33]]
    %v4585 = vstv %s4584
    %v4586 = vmul.f32 %v4585, %v4550
    %v4587 = vmul.f32 %v4585, %v4551
    %v4588 = vmul.f32 %v4585, %v4552
    %v4589 = vmul.f32 %v4585, %v4553
    %v4590 = vadd.f32 %v4546, %v4586
    %v4591 = vadd.f32 %v4547, %v4587
    %v4592 = vadd.f32 %v4548, %v4588
    %v4593 = vadd.f32 %v4549, %v4589
    %s4594 = sld [smem:[#allocation11 + $0x40]]
    %v4595 = vstv %s4594
    %v4596 = vmul.f32 %v4595, %v4550
    %v4597 = vmul.f32 %v4595, %v4551
    %v4598 = vmul.f32 %v4595, %v4552
    %v4599 = vmul.f32 %v4595, %v4553
    %4604 = vrot.lane.b32.xlu0 %v4596, 127
    %v4605 = vpop.permute.xlu0 %4604
    %4606 = vrot.lane.b32.xlu0 %v4597, 127
    %v4607 = vpop.permute.xlu0 %4606
    %4608 = vrot.lane.b32.xlu0 %v4598, 127
    %v4609 = vpop.permute.xlu0 %4608
    %4610 = vrot.lane.b32.xlu0 %v4599, 127
    %v4611 = vpop.permute.xlu0 %4610
    %v4616 = vadd.f32 %v4560, %v4605
    %v4617 = vadd.f32 %v4561, %v4607
    %v4618 = vadd.f32 %v4562, %v4609
    %v4619 = vadd.f32 %v4563, %v4611
    %s4620 = sld [smem:[#allocation11 + $0x41]]
    %v4621 = vstv %s4620
    %v4622 = vmul.f32 %v4621, %v4550
    %v4623 = vmul.f32 %v4621, %v4551
    %v4624 = vmul.f32 %v4621, %v4552
    %v4625 = vmul.f32 %v4621, %v4553
    %4630 = vrot.lane.b32.xlu0 %v4622, 127
    %v4631 = vpop.permute.xlu0 %4630
    %4632 = vrot.lane.b32.xlu0 %v4623, 127
    %v4633 = vpop.permute.xlu0 %4632
    %4634 = vrot.lane.b32.xlu0 %v4624, 127
    %v4635 = vpop.permute.xlu0 %4634
    %4636 = vrot.lane.b32.xlu0 %v4625, 127
    %v4637 = vpop.permute.xlu0 %4636
    %v4642 = vadd.f32 %v4570, %v4631
    %v4643 = vadd.f32 %v4571, %v4633
    %v4644 = vadd.f32 %v4572, %v4635
    %v4645 = vadd.f32 %v4573, %v4637
    %s4646 = sld [smem:[#allocation11 + $0x42]]
    %v4647 = vstv %s4646
    %v4648 = vmul.f32 %v4647, %v4550
    %v4649 = vmul.f32 %v4647, %v4551
    %v4650 = vmul.f32 %v4647, %v4552
    %v4651 = vmul.f32 %v4647, %v4553
    %4656 = vrot.lane.b32.xlu0 %v4648, 127
    %v4657 = vpop.permute.xlu0 %4656
    %4658 = vrot.lane.b32.xlu0 %v4649, 127
    %v4659 = vpop.permute.xlu0 %4658
    %4660 = vrot.lane.b32.xlu0 %v4650, 127
    %v4661 = vpop.permute.xlu0 %4660
    %4662 = vrot.lane.b32.xlu0 %v4651, 127
    %v4663 = vpop.permute.xlu0 %4662
    %v4668 = vadd.f32 %v4580, %v4657
    %v4669 = vadd.f32 %v4581, %v4659
    %v4670 = vadd.f32 %v4582, %v4661
    %v4671 = vadd.f32 %v4583, %v4663
    %s4672 = sld [smem:[#allocation11 + $0x43]]
    %v4673 = vstv %s4672
    %v4674 = vmul.f32 %v4673, %v4550
    %v4675 = vmul.f32 %v4673, %v4551
    %v4676 = vmul.f32 %v4673, %v4552
    %v4677 = vmul.f32 %v4673, %v4553
    %4682 = vrot.lane.b32.xlu0 %v4674, 127
    %v4683 = vpop.permute.xlu0 %4682
    %4684 = vrot.lane.b32.xlu0 %v4675, 127
    %v4685 = vpop.permute.xlu0 %4684
    %4686 = vrot.lane.b32.xlu0 %v4676, 127
    %v4687 = vpop.permute.xlu0 %4686
    %4688 = vrot.lane.b32.xlu0 %v4677, 127
    %v4689 = vpop.permute.xlu0 %4688
    %v4694 = vadd.f32 %v4590, %v4683
    %v4695 = vadd.f32 %v4591, %v4685
    %v4696 = vadd.f32 %v4592, %v4687
    %v4697 = vadd.f32 %v4593, %v4689
    %s4698 = sld [smem:[#allocation11 + $0x50]]
    %v4699 = vstv %s4698
    %v4700 = vmul.f32 %v4699, %v4550
    %v4701 = vmul.f32 %v4699, %v4551
    %v4702 = vmul.f32 %v4699, %v4552
    %v4703 = vmul.f32 %v4699, %v4553
    %4708 = vrot.lane.b32.xlu0 %v4700, 126
    %v4709 = vpop.permute.xlu0 %4708
    %4710 = vrot.lane.b32.xlu0 %v4701, 126
    %v4711 = vpop.permute.xlu0 %4710
    %4712 = vrot.lane.b32.xlu0 %v4702, 126
    %v4713 = vpop.permute.xlu0 %4712
    %4714 = vrot.lane.b32.xlu0 %v4703, 126
    %v4715 = vpop.permute.xlu0 %4714
    %v4720 = vadd.f32 %v4616, %v4709
    %v4721 = vadd.f32 %v4617, %v4711
    %v4722 = vadd.f32 %v4618, %v4713
    %v4723 = vadd.f32 %v4619, %v4715
    %s4724 = sld [smem:[#allocation11 + $0x51]]
    %v4725 = vstv %s4724
    %v4726 = vmul.f32 %v4725, %v4550
    %v4727 = vmul.f32 %v4725, %v4551
    %v4728 = vmul.f32 %v4725, %v4552
    %v4729 = vmul.f32 %v4725, %v4553
    %4734 = vrot.lane.b32.xlu0 %v4726, 126
    %v4735 = vpop.permute.xlu0 %4734
    %4736 = vrot.lane.b32.xlu0 %v4727, 126
    %v4737 = vpop.permute.xlu0 %4736
    %4738 = vrot.lane.b32.xlu0 %v4728, 126
    %v4739 = vpop.permute.xlu0 %4738
    %4740 = vrot.lane.b32.xlu0 %v4729, 126
    %v4741 = vpop.permute.xlu0 %4740
    %v4746 = vadd.f32 %v4642, %v4735
    %v4747 = vadd.f32 %v4643, %v4737
    %v4748 = vadd.f32 %v4644, %v4739
    %v4749 = vadd.f32 %v4645, %v4741
    %s4750 = sld [smem:[#allocation11 + $0x52]]
    %v4751 = vstv %s4750
    %v4752 = vmul.f32 %v4751, %v4550
    %v4753 = vmul.f32 %v4751, %v4551
    %v4754 = vmul.f32 %v4751, %v4552
    %v4755 = vmul.f32 %v4751, %v4553
    %4760 = vrot.lane.b32.xlu0 %v4752, 126
    %v4761 = vpop.permute.xlu0 %4760
    %4762 = vrot.lane.b32.xlu0 %v4753, 126
    %v4763 = vpop.permute.xlu0 %4762
    %4764 = vrot.lane.b32.xlu0 %v4754, 126
    %v4765 = vpop.permute.xlu0 %4764
    %4766 = vrot.lane.b32.xlu0 %v4755, 126
    %v4767 = vpop.permute.xlu0 %4766
    %v4772 = vadd.f32 %v4668, %v4761
    %v4773 = vadd.f32 %v4669, %v4763
    %v4774 = vadd.f32 %v4670, %v4765
    %v4775 = vadd.f32 %v4671, %v4767
    %s4776 = sld [smem:[#allocation11 + $0x53]]
    %v4777 = vstv %s4776
    %v4778 = vmul.f32 %v4777, %v4550
    %v4779 = vmul.f32 %v4777, %v4551
    %v4780 = vmul.f32 %v4777, %v4552
    %v4781 = vmul.f32 %v4777, %v4553
    %4786 = vrot.lane.b32.xlu0 %v4778, 126
    %v4787 = vpop.permute.xlu0 %4786
    %4788 = vrot.lane.b32.xlu0 %v4779, 126
    %v4789 = vpop.permute.xlu0 %4788
    %4790 = vrot.lane.b32.xlu0 %v4780, 126
    %v4791 = vpop.permute.xlu0 %4790
    %4792 = vrot.lane.b32.xlu0 %v4781, 126
    %v4793 = vpop.permute.xlu0 %4792
    %v4798 = vadd.f32 %v4694, %v4787
    %v4799 = vadd.f32 %v4695, %v4789
    %v4800 = vadd.f32 %v4696, %v4791
    %v4801 = vadd.f32 %v4697, %v4793
    %v4802 = vld [vmem:[#allocation2 + $0x2] sm:$0xff]
    %v4803 = vld [vmem:[#allocation2 + $0xa] sm:$0xff]
    %v4804 = vld [vmem:[#allocation2 + $0x62] sm:$0xff]
    %v4805 = vld [vmem:[#allocation2 + $0x6a] sm:$0xff]
    %s4806 = sld [smem:[#allocation11 + $0x60]]
    %v4807 = vstv %s4806
    %v4808 = vmul.f32 %v4807, %v4802
    %v4809 = vmul.f32 %v4807, %v4803
    %v4810 = vmul.f32 %v4807, %v4804
    %v4811 = vmul.f32 %v4807, %v4805
    %v4812 = vadd.f32 %v4720, %v4808
    %v4813 = vadd.f32 %v4721, %v4809
    %v4814 = vadd.f32 %v4722, %v4810
    %v4815 = vadd.f32 %v4723, %v4811
    %s4816 = sld [smem:[#allocation11 + $0x61]]
    %v4817 = vstv %s4816
    %v4818 = vmul.f32 %v4817, %v4802
    %v4819 = vmul.f32 %v4817, %v4803
    %v4820 = vmul.f32 %v4817, %v4804
    %v4821 = vmul.f32 %v4817, %v4805
    %v4822 = vadd.f32 %v4746, %v4818
    %v4823 = vadd.f32 %v4747, %v4819
    %v4824 = vadd.f32 %v4748, %v4820
    %v4825 = vadd.f32 %v4749, %v4821
    %s4826 = sld [smem:[#allocation11 + $0x62]]
    %v4827 = vstv %s4826
    %v4828 = vmul.f32 %v4827, %v4802
    %v4829 = vmul.f32 %v4827, %v4803
    %v4830 = vmul.f32 %v4827, %v4804
    %v4831 = vmul.f32 %v4827, %v4805
    %v4832 = vadd.f32 %v4772, %v4828
    %v4833 = vadd.f32 %v4773, %v4829
    %v4834 = vadd.f32 %v4774, %v4830
    %v4835 = vadd.f32 %v4775, %v4831
    %s4836 = sld [smem:[#allocation11 + $0x63]]
    %v4837 = vstv %s4836
    %v4838 = vmul.f32 %v4837, %v4802
    %v4839 = vmul.f32 %v4837, %v4803
    %v4840 = vmul.f32 %v4837, %v4804
    %v4841 = vmul.f32 %v4837, %v4805
    %v4842 = vadd.f32 %v4798, %v4838
    %v4843 = vadd.f32 %v4799, %v4839
    %v4844 = vadd.f32 %v4800, %v4840
    %v4845 = vadd.f32 %v4801, %v4841
    %s4846 = sld [smem:[#allocation11 + $0x70]]
    %v4847 = vstv %s4846
    %v4848 = vmul.f32 %v4847, %v4802
    %v4849 = vmul.f32 %v4847, %v4803
    %v4850 = vmul.f32 %v4847, %v4804
    %v4851 = vmul.f32 %v4847, %v4805
    %4856 = vrot.lane.b32.xlu0 %v4848, 127
    %v4857 = vpop.permute.xlu0 %4856
    %4858 = vrot.lane.b32.xlu0 %v4849, 127
    %v4859 = vpop.permute.xlu0 %4858
    %4860 = vrot.lane.b32.xlu0 %v4850, 127
    %v4861 = vpop.permute.xlu0 %4860
    %4862 = vrot.lane.b32.xlu0 %v4851, 127
    %v4863 = vpop.permute.xlu0 %4862
    %v4868 = vadd.f32 %v4812, %v4857
    %v4869 = vadd.f32 %v4813, %v4859
    %v4870 = vadd.f32 %v4814, %v4861
    %v4871 = vadd.f32 %v4815, %v4863
    %s4872 = sld [smem:[#allocation11 + $0x71]]
    %v4873 = vstv %s4872
    %v4874 = vmul.f32 %v4873, %v4802
    %v4875 = vmul.f32 %v4873, %v4803
    %v4876 = vmul.f32 %v4873, %v4804
    %v4877 = vmul.f32 %v4873, %v4805
    %4882 = vrot.lane.b32.xlu0 %v4874, 127
    %v4883 = vpop.permute.xlu0 %4882
    %4884 = vrot.lane.b32.xlu0 %v4875, 127
    %v4885 = vpop.permute.xlu0 %4884
    %4886 = vrot.lane.b32.xlu0 %v4876, 127
    %v4887 = vpop.permute.xlu0 %4886
    %4888 = vrot.lane.b32.xlu0 %v4877, 127
    %v4889 = vpop.permute.xlu0 %4888
    %v4894 = vadd.f32 %v4822, %v4883
    %v4895 = vadd.f32 %v4823, %v4885
    %v4896 = vadd.f32 %v4824, %v4887
    %v4897 = vadd.f32 %v4825, %v4889
    %s4898 = sld [smem:[#allocation11 + $0x72]]
    %v4899 = vstv %s4898
    %v4900 = vmul.f32 %v4899, %v4802
    %v4901 = vmul.f32 %v4899, %v4803
    %v4902 = vmul.f32 %v4899, %v4804
    %v4903 = vmul.f32 %v4899, %v4805
    %4908 = vrot.lane.b32.xlu0 %v4900, 127
    %v4909 = vpop.permute.xlu0 %4908
    %4910 = vrot.lane.b32.xlu0 %v4901, 127
    %v4911 = vpop.permute.xlu0 %4910
    %4912 = vrot.lane.b32.xlu0 %v4902, 127
    %v4913 = vpop.permute.xlu0 %4912
    %4914 = vrot.lane.b32.xlu0 %v4903, 127
    %v4915 = vpop.permute.xlu0 %4914
    %v4920 = vadd.f32 %v4832, %v4909
    %v4921 = vadd.f32 %v4833, %v4911
    %v4922 = vadd.f32 %v4834, %v4913
    %v4923 = vadd.f32 %v4835, %v4915
    %s4924 = sld [smem:[#allocation11 + $0x73]]
    %v4925 = vstv %s4924
    %v4926 = vmul.f32 %v4925, %v4802
    %v4927 = vmul.f32 %v4925, %v4803
    %v4928 = vmul.f32 %v4925, %v4804
    %v4929 = vmul.f32 %v4925, %v4805
    %4934 = vrot.lane.b32.xlu0 %v4926, 127
    %v4935 = vpop.permute.xlu0 %4934
    %4936 = vrot.lane.b32.xlu0 %v4927, 127
    %v4937 = vpop.permute.xlu0 %4936
    %4938 = vrot.lane.b32.xlu0 %v4928, 127
    %v4939 = vpop.permute.xlu0 %4938
    %4940 = vrot.lane.b32.xlu0 %v4929, 127
    %v4941 = vpop.permute.xlu0 %4940
    %v4946 = vadd.f32 %v4842, %v4935
    %v4947 = vadd.f32 %v4843, %v4937
    %v4948 = vadd.f32 %v4844, %v4939
    %v4949 = vadd.f32 %v4845, %v4941
    %s4950 = sld [smem:[#allocation11 + $0x80]]
    %v4951 = vstv %s4950
    %v4952 = vmul.f32 %v4951, %v4802
    %v4953 = vmul.f32 %v4951, %v4803
    %v4954 = vmul.f32 %v4951, %v4804
    %v4955 = vmul.f32 %v4951, %v4805
    %4960 = vrot.lane.b32.xlu0 %v4952, 126
    %v4961 = vpop.permute.xlu0 %4960
    %4962 = vrot.lane.b32.xlu0 %v4953, 126
    %v4963 = vpop.permute.xlu0 %4962
    %4964 = vrot.lane.b32.xlu0 %v4954, 126
    %v4965 = vpop.permute.xlu0 %4964
    %4966 = vrot.lane.b32.xlu0 %v4955, 126
    %v4967 = vpop.permute.xlu0 %4966
    %v4972 = vadd.f32 %v4868, %v4961
    %v4973 = vadd.f32 %v4869, %v4963
    %v4974 = vadd.f32 %v4870, %v4965
    %v4975 = vadd.f32 %v4871, %v4967
    %s4976 = sld [smem:[#allocation11 + $0x81]]
    %v4977 = vstv %s4976
    %v4978 = vmul.f32 %v4977, %v4802
    %v4979 = vmul.f32 %v4977, %v4803
    %v4980 = vmul.f32 %v4977, %v4804
    %v4981 = vmul.f32 %v4977, %v4805
    %4986 = vrot.lane.b32.xlu0 %v4978, 126
    %v4987 = vpop.permute.xlu0 %4986
    %4988 = vrot.lane.b32.xlu0 %v4979, 126
    %v4989 = vpop.permute.xlu0 %4988
    %4990 = vrot.lane.b32.xlu0 %v4980, 126
    %v4991 = vpop.permute.xlu0 %4990
    %4992 = vrot.lane.b32.xlu0 %v4981, 126
    %v4993 = vpop.permute.xlu0 %4992
    %v4998 = vadd.f32 %v4894, %v4987
    %v4999 = vadd.f32 %v4895, %v4989
    %v5000 = vadd.f32 %v4896, %v4991
    %v5001 = vadd.f32 %v4897, %v4993
    %s5002 = sld [smem:[#allocation11 + $0x82]]
    %v5003 = vstv %s5002
    %v5004 = vmul.f32 %v5003, %v4802
    %v5005 = vmul.f32 %v5003, %v4803
    %v5006 = vmul.f32 %v5003, %v4804
    %v5007 = vmul.f32 %v5003, %v4805
    %5012 = vrot.lane.b32.xlu0 %v5004, 126
    %v5013 = vpop.permute.xlu0 %5012
    %5014 = vrot.lane.b32.xlu0 %v5005, 126
    %v5015 = vpop.permute.xlu0 %5014
    %5016 = vrot.lane.b32.xlu0 %v5006, 126
    %v5017 = vpop.permute.xlu0 %5016
    %5018 = vrot.lane.b32.xlu0 %v5007, 126
    %v5019 = vpop.permute.xlu0 %5018
    %v5024 = vadd.f32 %v4920, %v5013
    %v5025 = vadd.f32 %v4921, %v5015
    %v5026 = vadd.f32 %v4922, %v5017
    %v5027 = vadd.f32 %v4923, %v5019
    %s5028 = sld [smem:[#allocation11 + $0x83]]
    %v5029 = vstv %s5028
    %v5030 = vmul.f32 %v5029, %v4802
    %v5031 = vmul.f32 %v5029, %v4803
    %v5032 = vmul.f32 %v5029, %v4804
    %v5033 = vmul.f32 %v5029, %v4805
    %5038 = vrot.lane.b32.xlu0 %v5030, 126
    %v5039 = vpop.permute.xlu0 %5038
    %5040 = vrot.lane.b32.xlu0 %v5031, 126
    %v5041 = vpop.permute.xlu0 %5040
    %5042 = vrot.lane.b32.xlu0 %v5032, 126
    %v5043 = vpop.permute.xlu0 %5042
    %5044 = vrot.lane.b32.xlu0 %v5033, 126
    %v5045 = vpop.permute.xlu0 %5044
    %v5050 = vadd.f32 %v4946, %v5039
    %v5051 = vadd.f32 %v4947, %v5041
    %v5052 = vadd.f32 %v4948, %v5043
    %v5053 = vadd.f32 %v4949, %v5045
    %v5054 = vld [vmem:[%s174] sm:$0xff]
    %v5055 = vld [vmem:[%s174 + $0x8] sm:$0xff]
    %v5056 = vld [vmem:[%s174 + $0x60] sm:$0xff]
    %v5057 = vld [vmem:[%s174 + $0x68] sm:$0xff]
    %s5058 = sld [smem:[#allocation11 + $0x4]]
    %v5059 = vstv %s5058
    %v5060 = vmul.f32 %v5059, %v5054
    %v5061 = vmul.f32 %v5059, %v5055
    %v5062 = vmul.f32 %v5059, %v5056
    %v5063 = vmul.f32 %v5059, %v5057
    %v5064 = vadd.f32 %v4972, %v5060
    %v5065 = vadd.f32 %v4973, %v5061
    %v5066 = vadd.f32 %v4974, %v5062
    %v5067 = vadd.f32 %v4975, %v5063
    %s5068 = sld [smem:[#allocation11 + $0x5]]
    %v5069 = vstv %s5068
    %v5070 = vmul.f32 %v5069, %v5054
    %v5071 = vmul.f32 %v5069, %v5055
    %v5072 = vmul.f32 %v5069, %v5056
    %v5073 = vmul.f32 %v5069, %v5057
    %v5074 = vadd.f32 %v4998, %v5070
    %v5075 = vadd.f32 %v4999, %v5071
    %v5076 = vadd.f32 %v5000, %v5072
    %v5077 = vadd.f32 %v5001, %v5073
    %s5078 = sld [smem:[#allocation11 + $0x6]]
    %v5079 = vstv %s5078
    %v5080 = vmul.f32 %v5079, %v5054
    %v5081 = vmul.f32 %v5079, %v5055
    %v5082 = vmul.f32 %v5079, %v5056
    %v5083 = vmul.f32 %v5079, %v5057
    %v5084 = vadd.f32 %v5024, %v5080
    %v5085 = vadd.f32 %v5025, %v5081
    %v5086 = vadd.f32 %v5026, %v5082
    %v5087 = vadd.f32 %v5027, %v5083
    %s5088 = sld [smem:[#allocation11 + $0x7]]
    %v5089 = vstv %s5088
    %v5090 = vmul.f32 %v5089, %v5054
    %v5091 = vmul.f32 %v5089, %v5055
    %v5092 = vmul.f32 %v5089, %v5056
    %v5093 = vmul.f32 %v5089, %v5057
    %v5094 = vadd.f32 %v5050, %v5090
    %v5095 = vadd.f32 %v5051, %v5091
    %v5096 = vadd.f32 %v5052, %v5092
    %v5097 = vadd.f32 %v5053, %v5093
    %s5098 = sld [smem:[#allocation11 + $0x14]]
    %v5099 = vstv %s5098
    %v5100 = vmul.f32 %v5099, %v5054
    %v5101 = vmul.f32 %v5099, %v5055
    %v5102 = vmul.f32 %v5099, %v5056
    %v5103 = vmul.f32 %v5099, %v5057
    %5108 = vrot.lane.b32.xlu0 %v5100, 127
    %v5109 = vpop.permute.xlu0 %5108
    %5110 = vrot.lane.b32.xlu0 %v5101, 127
    %v5111 = vpop.permute.xlu0 %5110
    %5112 = vrot.lane.b32.xlu0 %v5102, 127
    %v5113 = vpop.permute.xlu0 %5112
    %5114 = vrot.lane.b32.xlu0 %v5103, 127
    %v5115 = vpop.permute.xlu0 %5114
    %v5120 = vadd.f32 %v5064, %v5109
    %v5121 = vadd.f32 %v5065, %v5111
    %v5122 = vadd.f32 %v5066, %v5113
    %v5123 = vadd.f32 %v5067, %v5115
    %s5124 = sld [smem:[#allocation11 + $0x15]]
    %v5125 = vstv %s5124
    %v5126 = vmul.f32 %v5125, %v5054
    %v5127 = vmul.f32 %v5125, %v5055
    %v5128 = vmul.f32 %v5125, %v5056
    %v5129 = vmul.f32 %v5125, %v5057
    %5134 = vrot.lane.b32.xlu0 %v5126, 127
    %v5135 = vpop.permute.xlu0 %5134
    %5136 = vrot.lane.b32.xlu0 %v5127, 127
    %v5137 = vpop.permute.xlu0 %5136
    %5138 = vrot.lane.b32.xlu0 %v5128, 127
    %v5139 = vpop.permute.xlu0 %5138
    %5140 = vrot.lane.b32.xlu0 %v5129, 127
    %v5141 = vpop.permute.xlu0 %5140
    %v5146 = vadd.f32 %v5074, %v5135
    %v5147 = vadd.f32 %v5075, %v5137
    %v5148 = vadd.f32 %v5076, %v5139
    %v5149 = vadd.f32 %v5077, %v5141
    %s5150 = sld [smem:[#allocation11 + $0x16]]
    %v5151 = vstv %s5150
    %v5152 = vmul.f32 %v5151, %v5054
    %v5153 = vmul.f32 %v5151, %v5055
    %v5154 = vmul.f32 %v5151, %v5056
    %v5155 = vmul.f32 %v5151, %v5057
    %5160 = vrot.lane.b32.xlu0 %v5152, 127
    %v5161 = vpop.permute.xlu0 %5160
    %5162 = vrot.lane.b32.xlu0 %v5153, 127
    %v5163 = vpop.permute.xlu0 %5162
    %5164 = vrot.lane.b32.xlu0 %v5154, 127
    %v5165 = vpop.permute.xlu0 %5164
    %5166 = vrot.lane.b32.xlu0 %v5155, 127
    %v5167 = vpop.permute.xlu0 %5166
    %v5172 = vadd.f32 %v5084, %v5161
    %v5173 = vadd.f32 %v5085, %v5163
    %v5174 = vadd.f32 %v5086, %v5165
    %v5175 = vadd.f32 %v5087, %v5167
    %s5176 = sld [smem:[#allocation11 + $0x17]]
    %v5177 = vstv %s5176
    %v5178 = vmul.f32 %v5177, %v5054
    %v5179 = vmul.f32 %v5177, %v5055
    %v5180 = vmul.f32 %v5177, %v5056
    %v5181 = vmul.f32 %v5177, %v5057
    %5186 = vrot.lane.b32.xlu0 %v5178, 127
    %v5187 = vpop.permute.xlu0 %5186
    %5188 = vrot.lane.b32.xlu0 %v5179, 127
    %v5189 = vpop.permute.xlu0 %5188
    %5190 = vrot.lane.b32.xlu0 %v5180, 127
    %v5191 = vpop.permute.xlu0 %5190
    %5192 = vrot.lane.b32.xlu0 %v5181, 127
    %v5193 = vpop.permute.xlu0 %5192
    %v5198 = vadd.f32 %v5094, %v5187
    %v5199 = vadd.f32 %v5095, %v5189
    %v5200 = vadd.f32 %v5096, %v5191
    %v5201 = vadd.f32 %v5097, %v5193
    %s5202 = sld [smem:[#allocation11 + $0x24]]
    %v5203 = vstv %s5202
    %v5204 = vmul.f32 %v5203, %v5054
    %v5205 = vmul.f32 %v5203, %v5055
    %v5206 = vmul.f32 %v5203, %v5056
    %v5207 = vmul.f32 %v5203, %v5057
    %5212 = vrot.lane.b32.xlu0 %v5204, 126
    %v5213 = vpop.permute.xlu0 %5212
    %5214 = vrot.lane.b32.xlu0 %v5205, 126
    %v5215 = vpop.permute.xlu0 %5214
    %5216 = vrot.lane.b32.xlu0 %v5206, 126
    %v5217 = vpop.permute.xlu0 %5216
    %5218 = vrot.lane.b32.xlu0 %v5207, 126
    %v5219 = vpop.permute.xlu0 %5218
    %v5224 = vadd.f32 %v5120, %v5213
    %v5225 = vadd.f32 %v5121, %v5215
    %v5226 = vadd.f32 %v5122, %v5217
    %v5227 = vadd.f32 %v5123, %v5219
    %s5228 = sld [smem:[#allocation11 + $0x25]]
    %v5229 = vstv %s5228
    %v5230 = vmul.f32 %v5229, %v5054
    %v5231 = vmul.f32 %v5229, %v5055
    %v5232 = vmul.f32 %v5229, %v5056
    %v5233 = vmul.f32 %v5229, %v5057
    %5238 = vrot.lane.b32.xlu0 %v5230, 126
    %v5239 = vpop.permute.xlu0 %5238
    %5240 = vrot.lane.b32.xlu0 %v5231, 126
    %v5241 = vpop.permute.xlu0 %5240
    %5242 = vrot.lane.b32.xlu0 %v5232, 126
    %v5243 = vpop.permute.xlu0 %5242
    %5244 = vrot.lane.b32.xlu0 %v5233, 126
    %v5245 = vpop.permute.xlu0 %5244
    %v5250 = vadd.f32 %v5146, %v5239
    %v5251 = vadd.f32 %v5147, %v5241
    %v5252 = vadd.f32 %v5148, %v5243
    %v5253 = vadd.f32 %v5149, %v5245
    %s5254 = sld [smem:[#allocation11 + $0x26]]
    %v5255 = vstv %s5254
    %v5256 = vmul.f32 %v5255, %v5054
    %v5257 = vmul.f32 %v5255, %v5055
    %v5258 = vmul.f32 %v5255, %v5056
    %v5259 = vmul.f32 %v5255, %v5057
    %5264 = vrot.lane.b32.xlu0 %v5256, 126
    %v5265 = vpop.permute.xlu0 %5264
    %5266 = vrot.lane.b32.xlu0 %v5257, 126
    %v5267 = vpop.permute.xlu0 %5266
    %5268 = vrot.lane.b32.xlu0 %v5258, 126
    %v5269 = vpop.permute.xlu0 %5268
    %5270 = vrot.lane.b32.xlu0 %v5259, 126
    %v5271 = vpop.permute.xlu0 %5270
    %v5276 = vadd.f32 %v5172, %v5265
    %v5277 = vadd.f32 %v5173, %v5267
    %v5278 = vadd.f32 %v5174, %v5269
    %v5279 = vadd.f32 %v5175, %v5271
    %s5280 = sld [smem:[#allocation11 + $0x27]]
    %v5281 = vstv %s5280
    %v5282 = vmul.f32 %v5281, %v5054
    %v5283 = vmul.f32 %v5281, %v5055
    %v5284 = vmul.f32 %v5281, %v5056
    %v5285 = vmul.f32 %v5281, %v5057
    %5290 = vrot.lane.b32.xlu0 %v5282, 126
    %v5291 = vpop.permute.xlu0 %5290
    %5292 = vrot.lane.b32.xlu0 %v5283, 126
    %v5293 = vpop.permute.xlu0 %5292
    %5294 = vrot.lane.b32.xlu0 %v5284, 126
    %v5295 = vpop.permute.xlu0 %5294
    %5296 = vrot.lane.b32.xlu0 %v5285, 126
    %v5297 = vpop.permute.xlu0 %5296
    %v5302 = vadd.f32 %v5198, %v5291
    %v5303 = vadd.f32 %v5199, %v5293
    %v5304 = vadd.f32 %v5200, %v5295
    %v5305 = vadd.f32 %v5201, %v5297
    %v5306 = vld [vmem:[%s174 + $0x1] sm:$0xff]
    %v5307 = vld [vmem:[%s174 + $0x9] sm:$0xff]
    %v5308 = vld [vmem:[%s174 + $0x61] sm:$0xff]
    %v5309 = vld [vmem:[%s174 + $0x69] sm:$0xff]
    %s5310 = sld [smem:[#allocation11 + $0x34]]
    %v5311 = vstv %s5310
    %v5312 = vmul.f32 %v5311, %v5306
    %v5313 = vmul.f32 %v5311, %v5307
    %v5314 = vmul.f32 %v5311, %v5308
    %v5315 = vmul.f32 %v5311, %v5309
    %v5316 = vadd.f32 %v5224, %v5312
    %v5317 = vadd.f32 %v5225, %v5313
    %v5318 = vadd.f32 %v5226, %v5314
    %v5319 = vadd.f32 %v5227, %v5315
    %s5320 = sld [smem:[#allocation11 + $0x35]]
    %v5321 = vstv %s5320
    %v5322 = vmul.f32 %v5321, %v5306
    %v5323 = vmul.f32 %v5321, %v5307
    %v5324 = vmul.f32 %v5321, %v5308
    %v5325 = vmul.f32 %v5321, %v5309
    %v5326 = vadd.f32 %v5250, %v5322
    %v5327 = vadd.f32 %v5251, %v5323
    %v5328 = vadd.f32 %v5252, %v5324
    %v5329 = vadd.f32 %v5253, %v5325
    %s5330 = sld [smem:[#allocation11 + $0x36]]
    %v5331 = vstv %s5330
    %v5332 = vmul.f32 %v5331, %v5306
    %v5333 = vmul.f32 %v5331, %v5307
    %v5334 = vmul.f32 %v5331, %v5308
    %v5335 = vmul.f32 %v5331, %v5309
    %v5336 = vadd.f32 %v5276, %v5332
    %v5337 = vadd.f32 %v5277, %v5333
    %v5338 = vadd.f32 %v5278, %v5334
    %v5339 = vadd.f32 %v5279, %v5335
    %s5340 = sld [smem:[#allocation11 + $0x37]]
    %v5341 = vstv %s5340
    %v5342 = vmul.f32 %v5341, %v5306
    %v5343 = vmul.f32 %v5341, %v5307
    %v5344 = vmul.f32 %v5341, %v5308
    %v5345 = vmul.f32 %v5341, %v5309
    %v5346 = vadd.f32 %v5302, %v5342
    %v5347 = vadd.f32 %v5303, %v5343
    %v5348 = vadd.f32 %v5304, %v5344
    %v5349 = vadd.f32 %v5305, %v5345
    %s5350 = sld [smem:[#allocation11 + $0x44]]
    %v5351 = vstv %s5350
    %v5352 = vmul.f32 %v5351, %v5306
    %v5353 = vmul.f32 %v5351, %v5307
    %v5354 = vmul.f32 %v5351, %v5308
    %v5355 = vmul.f32 %v5351, %v5309
    %5360 = vrot.lane.b32.xlu0 %v5352, 127
    %v5361 = vpop.permute.xlu0 %5360
    %5362 = vrot.lane.b32.xlu0 %v5353, 127
    %v5363 = vpop.permute.xlu0 %5362
    %5364 = vrot.lane.b32.xlu0 %v5354, 127
    %v5365 = vpop.permute.xlu0 %5364
    %5366 = vrot.lane.b32.xlu0 %v5355, 127
    %v5367 = vpop.permute.xlu0 %5366
    %v5372 = vadd.f32 %v5316, %v5361
    %v5373 = vadd.f32 %v5317, %v5363
    %v5374 = vadd.f32 %v5318, %v5365
    %v5375 = vadd.f32 %v5319, %v5367
    %s5376 = sld [smem:[#allocation11 + $0x45]]
    %v5377 = vstv %s5376
    %v5378 = vmul.f32 %v5377, %v5306
    %v5379 = vmul.f32 %v5377, %v5307
    %v5380 = vmul.f32 %v5377, %v5308
    %v5381 = vmul.f32 %v5377, %v5309
    %5386 = vrot.lane.b32.xlu0 %v5378, 127
    %v5387 = vpop.permute.xlu0 %5386
    %5388 = vrot.lane.b32.xlu0 %v5379, 127
    %v5389 = vpop.permute.xlu0 %5388
    %5390 = vrot.lane.b32.xlu0 %v5380, 127
    %v5391 = vpop.permute.xlu0 %5390
    %5392 = vrot.lane.b32.xlu0 %v5381, 127
    %v5393 = vpop.permute.xlu0 %5392
    %v5398 = vadd.f32 %v5326, %v5387
    %v5399 = vadd.f32 %v5327, %v5389
    %v5400 = vadd.f32 %v5328, %v5391
    %v5401 = vadd.f32 %v5329, %v5393
    %s5402 = sld [smem:[#allocation11 + $0x46]]
    %v5403 = vstv %s5402
    %v5404 = vmul.f32 %v5403, %v5306
    %v5405 = vmul.f32 %v5403, %v5307
    %v5406 = vmul.f32 %v5403, %v5308
    %v5407 = vmul.f32 %v5403, %v5309
    %5412 = vrot.lane.b32.xlu0 %v5404, 127
    %v5413 = vpop.permute.xlu0 %5412
    %5414 = vrot.lane.b32.xlu0 %v5405, 127
    %v5415 = vpop.permute.xlu0 %5414
    %5416 = vrot.lane.b32.xlu0 %v5406, 127
    %v5417 = vpop.permute.xlu0 %5416
    %5418 = vrot.lane.b32.xlu0 %v5407, 127
    %v5419 = vpop.permute.xlu0 %5418
    %v5424 = vadd.f32 %v5336, %v5413
    %v5425 = vadd.f32 %v5337, %v5415
    %v5426 = vadd.f32 %v5338, %v5417
    %v5427 = vadd.f32 %v5339, %v5419
    %s5428 = sld [smem:[#allocation11 + $0x47]]
    %v5429 = vstv %s5428
    %v5430 = vmul.f32 %v5429, %v5306
    %v5431 = vmul.f32 %v5429, %v5307
    %v5432 = vmul.f32 %v5429, %v5308
    %v5433 = vmul.f32 %v5429, %v5309
    %5438 = vrot.lane.b32.xlu0 %v5430, 127
    %v5439 = vpop.permute.xlu0 %5438
    %5440 = vrot.lane.b32.xlu0 %v5431, 127
    %v5441 = vpop.permute.xlu0 %5440
    %5442 = vrot.lane.b32.xlu0 %v5432, 127
    %v5443 = vpop.permute.xlu0 %5442
    %5444 = vrot.lane.b32.xlu0 %v5433, 127
    %v5445 = vpop.permute.xlu0 %5444
    %v5450 = vadd.f32 %v5346, %v5439
    %v5451 = vadd.f32 %v5347, %v5441
    %v5452 = vadd.f32 %v5348, %v5443
    %v5453 = vadd.f32 %v5349, %v5445
    %s5454 = sld [smem:[#allocation11 + $0x54]]
    %v5455 = vstv %s5454
    %v5456 = vmul.f32 %v5455, %v5306
    %v5457 = vmul.f32 %v5455, %v5307
    %v5458 = vmul.f32 %v5455, %v5308
    %v5459 = vmul.f32 %v5455, %v5309
    %5464 = vrot.lane.b32.xlu0 %v5456, 126
    %v5465 = vpop.permute.xlu0 %5464
    %5466 = vrot.lane.b32.xlu0 %v5457, 126
    %v5467 = vpop.permute.xlu0 %5466
    %5468 = vrot.lane.b32.xlu0 %v5458, 126
    %v5469 = vpop.permute.xlu0 %5468
    %5470 = vrot.lane.b32.xlu0 %v5459, 126
    %v5471 = vpop.permute.xlu0 %5470
    %v5476 = vadd.f32 %v5372, %v5465
    %v5477 = vadd.f32 %v5373, %v5467
    %v5478 = vadd.f32 %v5374, %v5469
    %v5479 = vadd.f32 %v5375, %v5471
    %s5480 = sld [smem:[#allocation11 + $0x55]]
    %v5481 = vstv %s5480
    %v5482 = vmul.f32 %v5481, %v5306
    %v5483 = vmul.f32 %v5481, %v5307
    %v5484 = vmul.f32 %v5481, %v5308
    %v5485 = vmul.f32 %v5481, %v5309
    %5490 = vrot.lane.b32.xlu0 %v5482, 126
    %v5491 = vpop.permute.xlu0 %5490
    %5492 = vrot.lane.b32.xlu0 %v5483, 126
    %v5493 = vpop.permute.xlu0 %5492
    %5494 = vrot.lane.b32.xlu0 %v5484, 126
    %v5495 = vpop.permute.xlu0 %5494
    %5496 = vrot.lane.b32.xlu0 %v5485, 126
    %v5497 = vpop.permute.xlu0 %5496
    %v5502 = vadd.f32 %v5398, %v5491
    %v5503 = vadd.f32 %v5399, %v5493
    %v5504 = vadd.f32 %v5400, %v5495
    %v5505 = vadd.f32 %v5401, %v5497
    %s5506 = sld [smem:[#allocation11 + $0x56]]
    %v5507 = vstv %s5506
    %v5508 = vmul.f32 %v5507, %v5306
    %v5509 = vmul.f32 %v5507, %v5307
    %v5510 = vmul.f32 %v5507, %v5308
    %v5511 = vmul.f32 %v5507, %v5309
    %5516 = vrot.lane.b32.xlu0 %v5508, 126
    %v5517 = vpop.permute.xlu0 %5516
    %5518 = vrot.lane.b32.xlu0 %v5509, 126
    %v5519 = vpop.permute.xlu0 %5518
    %5520 = vrot.lane.b32.xlu0 %v5510, 126
    %v5521 = vpop.permute.xlu0 %5520
    %5522 = vrot.lane.b32.xlu0 %v5511, 126
    %v5523 = vpop.permute.xlu0 %5522
    %v5528 = vadd.f32 %v5424, %v5517
    %v5529 = vadd.f32 %v5425, %v5519
    %v5530 = vadd.f32 %v5426, %v5521
    %v5531 = vadd.f32 %v5427, %v5523
    %s5532 = sld [smem:[#allocation11 + $0x57]]
    %v5533 = vstv %s5532
    %v5534 = vmul.f32 %v5533, %v5306
    %v5535 = vmul.f32 %v5533, %v5307
    %v5536 = vmul.f32 %v5533, %v5308
    %v5537 = vmul.f32 %v5533, %v5309
    %5542 = vrot.lane.b32.xlu0 %v5534, 126
    %v5543 = vpop.permute.xlu0 %5542
    %5544 = vrot.lane.b32.xlu0 %v5535, 126
    %v5545 = vpop.permute.xlu0 %5544
    %5546 = vrot.lane.b32.xlu0 %v5536, 126
    %v5547 = vpop.permute.xlu0 %5546
    %5548 = vrot.lane.b32.xlu0 %v5537, 126
    %v5549 = vpop.permute.xlu0 %5548
    %v5554 = vadd.f32 %v5450, %v5543
    %v5555 = vadd.f32 %v5451, %v5545
    %v5556 = vadd.f32 %v5452, %v5547
    %v5557 = vadd.f32 %v5453, %v5549
    %v5558 = vld [vmem:[%s174 + $0x2] sm:$0xff]
    %v5559 = vld [vmem:[%s174 + $0xa] sm:$0xff]
    %v5560 = vld [vmem:[%s174 + $0x62] sm:$0xff]
    %v5561 = vld [vmem:[%s174 + $0x6a] sm:$0xff]
    %s5562 = sld [smem:[#allocation11 + $0x64]]
    %v5563 = vstv %s5562
    %v5564 = vmul.f32 %v5563, %v5558
    %v5565 = vmul.f32 %v5563, %v5559
    %v5566 = vmul.f32 %v5563, %v5560
    %v5567 = vmul.f32 %v5563, %v5561
    %v5568 = vadd.f32 %v5476, %v5564
    %v5569 = vadd.f32 %v5477, %v5565
    %v5570 = vadd.f32 %v5478, %v5566
    %v5571 = vadd.f32 %v5479, %v5567
    %s5572 = sld [smem:[#allocation11 + $0x65]]
    %v5573 = vstv %s5572
    %v5574 = vmul.f32 %v5573, %v5558
    %v5575 = vmul.f32 %v5573, %v5559
    %v5576 = vmul.f32 %v5573, %v5560
    %v5577 = vmul.f32 %v5573, %v5561
    %v5578 = vadd.f32 %v5502, %v5574
    %v5579 = vadd.f32 %v5503, %v5575
    %v5580 = vadd.f32 %v5504, %v5576
    %v5581 = vadd.f32 %v5505, %v5577
    %s5582 = sld [smem:[#allocation11 + $0x66]]
    %v5583 = vstv %s5582
    %v5584 = vmul.f32 %v5583, %v5558
    %v5585 = vmul.f32 %v5583, %v5559
    %v5586 = vmul.f32 %v5583, %v5560
    %v5587 = vmul.f32 %v5583, %v5561
    %v5588 = vadd.f32 %v5528, %v5584
    %v5589 = vadd.f32 %v5529, %v5585
    %v5590 = vadd.f32 %v5530, %v5586
    %v5591 = vadd.f32 %v5531, %v5587
    %s5592 = sld [smem:[#allocation11 + $0x67]]
    %v5593 = vstv %s5592
    %v5594 = vmul.f32 %v5593, %v5558
    %v5595 = vmul.f32 %v5593, %v5559
    %v5596 = vmul.f32 %v5593, %v5560
    %v5597 = vmul.f32 %v5593, %v5561
    %v5598 = vadd.f32 %v5554, %v5594
    %v5599 = vadd.f32 %v5555, %v5595
    %v5600 = vadd.f32 %v5556, %v5596
    %v5601 = vadd.f32 %v5557, %v5597
    %s5602 = sld [smem:[#allocation11 + $0x74]]
    %v5603 = vstv %s5602
    %v5604 = vmul.f32 %v5603, %v5558
    %v5605 = vmul.f32 %v5603, %v5559
    %v5606 = vmul.f32 %v5603, %v5560
    %v5607 = vmul.f32 %v5603, %v5561
    %5612 = vrot.lane.b32.xlu0 %v5604, 127
    %v5613 = vpop.permute.xlu0 %5612
    %5614 = vrot.lane.b32.xlu0 %v5605, 127
    %v5615 = vpop.permute.xlu0 %5614
    %5616 = vrot.lane.b32.xlu0 %v5606, 127
    %v5617 = vpop.permute.xlu0 %5616
    %5618 = vrot.lane.b32.xlu0 %v5607, 127
    %v5619 = vpop.permute.xlu0 %5618
    %v5624 = vadd.f32 %v5568, %v5613
    %v5625 = vadd.f32 %v5569, %v5615
    %v5626 = vadd.f32 %v5570, %v5617
    %v5627 = vadd.f32 %v5571, %v5619
    %s5628 = sld [smem:[#allocation11 + $0x75]]
    %v5629 = vstv %s5628
    %v5630 = vmul.f32 %v5629, %v5558
    %v5631 = vmul.f32 %v5629, %v5559
    %v5632 = vmul.f32 %v5629, %v5560
    %v5633 = vmul.f32 %v5629, %v5561
    %5638 = vrot.lane.b32.xlu0 %v5630, 127
    %v5639 = vpop.permute.xlu0 %5638
    %5640 = vrot.lane.b32.xlu0 %v5631, 127
    %v5641 = vpop.permute.xlu0 %5640
    %5642 = vrot.lane.b32.xlu0 %v5632, 127
    %v5643 = vpop.permute.xlu0 %5642
    %5644 = vrot.lane.b32.xlu0 %v5633, 127
    %v5645 = vpop.permute.xlu0 %5644
    %v5650 = vadd.f32 %v5578, %v5639
    %v5651 = vadd.f32 %v5579, %v5641
    %v5652 = vadd.f32 %v5580, %v5643
    %v5653 = vadd.f32 %v5581, %v5645
    %s5654 = sld [smem:[#allocation11 + $0x76]]
    %v5655 = vstv %s5654
    %v5656 = vmul.f32 %v5655, %v5558
    %v5657 = vmul.f32 %v5655, %v5559
    %v5658 = vmul.f32 %v5655, %v5560
    %v5659 = vmul.f32 %v5655, %v5561
    %5664 = vrot.lane.b32.xlu0 %v5656, 127
    %v5665 = vpop.permute.xlu0 %5664
    %5666 = vrot.lane.b32.xlu0 %v5657, 127
    %v5667 = vpop.permute.xlu0 %5666
    %5668 = vrot.lane.b32.xlu0 %v5658, 127
    %v5669 = vpop.permute.xlu0 %5668
    %5670 = vrot.lane.b32.xlu0 %v5659, 127
    %v5671 = vpop.permute.xlu0 %5670
    %v5676 = vadd.f32 %v5588, %v5665
    %v5677 = vadd.f32 %v5589, %v5667
    %v5678 = vadd.f32 %v5590, %v5669
    %v5679 = vadd.f32 %v5591, %v5671
    %s5680 = sld [smem:[#allocation11 + $0x77]]
    %v5681 = vstv %s5680
    %v5682 = vmul.f32 %v5681, %v5558
    %v5683 = vmul.f32 %v5681, %v5559
    %v5684 = vmul.f32 %v5681, %v5560
    %v5685 = vmul.f32 %v5681, %v5561
    %5690 = vrot.lane.b32.xlu0 %v5682, 127
    %v5691 = vpop.permute.xlu0 %5690
    %5692 = vrot.lane.b32.xlu0 %v5683, 127
    %v5693 = vpop.permute.xlu0 %5692
    %5694 = vrot.lane.b32.xlu0 %v5684, 127
    %v5695 = vpop.permute.xlu0 %5694
    %5696 = vrot.lane.b32.xlu0 %v5685, 127
    %v5697 = vpop.permute.xlu0 %5696
    %v5702 = vadd.f32 %v5598, %v5691
    %v5703 = vadd.f32 %v5599, %v5693
    %v5704 = vadd.f32 %v5600, %v5695
    %v5705 = vadd.f32 %v5601, %v5697
    %s5706 = sld [smem:[#allocation11 + $0x84]]
    %v5707 = vstv %s5706
    %v5708 = vmul.f32 %v5707, %v5558
    %v5709 = vmul.f32 %v5707, %v5559
    %v5710 = vmul.f32 %v5707, %v5560
    %v5711 = vmul.f32 %v5707, %v5561
    %5716 = vrot.lane.b32.xlu0 %v5708, 126
    %v5717 = vpop.permute.xlu0 %5716
    %5718 = vrot.lane.b32.xlu0 %v5709, 126
    %v5719 = vpop.permute.xlu0 %5718
    %5720 = vrot.lane.b32.xlu0 %v5710, 126
    %v5721 = vpop.permute.xlu0 %5720
    %5722 = vrot.lane.b32.xlu0 %v5711, 126
    %v5723 = vpop.permute.xlu0 %5722
    %v5728 = vadd.f32 %v5624, %v5717
    %v5729 = vadd.f32 %v5625, %v5719
    %v5730 = vadd.f32 %v5626, %v5721
    %v5731 = vadd.f32 %v5627, %v5723
    %s5732 = sld [smem:[#allocation11 + $0x85]]
    %v5733 = vstv %s5732
    %v5734 = vmul.f32 %v5733, %v5558
    %v5735 = vmul.f32 %v5733, %v5559
    %v5736 = vmul.f32 %v5733, %v5560
    %v5737 = vmul.f32 %v5733, %v5561
    %5742 = vrot.lane.b32.xlu0 %v5734, 126
    %v5743 = vpop.permute.xlu0 %5742
    %5744 = vrot.lane.b32.xlu0 %v5735, 126
    %v5745 = vpop.permute.xlu0 %5744
    %5746 = vrot.lane.b32.xlu0 %v5736, 126
    %v5747 = vpop.permute.xlu0 %5746
    %5748 = vrot.lane.b32.xlu0 %v5737, 126
    %v5749 = vpop.permute.xlu0 %5748
    %v5754 = vadd.f32 %v5650, %v5743
    %v5755 = vadd.f32 %v5651, %v5745
    %v5756 = vadd.f32 %v5652, %v5747
    %v5757 = vadd.f32 %v5653, %v5749
    %s5758 = sld [smem:[#allocation11 + $0x86]]
    %v5759 = vstv %s5758
    %v5760 = vmul.f32 %v5759, %v5558
    %v5761 = vmul.f32 %v5759, %v5559
    %v5762 = vmul.f32 %v5759, %v5560
    %v5763 = vmul.f32 %v5759, %v5561
    %5768 = vrot.lane.b32.xlu0 %v5760, 126
    %v5769 = vpop.permute.xlu0 %5768
    %5770 = vrot.lane.b32.xlu0 %v5761, 126
    %v5771 = vpop.permute.xlu0 %5770
    %5772 = vrot.lane.b32.xlu0 %v5762, 126
    %v5773 = vpop.permute.xlu0 %5772
    %5774 = vrot.lane.b32.xlu0 %v5763, 126
    %v5775 = vpop.permute.xlu0 %5774
    %v5780 = vadd.f32 %v5676, %v5769
    %v5781 = vadd.f32 %v5677, %v5771
    %v5782 = vadd.f32 %v5678, %v5773
    %v5783 = vadd.f32 %v5679, %v5775
    %s5784 = sld [smem:[#allocation11 + $0x87]]
    %v5785 = vstv %s5784
    %v5786 = vmul.f32 %v5785, %v5558
    %v5787 = vmul.f32 %v5785, %v5559
    %v5788 = vmul.f32 %v5785, %v5560
    %v5789 = vmul.f32 %v5785, %v5561
    %5794 = vrot.lane.b32.xlu0 %v5786, 126
    %v5795 = vpop.permute.xlu0 %5794
    %5796 = vrot.lane.b32.xlu0 %v5787, 126
    %v5797 = vpop.permute.xlu0 %5796
    %5798 = vrot.lane.b32.xlu0 %v5788, 126
    %v5799 = vpop.permute.xlu0 %5798
    %5800 = vrot.lane.b32.xlu0 %v5789, 126
    %v5801 = vpop.permute.xlu0 %5800
    %v5806 = vadd.f32 %v5702, %v5795
    %v5807 = vadd.f32 %v5703, %v5797
    %v5808 = vadd.f32 %v5704, %v5799
    %v5809 = vadd.f32 %v5705, %v5801
    %v5810 = vld [vmem:[%s199] sm:$0xff]
    %v5811 = vld [vmem:[%s199 + $0x8] sm:$0xff]
    %v5812 = vld [vmem:[%s199 + $0x60] sm:$0xff]
    %v5813 = vld [vmem:[%s199 + $0x68] sm:$0xff]
    %s5814 = sld [smem:[#allocation11 + $0x8]]
    %v5815 = vstv %s5814
    %v5816 = vmul.f32 %v5815, %v5810
    %v5817 = vmul.f32 %v5815, %v5811
    %v5818 = vmul.f32 %v5815, %v5812
    %v5819 = vmul.f32 %v5815, %v5813
    %v5820 = vadd.f32 %v5728, %v5816
    %v5821 = vadd.f32 %v5729, %v5817
    %v5822 = vadd.f32 %v5730, %v5818
    %v5823 = vadd.f32 %v5731, %v5819
    %s5824 = sld [smem:[#allocation11 + $0x9]]
    %v5825 = vstv %s5824
    %v5826 = vmul.f32 %v5825, %v5810
    %v5827 = vmul.f32 %v5825, %v5811
    %v5828 = vmul.f32 %v5825, %v5812
    %v5829 = vmul.f32 %v5825, %v5813
    %v5830 = vadd.f32 %v5754, %v5826
    %v5831 = vadd.f32 %v5755, %v5827
    %v5832 = vadd.f32 %v5756, %v5828
    %v5833 = vadd.f32 %v5757, %v5829
    %s5834 = sld [smem:[#allocation11 + $0xa]]
    %v5835 = vstv %s5834
    %v5836 = vmul.f32 %v5835, %v5810
    %v5837 = vmul.f32 %v5835, %v5811
    %v5838 = vmul.f32 %v5835, %v5812
    %v5839 = vmul.f32 %v5835, %v5813
    %v5840 = vadd.f32 %v5780, %v5836
    %v5841 = vadd.f32 %v5781, %v5837
    %v5842 = vadd.f32 %v5782, %v5838
    %v5843 = vadd.f32 %v5783, %v5839
    %s5844 = sld [smem:[#allocation11 + $0xb]]
    %v5845 = vstv %s5844
    %v5846 = vmul.f32 %v5845, %v5810
    %v5847 = vmul.f32 %v5845, %v5811
    %v5848 = vmul.f32 %v5845, %v5812
    %v5849 = vmul.f32 %v5845, %v5813
    %v5850 = vadd.f32 %v5806, %v5846
    %v5851 = vadd.f32 %v5807, %v5847
    %v5852 = vadd.f32 %v5808, %v5848
    %v5853 = vadd.f32 %v5809, %v5849
    %s5854 = sld [smem:[#allocation11 + $0x18]]
    %v5855 = vstv %s5854
    %v5856 = vmul.f32 %v5855, %v5810
    %v5857 = vmul.f32 %v5855, %v5811
    %v5858 = vmul.f32 %v5855, %v5812
    %v5859 = vmul.f32 %v5855, %v5813
    %5864 = vrot.lane.b32.xlu0 %v5856, 127
    %v5865 = vpop.permute.xlu0 %5864
    %5866 = vrot.lane.b32.xlu0 %v5857, 127
    %v5867 = vpop.permute.xlu0 %5866
    %5868 = vrot.lane.b32.xlu0 %v5858, 127
    %v5869 = vpop.permute.xlu0 %5868
    %5870 = vrot.lane.b32.xlu0 %v5859, 127
    %v5871 = vpop.permute.xlu0 %5870
    %v5876 = vadd.f32 %v5820, %v5865
    %v5877 = vadd.f32 %v5821, %v5867
    %v5878 = vadd.f32 %v5822, %v5869
    %v5879 = vadd.f32 %v5823, %v5871
    %s5880 = sld [smem:[#allocation11 + $0x19]]
    %v5881 = vstv %s5880
    %v5882 = vmul.f32 %v5881, %v5810
    %v5883 = vmul.f32 %v5881, %v5811
    %v5884 = vmul.f32 %v5881, %v5812
    %v5885 = vmul.f32 %v5881, %v5813
    %5890 = vrot.lane.b32.xlu0 %v5882, 127
    %v5891 = vpop.permute.xlu0 %5890
    %5892 = vrot.lane.b32.xlu0 %v5883, 127
    %v5893 = vpop.permute.xlu0 %5892
    %5894 = vrot.lane.b32.xlu0 %v5884, 127
    %v5895 = vpop.permute.xlu0 %5894
    %5896 = vrot.lane.b32.xlu0 %v5885, 127
    %v5897 = vpop.permute.xlu0 %5896
    %v5902 = vadd.f32 %v5830, %v5891
    %v5903 = vadd.f32 %v5831, %v5893
    %v5904 = vadd.f32 %v5832, %v5895
    %v5905 = vadd.f32 %v5833, %v5897
    %s5906 = sld [smem:[#allocation11 + $0x1a]]
    %v5907 = vstv %s5906
    %v5908 = vmul.f32 %v5907, %v5810
    %v5909 = vmul.f32 %v5907, %v5811
    %v5910 = vmul.f32 %v5907, %v5812
    %v5911 = vmul.f32 %v5907, %v5813
    %5916 = vrot.lane.b32.xlu0 %v5908, 127
    %v5917 = vpop.permute.xlu0 %5916
    %5918 = vrot.lane.b32.xlu0 %v5909, 127
    %v5919 = vpop.permute.xlu0 %5918
    %5920 = vrot.lane.b32.xlu0 %v5910, 127
    %v5921 = vpop.permute.xlu0 %5920
    %5922 = vrot.lane.b32.xlu0 %v5911, 127
    %v5923 = vpop.permute.xlu0 %5922
    %v5928 = vadd.f32 %v5840, %v5917
    %v5929 = vadd.f32 %v5841, %v5919
    %v5930 = vadd.f32 %v5842, %v5921
    %v5931 = vadd.f32 %v5843, %v5923
    %s5932 = sld [smem:[#allocation11 + $0x1b]]
    %v5933 = vstv %s5932
    %v5934 = vmul.f32 %v5933, %v5810
    %v5935 = vmul.f32 %v5933, %v5811
    %v5936 = vmul.f32 %v5933, %v5812
    %v5937 = vmul.f32 %v5933, %v5813
    %5942 = vrot.lane.b32.xlu0 %v5934, 127
    %v5943 = vpop.permute.xlu0 %5942
    %5944 = vrot.lane.b32.xlu0 %v5935, 127
    %v5945 = vpop.permute.xlu0 %5944
    %5946 = vrot.lane.b32.xlu0 %v5936, 127
    %v5947 = vpop.permute.xlu0 %5946
    %5948 = vrot.lane.b32.xlu0 %v5937, 127
    %v5949 = vpop.permute.xlu0 %5948
    %v5954 = vadd.f32 %v5850, %v5943
    %v5955 = vadd.f32 %v5851, %v5945
    %v5956 = vadd.f32 %v5852, %v5947
    %v5957 = vadd.f32 %v5853, %v5949
    %s5958 = sld [smem:[#allocation11 + $0x28]]
    %v5959 = vstv %s5958
    %v5960 = vmul.f32 %v5959, %v5810
    %v5961 = vmul.f32 %v5959, %v5811
    %v5962 = vmul.f32 %v5959, %v5812
    %v5963 = vmul.f32 %v5959, %v5813
    %5968 = vrot.lane.b32.xlu0 %v5960, 126
    %v5969 = vpop.permute.xlu0 %5968
    %5970 = vrot.lane.b32.xlu0 %v5961, 126
    %v5971 = vpop.permute.xlu0 %5970
    %5972 = vrot.lane.b32.xlu0 %v5962, 126
    %v5973 = vpop.permute.xlu0 %5972
    %5974 = vrot.lane.b32.xlu0 %v5963, 126
    %v5975 = vpop.permute.xlu0 %5974
    %v5980 = vadd.f32 %v5876, %v5969
    %v5981 = vadd.f32 %v5877, %v5971
    %v5982 = vadd.f32 %v5878, %v5973
    %v5983 = vadd.f32 %v5879, %v5975
    %s5984 = sld [smem:[#allocation11 + $0x29]]
    %v5985 = vstv %s5984
    %v5986 = vmul.f32 %v5985, %v5810
    %v5987 = vmul.f32 %v5985, %v5811
    %v5988 = vmul.f32 %v5985, %v5812
    %v5989 = vmul.f32 %v5985, %v5813
    %5994 = vrot.lane.b32.xlu0 %v5986, 126
    %v5995 = vpop.permute.xlu0 %5994
    %5996 = vrot.lane.b32.xlu0 %v5987, 126
    %v5997 = vpop.permute.xlu0 %5996
    %5998 = vrot.lane.b32.xlu0 %v5988, 126
    %v5999 = vpop.permute.xlu0 %5998
    %6000 = vrot.lane.b32.xlu0 %v5989, 126
    %v6001 = vpop.permute.xlu0 %6000
    %v6006 = vadd.f32 %v5902, %v5995
    %v6007 = vadd.f32 %v5903, %v5997
    %v6008 = vadd.f32 %v5904, %v5999
    %v6009 = vadd.f32 %v5905, %v6001
    %s6010 = sld [smem:[#allocation11 + $0x2a]]
    %v6011 = vstv %s6010
    %v6012 = vmul.f32 %v6011, %v5810
    %v6013 = vmul.f32 %v6011, %v5811
    %v6014 = vmul.f32 %v6011, %v5812
    %v6015 = vmul.f32 %v6011, %v5813
    %6020 = vrot.lane.b32.xlu0 %v6012, 126
    %v6021 = vpop.permute.xlu0 %6020
    %6022 = vrot.lane.b32.xlu0 %v6013, 126
    %v6023 = vpop.permute.xlu0 %6022
    %6024 = vrot.lane.b32.xlu0 %v6014, 126
    %v6025 = vpop.permute.xlu0 %6024
    %6026 = vrot.lane.b32.xlu0 %v6015, 126
    %v6027 = vpop.permute.xlu0 %6026
    %v6032 = vadd.f32 %v5928, %v6021
    %v6033 = vadd.f32 %v5929, %v6023
    %v6034 = vadd.f32 %v5930, %v6025
    %v6035 = vadd.f32 %v5931, %v6027
    %s6036 = sld [smem:[#allocation11 + $0x2b]]
    %v6037 = vstv %s6036
    %v6038 = vmul.f32 %v6037, %v5810
    %v6039 = vmul.f32 %v6037, %v5811
    %v6040 = vmul.f32 %v6037, %v5812
    %v6041 = vmul.f32 %v6037, %v5813
    %6046 = vrot.lane.b32.xlu0 %v6038, 126
    %v6047 = vpop.permute.xlu0 %6046
    %6048 = vrot.lane.b32.xlu0 %v6039, 126
    %v6049 = vpop.permute.xlu0 %6048
    %6050 = vrot.lane.b32.xlu0 %v6040, 126
    %v6051 = vpop.permute.xlu0 %6050
    %6052 = vrot.lane.b32.xlu0 %v6041, 126
    %v6053 = vpop.permute.xlu0 %6052
    %v6058 = vadd.f32 %v5954, %v6047
    %v6059 = vadd.f32 %v5955, %v6049
    %v6060 = vadd.f32 %v5956, %v6051
    %v6061 = vadd.f32 %v5957, %v6053
    %v6062 = vld [vmem:[%s199 + $0x1] sm:$0xff]
    %v6063 = vld [vmem:[%s199 + $0x9] sm:$0xff]
    %v6064 = vld [vmem:[%s199 + $0x61] sm:$0xff]
    %v6065 = vld [vmem:[%s199 + $0x69] sm:$0xff]
    %s6066 = sld [smem:[#allocation11 + $0x38]]
    %v6067 = vstv %s6066
    %v6068 = vmul.f32 %v6067, %v6062
    %v6069 = vmul.f32 %v6067, %v6063
    %v6070 = vmul.f32 %v6067, %v6064
    %v6071 = vmul.f32 %v6067, %v6065
    %v6072 = vadd.f32 %v5980, %v6068
    %v6073 = vadd.f32 %v5981, %v6069
    %v6074 = vadd.f32 %v5982, %v6070
    %v6075 = vadd.f32 %v5983, %v6071
    %s6076 = sld [smem:[#allocation11 + $0x39]]
    %v6077 = vstv %s6076
    %v6078 = vmul.f32 %v6077, %v6062
    %v6079 = vmul.f32 %v6077, %v6063
    %v6080 = vmul.f32 %v6077, %v6064
    %v6081 = vmul.f32 %v6077, %v6065
    %v6082 = vadd.f32 %v6006, %v6078
    %v6083 = vadd.f32 %v6007, %v6079
    %v6084 = vadd.f32 %v6008, %v6080
    %v6085 = vadd.f32 %v6009, %v6081
    %s6086 = sld [smem:[#allocation11 + $0x3a]]
    %v6087 = vstv %s6086
    %v6088 = vmul.f32 %v6087, %v6062
    %v6089 = vmul.f32 %v6087, %v6063
    %v6090 = vmul.f32 %v6087, %v6064
    %v6091 = vmul.f32 %v6087, %v6065
    %v6092 = vadd.f32 %v6032, %v6088
    %v6093 = vadd.f32 %v6033, %v6089
    %v6094 = vadd.f32 %v6034, %v6090
    %v6095 = vadd.f32 %v6035, %v6091
    %s6096 = sld [smem:[#allocation11 + $0x3b]]
    %v6097 = vstv %s6096
    %v6098 = vmul.f32 %v6097, %v6062
    %v6099 = vmul.f32 %v6097, %v6063
    %v6100 = vmul.f32 %v6097, %v6064
    %v6101 = vmul.f32 %v6097, %v6065
    %v6102 = vadd.f32 %v6058, %v6098
    %v6103 = vadd.f32 %v6059, %v6099
    %v6104 = vadd.f32 %v6060, %v6100
    %v6105 = vadd.f32 %v6061, %v6101
    %s6106 = sld [smem:[#allocation11 + $0x48]]
    %v6107 = vstv %s6106
    %v6108 = vmul.f32 %v6107, %v6062
    %v6109 = vmul.f32 %v6107, %v6063
    %v6110 = vmul.f32 %v6107, %v6064
    %v6111 = vmul.f32 %v6107, %v6065
    %6116 = vrot.lane.b32.xlu0 %v6108, 127
    %v6117 = vpop.permute.xlu0 %6116
    %6118 = vrot.lane.b32.xlu0 %v6109, 127
    %v6119 = vpop.permute.xlu0 %6118
    %6120 = vrot.lane.b32.xlu0 %v6110, 127
    %v6121 = vpop.permute.xlu0 %6120
    %6122 = vrot.lane.b32.xlu0 %v6111, 127
    %v6123 = vpop.permute.xlu0 %6122
    %v6128 = vadd.f32 %v6072, %v6117
    %v6129 = vadd.f32 %v6073, %v6119
    %v6130 = vadd.f32 %v6074, %v6121
    %v6131 = vadd.f32 %v6075, %v6123
    %s6132 = sld [smem:[#allocation11 + $0x49]]
    %v6133 = vstv %s6132
    %v6134 = vmul.f32 %v6133, %v6062
    %v6135 = vmul.f32 %v6133, %v6063
    %v6136 = vmul.f32 %v6133, %v6064
    %v6137 = vmul.f32 %v6133, %v6065
    %6142 = vrot.lane.b32.xlu0 %v6134, 127
    %v6143 = vpop.permute.xlu0 %6142
    %6144 = vrot.lane.b32.xlu0 %v6135, 127
    %v6145 = vpop.permute.xlu0 %6144
    %6146 = vrot.lane.b32.xlu0 %v6136, 127
    %v6147 = vpop.permute.xlu0 %6146
    %6148 = vrot.lane.b32.xlu0 %v6137, 127
    %v6149 = vpop.permute.xlu0 %6148
    %v6154 = vadd.f32 %v6082, %v6143
    %v6155 = vadd.f32 %v6083, %v6145
    %v6156 = vadd.f32 %v6084, %v6147
    %v6157 = vadd.f32 %v6085, %v6149
    %s6158 = sld [smem:[#allocation11 + $0x4a]]
    %v6159 = vstv %s6158
    %v6160 = vmul.f32 %v6159, %v6062
    %v6161 = vmul.f32 %v6159, %v6063
    %v6162 = vmul.f32 %v6159, %v6064
    %v6163 = vmul.f32 %v6159, %v6065
    %6168 = vrot.lane.b32.xlu0 %v6160, 127
    %v6169 = vpop.permute.xlu0 %6168
    %6170 = vrot.lane.b32.xlu0 %v6161, 127
    %v6171 = vpop.permute.xlu0 %6170
    %6172 = vrot.lane.b32.xlu0 %v6162, 127
    %v6173 = vpop.permute.xlu0 %6172
    %6174 = vrot.lane.b32.xlu0 %v6163, 127
    %v6175 = vpop.permute.xlu0 %6174
    %v6180 = vadd.f32 %v6092, %v6169
    %v6181 = vadd.f32 %v6093, %v6171
    %v6182 = vadd.f32 %v6094, %v6173
    %v6183 = vadd.f32 %v6095, %v6175
    %s6184 = sld [smem:[#allocation11 + $0x4b]]
    %v6185 = vstv %s6184
    %v6186 = vmul.f32 %v6185, %v6062
    %v6187 = vmul.f32 %v6185, %v6063
    %v6188 = vmul.f32 %v6185, %v6064
    %v6189 = vmul.f32 %v6185, %v6065
    %6194 = vrot.lane.b32.xlu0 %v6186, 127
    %v6195 = vpop.permute.xlu0 %6194
    %6196 = vrot.lane.b32.xlu0 %v6187, 127
    %v6197 = vpop.permute.xlu0 %6196
    %6198 = vrot.lane.b32.xlu0 %v6188, 127
    %v6199 = vpop.permute.xlu0 %6198
    %6200 = vrot.lane.b32.xlu0 %v6189, 127
    %v6201 = vpop.permute.xlu0 %6200
    %v6206 = vadd.f32 %v6102, %v6195
    %v6207 = vadd.f32 %v6103, %v6197
    %v6208 = vadd.f32 %v6104, %v6199
    %v6209 = vadd.f32 %v6105, %v6201
    %s6210 = sld [smem:[#allocation11 + $0x58]]
    %v6211 = vstv %s6210
    %v6212 = vmul.f32 %v6211, %v6062
    %v6213 = vmul.f32 %v6211, %v6063
    %v6214 = vmul.f32 %v6211, %v6064
    %v6215 = vmul.f32 %v6211, %v6065
    %6220 = vrot.lane.b32.xlu0 %v6212, 126
    %v6221 = vpop.permute.xlu0 %6220
    %6222 = vrot.lane.b32.xlu0 %v6213, 126
    %v6223 = vpop.permute.xlu0 %6222
    %6224 = vrot.lane.b32.xlu0 %v6214, 126
    %v6225 = vpop.permute.xlu0 %6224
    %6226 = vrot.lane.b32.xlu0 %v6215, 126
    %v6227 = vpop.permute.xlu0 %6226
    %v6232 = vadd.f32 %v6128, %v6221
    %v6233 = vadd.f32 %v6129, %v6223
    %v6234 = vadd.f32 %v6130, %v6225
    %v6235 = vadd.f32 %v6131, %v6227
    %s6236 = sld [smem:[#allocation11 + $0x59]]
    %v6237 = vstv %s6236
    %v6238 = vmul.f32 %v6237, %v6062
    %v6239 = vmul.f32 %v6237, %v6063
    %v6240 = vmul.f32 %v6237, %v6064
    %v6241 = vmul.f32 %v6237, %v6065
    %6246 = vrot.lane.b32.xlu0 %v6238, 126
    %v6247 = vpop.permute.xlu0 %6246
    %6248 = vrot.lane.b32.xlu0 %v6239, 126
    %v6249 = vpop.permute.xlu0 %6248
    %6250 = vrot.lane.b32.xlu0 %v6240, 126
    %v6251 = vpop.permute.xlu0 %6250
    %6252 = vrot.lane.b32.xlu0 %v6241, 126
    %v6253 = vpop.permute.xlu0 %6252
    %v6258 = vadd.f32 %v6154, %v6247
    %v6259 = vadd.f32 %v6155, %v6249
    %v6260 = vadd.f32 %v6156, %v6251
    %v6261 = vadd.f32 %v6157, %v6253
    %s6262 = sld [smem:[#allocation11 + $0x5a]]
    %v6263 = vstv %s6262
    %v6264 = vmul.f32 %v6263, %v6062
    %v6265 = vmul.f32 %v6263, %v6063
    %v6266 = vmul.f32 %v6263, %v6064
    %v6267 = vmul.f32 %v6263, %v6065
    %6272 = vrot.lane.b32.xlu0 %v6264, 126
    %v6273 = vpop.permute.xlu0 %6272
    %6274 = vrot.lane.b32.xlu0 %v6265, 126
    %v6275 = vpop.permute.xlu0 %6274
    %6276 = vrot.lane.b32.xlu0 %v6266, 126
    %v6277 = vpop.permute.xlu0 %6276
    %6278 = vrot.lane.b32.xlu0 %v6267, 126
    %v6279 = vpop.permute.xlu0 %6278
    %v6284 = vadd.f32 %v6180, %v6273
    %v6285 = vadd.f32 %v6181, %v6275
    %v6286 = vadd.f32 %v6182, %v6277
    %v6287 = vadd.f32 %v6183, %v6279
    %s6288 = sld [smem:[#allocation11 + $0x5b]]
    %v6289 = vstv %s6288
    %v6290 = vmul.f32 %v6289, %v6062
    %v6291 = vmul.f32 %v6289, %v6063
    %v6292 = vmul.f32 %v6289, %v6064
    %v6293 = vmul.f32 %v6289, %v6065
    %6298 = vrot.lane.b32.xlu0 %v6290, 126
    %v6299 = vpop.permute.xlu0 %6298
    %6300 = vrot.lane.b32.xlu0 %v6291, 126
    %v6301 = vpop.permute.xlu0 %6300
    %6302 = vrot.lane.b32.xlu0 %v6292, 126
    %v6303 = vpop.permute.xlu0 %6302
    %6304 = vrot.lane.b32.xlu0 %v6293, 126
    %v6305 = vpop.permute.xlu0 %6304
    %v6310 = vadd.f32 %v6206, %v6299
    %v6311 = vadd.f32 %v6207, %v6301
    %v6312 = vadd.f32 %v6208, %v6303
    %v6313 = vadd.f32 %v6209, %v6305
    %v6314 = vld [vmem:[%s199 + $0x2] sm:$0xff]
    %v6315 = vld [vmem:[%s199 + $0xa] sm:$0xff]
    %v6316 = vld [vmem:[%s199 + $0x62] sm:$0xff]
    %v6317 = vld [vmem:[%s199 + $0x6a] sm:$0xff]
    %s6318 = sld [smem:[#allocation11 + $0x68]]
    %v6319 = vstv %s6318
    %v6320 = vmul.f32 %v6319, %v6314
    %v6321 = vmul.f32 %v6319, %v6315
    %v6322 = vmul.f32 %v6319, %v6316
    %v6323 = vmul.f32 %v6319, %v6317
    %v6324 = vadd.f32 %v6232, %v6320
    %v6325 = vadd.f32 %v6233, %v6321
    %v6326 = vadd.f32 %v6234, %v6322
    %v6327 = vadd.f32 %v6235, %v6323
    %s6328 = sld [smem:[#allocation11 + $0x69]]
    %v6329 = vstv %s6328
    %v6330 = vmul.f32 %v6329, %v6314
    %v6331 = vmul.f32 %v6329, %v6315
    %v6332 = vmul.f32 %v6329, %v6316
    %v6333 = vmul.f32 %v6329, %v6317
    %v6334 = vadd.f32 %v6258, %v6330
    %v6335 = vadd.f32 %v6259, %v6331
    %v6336 = vadd.f32 %v6260, %v6332
    %v6337 = vadd.f32 %v6261, %v6333
    %s6338 = sld [smem:[#allocation11 + $0x6a]]
    %v6339 = vstv %s6338
    %v6340 = vmul.f32 %v6339, %v6314
    %v6341 = vmul.f32 %v6339, %v6315
    %v6342 = vmul.f32 %v6339, %v6316
    %v6343 = vmul.f32 %v6339, %v6317
    %v6344 = vadd.f32 %v6284, %v6340
    %v6345 = vadd.f32 %v6285, %v6341
    %v6346 = vadd.f32 %v6286, %v6342
    %v6347 = vadd.f32 %v6287, %v6343
    %s6348 = sld [smem:[#allocation11 + $0x6b]]
    %v6349 = vstv %s6348
    %v6350 = vmul.f32 %v6349, %v6314
    %v6351 = vmul.f32 %v6349, %v6315
    %v6352 = vmul.f32 %v6349, %v6316
    %v6353 = vmul.f32 %v6349, %v6317
    %v6354 = vadd.f32 %v6310, %v6350
    %v6355 = vadd.f32 %v6311, %v6351
    %v6356 = vadd.f32 %v6312, %v6352
    %v6357 = vadd.f32 %v6313, %v6353
    %s6358 = sld [smem:[#allocation11 + $0x78]]
    %v6359 = vstv %s6358
    %v6360 = vmul.f32 %v6359, %v6314
    %v6361 = vmul.f32 %v6359, %v6315
    %v6362 = vmul.f32 %v6359, %v6316
    %v6363 = vmul.f32 %v6359, %v6317
    %6368 = vrot.lane.b32.xlu0 %v6360, 127
    %v6369 = vpop.permute.xlu0 %6368
    %6370 = vrot.lane.b32.xlu0 %v6361, 127
    %v6371 = vpop.permute.xlu0 %6370
    %6372 = vrot.lane.b32.xlu0 %v6362, 127
    %v6373 = vpop.permute.xlu0 %6372
    %6374 = vrot.lane.b32.xlu0 %v6363, 127
    %v6375 = vpop.permute.xlu0 %6374
    %v6380 = vadd.f32 %v6324, %v6369
    %v6381 = vadd.f32 %v6325, %v6371
    %v6382 = vadd.f32 %v6326, %v6373
    %v6383 = vadd.f32 %v6327, %v6375
    %s6384 = sld [smem:[#allocation11 + $0x79]]
    %v6385 = vstv %s6384
    %v6386 = vmul.f32 %v6385, %v6314
    %v6387 = vmul.f32 %v6385, %v6315
    %v6388 = vmul.f32 %v6385, %v6316
    %v6389 = vmul.f32 %v6385, %v6317
    %6394 = vrot.lane.b32.xlu0 %v6386, 127
    %v6395 = vpop.permute.xlu0 %6394
    %6396 = vrot.lane.b32.xlu0 %v6387, 127
    %v6397 = vpop.permute.xlu0 %6396
    %6398 = vrot.lane.b32.xlu0 %v6388, 127
    %v6399 = vpop.permute.xlu0 %6398
    %6400 = vrot.lane.b32.xlu0 %v6389, 127
    %v6401 = vpop.permute.xlu0 %6400
    %v6406 = vadd.f32 %v6334, %v6395
    %v6407 = vadd.f32 %v6335, %v6397
    %v6408 = vadd.f32 %v6336, %v6399
    %v6409 = vadd.f32 %v6337, %v6401
    %s6410 = sld [smem:[#allocation11 + $0x7a]]
    %v6411 = vstv %s6410
    %v6412 = vmul.f32 %v6411, %v6314
    %v6413 = vmul.f32 %v6411, %v6315
    %v6414 = vmul.f32 %v6411, %v6316
    %v6415 = vmul.f32 %v6411, %v6317
    %6420 = vrot.lane.b32.xlu0 %v6412, 127
    %v6421 = vpop.permute.xlu0 %6420
    %6422 = vrot.lane.b32.xlu0 %v6413, 127
    %v6423 = vpop.permute.xlu0 %6422
    %6424 = vrot.lane.b32.xlu0 %v6414, 127
    %v6425 = vpop.permute.xlu0 %6424
    %6426 = vrot.lane.b32.xlu0 %v6415, 127
    %v6427 = vpop.permute.xlu0 %6426
    %v6432 = vadd.f32 %v6344, %v6421
    %v6433 = vadd.f32 %v6345, %v6423
    %v6434 = vadd.f32 %v6346, %v6425
    %v6435 = vadd.f32 %v6347, %v6427
    %s6436 = sld [smem:[#allocation11 + $0x7b]]
    %v6437 = vstv %s6436
    %v6438 = vmul.f32 %v6437, %v6314
    %v6439 = vmul.f32 %v6437, %v6315
    %v6440 = vmul.f32 %v6437, %v6316
    %v6441 = vmul.f32 %v6437, %v6317
    %6446 = vrot.lane.b32.xlu0 %v6438, 127
    %v6447 = vpop.permute.xlu0 %6446
    %6448 = vrot.lane.b32.xlu0 %v6439, 127
    %v6449 = vpop.permute.xlu0 %6448
    %6450 = vrot.lane.b32.xlu0 %v6440, 127
    %v6451 = vpop.permute.xlu0 %6450
    %6452 = vrot.lane.b32.xlu0 %v6441, 127
    %v6453 = vpop.permute.xlu0 %6452
    %v6458 = vadd.f32 %v6354, %v6447
    %v6459 = vadd.f32 %v6355, %v6449
    %v6460 = vadd.f32 %v6356, %v6451
    %v6461 = vadd.f32 %v6357, %v6453
    %s6462 = sld [smem:[#allocation11 + $0x88]]
    %v6463 = vstv %s6462
    %v6464 = vmul.f32 %v6463, %v6314
    %v6465 = vmul.f32 %v6463, %v6315
    %v6466 = vmul.f32 %v6463, %v6316
    %v6467 = vmul.f32 %v6463, %v6317
    %6472 = vrot.lane.b32.xlu0 %v6464, 126
    %v6473 = vpop.permute.xlu0 %6472
    %6474 = vrot.lane.b32.xlu0 %v6465, 126
    %v6475 = vpop.permute.xlu0 %6474
    %6476 = vrot.lane.b32.xlu0 %v6466, 126
    %v6477 = vpop.permute.xlu0 %6476
    %6478 = vrot.lane.b32.xlu0 %v6467, 126
    %v6479 = vpop.permute.xlu0 %6478
    %v6484 = vadd.f32 %v6380, %v6473
    %v6485 = vadd.f32 %v6381, %v6475
    %v6486 = vadd.f32 %v6382, %v6477
    %v6487 = vadd.f32 %v6383, %v6479
    %s6488 = sld [smem:[#allocation11 + $0x89]]
    %v6489 = vstv %s6488
    %v6490 = vmul.f32 %v6489, %v6314
    %v6491 = vmul.f32 %v6489, %v6315
    %v6492 = vmul.f32 %v6489, %v6316
    %v6493 = vmul.f32 %v6489, %v6317
    %6498 = vrot.lane.b32.xlu0 %v6490, 126
    %v6499 = vpop.permute.xlu0 %6498
    %6500 = vrot.lane.b32.xlu0 %v6491, 126
    %v6501 = vpop.permute.xlu0 %6500
    %6502 = vrot.lane.b32.xlu0 %v6492, 126
    %v6503 = vpop.permute.xlu0 %6502
    %6504 = vrot.lane.b32.xlu0 %v6493, 126
    %v6505 = vpop.permute.xlu0 %6504
    %v6510 = vadd.f32 %v6406, %v6499
    %v6511 = vadd.f32 %v6407, %v6501
    %v6512 = vadd.f32 %v6408, %v6503
    %v6513 = vadd.f32 %v6409, %v6505
    %s6514 = sld [smem:[#allocation11 + $0x8a]]
    %v6515 = vstv %s6514
    %v6516 = vmul.f32 %v6515, %v6314
    %v6517 = vmul.f32 %v6515, %v6315
    %v6518 = vmul.f32 %v6515, %v6316
    %v6519 = vmul.f32 %v6515, %v6317
    %6524 = vrot.lane.b32.xlu0 %v6516, 126
    %v6525 = vpop.permute.xlu0 %6524
    %6526 = vrot.lane.b32.xlu0 %v6517, 126
    %v6527 = vpop.permute.xlu0 %6526
    %6528 = vrot.lane.b32.xlu0 %v6518, 126
    %v6529 = vpop.permute.xlu0 %6528
    %6530 = vrot.lane.b32.xlu0 %v6519, 126
    %v6531 = vpop.permute.xlu0 %6530
    %v6536 = vadd.f32 %v6432, %v6525
    %v6537 = vadd.f32 %v6433, %v6527
    %v6538 = vadd.f32 %v6434, %v6529
    %v6539 = vadd.f32 %v6435, %v6531
    %s6540 = sld [smem:[#allocation11 + $0x8b]]
    %v6541 = vstv %s6540
    %v6542 = vmul.f32 %v6541, %v6314
    %v6543 = vmul.f32 %v6541, %v6315
    %v6544 = vmul.f32 %v6541, %v6316
    %v6545 = vmul.f32 %v6541, %v6317
    %6550 = vrot.lane.b32.xlu0 %v6542, 126
    %v6551 = vpop.permute.xlu0 %6550
    %6552 = vrot.lane.b32.xlu0 %v6543, 126
    %v6553 = vpop.permute.xlu0 %6552
    %6554 = vrot.lane.b32.xlu0 %v6544, 126
    %v6555 = vpop.permute.xlu0 %6554
    %6556 = vrot.lane.b32.xlu0 %v6545, 126
    %v6557 = vpop.permute.xlu0 %6556
    %v6562 = vadd.f32 %v6458, %v6551
    %v6563 = vadd.f32 %v6459, %v6553
    %v6564 = vadd.f32 %v6460, %v6555
    %v6565 = vadd.f32 %v6461, %v6557
    %v6566 = vld [vmem:[%s224] sm:$0xff]
    %v6567 = vld [vmem:[%s224 + $0x8] sm:$0xff]
    %v6568 = vld [vmem:[%s224 + $0x60] sm:$0xff]
    %v6569 = vld [vmem:[%s224 + $0x68] sm:$0xff]
    %s6570 = sld [smem:[#allocation11 + $0xc]]
    %v6571 = vstv %s6570
    %v6572 = vmul.f32 %v6571, %v6566
    %v6573 = vmul.f32 %v6571, %v6567
    %v6574 = vmul.f32 %v6571, %v6568
    %v6575 = vmul.f32 %v6571, %v6569
    %v6576 = vadd.f32 %v6484, %v6572
    %v6577 = vadd.f32 %v6485, %v6573
    %v6578 = vadd.f32 %v6486, %v6574
    %v6579 = vadd.f32 %v6487, %v6575
    %s6580 = sld [smem:[#allocation11 + $0xd]]
    %v6581 = vstv %s6580
    %v6582 = vmul.f32 %v6581, %v6566
    %v6583 = vmul.f32 %v6581, %v6567
    %v6584 = vmul.f32 %v6581, %v6568
    %v6585 = vmul.f32 %v6581, %v6569
    %v6586 = vadd.f32 %v6510, %v6582
    %v6587 = vadd.f32 %v6511, %v6583
    %v6588 = vadd.f32 %v6512, %v6584
    %v6589 = vadd.f32 %v6513, %v6585
    %s6590 = sld [smem:[#allocation11 + $0xe]]
    %v6591 = vstv %s6590
    %v6592 = vmul.f32 %v6591, %v6566
    %v6593 = vmul.f32 %v6591, %v6567
    %v6594 = vmul.f32 %v6591, %v6568
    %v6595 = vmul.f32 %v6591, %v6569
    %v6596 = vadd.f32 %v6536, %v6592
    %v6597 = vadd.f32 %v6537, %v6593
    %v6598 = vadd.f32 %v6538, %v6594
    %v6599 = vadd.f32 %v6539, %v6595
    %s6600 = sld [smem:[#allocation11 + $0xf]]
    %v6601 = vstv %s6600
    %v6602 = vmul.f32 %v6601, %v6566
    %v6603 = vmul.f32 %v6601, %v6567
    %v6604 = vmul.f32 %v6601, %v6568
    %v6605 = vmul.f32 %v6601, %v6569
    %v6606 = vadd.f32 %v6562, %v6602
    %v6607 = vadd.f32 %v6563, %v6603
    %v6608 = vadd.f32 %v6564, %v6604
    %v6609 = vadd.f32 %v6565, %v6605
    %s6610 = sld [smem:[#allocation11 + $0x1c]]
    %v6611 = vstv %s6610
    %v6612 = vmul.f32 %v6611, %v6566
    %v6613 = vmul.f32 %v6611, %v6567
    %v6614 = vmul.f32 %v6611, %v6568
    %v6615 = vmul.f32 %v6611, %v6569
    %6620 = vrot.lane.b32.xlu0 %v6612, 127
    %v6621 = vpop.permute.xlu0 %6620
    %6622 = vrot.lane.b32.xlu0 %v6613, 127
    %v6623 = vpop.permute.xlu0 %6622
    %6624 = vrot.lane.b32.xlu0 %v6614, 127
    %v6625 = vpop.permute.xlu0 %6624
    %6626 = vrot.lane.b32.xlu0 %v6615, 127
    %v6627 = vpop.permute.xlu0 %6626
    %v6632 = vadd.f32 %v6576, %v6621
    %v6633 = vadd.f32 %v6577, %v6623
    %v6634 = vadd.f32 %v6578, %v6625
    %v6635 = vadd.f32 %v6579, %v6627
    %s6636 = sld [smem:[#allocation11 + $0x1d]]
    %v6637 = vstv %s6636
    %v6638 = vmul.f32 %v6637, %v6566
    %v6639 = vmul.f32 %v6637, %v6567
    %v6640 = vmul.f32 %v6637, %v6568
    %v6641 = vmul.f32 %v6637, %v6569
    %6646 = vrot.lane.b32.xlu0 %v6638, 127
    %v6647 = vpop.permute.xlu0 %6646
    %6648 = vrot.lane.b32.xlu0 %v6639, 127
    %v6649 = vpop.permute.xlu0 %6648
    %6650 = vrot.lane.b32.xlu0 %v6640, 127
    %v6651 = vpop.permute.xlu0 %6650
    %6652 = vrot.lane.b32.xlu0 %v6641, 127
    %v6653 = vpop.permute.xlu0 %6652
    %v6658 = vadd.f32 %v6586, %v6647
    %v6659 = vadd.f32 %v6587, %v6649
    %v6660 = vadd.f32 %v6588, %v6651
    %v6661 = vadd.f32 %v6589, %v6653
    %s6662 = sld [smem:[#allocation11 + $0x1e]]
    %v6663 = vstv %s6662
    %v6664 = vmul.f32 %v6663, %v6566
    %v6665 = vmul.f32 %v6663, %v6567
    %v6666 = vmul.f32 %v6663, %v6568
    %v6667 = vmul.f32 %v6663, %v6569
    %6672 = vrot.lane.b32.xlu0 %v6664, 127
    %v6673 = vpop.permute.xlu0 %6672
    %6674 = vrot.lane.b32.xlu0 %v6665, 127
    %v6675 = vpop.permute.xlu0 %6674
    %6676 = vrot.lane.b32.xlu0 %v6666, 127
    %v6677 = vpop.permute.xlu0 %6676
    %6678 = vrot.lane.b32.xlu0 %v6667, 127
    %v6679 = vpop.permute.xlu0 %6678
    %v6684 = vadd.f32 %v6596, %v6673
    %v6685 = vadd.f32 %v6597, %v6675
    %v6686 = vadd.f32 %v6598, %v6677
    %v6687 = vadd.f32 %v6599, %v6679
    %s6688 = sld [smem:[#allocation11 + $0x1f]]
    %v6689 = vstv %s6688
    %v6690 = vmul.f32 %v6689, %v6566
    %v6691 = vmul.f32 %v6689, %v6567
    %v6692 = vmul.f32 %v6689, %v6568
    %v6693 = vmul.f32 %v6689, %v6569
    %6698 = vrot.lane.b32.xlu0 %v6690, 127
    %v6699 = vpop.permute.xlu0 %6698
    %6700 = vrot.lane.b32.xlu0 %v6691, 127
    %v6701 = vpop.permute.xlu0 %6700
    %6702 = vrot.lane.b32.xlu0 %v6692, 127
    %v6703 = vpop.permute.xlu0 %6702
    %6704 = vrot.lane.b32.xlu0 %v6693, 127
    %v6705 = vpop.permute.xlu0 %6704
    %v6710 = vadd.f32 %v6606, %v6699
    %v6711 = vadd.f32 %v6607, %v6701
    %v6712 = vadd.f32 %v6608, %v6703
    %v6713 = vadd.f32 %v6609, %v6705
    %s6714 = sld [smem:[#allocation11 + $0x2c]]
    %v6715 = vstv %s6714
    %v6716 = vmul.f32 %v6715, %v6566
    %v6717 = vmul.f32 %v6715, %v6567
    %v6718 = vmul.f32 %v6715, %v6568
    %v6719 = vmul.f32 %v6715, %v6569
    %6724 = vrot.lane.b32.xlu0 %v6716, 126
    %v6725 = vpop.permute.xlu0 %6724
    %6726 = vrot.lane.b32.xlu0 %v6717, 126
    %v6727 = vpop.permute.xlu0 %6726
    %6728 = vrot.lane.b32.xlu0 %v6718, 126
    %v6729 = vpop.permute.xlu0 %6728
    %6730 = vrot.lane.b32.xlu0 %v6719, 126
    %v6731 = vpop.permute.xlu0 %6730
    %v6736 = vadd.f32 %v6632, %v6725
    %v6737 = vadd.f32 %v6633, %v6727
    %v6738 = vadd.f32 %v6634, %v6729
    %v6739 = vadd.f32 %v6635, %v6731
    %s6740 = sld [smem:[#allocation11 + $0x2d]]
    %v6741 = vstv %s6740
    %v6742 = vmul.f32 %v6741, %v6566
    %v6743 = vmul.f32 %v6741, %v6567
    %v6744 = vmul.f32 %v6741, %v6568
    %v6745 = vmul.f32 %v6741, %v6569
    %6750 = vrot.lane.b32.xlu0 %v6742, 126
    %v6751 = vpop.permute.xlu0 %6750
    %6752 = vrot.lane.b32.xlu0 %v6743, 126
    %v6753 = vpop.permute.xlu0 %6752
    %6754 = vrot.lane.b32.xlu0 %v6744, 126
    %v6755 = vpop.permute.xlu0 %6754
    %6756 = vrot.lane.b32.xlu0 %v6745, 126
    %v6757 = vpop.permute.xlu0 %6756
    %v6762 = vadd.f32 %v6658, %v6751
    %v6763 = vadd.f32 %v6659, %v6753
    %v6764 = vadd.f32 %v6660, %v6755
    %v6765 = vadd.f32 %v6661, %v6757
    %s6766 = sld [smem:[#allocation11 + $0x2e]]
    %v6767 = vstv %s6766
    %v6768 = vmul.f32 %v6767, %v6566
    %v6769 = vmul.f32 %v6767, %v6567
    %v6770 = vmul.f32 %v6767, %v6568
    %v6771 = vmul.f32 %v6767, %v6569
    %6776 = vrot.lane.b32.xlu0 %v6768, 126
    %v6777 = vpop.permute.xlu0 %6776
    %6778 = vrot.lane.b32.xlu0 %v6769, 126
    %v6779 = vpop.permute.xlu0 %6778
    %6780 = vrot.lane.b32.xlu0 %v6770, 126
    %v6781 = vpop.permute.xlu0 %6780
    %6782 = vrot.lane.b32.xlu0 %v6771, 126
    %v6783 = vpop.permute.xlu0 %6782
    %v6788 = vadd.f32 %v6684, %v6777
    %v6789 = vadd.f32 %v6685, %v6779
    %v6790 = vadd.f32 %v6686, %v6781
    %v6791 = vadd.f32 %v6687, %v6783
    %s6792 = sld [smem:[#allocation11 + $0x2f]]
    %v6793 = vstv %s6792
    %v6794 = vmul.f32 %v6793, %v6566
    %v6795 = vmul.f32 %v6793, %v6567
    %v6796 = vmul.f32 %v6793, %v6568
    %v6797 = vmul.f32 %v6793, %v6569
    %6802 = vrot.lane.b32.xlu0 %v6794, 126
    %v6803 = vpop.permute.xlu0 %6802
    %6804 = vrot.lane.b32.xlu0 %v6795, 126
    %v6805 = vpop.permute.xlu0 %6804
    %6806 = vrot.lane.b32.xlu0 %v6796, 126
    %v6807 = vpop.permute.xlu0 %6806
    %6808 = vrot.lane.b32.xlu0 %v6797, 126
    %v6809 = vpop.permute.xlu0 %6808
    %v6814 = vadd.f32 %v6710, %v6803
    %v6815 = vadd.f32 %v6711, %v6805
    %v6816 = vadd.f32 %v6712, %v6807
    %v6817 = vadd.f32 %v6713, %v6809
    %v6818 = vld [vmem:[%s224 + $0x1] sm:$0xff]
    %v6819 = vld [vmem:[%s224 + $0x9] sm:$0xff]
    %v6820 = vld [vmem:[%s224 + $0x61] sm:$0xff]
    %v6821 = vld [vmem:[%s224 + $0x69] sm:$0xff]
    %s6822 = sld [smem:[#allocation11 + $0x3c]]
    %v6823 = vstv %s6822
    %v6824 = vmul.f32 %v6823, %v6818
    %v6825 = vmul.f32 %v6823, %v6819
    %v6826 = vmul.f32 %v6823, %v6820
    %v6827 = vmul.f32 %v6823, %v6821
    %v6828 = vadd.f32 %v6736, %v6824
    %v6829 = vadd.f32 %v6737, %v6825
    %v6830 = vadd.f32 %v6738, %v6826
    %v6831 = vadd.f32 %v6739, %v6827
    %s6832 = sld [smem:[#allocation11 + $0x3d]]
    %v6833 = vstv %s6832
    %v6834 = vmul.f32 %v6833, %v6818
    %v6835 = vmul.f32 %v6833, %v6819
    %v6836 = vmul.f32 %v6833, %v6820
    %v6837 = vmul.f32 %v6833, %v6821
    %v6838 = vadd.f32 %v6762, %v6834
    %v6839 = vadd.f32 %v6763, %v6835
    %v6840 = vadd.f32 %v6764, %v6836
    %v6841 = vadd.f32 %v6765, %v6837
    %s6842 = sld [smem:[#allocation11 + $0x3e]]
    %v6843 = vstv %s6842
    %v6844 = vmul.f32 %v6843, %v6818
    %v6845 = vmul.f32 %v6843, %v6819
    %v6846 = vmul.f32 %v6843, %v6820
    %v6847 = vmul.f32 %v6843, %v6821
    %v6848 = vadd.f32 %v6788, %v6844
    %v6849 = vadd.f32 %v6789, %v6845
    %v6850 = vadd.f32 %v6790, %v6846
    %v6851 = vadd.f32 %v6791, %v6847
    %s6852 = sld [smem:[#allocation11 + $0x3f]]
    %v6853 = vstv %s6852
    %v6854 = vmul.f32 %v6853, %v6818
    %v6855 = vmul.f32 %v6853, %v6819
    %v6856 = vmul.f32 %v6853, %v6820
    %v6857 = vmul.f32 %v6853, %v6821
    %v6858 = vadd.f32 %v6814, %v6854
    %v6859 = vadd.f32 %v6815, %v6855
    %v6860 = vadd.f32 %v6816, %v6856
    %v6861 = vadd.f32 %v6817, %v6857
    %s6862 = sld [smem:[#allocation11 + $0x4c]]
    %v6863 = vstv %s6862
    %v6864 = vmul.f32 %v6863, %v6818
    %v6865 = vmul.f32 %v6863, %v6819
    %v6866 = vmul.f32 %v6863, %v6820
    %v6867 = vmul.f32 %v6863, %v6821
    %6872 = vrot.lane.b32.xlu0 %v6864, 127
    %v6873 = vpop.permute.xlu0 %6872
    %6874 = vrot.lane.b32.xlu0 %v6865, 127
    %v6875 = vpop.permute.xlu0 %6874
    %6876 = vrot.lane.b32.xlu0 %v6866, 127
    %v6877 = vpop.permute.xlu0 %6876
    %6878 = vrot.lane.b32.xlu0 %v6867, 127
    %v6879 = vpop.permute.xlu0 %6878
    %v6884 = vadd.f32 %v6828, %v6873
    %v6885 = vadd.f32 %v6829, %v6875
    %v6886 = vadd.f32 %v6830, %v6877
    %v6887 = vadd.f32 %v6831, %v6879
    %s6888 = sld [smem:[#allocation11 + $0x4d]]
    %v6889 = vstv %s6888
    %v6890 = vmul.f32 %v6889, %v6818
    %v6891 = vmul.f32 %v6889, %v6819
    %v6892 = vmul.f32 %v6889, %v6820
    %v6893 = vmul.f32 %v6889, %v6821
    %6898 = vrot.lane.b32.xlu0 %v6890, 127
    %v6899 = vpop.permute.xlu0 %6898
    %6900 = vrot.lane.b32.xlu0 %v6891, 127
    %v6901 = vpop.permute.xlu0 %6900
    %6902 = vrot.lane.b32.xlu0 %v6892, 127
    %v6903 = vpop.permute.xlu0 %6902
    %6904 = vrot.lane.b32.xlu0 %v6893, 127
    %v6905 = vpop.permute.xlu0 %6904
    %v6910 = vadd.f32 %v6838, %v6899
    %v6911 = vadd.f32 %v6839, %v6901
    %v6912 = vadd.f32 %v6840, %v6903
    %v6913 = vadd.f32 %v6841, %v6905
    %s6914 = sld [smem:[#allocation11 + $0x4e]]
    %v6915 = vstv %s6914
    %v6916 = vmul.f32 %v6915, %v6818
    %v6917 = vmul.f32 %v6915, %v6819
    %v6918 = vmul.f32 %v6915, %v6820
    %v6919 = vmul.f32 %v6915, %v6821
    %6924 = vrot.lane.b32.xlu0 %v6916, 127
    %v6925 = vpop.permute.xlu0 %6924
    %6926 = vrot.lane.b32.xlu0 %v6917, 127
    %v6927 = vpop.permute.xlu0 %6926
    %6928 = vrot.lane.b32.xlu0 %v6918, 127
    %v6929 = vpop.permute.xlu0 %6928
    %6930 = vrot.lane.b32.xlu0 %v6919, 127
    %v6931 = vpop.permute.xlu0 %6930
    %v6936 = vadd.f32 %v6848, %v6925
    %v6937 = vadd.f32 %v6849, %v6927
    %v6938 = vadd.f32 %v6850, %v6929
    %v6939 = vadd.f32 %v6851, %v6931
    %s6940 = sld [smem:[#allocation11 + $0x4f]]
    %v6941 = vstv %s6940
    %v6942 = vmul.f32 %v6941, %v6818
    %v6943 = vmul.f32 %v6941, %v6819
    %v6944 = vmul.f32 %v6941, %v6820
    %v6945 = vmul.f32 %v6941, %v6821
    %6950 = vrot.lane.b32.xlu0 %v6942, 127
    %v6951 = vpop.permute.xlu0 %6950
    %6952 = vrot.lane.b32.xlu0 %v6943, 127
    %v6953 = vpop.permute.xlu0 %6952
    %6954 = vrot.lane.b32.xlu0 %v6944, 127
    %v6955 = vpop.permute.xlu0 %6954
    %6956 = vrot.lane.b32.xlu0 %v6945, 127
    %v6957 = vpop.permute.xlu0 %6956
    %v6962 = vadd.f32 %v6858, %v6951
    %v6963 = vadd.f32 %v6859, %v6953
    %v6964 = vadd.f32 %v6860, %v6955
    %v6965 = vadd.f32 %v6861, %v6957
    %s6966 = sld [smem:[#allocation11 + $0x5c]]
    %v6967 = vstv %s6966
    %v6968 = vmul.f32 %v6967, %v6818
    %v6969 = vmul.f32 %v6967, %v6819
    %v6970 = vmul.f32 %v6967, %v6820
    %v6971 = vmul.f32 %v6967, %v6821
    %6976 = vrot.lane.b32.xlu0 %v6968, 126
    %v6977 = vpop.permute.xlu0 %6976
    %6978 = vrot.lane.b32.xlu0 %v6969, 126
    %v6979 = vpop.permute.xlu0 %6978
    %6980 = vrot.lane.b32.xlu0 %v6970, 126
    %v6981 = vpop.permute.xlu0 %6980
    %6982 = vrot.lane.b32.xlu0 %v6971, 126
    %v6983 = vpop.permute.xlu0 %6982
    %v6988 = vadd.f32 %v6884, %v6977
    %v6989 = vadd.f32 %v6885, %v6979
    %v6990 = vadd.f32 %v6886, %v6981
    %v6991 = vadd.f32 %v6887, %v6983
    %s6992 = sld [smem:[#allocation11 + $0x5d]]
    %v6993 = vstv %s6992
    %v6994 = vmul.f32 %v6993, %v6818
    %v6995 = vmul.f32 %v6993, %v6819
    %v6996 = vmul.f32 %v6993, %v6820
    %v6997 = vmul.f32 %v6993, %v6821
    %7002 = vrot.lane.b32.xlu0 %v6994, 126
    %v7003 = vpop.permute.xlu0 %7002
    %7004 = vrot.lane.b32.xlu0 %v6995, 126
    %v7005 = vpop.permute.xlu0 %7004
    %7006 = vrot.lane.b32.xlu0 %v6996, 126
    %v7007 = vpop.permute.xlu0 %7006
    %7008 = vrot.lane.b32.xlu0 %v6997, 126
    %v7009 = vpop.permute.xlu0 %7008
    %v7014 = vadd.f32 %v6910, %v7003
    %v7015 = vadd.f32 %v6911, %v7005
    %v7016 = vadd.f32 %v6912, %v7007
    %v7017 = vadd.f32 %v6913, %v7009
    %s7018 = sld [smem:[#allocation11 + $0x5e]]
    %v7019 = vstv %s7018
    %v7020 = vmul.f32 %v7019, %v6818
    %v7021 = vmul.f32 %v7019, %v6819
    %v7022 = vmul.f32 %v7019, %v6820
    %v7023 = vmul.f32 %v7019, %v6821
    %7028 = vrot.lane.b32.xlu0 %v7020, 126
    %v7029 = vpop.permute.xlu0 %7028
    %7030 = vrot.lane.b32.xlu0 %v7021, 126
    %v7031 = vpop.permute.xlu0 %7030
    %7032 = vrot.lane.b32.xlu0 %v7022, 126
    %v7033 = vpop.permute.xlu0 %7032
    %7034 = vrot.lane.b32.xlu0 %v7023, 126
    %v7035 = vpop.permute.xlu0 %7034
    %v7040 = vadd.f32 %v6936, %v7029
    %v7041 = vadd.f32 %v6937, %v7031
    %v7042 = vadd.f32 %v6938, %v7033
    %v7043 = vadd.f32 %v6939, %v7035
    %s7044 = sld [smem:[#allocation11 + $0x5f]]
    %v7045 = vstv %s7044
    %v7046 = vmul.f32 %v7045, %v6818
    %v7047 = vmul.f32 %v7045, %v6819
    %v7048 = vmul.f32 %v7045, %v6820
    %v7049 = vmul.f32 %v7045, %v6821
    %7054 = vrot.lane.b32.xlu0 %v7046, 126
    %v7055 = vpop.permute.xlu0 %7054
    %7056 = vrot.lane.b32.xlu0 %v7047, 126
    %v7057 = vpop.permute.xlu0 %7056
    %7058 = vrot.lane.b32.xlu0 %v7048, 126
    %v7059 = vpop.permute.xlu0 %7058
    %7060 = vrot.lane.b32.xlu0 %v7049, 126
    %v7061 = vpop.permute.xlu0 %7060
    %v7066 = vadd.f32 %v6962, %v7055
    %v7067 = vadd.f32 %v6963, %v7057
    %v7068 = vadd.f32 %v6964, %v7059
    %v7069 = vadd.f32 %v6965, %v7061
    %v7070 = vld [vmem:[%s224 + $0x2] sm:$0xff]
    %v7071 = vld [vmem:[%s224 + $0xa] sm:$0xff]
    %v7072 = vld [vmem:[%s224 + $0x62] sm:$0xff]
    %v7073 = vld [vmem:[%s224 + $0x6a] sm:$0xff]
    %s7074 = sld [smem:[#allocation11 + $0x6c]]
    %v7075 = vstv %s7074
    %v7076 = vmul.f32 %v7075, %v7070
    %v7077 = vmul.f32 %v7075, %v7071
    %v7078 = vmul.f32 %v7075, %v7072
    %v7079 = vmul.f32 %v7075, %v7073
    %v7080 = vadd.f32 %v6988, %v7076
    %v7081 = vadd.f32 %v6989, %v7077
    %v7082 = vadd.f32 %v6990, %v7078
    %v7083 = vadd.f32 %v6991, %v7079
    %s7084 = sld [smem:[#allocation11 + $0x6d]]
    %v7085 = vstv %s7084
    %v7086 = vmul.f32 %v7085, %v7070
    %v7087 = vmul.f32 %v7085, %v7071
    %v7088 = vmul.f32 %v7085, %v7072
    %v7089 = vmul.f32 %v7085, %v7073
    %v7090 = vadd.f32 %v7014, %v7086
    %v7091 = vadd.f32 %v7015, %v7087
    %v7092 = vadd.f32 %v7016, %v7088
    %v7093 = vadd.f32 %v7017, %v7089
    %s7094 = sld [smem:[#allocation11 + $0x6e]]
    %v7095 = vstv %s7094
    %v7096 = vmul.f32 %v7095, %v7070
    %v7097 = vmul.f32 %v7095, %v7071
    %v7098 = vmul.f32 %v7095, %v7072
    %v7099 = vmul.f32 %v7095, %v7073
    %v7100 = vadd.f32 %v7040, %v7096
    %v7101 = vadd.f32 %v7041, %v7097
    %v7102 = vadd.f32 %v7042, %v7098
    %v7103 = vadd.f32 %v7043, %v7099
    %s7104 = sld [smem:[#allocation11 + $0x6f]]
    %v7105 = vstv %s7104
    %v7106 = vmul.f32 %v7105, %v7070
    %v7107 = vmul.f32 %v7105, %v7071
    %v7108 = vmul.f32 %v7105, %v7072
    %v7109 = vmul.f32 %v7105, %v7073
    %v7110 = vadd.f32 %v7066, %v7106
    %v7111 = vadd.f32 %v7067, %v7107
    %v7112 = vadd.f32 %v7068, %v7108
    %v7113 = vadd.f32 %v7069, %v7109
    %s7114 = sld [smem:[#allocation11 + $0x7c]]
    %v7115 = vstv %s7114
    %v7116 = vmul.f32 %v7115, %v7070
    %v7117 = vmul.f32 %v7115, %v7071
    %v7118 = vmul.f32 %v7115, %v7072
    %v7119 = vmul.f32 %v7115, %v7073
    %7124 = vrot.lane.b32.xlu0 %v7116, 127
    %v7125 = vpop.permute.xlu0 %7124
    %7126 = vrot.lane.b32.xlu0 %v7117, 127
    %v7127 = vpop.permute.xlu0 %7126
    %7128 = vrot.lane.b32.xlu0 %v7118, 127
    %v7129 = vpop.permute.xlu0 %7128
    %7130 = vrot.lane.b32.xlu0 %v7119, 127
    %v7131 = vpop.permute.xlu0 %7130
    %v7136 = vadd.f32 %v7080, %v7125
    %v7137 = vadd.f32 %v7081, %v7127
    %v7138 = vadd.f32 %v7082, %v7129
    %v7139 = vadd.f32 %v7083, %v7131
    %s7140 = sld [smem:[#allocation11 + $0x7d]]
    %v7141 = vstv %s7140
    %v7142 = vmul.f32 %v7141, %v7070
    %v7143 = vmul.f32 %v7141, %v7071
    %v7144 = vmul.f32 %v7141, %v7072
    %v7145 = vmul.f32 %v7141, %v7073
    %7150 = vrot.lane.b32.xlu0 %v7142, 127
    %v7151 = vpop.permute.xlu0 %7150
    %7152 = vrot.lane.b32.xlu0 %v7143, 127
    %v7153 = vpop.permute.xlu0 %7152
    %7154 = vrot.lane.b32.xlu0 %v7144, 127
    %v7155 = vpop.permute.xlu0 %7154
    %7156 = vrot.lane.b32.xlu0 %v7145, 127
    %v7157 = vpop.permute.xlu0 %7156
    %v7162 = vadd.f32 %v7090, %v7151
    %v7163 = vadd.f32 %v7091, %v7153
    %v7164 = vadd.f32 %v7092, %v7155
    %v7165 = vadd.f32 %v7093, %v7157
    %s7166 = sld [smem:[#allocation11 + $0x7e]]
    %v7167 = vstv %s7166
    %v7168 = vmul.f32 %v7167, %v7070
    %v7169 = vmul.f32 %v7167, %v7071
    %v7170 = vmul.f32 %v7167, %v7072
    %v7171 = vmul.f32 %v7167, %v7073
    %7176 = vrot.lane.b32.xlu0 %v7168, 127
    %v7177 = vpop.permute.xlu0 %7176
    %7178 = vrot.lane.b32.xlu0 %v7169, 127
    %v7179 = vpop.permute.xlu0 %7178
    %7180 = vrot.lane.b32.xlu0 %v7170, 127
    %v7181 = vpop.permute.xlu0 %7180
    %7182 = vrot.lane.b32.xlu0 %v7171, 127
    %v7183 = vpop.permute.xlu0 %7182
    %v7188 = vadd.f32 %v7100, %v7177
    %v7189 = vadd.f32 %v7101, %v7179
    %v7190 = vadd.f32 %v7102, %v7181
    %v7191 = vadd.f32 %v7103, %v7183
    %s7192 = sld [smem:[#allocation11 + $0x7f]]
    %v7193 = vstv %s7192
    %v7194 = vmul.f32 %v7193, %v7070
    %v7195 = vmul.f32 %v7193, %v7071
    %v7196 = vmul.f32 %v7193, %v7072
    %v7197 = vmul.f32 %v7193, %v7073
    %7202 = vrot.lane.b32.xlu0 %v7194, 127
    %v7203 = vpop.permute.xlu0 %7202
    %7204 = vrot.lane.b32.xlu0 %v7195, 127
    %v7205 = vpop.permute.xlu0 %7204
    %7206 = vrot.lane.b32.xlu0 %v7196, 127
    %v7207 = vpop.permute.xlu0 %7206
    %7208 = vrot.lane.b32.xlu0 %v7197, 127
    %v7209 = vpop.permute.xlu0 %7208
    %v7214 = vadd.f32 %v7110, %v7203
    %v7215 = vadd.f32 %v7111, %v7205
    %v7216 = vadd.f32 %v7112, %v7207
    %v7217 = vadd.f32 %v7113, %v7209
    %s7218 = sld [smem:[#allocation11 + $0x8c]]
    %v7219 = vstv %s7218
    %v7220 = vmul.f32 %v7219, %v7070
    %v7221 = vmul.f32 %v7219, %v7071
    %v7222 = vmul.f32 %v7219, %v7072
    %v7223 = vmul.f32 %v7219, %v7073
    %7228 = vrot.lane.b32.xlu0 %v7220, 126
    %v7229 = vpop.permute.xlu0 %7228
    %7230 = vrot.lane.b32.xlu0 %v7221, 126
    %v7231 = vpop.permute.xlu0 %7230
    %7232 = vrot.lane.b32.xlu0 %v7222, 126
    %v7233 = vpop.permute.xlu0 %7232
    %7234 = vrot.lane.b32.xlu0 %v7223, 126
    %v7235 = vpop.permute.xlu0 %7234
    %v7240 = vadd.f32 %v7136, %v7229
    %v7241 = vadd.f32 %v7137, %v7231
    %v7242 = vadd.f32 %v7138, %v7233
    %v7243 = vadd.f32 %v7139, %v7235
    %s7244 = sld [smem:[#allocation11 + $0x8d]]
    %v7245 = vstv %s7244
    %v7246 = vmul.f32 %v7245, %v7070
    %v7247 = vmul.f32 %v7245, %v7071
    %v7248 = vmul.f32 %v7245, %v7072
    %v7249 = vmul.f32 %v7245, %v7073
    %7254 = vrot.lane.b32.xlu0 %v7246, 126
    %v7255 = vpop.permute.xlu0 %7254
    %7256 = vrot.lane.b32.xlu0 %v7247, 126
    %v7257 = vpop.permute.xlu0 %7256
    %7258 = vrot.lane.b32.xlu0 %v7248, 126
    %v7259 = vpop.permute.xlu0 %7258
    %7260 = vrot.lane.b32.xlu0 %v7249, 126
    %v7261 = vpop.permute.xlu0 %7260
    %v7266 = vadd.f32 %v7162, %v7255
    %v7267 = vadd.f32 %v7163, %v7257
    %v7268 = vadd.f32 %v7164, %v7259
    %v7269 = vadd.f32 %v7165, %v7261
    %s7270 = sld [smem:[#allocation11 + $0x8e]]
    %v7271 = vstv %s7270
    %v7272 = vmul.f32 %v7271, %v7070
    %v7273 = vmul.f32 %v7271, %v7071
    %v7274 = vmul.f32 %v7271, %v7072
    %v7275 = vmul.f32 %v7271, %v7073
    %7280 = vrot.lane.b32.xlu0 %v7272, 126
    %v7281 = vpop.permute.xlu0 %7280
    %7282 = vrot.lane.b32.xlu0 %v7273, 126
    %v7283 = vpop.permute.xlu0 %7282
    %7284 = vrot.lane.b32.xlu0 %v7274, 126
    %v7285 = vpop.permute.xlu0 %7284
    %7286 = vrot.lane.b32.xlu0 %v7275, 126
    %v7287 = vpop.permute.xlu0 %7286
    %v7292 = vadd.f32 %v7188, %v7281
    %v7293 = vadd.f32 %v7189, %v7283
    %v7294 = vadd.f32 %v7190, %v7285
    %v7295 = vadd.f32 %v7191, %v7287
    %s7296 = sld [smem:[#allocation11 + $0x8f]]
    %v7297 = vstv %s7296
    %v7298 = vmul.f32 %v7297, %v7070
    %v7299 = vmul.f32 %v7297, %v7071
    %v7300 = vmul.f32 %v7297, %v7072
    %v7301 = vmul.f32 %v7297, %v7073
    %7306 = vrot.lane.b32.xlu0 %v7298, 126
    %v7307 = vpop.permute.xlu0 %7306
    %7308 = vrot.lane.b32.xlu0 %v7299, 126
    %v7309 = vpop.permute.xlu0 %7308
    %7310 = vrot.lane.b32.xlu0 %v7300, 126
    %v7311 = vpop.permute.xlu0 %7310
    %7312 = vrot.lane.b32.xlu0 %v7301, 126
    %v7313 = vpop.permute.xlu0 %7312
    %v7318 = vadd.f32 %v7214, %v7307
    %v7319 = vadd.f32 %v7215, %v7309
    %v7320 = vadd.f32 %v7216, %v7311
    %v7321 = vadd.f32 %v7217, %v7313
    %v7322 = vsel %vm3549, %v7240, 0.0
    %7323 = vadd.xlane.f32.xlu0 %v7322
    %v7324 = vpop.xlane.xlu0 %7323
    %v7325 = vsel %vm3549, %v7241, 0.0
    %7326 = vadd.xlane.f32.xlu0 %v7325
    %v7327 = vpop.xlane.xlu0 %7326
    %v7328 = vsel %vm3549, %v7242, 0.0
    %7329 = vadd.xlane.f32.xlu0 %v7328
    %v7330 = vpop.xlane.xlu0 %7329
    %v7331 = vsel %vm3549, %v7243, 0.0
    %7332 = vadd.xlane.f32.xlu0 %v7331
    %v7333 = vpop.xlane.xlu0 %7332
    %v7334 = vadd.f32 %v7324, %v7327
    %v7335 = vrot.slane %v7334, 4
    %v7336 = vadd.f32 %v7334, %v7335
    %v7337 = vrot.slane %v7336, 2
    %v7338 = vadd.f32 %v7336, %v7337
    %v7339 = vrot.slane %v7338, 1
    %v7340 = vadd.f32 %v7338, %v7339
    %v7341 = vadd.f32 %v7330, %v7333
    %v7342 = vrot.slane %v7341, 4
    %v7343 = vadd.f32 %v7341, %v7342
    %v7344 = vrot.slane %v7343, 2
    %v7345 = vadd.f32 %v7343, %v7344
    %v7346 = vrot.slane %v7345, 1
    %v7347 = vadd.f32 %v7345, %v7346
    %v7348 = vadd.f32 %v7340, %v7347
    %v7349 = vmul.f32 %v7348, 0.001953125
    %v7350 = vsub.f32 %v7240, %v7349
    %v7351 = vsub.f32 %v7241, %v7349
    %v7352 = vsub.f32 %v7242, %v7349
    %v7353 = vsub.f32 %v7243, %v7349
    %v7354 = vmul.f32 %v7350, %v7350
    %v7355 = vmul.f32 %v7351, %v7351
    %v7356 = vmul.f32 %v7352, %v7352
    %v7357 = vmul.f32 %v7353, %v7353
    %v7358 = vsel %vm3549, %v7354, 0.0
    %7359 = vadd.xlane.f32.xlu0 %v7358
    %v7360 = vpop.xlane.xlu0 %7359
    %v7361 = vsel %vm3549, %v7355, 0.0
    %7362 = vadd.xlane.f32.xlu0 %v7361
    %v7363 = vpop.xlane.xlu0 %7362
    %v7364 = vsel %vm3549, %v7356, 0.0
    %7365 = vadd.xlane.f32.xlu0 %v7364
    %v7366 = vpop.xlane.xlu0 %7365
    %v7367 = vsel %vm3549, %v7357, 0.0
    %7368 = vadd.xlane.f32.xlu0 %v7367
    %v7369 = vpop.xlane.xlu0 %7368
    %v7370 = vadd.f32 %v7360, %v7363
    %v7371 = vrot.slane %v7370, 4
    %v7372 = vadd.f32 %v7370, %v7371
    %v7373 = vrot.slane %v7372, 2
    %v7374 = vadd.f32 %v7372, %v7373
    %v7375 = vrot.slane %v7374, 1
    %v7376 = vadd.f32 %v7374, %v7375
    %v7377 = vadd.f32 %v7366, %v7369
    %v7378 = vrot.slane %v7377, 4
    %v7379 = vadd.f32 %v7377, %v7378
    %v7380 = vrot.slane %v7379, 2
    %v7381 = vadd.f32 %v7379, %v7380
    %v7382 = vrot.slane %v7381, 1
    %v7383 = vadd.f32 %v7381, %v7382
    %v7384 = vadd.f32 %v7376, %v7383
    %s7385 = sld [smem:[#allocation13]]
    %v7386 = vmul.f32 %v7384, 0.001953125
    %v7387 = vadd.f32 %v7386, 1e-05
    %v7388 = vrsqrt.pop %v7387
    %v7389 = vstv %s7385
    %v7390 = vmul.f32 %v7389, %v7388
    %v7391 = vmul.f32 %v7350, %v7390
    %v7392 = vmul.f32 %v7351, %v7390
    %v7393 = vmul.f32 %v7352, %v7390
    %v7394 = vmul.f32 %v7353, %v7390
    %s7395 = sld [smem:[#allocation14]]
    %v7396 = vstv %s7395
    %v7397 = vadd.f32 %v7391, %v7396
    %v7398 = vadd.f32 %v7392, %v7396
    %v7399 = vadd.f32 %v7393, %v7396
    %v7400 = vadd.f32 %v7394, %v7396
    %v7401 = vsel %vm3549, %v7266, 0.0
    %7402 = vadd.xlane.f32.xlu0 %v7401
    %v7403 = vpop.xlane.xlu0 %7402
    %v7404 = vsel %vm3549, %v7267, 0.0
    %7405 = vadd.xlane.f32.xlu0 %v7404
    %v7406 = vpop.xlane.xlu0 %7405
    %v7407 = vsel %vm3549, %v7268, 0.0
    %7408 = vadd.xlane.f32.xlu0 %v7407
    %v7409 = vpop.xlane.xlu0 %7408
    %v7410 = vsel %vm3549, %v7269, 0.0
    %7411 = vadd.xlane.f32.xlu0 %v7410
    %v7412 = vpop.xlane.xlu0 %7411
    %v7413 = vadd.f32 %v7403, %v7406
    %v7414 = vrot.slane %v7413, 4
    %v7415 = vadd.f32 %v7413, %v7414
    %v7416 = vrot.slane %v7415, 2
    %v7417 = vadd.f32 %v7415, %v7416
    %v7418 = vrot.slane %v7417, 1
    %v7419 = vadd.f32 %v7417, %v7418
    %v7420 = vadd.f32 %v7409, %v7412
    %v7421 = vrot.slane %v7420, 4
    %v7422 = vadd.f32 %v7420, %v7421
    %v7423 = vrot.slane %v7422, 2
    %v7424 = vadd.f32 %v7422, %v7423
    %v7425 = vrot.slane %v7424, 1
    %v7426 = vadd.f32 %v7424, %v7425
    %v7427 = vadd.f32 %v7419, %v7426
    %v7428 = vmul.f32 %v7427, 0.001953125
    %v7429 = vsub.f32 %v7266, %v7428
    %v7430 = vsub.f32 %v7267, %v7428
    %v7431 = vsub.f32 %v7268, %v7428
    %v7432 = vsub.f32 %v7269, %v7428
    %v7433 = vmul.f32 %v7429, %v7429
    %v7434 = vmul.f32 %v7430, %v7430
    %v7435 = vmul.f32 %v7431, %v7431
    %v7436 = vmul.f32 %v7432, %v7432
    %v7437 = vsel %vm3549, %v7433, 0.0
    %7438 = vadd.xlane.f32.xlu0 %v7437
    %v7439 = vpop.xlane.xlu0 %7438
    %v7440 = vsel %vm3549, %v7434, 0.0
    %7441 = vadd.xlane.f32.xlu0 %v7440
    %v7442 = vpop.xlane.xlu0 %7441
    %v7443 = vsel %vm3549, %v7435, 0.0
    %7444 = vadd.xlane.f32.xlu0 %v7443
    %v7445 = vpop.xlane.xlu0 %7444
    %v7446 = vsel %vm3549, %v7436, 0.0
    %7447 = vadd.xlane.f32.xlu0 %v7446
    %v7448 = vpop.xlane.xlu0 %7447
    %v7449 = vadd.f32 %v7439, %v7442
    %v7450 = vrot.slane %v7449, 4
    %v7451 = vadd.f32 %v7449, %v7450
    %v7452 = vrot.slane %v7451, 2
    %v7453 = vadd.f32 %v7451, %v7452
    %v7454 = vrot.slane %v7453, 1
    %v7455 = vadd.f32 %v7453, %v7454
    %v7456 = vadd.f32 %v7445, %v7448
    %v7457 = vrot.slane %v7456, 4
    %v7458 = vadd.f32 %v7456, %v7457
    %v7459 = vrot.slane %v7458, 2
    %v7460 = vadd.f32 %v7458, %v7459
    %v7461 = vrot.slane %v7460, 1
    %v7462 = vadd.f32 %v7460, %v7461
    %v7463 = vadd.f32 %v7455, %v7462
    %s7464 = sld [smem:[#allocation13 + $0x1]]
    %v7465 = vmul.f32 %v7463, 0.001953125
    %v7466 = vadd.f32 %v7465, 1e-05
    %v7467 = vrsqrt.pop %v7466
    %v7468 = vstv %s7464
    %v7469 = vmul.f32 %v7468, %v7467
    %v7470 = vmul.f32 %v7429, %v7469
    %v7471 = vmul.f32 %v7430, %v7469
    %v7472 = vmul.f32 %v7431, %v7469
    %v7473 = vmul.f32 %v7432, %v7469
    %s7474 = sld [smem:[#allocation14 + $0x1]]
    %v7475 = vstv %s7474
    %v7476 = vadd.f32 %v7470, %v7475
    %v7477 = vadd.f32 %v7471, %v7475
    %v7478 = vadd.f32 %v7472, %v7475
    %v7479 = vadd.f32 %v7473, %v7475
    %v7480 = vsel %vm3549, %v7292, 0.0
    %7481 = vadd.xlane.f32.xlu0 %v7480
    %v7482 = vpop.xlane.xlu0 %7481
    %v7483 = vsel %vm3549, %v7293, 0.0
    %7484 = vadd.xlane.f32.xlu0 %v7483
    %v7485 = vpop.xlane.xlu0 %7484
    %v7486 = vsel %vm3549, %v7294, 0.0
    %7487 = vadd.xlane.f32.xlu0 %v7486
    %v7488 = vpop.xlane.xlu0 %7487
    %v7489 = vsel %vm3549, %v7295, 0.0
    %7490 = vadd.xlane.f32.xlu0 %v7489
    %v7491 = vpop.xlane.xlu0 %7490
    %v7492 = vadd.f32 %v7482, %v7485
    %v7493 = vrot.slane %v7492, 4
    %v7494 = vadd.f32 %v7492, %v7493
    %v7495 = vrot.slane %v7494, 2
    %v7496 = vadd.f32 %v7494, %v7495
    %v7497 = vrot.slane %v7496, 1
    %v7498 = vadd.f32 %v7496, %v7497
    %v7499 = vadd.f32 %v7488, %v7491
    %v7500 = vrot.slane %v7499, 4
    %v7501 = vadd.f32 %v7499, %v7500
    %v7502 = vrot.slane %v7501, 2
    %v7503 = vadd.f32 %v7501, %v7502
    %v7504 = vrot.slane %v7503, 1
    %v7505 = vadd.f32 %v7503, %v7504
    %v7506 = vadd.f32 %v7498, %v7505
    %v7507 = vmul.f32 %v7506, 0.001953125
    %v7508 = vsub.f32 %v7292, %v7507
    %v7509 = vsub.f32 %v7293, %v7507
    %v7510 = vsub.f32 %v7294, %v7507
    %v7511 = vsub.f32 %v7295, %v7507
    %v7512 = vmul.f32 %v7508, %v7508
    %v7513 = vmul.f32 %v7509, %v7509
    %v7514 = vmul.f32 %v7510, %v7510
    %v7515 = vmul.f32 %v7511, %v7511
    %v7516 = vsel %vm3549, %v7512, 0.0
    %7517 = vadd.xlane.f32.xlu0 %v7516
    %v7518 = vpop.xlane.xlu0 %7517
    %v7519 = vsel %vm3549, %v7513, 0.0
    %7520 = vadd.xlane.f32.xlu0 %v7519
    %v7521 = vpop.xlane.xlu0 %7520
    %v7522 = vsel %vm3549, %v7514, 0.0
    %7523 = vadd.xlane.f32.xlu0 %v7522
    %v7524 = vpop.xlane.xlu0 %7523
    %v7525 = vsel %vm3549, %v7515, 0.0
    %7526 = vadd.xlane.f32.xlu0 %v7525
    %v7527 = vpop.xlane.xlu0 %7526
    %v7528 = vadd.f32 %v7518, %v7521
    %v7529 = vrot.slane %v7528, 4
    %v7530 = vadd.f32 %v7528, %v7529
    %v7531 = vrot.slane %v7530, 2
    %v7532 = vadd.f32 %v7530, %v7531
    %v7533 = vrot.slane %v7532, 1
    %v7534 = vadd.f32 %v7532, %v7533
    %v7535 = vadd.f32 %v7524, %v7527
    %v7536 = vrot.slane %v7535, 4
    %v7537 = vadd.f32 %v7535, %v7536
    %v7538 = vrot.slane %v7537, 2
    %v7539 = vadd.f32 %v7537, %v7538
    %v7540 = vrot.slane %v7539, 1
    %v7541 = vadd.f32 %v7539, %v7540
    %v7542 = vadd.f32 %v7534, %v7541
    %s7543 = sld [smem:[#allocation13 + $0x2]]
    %v7544 = vmul.f32 %v7542, 0.001953125
    %v7545 = vadd.f32 %v7544, 1e-05
    %v7546 = vrsqrt.pop %v7545
    %v7547 = vstv %s7543
    %v7548 = vmul.f32 %v7547, %v7546
    %v7549 = vmul.f32 %v7508, %v7548
    %v7550 = vmul.f32 %v7509, %v7548
    %v7551 = vmul.f32 %v7510, %v7548
    %v7552 = vmul.f32 %v7511, %v7548
    %s7553 = sld [smem:[#allocation14 + $0x2]]
    %v7554 = vstv %s7553
    %v7555 = vadd.f32 %v7549, %v7554
    %v7556 = vadd.f32 %v7550, %v7554
    %v7557 = vadd.f32 %v7551, %v7554
    %v7558 = vadd.f32 %v7552, %v7554
    %v7559 = vsel %vm3549, %v7318, 0.0
    %7560 = vadd.xlane.f32.xlu0 %v7559
    %v7561 = vpop.xlane.xlu0 %7560
    %v7562 = vsel %vm3549, %v7319, 0.0
    %7563 = vadd.xlane.f32.xlu0 %v7562
    %v7564 = vpop.xlane.xlu0 %7563
    %v7565 = vsel %vm3549, %v7320, 0.0
    %7566 = vadd.xlane.f32.xlu0 %v7565
    %v7567 = vpop.xlane.xlu0 %7566
    %v7568 = vsel %vm3549, %v7321, 0.0
    %7569 = vadd.xlane.f32.xlu0 %v7568
    %v7570 = vpop.xlane.xlu0 %7569
    %v7571 = vadd.f32 %v7561, %v7564
    %v7572 = vrot.slane %v7571, 4
    %v7573 = vadd.f32 %v7571, %v7572
    %v7574 = vrot.slane %v7573, 2
    %v7575 = vadd.f32 %v7573, %v7574
    %v7576 = vrot.slane %v7575, 1
    %v7577 = vadd.f32 %v7575, %v7576
    %v7578 = vadd.f32 %v7567, %v7570
    %v7579 = vrot.slane %v7578, 4
    %v7580 = vadd.f32 %v7578, %v7579
    %v7581 = vrot.slane %v7580, 2
    %v7582 = vadd.f32 %v7580, %v7581
    %v7583 = vrot.slane %v7582, 1
    %v7584 = vadd.f32 %v7582, %v7583
    %v7585 = vadd.f32 %v7577, %v7584
    %v7586 = vmul.f32 %v7585, 0.001953125
    %v7587 = vsub.f32 %v7318, %v7586
    %v7588 = vsub.f32 %v7319, %v7586
    %v7589 = vsub.f32 %v7320, %v7586
    %v7590 = vsub.f32 %v7321, %v7586
    %v7591 = vmul.f32 %v7587, %v7587
    %v7592 = vmul.f32 %v7588, %v7588
    %v7593 = vmul.f32 %v7589, %v7589
    %v7594 = vmul.f32 %v7590, %v7590
    %v7595 = vsel %vm3549, %v7591, 0.0
    %7596 = vadd.xlane.f32.xlu0 %v7595
    %v7597 = vpop.xlane.xlu0 %7596
    %v7598 = vsel %vm3549, %v7592, 0.0
    %7599 = vadd.xlane.f32.xlu0 %v7598
    %v7600 = vpop.xlane.xlu0 %7599
    %v7601 = vsel %vm3549, %v7593, 0.0
    %7602 = vadd.xlane.f32.xlu0 %v7601
    %v7603 = vpop.xlane.xlu0 %7602
    %v7604 = vsel %vm3549, %v7594, 0.0
    %7605 = vadd.xlane.f32.xlu0 %v7604
    %v7606 = vpop.xlane.xlu0 %7605
    %v7607 = vadd.f32 %v7597, %v7600
    %v7608 = vrot.slane %v7607, 4
    %v7609 = vadd.f32 %v7607, %v7608
    %v7610 = vrot.slane %v7609, 2
    %v7611 = vadd.f32 %v7609, %v7610
    %v7612 = vrot.slane %v7611, 1
    %v7613 = vadd.f32 %v7611, %v7612
    %v7614 = vadd.f32 %v7603, %v7606
    %v7615 = vrot.slane %v7614, 4
    %v7616 = vadd.f32 %v7614, %v7615
    %v7617 = vrot.slane %v7616, 2
    %v7618 = vadd.f32 %v7616, %v7617
    %v7619 = vrot.slane %v7618, 1
    %v7620 = vadd.f32 %v7618, %v7619
    %v7621 = vadd.f32 %v7613, %v7620
    %s7622 = sld [smem:[#allocation13 + $0x3]]
    %v7623 = vmul.f32 %v7621, 0.001953125
    %v7624 = vadd.f32 %v7623, 1e-05
    %v7625 = vrsqrt.pop %v7624
    %v7626 = vstv %s7622
    %v7627 = vmul.f32 %v7626, %v7625
    %v7628 = vmul.f32 %v7587, %v7627
    %v7629 = vmul.f32 %v7588, %v7627
    %v7630 = vmul.f32 %v7589, %v7627
    %v7631 = vmul.f32 %v7590, %v7627
    %s7632 = sld [smem:[#allocation14 + $0x3]]
    %v7633 = vstv %s7632
    %v7634 = vadd.f32 %v7628, %v7633
    %v7635 = vadd.f32 %v7629, %v7633
    %v7636 = vadd.f32 %v7630, %v7633
    %v7637 = vadd.f32 %v7631, %v7633
    %v7638 = vadd.f32 %v7397, %v112
    %v7639 = vadd.f32 %v7398, %v113
    %v7640 = vadd.f32 %v7399, %v114
    %v7641 = vadd.f32 %v7400, %v115
    %7642 = vst.msk [vmem:[#allocation16] sm:$0xff] %vm3549, %v7638
    %7643 = vst.msk [vmem:[#allocation16 + $0x8] sm:$0xff] %vm3549, %v7639
    %7644 = vst.msk [vmem:[#allocation16 + $0x40] sm:$0xff] %vm3549, %v7640
    %7645 = vst.msk [vmem:[#allocation16 + $0x48] sm:$0xff] %vm3549, %v7641
    %v7646 = vadd.f32 %v7476, %v117
    %v7647 = vadd.f32 %v7477, %v118
    %v7648 = vadd.f32 %v7478, %v119
    %v7649 = vadd.f32 %v7479, %v120
    %s7650 = scalar_lea.vmem [#allocation16], 16
    %7651 = vst.msk [vmem:[%s7650] sm:$0xff] %vm3549, %v7646
    %7652 = vst.msk [vmem:[%s7650 + $0x8] sm:$0xff] %vm3549, %v7647
    %7653 = vst.msk [vmem:[%s7650 + $0x40] sm:$0xff] %vm3549, %v7648
    %7654 = vst.msk [vmem:[%s7650 + $0x48] sm:$0xff] %vm3549, %v7649
    %v7655 = vadd.f32 %v7555, %v122
    %v7656 = vadd.f32 %v7556, %v123
    %v7657 = vadd.f32 %v7557, %v124
    %v7658 = vadd.f32 %v7558, %v125
    %s7659 = scalar_lea.vmem [#allocation16], 32
    %7660 = vst.msk [vmem:[%s7659] sm:$0xff] %vm3549, %v7655
    %7661 = vst.msk [vmem:[%s7659 + $0x8] sm:$0xff] %vm3549, %v7656
    %7662 = vst.msk [vmem:[%s7659 + $0x40] sm:$0xff] %vm3549, %v7657
    %7663 = vst.msk [vmem:[%s7659 + $0x48] sm:$0xff] %vm3549, %v7658
    %v7664 = vadd.f32 %v7634, %v127
    %v7665 = vadd.f32 %v7635, %v128
    %v7666 = vadd.f32 %v7636, %v129
    %v7667 = vadd.f32 %v7637, %v130
    %s7668 = scalar_lea.vmem [#allocation16], 48
    %7669 = vst.msk [vmem:[%s7668] sm:$0xff] %vm3549, %v7664
    %7670 = vst.msk [vmem:[%s7668 + $0x8] sm:$0xff] %vm3549, %v7665
    %7671 = vst.msk [vmem:[%s7668 + $0x40] sm:$0xff] %vm3549, %v7666
    %7672 = vst.msk [vmem:[%s7668 + $0x48] sm:$0xff] %vm3549, %v7667
    // Predicated region
    $region58: #{resblock_forward.1} parent=1 // pred_check
      _
    $region59: #{resblock_forward.1} parent=1 // pred_check_branch
      %7674 = sbr.rel (0) target = $region61
    $region60: #{resblock_forward.1} parent=1 // pred_region
      %s7676 = ssub.s32 2048, 2048
      %7677 = vsyncadd [#allocation5], %s7676
      %s7678 = sshll.u32 [#allocation16], 4
      %s7679 = int_to_ptr.vmem [resolvable:$true] %s7678
      %7684 = dma.vmem_to_hbm [thread:$0]  %s7679, 2048, %s7, [#allocation5], 128, 128, 8
    $region61: #{resblock_forward.1} parent=1 // pred_fallthru
      _
    // Predicated region
    $region62: #{resblock_forward.1} parent=1 // pred_check
      _
    $region63: #{resblock_forward.1} parent=1 // pred_check_branch
      %7686 = sbr.rel (0) target = $region65
    $region64: #{resblock_forward.1} parent=1 // pred_region
      %7687 = dma.done [#allocation5], 2048
    $region65: #{resblock_forward.1} parent=1 // pred_fallthru
      _
    %7688 = vsyncpa [#allocation4], 1
    %7689 = vsyncpa [#allocation5], 1
    %7690 = vsyncpa [#allocation6], 1
    %7691 = vsyncpa [#allocation9], 1
    %7692 = vsyncpa [#allocation12], 1
    %7693 = vsyncpa [#allocation15], 1

</llo_original>
